<compile_context>
chip_gen: v5e
topology: v5e:2x2
jax: 0.10.0
libtpu: 0.0.40
codegen_flags: <defaults>
</compile_context>

<pallas_src>
import math
from functools import partial

import jax
import jax.numpy as jnp
from jax.experimental import pallas as pl
from jax.experimental.pallas import tpu as pltpu

LN_EPS = 1e-6
_SQRT_2_OVER_PI = 0.7978845608028654


def _gelu_tanh(x):
    # TODO(synk): PyTorch nn.GELU() uses the exact erf form; the tanh approximation is used here
    # (erf lowering inside Mosaic is not guaranteed); reference uses the same formula.
    return 0.5 * x * (1.0 + jnp.tanh(_SQRT_2_OVER_PI * (x + 0.044715 * x * x * x)))


# ------------------------------ Pallas kernel ------------------------------

def _aggregate_kernel(ht_ref, th_ref, mask_ref, wht_ref, wth_ref, wfc_ref,
                      pdm_ref, pdr_ref, out_ref):
    ht = ht_ref[0]                       # (TP, dr)      f32 or bf16
    th = th_ref[0]                       # (TP, K, dm)   f32 or bf16
    msk = mask_ref[0]                    # (TP, K, 1)    f32, 1.0 == masked
    tp, k, dm = th.shape

    b_c   = pdm_ref[0:1, :]              # (1, dm)
    v_row = pdm_ref[1:2, :]              # (1, dm)
    b_fc  = pdr_ref[0:1, :]              # (1, dr)
    gamma = pdr_ref[1:2, :]
    beta  = pdr_ref[2:3, :]

    # attn_combine split as [W_ht | W_th]; per-pair part computed once (hoisted out of candidates).
    proj_ht = jnp.dot(ht, wht_ref[...],
                      preferred_element_type=jnp.float32) + b_c                  # (TP, dm)
    proj_th = jnp.dot(th.reshape(tp * k, dm), wth_ref[...],
                      preferred_element_type=jnp.float32)                        # (TP*K, dm)
    pre = proj_th.reshape(tp, k, dm) + proj_ht[:, None, :]                       # (TP, K, dm)

    g = _gelu_tanh(pre)                                                          # f32
    energy = jnp.sum(g * v_row, axis=-1, keepdims=True)                          # (TP, K, 1)
    energy = jnp.where(msk > 0.5, -10000.0, energy)                              # masked_fill

    e_max = jnp.max(energy, axis=1, keepdims=True)                               # softmax over K
    e = jnp.exp(energy - e_max)
    attn = e / jnp.sum(e, axis=1, keepdims=True)                                 # (TP, K, 1) f32

    agg = jnp.sum(th.astype(jnp.float32) * attn, axis=1)                         # (TP, dm)

    w_fc = wfc_ref[...]
    out = jnp.dot(agg.astype(w_fc.dtype), w_fc,
                  preferred_element_type=jnp.float32) + b_fc                     # (TP, dr)
    out = out + ht.astype(jnp.float32)   # residual (dropout is identity in eval)

    # LayerNorm over rel_dim, eps=1e-6 (biased variance, like PyTorch)
    mu = jnp.mean(out, axis=-1, keepdims=True)
    var = jnp.mean((out - mu) ** 2, axis=-1, keepdims=True)
    out = (out - mu) * jax.lax.rsqrt(var + LN_EPS)
    out_ref[0] = (out * gamma + beta).astype(out_ref.dtype)


# ------------------------------ wrapper helpers ------------------------------

def _half_slabs(factor, factor_type):
    # Mirrors the torch .permute calls in update_single.
    if factor_type == 'sib':
        ha = factor
        hb = jnp.transpose(factor, (0, 1, 3, 2, 4))
    elif factor_type == 'cop':
        ha = jnp.transpose(factor, (0, 1, 3, 2, 4))
        hb = jnp.transpose(factor, (0, 2, 3, 1, 4))
    elif factor_type == 'gp':
        ha = factor
        hb = jnp.transpose(factor, (0, 2, 3, 1, 4))
    else:
        raise ValueError('factor_type is not correct')
    return ha, hb


def _ent_mask3d(n_ents, ne):
    # mask3d[b,i,j,k] = (i<n_b) & (j<n_b) & (k<n_b)
    n = jnp.asarray(n_ents).reshape(-1, 1)
    valid = jnp.arange(ne)[None, :] < n                       # (bs, ne)
    return (valid[:, :, None, None] & valid[:, None, :, None] & valid[:, None, None, :])


def _build_attn_mask(n_ents, ne, factor_type):
    # Mirrors the masking branch of update_single (True == masked).
    m3 = _ent_mask3d(n_ents, ne)                              # (bs, ne, ne, ne)
    eye = jnp.eye(ne, dtype=bool)
    if factor_type == 'sib':
        m1 = eye[None, None, :, :] | ~m3                      # j == k or out of range
    elif factor_type == 'cop':
        m1 = eye[None, :, None, :] | ~m3                      # i == k or out of range
    elif factor_type == 'gp':
        m1 = ~m3
    else:
        raise ValueError('factor_type is not correct')
    return jnp.concatenate([m1, m1], axis=-1)                 # (bs, ne, ne, 2*ne)


def _pick_pair_tile(P, target):
    cands = [d for d in range(1, P + 1) if P % d == 0 and (d % 8 == 0 or d == P)]
    fit = [d for d in cands if d <= target]
    return max(fit) if fit else min(cands)


def _forward(ht, factor, n_ents, params, *, factor_type='sib',
             pairs_per_step=128, mxu_bf16=False, vmem_limit_bytes=None):
    bs, ne, _, dr = ht.shape
    dm = factor.shape[-1]
    P = ne * ne

    ha, hb = _half_slabs(factor, factor_type)
    total_h = jnp.concatenate([ha, hb], axis=-2)              # (bs, ne, ne, 2ne, dm)
    K = total_h.shape[-2]
    th = total_h.reshape(bs, P, K, dm)
    mask = _build_attn_mask(n_ents, ne, factor_type)
    mask = mask.reshape(bs, P, K, 1).astype(jnp.float32)
    ht2 = ht.reshape(bs, P, dr)

    w_ht, w_th, w_fc = params['w_ht'], params['w_th'], params['w_fc']
    if mxu_bf16:
        ht2, th = ht2.astype(jnp.bfloat16), th.astype(jnp.bfloat16)
        w_ht, w_th, w_fc = (w.astype(jnp.bfloat16) for w in (w_ht, w_th, w_fc))

    pdm = jnp.stack([params['b_c'], params['v']], axis=0)             # (2, dm)
    pdr = jnp.stack([params['b_fc'], params['gamma'], params['beta']], axis=0)  # (3, dr)

    TP = _pick_pair_tile(P, pairs_per_step)
    grid = (bs, P // TP)

    def fixed(shape):
        return pl.BlockSpec(shape, lambda b, t: tuple(0 for _ in shape))

    grid_spec = pltpu.PrefetchScalarGridSpec(
        num_scalar_prefetch=0,
        grid=grid,
        in_specs=[
            pl.BlockSpec((1, TP, dr), lambda b, t: (b, t, 0)),          # ht (pairs)
            pl.BlockSpec((1, TP, K, dm), lambda b, t: (b, t, 0, 0)),    # total_h (candidates)
            pl.BlockSpec((1, TP, K, 1), lambda b, t: (b, t, 0, 0)),     # attn mask
            fixed((dr, dm)),                                            # W_ht
            fixed((dm, dm)),                                            # W_th
            fixed((dm, dr)),                                            # W_fc
            fixed((2, dm)),                                             # [b_c ; v]
            fixed((3, dr)),                                             # [b_fc ; gamma ; beta]
        ],
        out_specs=pl.BlockSpec((1, TP, dr), lambda b, t: (b, t, 0)),
    )

    cp = dict(dimension_semantics=("parallel", "parallel"))
    if vmem_limit_bytes is not None:
        cp["vmem_limit_bytes"] = vmem_limit_bytes

    out = pl.pallas_call(
        _aggregate_kernel,
        out_shape=jax.ShapeDtypeStruct((bs, P, dr), jnp.float32),
        grid_spec=grid_spec,
        compiler_params=pltpu.CompilerParams(**cp),
    )(ht2, th, mask, w_ht, w_th, w_fc, pdm, pdr)
    return out.reshape(bs, ne, ne, dr)


hypergnn_binary_aggregate = jax.jit(
    _forward, static_argnames=("factor_type", "pairs_per_step", "mxu_bf16", "vmem_limit_bytes"))

# TODO(synk): factor_types 'sibcop'/'sibgp'/'copgp'/'sibcopgp' (update_double/update_triple) are not
# wired up; the same kernel applies with K = 4*ne / 6*ne via wrapper-side concatenation of slabs+masks.
# TODO(synk): nn.Dropout has no inference-time effect; training-mode dropout is not implemented.


# ------------------------------ pure-JAX reference (mirrors PyTorch update_single) ------------------------------

@partial(jax.jit, static_argnames="factor_type")
def reference(ht, factor, n_ents, params, factor_type='sib'):
    bs, ne, _, dr = ht.shape
    ha, hb = _half_slabs(factor, factor_type)
    total_h = jnp.concatenate([ha, hb], axis=-2)              # (bs, ne, ne, 2ne, dm)
    K = total_h.shape[-2]
    ht_rep = jnp.broadcast_to(ht[:, :, :, None, :], (bs, ne, ne, K, dr))
    comb = jnp.concatenate([ht_rep, total_h], axis=-1)        # (..., dr+dm)
    w_comb = jnp.concatenate([params['w_ht'], params['w_th']], axis=0)
    energy = _gelu_tanh(jnp.dot(comb, w_comb, precision='highest') + params['b_c'])
    energy = jnp.sum(energy * params['v'], axis=-1)           # (bs, ne, ne, K)
    mask = _build_attn_mask(n_ents, ne, factor_type)
    energy = jnp.where(mask, -10000.0, energy)
    attn = jax.nn.softmax(energy, axis=-1)
    out = jnp.einsum('bijk,bijkd->bijd', attn, total_h, precision='highest')
    out = jnp.dot(out, params['w_fc'], precision='highest') + params['b_fc'] + ht
    mu = out.mean(-1, keepdims=True)
    var = ((out - mu) ** 2).mean(-1, keepdims=True)
    out = (out - mu) * jax.lax.rsqrt(var + LN_EPS)
    return out * params['gamma'] + params['beta']


def init_params(key, rel_dim, mem_dim):
    ks = jax.random.split(key, 3)

    def lin(k, fan_in, fan_out, bias=True):
        scale = 1.0 / math.sqrt(fan_in)
        kw, kb = jax.random.split(k)
        w = jax.random.uniform(kw, (fan_in, fan_out), jnp.float32, -scale, scale)
        b = jax.random.uniform(kb, (fan_out,), jnp.float32, -scale, scale) if bias else None
        return w, b

    # attn_combine: Linear(mem+rel -> mem); stored transposed, split into the ht (rel) and total_h (mem) rows.
    w_comb, b_c = lin(ks[0], rel_dim + mem_dim, mem_dim)
    w_ht, w_th = w_comb[:rel_dim], w_comb[rel_dim:]
    v_w, _ = lin(ks[1], mem_dim, 1, bias=False)
    w_fc, b_fc = lin(ks[2], mem_dim, rel_dim)
    return dict(w_ht=w_ht, w_th=w_th, b_c=b_c, v=v_w[:, 0], w_fc=w_fc, b_fc=b_fc,
                gamma=jnp.ones((rel_dim,), jnp.float32),      # LayerNorm defaults
                beta=jnp.zeros((rel_dim,), jnp.float32))


if __name__ == "__main__":
    bs, ne = 2, 8
    rel_dim, mem_dim = 32, 32

    key = jax.random.PRNGKey(0)
    k_ht, k_f, k_p = jax.random.split(key, 3)
    ht = jax.random.normal(k_ht, (bs, ne, ne, rel_dim), jnp.float32)
    factor = jax.random.normal(k_f, (bs, ne, ne, ne, mem_dim), jnp.float32)
    n_ents = jnp.array([8, 5], dtype=jnp.int32)               # variable entity counts exercise masking
    params = init_params(k_p, rel_dim, mem_dim)

    for ft in ("sib", "cop", "gp"):
        out = jax.block_until_ready(
            hypergnn_binary_aggregate(ht, factor, n_ents, params, factor_type=ft))
        ref = reference(ht, factor, n_ents, params, factor_type=ft)
        assert out.shape == (bs, ne, ne, rel_dim)
        assert jnp.allclose(out, ref, rtol=1e-3, atol=1e-3), (ft, float(jnp.abs(out - ref).max()))

    # Multi-block pair axis (grid = (bs, 4)) exercises the tiled BlockSpecs.
    ref_sib = reference(ht, factor, n_ents, params, factor_type="sib")
    out_tiled = jax.block_until_ready(
        hypergnn_binary_aggregate(ht, factor, n_ents, params, factor_type="sib", pairs_per_step=16))
    assert jnp.allclose(out_tiled, ref_sib, rtol=1e-3, atol=1e-3), \
        float(jnp.abs(out_tiled - ref_sib).max())

    # bf16 MXU-operand path (f32 accumulation / softmax / LayerNorm stats): loose check only.
    out_bf16 = jax.block_until_ready(
        hypergnn_binary_aggregate(ht, factor, n_ents, params, factor_type="sib", mxu_bf16=True))
    assert float(jnp.abs(out_bf16 - ref_sib).max()) < 0.25

    print("KERNEL_OK")
</pallas_src>

<mosaic_0001>
module attributes {stable_mosaic.version = 11 : i64} {
  func.func @_aggregate_kernel(%arg0: i32, %arg1: i32, %arg2: memref<1x64x32xf32, #tpu.memory_space<vmem>>, %arg3: memref<1x64x16x32xf32, #tpu.memory_space<vmem>>, %arg4: memref<1x64x16x1xf32, #tpu.memory_space<vmem>>, %arg5: memref<32x32xf32, #tpu.memory_space<vmem>>, %arg6: memref<32x32xf32, #tpu.memory_space<vmem>>, %arg7: memref<32x32xf32, #tpu.memory_space<vmem>>, %arg8: memref<2x32xf32, #tpu.memory_space<vmem>>, %arg9: memref<3x32xf32, #tpu.memory_space<vmem>>, %arg10: memref<1x64x32xf32, #tpu.memory_space<vmem>>) attributes {dimension_semantics = [#tpu.dimension_semantics<parallel>, #tpu.dimension_semantics<parallel>], iteration_bounds = array<i64: 2, 1>, scalar_prefetch = 0 : i64, scratch_operands = 0 : i64, tpu.core_type = #tpu.core_type<tc>, window_params = [{transform_indices = @transform_0, window_bounds = array<i64: 1, 64, 32>}, {transform_indices = @transform_1, window_bounds = array<i64: 1, 64, 16, 32>}, {transform_indices = @transform_2, window_bounds = array<i64: 1, 64, 16, 1>}, {pipeline_mode = #tpu.pipeline_mode<synchronous>, transform_indices = @transform_3, window_bounds = array<i64: 32, 32>}, {pipeline_mode = #tpu.pipeline_mode<synchronous>, transform_indices = @transform_4, window_bounds = array<i64: 32, 32>}, {pipeline_mode = #tpu.pipeline_mode<synchronous>, transform_indices = @transform_5, window_bounds = array<i64: 32, 32>}, {pipeline_mode = #tpu.pipeline_mode<synchronous>, transform_indices = @transform_6, window_bounds = array<i64: 2, 32>}, {pipeline_mode = #tpu.pipeline_mode<synchronous>, transform_indices = @transform_7, window_bounds = array<i64: 3, 32>}, {transform_indices = @transform_8, window_bounds = array<i64: 1, 64, 32>}]} {
    %c0 = arith.constant 0 : index
    %c0_0 = arith.constant 0 : index
    %c0_1 = arith.constant 0 : index
    %0 = vector.load %arg2[%c0, %c0_0, %c0_1] : memref<1x64x32xf32, #tpu.memory_space<vmem>>, vector<1x64x32xf32>
    %1 = vector.shape_cast %0 : vector<1x64x32xf32> to vector<64x32xf32>
    %c0_2 = arith.constant 0 : index
    %c0_3 = arith.constant 0 : index
    %c0_4 = arith.constant 0 : index
    %c0_5 = arith.constant 0 : index
    %2 = vector.load %arg3[%c0_2, %c0_3, %c0_4, %c0_5] : memref<1x64x16x32xf32, #tpu.memory_space<vmem>>, vector<1x64x16x32xf32>
    %3 = vector.shape_cast %2 : vector<1x64x16x32xf32> to vector<64x16x32xf32>
    %c0_6 = arith.constant 0 : index
    %c0_7 = arith.constant 0 : index
    %c0_8 = arith.constant 0 : index
    %c0_9 = arith.constant 0 : index
    %4 = vector.load %arg4[%c0_6, %c0_7, %c0_8, %c0_9] : memref<1x64x16x1xf32, #tpu.memory_space<vmem>>, vector<1x64x16x1xf32>
    %5 = vector.shape_cast %4 : vector<1x64x16x1xf32> to vector<64x16x1xf32>
    %c0_10 = arith.constant 0 : index
    %c0_11 = arith.constant 0 : index
    %6 = vector.load %arg8[%c0_10, %c0_11] : memref<2x32xf32, #tpu.memory_space<vmem>>, vector<1x32xf32>
    %c1 = arith.constant 1 : index
    %c0_12 = arith.constant 0 : index
    %7 = vector.load %arg8[%c1, %c0_12] : memref<2x32xf32, #tpu.memory_space<vmem>>, vector<1x32xf32>
    %c0_13 = arith.constant 0 : index
    %c0_14 = arith.constant 0 : index
    %8 = vector.load %arg9[%c0_13, %c0_14] : memref<3x32xf32, #tpu.memory_space<vmem>>, vector<1x32xf32>
    %c1_15 = arith.constant 1 : index
    %c0_16 = arith.constant 0 : index
    %9 = vector.load %arg9[%c1_15, %c0_16] : memref<3x32xf32, #tpu.memory_space<vmem>>, vector<1x32xf32>
    %c2 = arith.constant 2 : index
    %c0_17 = arith.constant 0 : index
    %10 = vector.load %arg9[%c2, %c0_17] : memref<3x32xf32, #tpu.memory_space<vmem>>, vector<1x32xf32>
    %c0_18 = arith.constant 0 : index
    %c0_19 = arith.constant 0 : index
    %11 = vector.load %arg5[%c0_18, %c0_19] : memref<32x32xf32, #tpu.memory_space<vmem>>, vector<32x32xf32>
    %cst = arith.constant dense<0.000000e+00> : vector<64x32xf32>
    %12 = tpu.matmul %1, %11, %cst {dimension_numbers = #tpu.dot_dimension_numbers<[1], [0], [0], [1], [0, 0, 1, 1], [], []>} : vector<64x32xf32>, vector<32x32xf32>, vector<64x32xf32> -> vector<64x32xf32>
    %13 = vector.broadcast %6 : vector<1x32xf32> to vector<64x32xf32>
    %14 = arith.addf %12, %13 : vector<64x32xf32>
    %15 = vector.shape_cast %3 : vector<64x16x32xf32> to vector<1024x32xf32>
    %c0_20 = arith.constant 0 : index
    %c0_21 = arith.constant 0 : index
    %16 = vector.load %arg6[%c0_20, %c0_21] : memref<32x32xf32, #tpu.memory_space<vmem>>, vector<32x32xf32>
    %cst_22 = arith.constant dense<0.000000e+00> : vector<1024x32xf32>
    %17 = tpu.matmul %15, %16, %cst_22 {dimension_numbers = #tpu.dot_dimension_numbers<[1], [0], [0], [1], [0, 0, 1, 1], [], []>} : vector<1024x32xf32>, vector<32x32xf32>, vector<1024x32xf32> -> vector<1024x32xf32>
    %18 = vector.shape_cast %17 : vector<1024x32xf32> to vector<64x16x32xf32>
    %19 = vector.shape_cast %14 : vector<64x32xf32> to vector<64x1x32xf32>
    %20 = vector.broadcast %19 : vector<64x1x32xf32> to vector<64x16x32xf32>
    %21 = arith.addf %18, %20 : vector<64x16x32xf32>
    %cst_23 = arith.constant 5.000000e-01 : f32
    %22 = vector.broadcast %cst_23 : f32 to vector<64x16x32xf32>
    %23 = arith.mulf %22, %21 : vector<64x16x32xf32>
    %cst_24 = arith.constant 4.471500e-02 : f32
    %24 = vector.broadcast %cst_24 : f32 to vector<64x16x32xf32>
    %25 = arith.mulf %24, %21 : vector<64x16x32xf32>
    %26 = arith.mulf %25, %21 : vector<64x16x32xf32>
    %27 = arith.mulf %26, %21 : vector<64x16x32xf32>
    %28 = arith.addf %21, %27 : vector<64x16x32xf32>
    %cst_25 = arith.constant 0.797884583 : f32
    %29 = vector.broadcast %cst_25 : f32 to vector<64x16x32xf32>
    %30 = arith.mulf %29, %28 : vector<64x16x32xf32>
    %31 = math.tanh %30 : vector<64x16x32xf32>
    %cst_26 = arith.constant 1.000000e+00 : f32
    %32 = vector.broadcast %cst_26 : f32 to vector<64x16x32xf32>
    %33 = arith.addf %32, %31 : vector<64x16x32xf32>
    %34 = arith.mulf %23, %33 : vector<64x16x32xf32>
    %35 = vector.shape_cast %7 : vector<1x32xf32> to vector<1x1x32xf32>
    %36 = vector.broadcast %35 : vector<1x1x32xf32> to vector<64x16x32xf32>
    %37 = arith.mulf %34, %36 : vector<64x16x32xf32>
    %cst_27 = arith.constant dense<0.000000e+00> : vector<64x16xf32>
    %38 = vector.multi_reduction <add>, %37, %cst_27 [2] : vector<64x16x32xf32> to vector<64x16xf32>
    %39 = vector.shape_cast %38 : vector<64x16xf32> to vector<64x16x1xf32>
    %cst_28 = arith.constant 5.000000e-01 : f32
    %40 = vector.broadcast %cst_28 : f32 to vector<64x16x1xf32>
    %41 = arith.cmpf ogt, %5, %40 : vector<64x16x1xf32>
    %cst_29 = arith.constant -1.000000e+04 : f32
    %42 = vector.broadcast %cst_29 : f32 to vector<64x16x1xf32>
    %43 = arith.select %41, %42, %39 : vector<64x16x1xi1>, vector<64x16x1xf32>
    %cst_30 = arith.constant dense<0xFF800000> : vector<64x1xf32>
    %44 = vector.multi_reduction <maximumf>, %43, %cst_30 [1] : vector<64x16x1xf32> to vector<64x1xf32>
    %45 = vector.shape_cast %44 : vector<64x1xf32> to vector<64x1x1xf32>
    %46 = vector.broadcast %45 : vector<64x1x1xf32> to vector<64x16x1xf32>
    %47 = arith.subf %43, %46 : vector<64x16x1xf32>
    %48 = math.exp %47 : vector<64x16x1xf32>
    %cst_31 = arith.constant dense<0.000000e+00> : vector<64x1xf32>
    %49 = vector.multi_reduction <add>, %48, %cst_31 [1] : vector<64x16x1xf32> to vector<64x1xf32>
    %50 = vector.shape_cast %49 : vector<64x1xf32> to vector<64x1x1xf32>
    %51 = vector.broadcast %50 : vector<64x1x1xf32> to vector<64x16x1xf32>
    %52 = arith.divf %48, %51 : vector<64x16x1xf32>
    %53 = vector.broadcast %52 : vector<64x16x1xf32> to vector<64x16x32xf32>
    %54 = arith.mulf %3, %53 : vector<64x16x32xf32>
    %cst_32 = arith.constant dense<0.000000e+00> : vector<64x32xf32>
    %55 = vector.multi_reduction <add>, %54, %cst_32 [1] : vector<64x16x32xf32> to vector<64x32xf32>
    %c0_33 = arith.constant 0 : index
    %c0_34 = arith.constant 0 : index
    %56 = vector.load %arg7[%c0_33, %c0_34] : memref<32x32xf32, #tpu.memory_space<vmem>>, vector<32x32xf32>
    %cst_35 = arith.constant dense<0.000000e+00> : vector<64x32xf32>
    %57 = tpu.matmul %55, %56, %cst_35 {dimension_numbers = #tpu.dot_dimension_numbers<[1], [0], [0], [1], [0, 0, 1, 1], [], []>} : vector<64x32xf32>, vector<32x32xf32>, vector<64x32xf32> -> vector<64x32xf32>
    %58 = vector.broadcast %8 : vector<1x32xf32> to vector<64x32xf32>
    %59 = arith.addf %57, %58 : vector<64x32xf32>
    %60 = arith.addf %59, %1 : vector<64x32xf32>
    %cst_36 = arith.constant dense<0.000000e+00> : vector<64xf32>
    %61 = vector.multi_reduction <add>, %60, %cst_36 [1] : vector<64x32xf32> to vector<64xf32>
    %62 = vector.shape_cast %61 : vector<64xf32> to vector<64x1xf32>
    %cst_37 = arith.constant 3.200000e+01 : f32
    %63 = vector.broadcast %cst_37 : f32 to vector<64x1xf32>
    %64 = arith.divf %62, %63 : vector<64x1xf32>
    %65 = vector.broadcast %64 : vector<64x1xf32> to vector<64x32xf32>
    %66 = arith.subf %60, %65 : vector<64x32xf32>
    %67 = arith.mulf %66, %66 : vector<64x32xf32>
    %cst_38 = arith.constant dense<0.000000e+00> : vector<64xf32>
    %68 = vector.multi_reduction <add>, %67, %cst_38 [1] : vector<64x32xf32> to vector<64xf32>
    %69 = vector.shape_cast %68 : vector<64xf32> to vector<64x1xf32>
    %cst_39 = arith.constant 3.200000e+01 : f32
    %70 = vector.broadcast %cst_39 : f32 to vector<64x1xf32>
    %71 = arith.divf %69, %70 : vector<64x1xf32>
    %72 = vector.broadcast %64 : vector<64x1xf32> to vector<64x32xf32>
    %73 = arith.subf %60, %72 : vector<64x32xf32>
    %cst_40 = arith.constant 9.99999997E-7 : f32
    %74 = vector.broadcast %cst_40 : f32 to vector<64x1xf32>
    %75 = arith.addf %71, %74 : vector<64x1xf32>
    %76 = math.rsqrt %75 : vector<64x1xf32>
    %77 = vector.broadcast %76 : vector<64x1xf32> to vector<64x32xf32>
    %78 = arith.mulf %73, %77 : vector<64x32xf32>
    %79 = vector.broadcast %9 : vector<1x32xf32> to vector<64x32xf32>
    %80 = arith.mulf %78, %79 : vector<64x32xf32>
    %81 = vector.broadcast %10 : vector<1x32xf32> to vector<64x32xf32>
    %82 = arith.addf %80, %81 : vector<64x32xf32>
    %c0_41 = arith.constant 0 : index
    %c0_42 = arith.constant 0 : index
    %c0_43 = arith.constant 0 : index
    %83 = vector.load %arg10[%c0_41, %c0_42, %c0_43] : memref<1x64x32xf32, #tpu.memory_space<vmem>>, vector<1x64x32xf32>
    %84 = vector.shape_cast %83 : vector<1x64x32xf32> to vector<64x32xf32>
    %85 = vector.shape_cast %82 : vector<64x32xf32> to vector<1x64x32xf32>
    tpu.vector_store %arg10[%c0_41, %c0_42, %c0_43], %85 {strides = array<i32>} : memref<1x64x32xf32, #tpu.memory_space<vmem>>, vector<1x64x32xf32>,
    return
  }
  func.func @transform_0(%arg0: i32, %arg1: i32) -> (i32, i32, i32) {
    %c0_i32 = arith.constant 0 : i32
    %c0_i32_0 = arith.constant 0 : i32
    return %arg0, %arg1, %c0_i32 : i32, i32, i32
  }
  func.func @transform_1(%arg0: i32, %arg1: i32) -> (i32, i32, i32, i32) {
    %c0_i32 = arith.constant 0 : i32
    %c0_i32_0 = arith.constant 0 : i32
    %c0_i32_1 = arith.constant 0 : i32
    return %arg0, %arg1, %c0_i32, %c0_i32_0 : i32, i32, i32, i32
  }
  func.func @transform_2(%arg0: i32, %arg1: i32) -> (i32, i32, i32, i32) {
    %c0_i32 = arith.constant 0 : i32
    %c0_i32_0 = arith.constant 0 : i32
    %c0_i32_1 = arith.constant 0 : i32
    return %arg0, %arg1, %c0_i32, %c0_i32_0 : i32, i32, i32, i32
  }
  func.func @transform_3(%arg0: i32, %arg1: i32) -> (i32, i32) {
    %c0_i32 = arith.constant 0 : i32
    %c0_i32_0 = arith.constant 0 : i32
    %c0_i32_1 = arith.constant 0 : i32
    return %c0_i32, %c0_i32_0 : i32, i32
  }
  func.func @transform_4(%arg0: i32, %arg1: i32) -> (i32, i32) {
    %c0_i32 = arith.constant 0 : i32
    %c0_i32_0 = arith.constant 0 : i32
    %c0_i32_1 = arith.constant 0 : i32
    return %c0_i32, %c0_i32_0 : i32, i32
  }
  func.func @transform_5(%arg0: i32, %arg1: i32) -> (i32, i32) {
    %c0_i32 = arith.constant 0 : i32
    %c0_i32_0 = arith.constant 0 : i32
    %c0_i32_1 = arith.constant 0 : i32
    return %c0_i32, %c0_i32_0 : i32, i32
  }
  func.func @transform_6(%arg0: i32, %arg1: i32) -> (i32, i32) {
    %c0_i32 = arith.constant 0 : i32
    %c0_i32_0 = arith.constant 0 : i32
    %c0_i32_1 = arith.constant 0 : i32
    return %c0_i32, %c0_i32_0 : i32, i32
  }
  func.func @transform_7(%arg0: i32, %arg1: i32) -> (i32, i32) {
    %c0_i32 = arith.constant 0 : i32
    %c0_i32_0 = arith.constant 0 : i32
    %c0_i32_1 = arith.constant 0 : i32
    return %c0_i32, %c0_i32_0 : i32, i32
  }
  func.func @transform_8(%arg0: i32, %arg1: i32) -> (i32, i32, i32) {
    %c0_i32 = arith.constant 0 : i32
    %c0_i32_0 = arith.constant 0 : i32
    return %arg0, %arg1, %c0_i32 : i32, i32, i32
  }
}

</mosaic_0001>

<llo_original>
// kernel: _forward.1
$region0: #{_forward.1}
  #allocation0 [shape = 'u32[]', space=smem, size = 0x4, offset = 0x4, fixed_abs, tag = 'smem constant byte address 0x4 - core index']
  #allocation1 [shape = 'u32[72,128]{1,0:T(1,128)}', space=vmem, size = 0x9000, scoped, tag = 'internal scratch']
  %s0 = inlined_call_operand.vmem [shape: f32[2,64,32], index: 0, kind: input, shape index: {}]
  %s1 = inlined_call_operand.vmem [shape: f32[2,64,16,32], index: 1, kind: input, shape index: {}]
  %s2 = inlined_call_operand.vmem [shape: f32[2,64,16,1], index: 2, kind: input, shape index: {}]
  %s3 = inlined_call_operand.vmem [shape: f32[32,32], index: 3, kind: input, shape index: {}]
  %s4 = inlined_call_operand.vmem [shape: f32[32,32], index: 4, kind: input, shape index: {}]
  %s5 = inlined_call_operand.vmem [shape: f32[32,32], index: 5, kind: input, shape index: {}]
  %s6 = inlined_call_operand.vmem [shape: f32[2,32], index: 6, kind: input, shape index: {}]
  %s7 = inlined_call_operand.vmem [shape: f32[3,32], index: 7, kind: input, shape index: {}]
  %s8 = inlined_call_operand.hbm [shape: f32[2,64,32], index: 8, kind: output, shape index: {}]
  %s9 = sld [smem:[#allocation0]]
  $region65: #{_forward.1} parent=0
    _
  %s11 = ssub.s32 1, %s9
  %s12 = scalar_select 0, %s11, %s9
  $region1: #{_forward.1} parent=0
    #allocation2 [shape = 'u8[65536]{0}', space=vmem, size = 0x10000, scoped, tag = 'output window, operand 0']
    #allocation3 [shape = 's32[2]{0}', space=sflag, size = 0x8, scoped, tag = 'scoped memory for _forward.1']
    %13 = vsyncpa [#allocation3], 0
    %s14 = scalar_lea.sflag [#allocation3], 1
    %15 = vsyncpa %s14, 0
    loop: start=0, step=1, limit=4
    $region2: #{_forward.1} parent=1 // loop_pre_header
      _
    $region3: #{_forward.1} parent=1 // loop_header
      %s17 = sphi 0, %s21
      %p18 = scmp.ge.s32.totalorder %s17, 4
      %s24 = sphi 0, %s36
      %s25 = sphi 0, %s32
      %s26 = sphi 0, %s24
      %s27 = sphi 0, %s25
      %s28 = sphi 0, %s26
      %s29 = sphi 0, %s27
      %s41 = sphi 0, %s43
      %s44 = sphi 0, %s41
      %s45 = sphi 0, %s44
      %s61 = sphi 0, %s45
      %s69 = sphi 0, %s71
      %s72 = sphi 0, %s69
      %s73 = sphi 0, %s72
      %s89 = sphi 0, %s73
      %s97 = sphi 0, %s99
      %s100 = sphi 0, %s97
      %s101 = sphi 0, %s100
      %s117 = sphi 0, %s101
      %s121 = sphi 0, %s121
      %s123 = sphi 0, %s121
      %s124 = sphi 0, %s123
      %s138 = sphi 0, %s124
      %s142 = sphi 0, %s142
      %s144 = sphi 0, %s142
      %s145 = sphi 0, %s144
      %s159 = sphi 0, %s145
      %s163 = sphi 0, %s163
      %s165 = sphi 0, %s163
      %s166 = sphi 0, %s165
      %s180 = sphi 0, %s166
      %s184 = sphi 0, %s184
      %s186 = sphi 0, %s184
      %s187 = sphi 0, %s186
      %s201 = sphi 0, %s187
      %s205 = sphi 0, %s205
      %s207 = sphi 0, %s205
      %s208 = sphi 0, %s207
      %s222 = sphi 0, %s208
      %s230 = sphi 0, %s232
      %s233 = sphi 0, %s230
      %s234 = sphi 0, %s233
      %s250 = sphi 0, %s234
    $region4: #{_forward.1} parent=1 // loop_header_branch
      %20 = sbr.rel (%p18) target = $region8
    $region5: #{_forward.1} parent=1 // loop_body
      %s22 = ssub.s32 %s17, 1
      %s23 = ssub.s32 %s17, 2
      %s30 = sadd.s32 1, %s25
      %p31 = scmp.ge.s32.totalorder %s30, 1
      %s32 = scalar_select %p31, 0, %s30
      %s33 = sadd.s32 1, %s24
      %s34 = scalar_select %p31, %s33, %s24
      %p35 = scmp.ge.s32.totalorder %s34, 2
      %s36 = scalar_select %p35, 0, %s34
      %s37 = ssub.s32 %s24, %s36
      %s38 = ssub.s32 %s25, %s32
      %s39 = sor.u32 %s37, %s38
      %p40 = scmp.eq.s32.totalorder %s39, 0
      %s42 = sadd.s32 %s41, 1
      %s43 = scalar_select %p40, %s41, %s42
      %p46 = pneg %p40
      %p47 = scmp.eq.s32.totalorder %s17, 1
      %p48 = por %p46, %p47
      %p49 = scmp.ne.s32.totalorder %s41, %s44
      %p50 = scmp.eq.s32.totalorder %s17, 0
      %p51 = por %p49, %p50
      %p52 = scmp.ne.s32.totalorder %s41, %s44
      %p53 = scmp.eq.s32.totalorder %s22, 1
      %p54 = por %p52, %p53
      %p55 = scmp.ne.s32.totalorder %s44, %s45
      %p56 = scmp.eq.s32.totalorder %s22, 0
      %p57 = por %p55, %p56
      %p58 = scmp.ne.s32.totalorder %s44, %s45
      %p59 = scmp.eq.s32.totalorder %s23, 1
      %p60 = por %p58, %p59
      %p62 = scmp.ne.s32.totalorder %s45, %s61
      %p63 = scmp.eq.s32.totalorder %s23, 0
      %p64 = por %p62, %p63
      %s65 = ssub.s32 %s24, %s36
      %s66 = ssub.s32 %s25, %s32
      %s67 = sor.u32 %s65, %s66
      %p68 = scmp.eq.s32.totalorder %s67, 0
      %s70 = sadd.s32 %s69, 1
      %s71 = scalar_select %p68, %s69, %s70
      %p74 = pneg %p68
      %p75 = scmp.eq.s32.totalorder %s17, 1
      %p76 = por %p74, %p75
      %p77 = scmp.ne.s32.totalorder %s69, %s72
      %p78 = scmp.eq.s32.totalorder %s17, 0
      %p79 = por %p77, %p78
      %p80 = scmp.ne.s32.totalorder %s69, %s72
      %p81 = scmp.eq.s32.totalorder %s22, 1
      %p82 = por %p80, %p81
      %p83 = scmp.ne.s32.totalorder %s72, %s73
      %p84 = scmp.eq.s32.totalorder %s22, 0
      %p85 = por %p83, %p84
      %p86 = scmp.ne.s32.totalorder %s72, %s73
      %p87 = scmp.eq.s32.totalorder %s23, 1
      %p88 = por %p86, %p87
      %p90 = scmp.ne.s32.totalorder %s73, %s89
      %p91 = scmp.eq.s32.totalorder %s23, 0
      %p92 = por %p90, %p91
      %s93 = ssub.s32 %s24, %s36
      %s94 = ssub.s32 %s25, %s32
      %s95 = sor.u32 %s93, %s94
      %p96 = scmp.eq.s32.totalorder %s95, 0
      %s98 = sadd.s32 %s97, 1
      %s99 = scalar_select %p96, %s97, %s98
      %p102 = pneg %p96
      %p103 = scmp.eq.s32.totalorder %s17, 1
      %p104 = por %p102, %p103
      %p105 = scmp.ne.s32.totalorder %s97, %s100
      %p106 = scmp.eq.s32.totalorder %s17, 0
      %p107 = por %p105, %p106
      %p108 = scmp.ne.s32.totalorder %s97, %s100
      %p109 = scmp.eq.s32.totalorder %s22, 1
      %p110 = por %p108, %p109
      %p111 = scmp.ne.s32.totalorder %s100, %s101
      %p112 = scmp.eq.s32.totalorder %s22, 0
      %p113 = por %p111, %p112
      %p114 = scmp.ne.s32.totalorder %s100, %s101
      %p115 = scmp.eq.s32.totalorder %s23, 1
      %p116 = por %p114, %p115
      %p118 = scmp.ne.s32.totalorder %s101, %s117
      %p119 = scmp.eq.s32.totalorder %s23, 0
      %p120 = por %p118, %p119
      %s122 = sadd.s32 %s121, 1
      %p125 = scmp.eq.s32.totalorder %s17, 1
      %p126 = scmp.ne.s32.totalorder %s121, %s123
      %p127 = scmp.eq.s32.totalorder %s17, 0
      %p128 = por %p126, %p127
      %p129 = scmp.ne.s32.totalorder %s121, %s123
      %p130 = scmp.eq.s32.totalorder %s22, 1
      %p131 = por %p129, %p130
      %p132 = scmp.ne.s32.totalorder %s123, %s124
      %p133 = scmp.eq.s32.totalorder %s22, 0
      %p134 = por %p132, %p133
      %p135 = scmp.ne.s32.totalorder %s123, %s124
      %p136 = scmp.eq.s32.totalorder %s23, 1
      %p137 = por %p135, %p136
      %p139 = scmp.ne.s32.totalorder %s124, %s138
      %p140 = scmp.eq.s32.totalorder %s23, 0
      %p141 = por %p139, %p140
      %s143 = sadd.s32 %s142, 1
      %p146 = scmp.eq.s32.totalorder %s17, 1
      %p147 = scmp.ne.s32.totalorder %s142, %s144
      %p148 = scmp.eq.s32.totalorder %s17, 0
      %p149 = por %p147, %p148
      %p150 = scmp.ne.s32.totalorder %s142, %s144
      %p151 = scmp.eq.s32.totalorder %s22, 1
      %p152 = por %p150, %p151
      %p153 = scmp.ne.s32.totalorder %s144, %s145
      %p154 = scmp.eq.s32.totalorder %s22, 0
      %p155 = por %p153, %p154
      %p156 = scmp.ne.s32.totalorder %s144, %s145
      %p157 = scmp.eq.s32.totalorder %s23, 1
      %p158 = por %p156, %p157
      %p160 = scmp.ne.s32.totalorder %s145, %s159
      %p161 = scmp.eq.s32.totalorder %s23, 0
      %p162 = por %p160, %p161
      %s164 = sadd.s32 %s163, 1
      %p167 = scmp.eq.s32.totalorder %s17, 1
      %p168 = scmp.ne.s32.totalorder %s163, %s165
      %p169 = scmp.eq.s32.totalorder %s17, 0
      %p170 = por %p168, %p169
      %p171 = scmp.ne.s32.totalorder %s163, %s165
      %p172 = scmp.eq.s32.totalorder %s22, 1
      %p173 = por %p171, %p172
      %p174 = scmp.ne.s32.totalorder %s165, %s166
      %p175 = scmp.eq.s32.totalorder %s22, 0
      %p176 = por %p174, %p175
      %p177 = scmp.ne.s32.totalorder %s165, %s166
      %p178 = scmp.eq.s32.totalorder %s23, 1
      %p179 = por %p177, %p178
      %p181 = scmp.ne.s32.totalorder %s166, %s180
      %p182 = scmp.eq.s32.totalorder %s23, 0
      %p183 = por %p181, %p182
      %s185 = sadd.s32 %s184, 1
      %p188 = scmp.eq.s32.totalorder %s17, 1
      %p189 = scmp.ne.s32.totalorder %s184, %s186
      %p190 = scmp.eq.s32.totalorder %s17, 0
      %p191 = por %p189, %p190
      %p192 = scmp.ne.s32.totalorder %s184, %s186
      %p193 = scmp.eq.s32.totalorder %s22, 1
      %p194 = por %p192, %p193
      %p195 = scmp.ne.s32.totalorder %s186, %s187
      %p196 = scmp.eq.s32.totalorder %s22, 0
      %p197 = por %p195, %p196
      %p198 = scmp.ne.s32.totalorder %s186, %s187
      %p199 = scmp.eq.s32.totalorder %s23, 1
      %p200 = por %p198, %p199
      %p202 = scmp.ne.s32.totalorder %s187, %s201
      %p203 = scmp.eq.s32.totalorder %s23, 0
      %p204 = por %p202, %p203
      %s206 = sadd.s32 %s205, 1
      %p209 = scmp.eq.s32.totalorder %s17, 1
      %p210 = scmp.ne.s32.totalorder %s205, %s207
      %p211 = scmp.eq.s32.totalorder %s17, 0
      %p212 = por %p210, %p211
      %p213 = scmp.ne.s32.totalorder %s205, %s207
      %p214 = scmp.eq.s32.totalorder %s22, 1
      %p215 = por %p213, %p214
      %p216 = scmp.ne.s32.totalorder %s207, %s208
      %p217 = scmp.eq.s32.totalorder %s22, 0
      %p218 = por %p216, %p217
      %p219 = scmp.ne.s32.totalorder %s207, %s208
      %p220 = scmp.eq.s32.totalorder %s23, 1
      %p221 = por %p219, %p220
      %p223 = scmp.ne.s32.totalorder %s208, %s222
      %p224 = scmp.eq.s32.totalorder %s23, 0
      %p225 = por %p223, %p224
      %s226 = ssub.s32 %s24, %s36
      %s227 = ssub.s32 %s25, %s32
      %s228 = sor.u32 %s226, %s227
      %p229 = scmp.eq.s32.totalorder %s228, 0
      %s231 = sadd.s32 %s230, 1
      %s232 = scalar_select %p229, %s230, %s231
      %p235 = pneg %p229
      %p236 = scmp.eq.s32.totalorder %s17, 1
      %p237 = por %p235, %p236
      %p238 = scmp.ne.s32.totalorder %s230, %s233
      %p239 = scmp.eq.s32.totalorder %s17, 0
      %p240 = por %p238, %p239
      %p241 = scmp.ne.s32.totalorder %s230, %s233
      %p242 = scmp.eq.s32.totalorder %s22, 1
      %p243 = por %p241, %p242
      %p244 = scmp.ne.s32.totalorder %s233, %s234
      %p245 = scmp.eq.s32.totalorder %s22, 0
      %p246 = por %p244, %p245
      %p247 = scmp.ne.s32.totalorder %s233, %s234
      %p248 = scmp.eq.s32.totalorder %s23, 1
      %p249 = por %p247, %p248
      %p251 = scmp.ne.s32.totalorder %s234, %s250
      %p252 = scmp.eq.s32.totalorder %s23, 0
      %p253 = por %p251, %p252
      %p254 = scmp.le.s32.totalorder 1, %s17
      %p255 = scmp.lt.s32.totalorder %s17, 3
      %p256 = pnand %p254, %p255
      %p257 = pneg %p256
      // Predicated region
      $region9: #{_forward.1} parent=5 // pred_check
        _
      $region10: #{_forward.1} parent=5 // pred_check_branch
        %259 = sbr.rel (%p256) target = $region12
      $region11: #{_forward.1} parent=5 // pred_region
        %s260 = ssub.s32 %s17, 1
        // Predicated region
        $region13: #{_forward.1} parent=11 // pred_check
          %p261 = pneg %p134
        $region14: #{_forward.1} parent=11 // pred_check_branch
          %263 = sbr.rel (%p261) target = $region16
        $region15: #{_forward.1} parent=11 // pred_region
          _
        $region16: #{_forward.1} parent=11 // pred_fallthru
          _
        // Predicated region
        $region17: #{_forward.1} parent=11 // pred_check
          %p264 = pneg %p155
        $region18: #{_forward.1} parent=11 // pred_check_branch
          %266 = sbr.rel (%p264) target = $region20
        $region19: #{_forward.1} parent=11 // pred_region
          _
        $region20: #{_forward.1} parent=11 // pred_fallthru
          _
        // Predicated region
        $region21: #{_forward.1} parent=11 // pred_check
          %p267 = pneg %p176
        $region22: #{_forward.1} parent=11 // pred_check_branch
          %269 = sbr.rel (%p267) target = $region24
        $region23: #{_forward.1} parent=11 // pred_region
          _
        $region24: #{_forward.1} parent=11 // pred_fallthru
          _
        // Predicated region
        $region25: #{_forward.1} parent=11 // pred_check
          %p270 = pneg %p197
        $region26: #{_forward.1} parent=11 // pred_check_branch
          %272 = sbr.rel (%p270) target = $region28
        $region27: #{_forward.1} parent=11 // pred_region
          _
        $region28: #{_forward.1} parent=11 // pred_fallthru
          _
        // Predicated region
        $region29: #{_forward.1} parent=11 // pred_check
          %p273 = pneg %p218
        $region30: #{_forward.1} parent=11 // pred_check_branch
          %275 = sbr.rel (%p273) target = $region32
        $region31: #{_forward.1} parent=11 // pred_region
          _
        $region32: #{_forward.1} parent=11 // pred_fallthru
          _
      $region12: #{_forward.1} parent=5 // pred_fallthru
        _
      %p276 = scmp.lt.s32.totalorder %s17, 2
      // Predicated region
      $region33: #{_forward.1} parent=5 // pred_check
        %p277 = pneg %p276
      $region34: #{_forward.1} parent=5 // pred_check_branch
        %279 = sbr.rel (%p277) target = $region36
      $region35: #{_forward.1} parent=5 // pred_region
        // Predicated region
        $region37: #{_forward.1} parent=35 // pred_check
          %p280 = pneg %p51
        $region38: #{_forward.1} parent=35 // pred_check_branch
          %282 = sbr.rel (%p280) target = $region40
        $region39: #{_forward.1} parent=35 // pred_region
          %s283 = smul.u32 8, %s25
          %p284 = scmp.lt.s32.totalorder %s24, 1
          %s285 = scalar_select %p284, %s24, 1
          %p286 = scmp.lt.s32.totalorder %s283, 7
          %s287 = scalar_select %p286, %s283, 7
          %s288 = smul.addr %s285, 8
          %s289 = sadd.s32 %s287, %s288
          %s290 = smul.addr %s289, 8
          %s291 = scalar_lea.vmem %s0, %s290
          %s292 = smul.u32 8, %s25
        $region40: #{_forward.1} parent=35 // pred_fallthru
          _
        // Predicated region
        $region41: #{_forward.1} parent=35 // pred_check
          %p293 = pneg %p79
        $region42: #{_forward.1} parent=35 // pred_check_branch
          %295 = sbr.rel (%p293) target = $region44
        $region43: #{_forward.1} parent=35 // pred_region
          %s296 = smul.u32 64, %s25
          %p297 = scmp.lt.s32.totalorder %s24, 1
          %s298 = scalar_select %p297, %s24, 1
          %p299 = scmp.lt.s32.totalorder %s296, 63
          %s300 = scalar_select %p299, %s296, 63
          %s301 = smul.addr %s300, 2
          %s302 = smul.addr %s298, 128
          %s303 = sadd.s32 %s301, %s302
          %s304 = smul.addr %s303, 8
          %s305 = scalar_lea.vmem %s1, %s304
          %s306 = smul.u32 64, %s25
        $region44: #{_forward.1} parent=35 // pred_fallthru
          _
        // Predicated region
        $region45: #{_forward.1} parent=35 // pred_check
          %p307 = pneg %p107
        $region46: #{_forward.1} parent=35 // pred_check_branch
          %309 = sbr.rel (%p307) target = $region48
        $region47: #{_forward.1} parent=35 // pred_region
          %s310 = smul.u32 64, %s25
          %p311 = scmp.lt.s32.totalorder %s24, 1
          %s312 = scalar_select %p311, %s24, 1
          %p313 = scmp.lt.s32.totalorder %s310, 63
          %s314 = scalar_select %p313, %s310, 63
          %s315 = smul.addr %s314, 2
          %s316 = smul.addr %s312, 128
          %s317 = sadd.s32 %s315, %s316
          %s318 = smul.addr %s317, 8
          %s319 = scalar_lea.vmem %s2, %s318
          %s320 = smul.u32 64, %s25
        $region48: #{_forward.1} parent=35 // pred_fallthru
          _
      $region36: #{_forward.1} parent=5 // pred_fallthru
        _
      %p321 = scmp.le.s32.totalorder 1, %s17
      %p322 = scmp.lt.s32.totalorder %s17, 3
      %p323 = pnand %p321, %p322
      %p324 = pneg %p323
      // Predicated region
      $region49: #{_forward.1} parent=5 // pred_check
        _
      $region50: #{_forward.1} parent=5 // pred_check_branch
        %326 = sbr.rel (%p323) target = $region52
      $region51: #{_forward.1} parent=5 // pred_region
        %s327 = ssub.s32 %s17, 1
        %s328 = smul.u32 8, %s27
        %p329 = scmp.lt.s32.totalorder %s26, 1
        %s330 = scalar_select %p329, %s26, 1
        %p331 = scmp.lt.s32.totalorder %s328, 7
        %s332 = scalar_select %p331, %s328, 7
        %s333 = smul.addr %s330, 8
        %s334 = sadd.s32 %s332, %s333
        %s335 = smul.addr %s334, 8
        %s336 = scalar_lea.vmem %s0, %s335
        %p337 = pneg %p57
        %p338 = pneg %p54
        %s339 = smul.u32 64, %s27
        %p340 = scmp.lt.s32.totalorder %s26, 1
        %s341 = scalar_select %p340, %s26, 1
        %p342 = scmp.lt.s32.totalorder %s339, 63
        %s343 = scalar_select %p342, %s339, 63
        %s344 = smul.addr %s343, 2
        %s345 = smul.addr %s341, 128
        %s346 = sadd.s32 %s344, %s345
        %s347 = smul.addr %s346, 8
        %s348 = scalar_lea.vmem %s1, %s347
        %p349 = pneg %p85
        %p350 = pneg %p82
        %s351 = smul.u32 64, %s27
        %p352 = scmp.lt.s32.totalorder %s26, 1
        %s353 = scalar_select %p352, %s26, 1
        %p354 = scmp.lt.s32.totalorder %s351, 63
        %s355 = scalar_select %p354, %s351, 63
        %s356 = smul.addr %s355, 2
        %s357 = smul.addr %s353, 128
        %s358 = sadd.s32 %s356, %s357
        %s359 = smul.addr %s358, 8
        %s360 = scalar_lea.vmem %s2, %s359
        %p361 = pneg %p113
        %p362 = pneg %p110
        %p363 = pneg %p134
        %p364 = pneg %p131
        %p365 = pneg %p155
        %p366 = pneg %p152
        %p367 = pneg %p176
        %p368 = pneg %p173
        %p369 = pneg %p197
        %p370 = pneg %p194
        %p371 = pneg %p218
        %p372 = pneg %p215
        %p373 = pneg %p246
        %p374 = pneg %p243
        %s375 = sand.u32 %s233, 1
        %s376 = scalar_lea.sflag [#allocation3], %s375
        %s377 = sand.u32 %s233, 1
        %s378 = smul.addr %s377, 64
        %s379 = scalar_lea.vmem [#allocation2], %s378
        %s380 = smul.u32 8, %s27
        %p381 = scmp.lt.s32.totalorder %s26, 1
        %s382 = scalar_select %p381, %s26, 1
        %p383 = scmp.lt.s32.totalorder %s380, 7
        %s384 = scalar_select %p383, %s380, 7
        %s385 = smul.addr %s382, 8
        %s386 = sadd.s32 %s384, %s385
        %s387 = smul.addr %s386, 8
        %s388 = scalar_lea.vmem %s0, %s387
        %s389 = smul.u32 8, %s27
        %s390 = smul.u32 64, %s27
        %p391 = scmp.lt.s32.totalorder %s26, 1
        %s392 = scalar_select %p391, %s26, 1
        %p393 = scmp.lt.s32.totalorder %s390, 63
        %s394 = scalar_select %p393, %s390, 63
        %s395 = smul.addr %s394, 2
        %s396 = smul.addr %s392, 128
        %s397 = sadd.s32 %s395, %s396
        %s398 = smul.addr %s397, 8
        %s399 = scalar_lea.vmem %s1, %s398
        %s400 = smul.u32 64, %s27
        %s401 = smul.u32 64, %s27
        %p402 = scmp.lt.s32.totalorder %s26, 1
        %s403 = scalar_select %p402, %s26, 1
        %p404 = scmp.lt.s32.totalorder %s401, 63
        %s405 = scalar_select %p404, %s401, 63
        %s406 = smul.addr %s405, 2
        %s407 = smul.addr %s403, 128
        %s408 = sadd.s32 %s406, %s407
        %s409 = smul.addr %s408, 8
        %s410 = scalar_lea.vmem %s2, %s409
        %s411 = smul.u32 64, %s27
        %s412 = smul.u32 8, %s27
        %v413 = vld [vmem:[%s388] sm:$0xff]
        %v414 = vld [vmem:[%s388 + $0x8] sm:$0xff]
        %v415 = vld [vmem:[%s388 + $0x10] sm:$0xff]
        %v416 = vld [vmem:[%s388 + $0x18] sm:$0xff]
        %v417 = vld [vmem:[%s388 + $0x20] sm:$0xff]
        %v418 = vld [vmem:[%s388 + $0x28] sm:$0xff]
        %v419 = vld [vmem:[%s388 + $0x30] sm:$0xff]
        %v420 = vld [vmem:[%s388 + $0x38] sm:$0xff]
        %v421 = vld [vmem:[%s399] sm:$0xff]
        %v422 = vld [vmem:[%s399 + $0x8] sm:$0xff]
        %v423 = vld [vmem:[%s399 + $0x10] sm:$0xff]
        %v424 = vld [vmem:[%s399 + $0x18] sm:$0xff]
        %v425 = vld [vmem:[%s399 + $0x20] sm:$0xff]
        %v426 = vld [vmem:[%s399 + $0x28] sm:$0xff]
        %v427 = vld [vmem:[%s399 + $0x30] sm:$0xff]
        %v428 = vld [vmem:[%s399 + $0x38] sm:$0xff]
        %v429 = vld [vmem:[%s399 + $0x40] sm:$0xff]
        %v430 = vld [vmem:[%s399 + $0x48] sm:$0xff]
        %v431 = vld [vmem:[%s399 + $0x50] sm:$0xff]
        %v432 = vld [vmem:[%s399 + $0x58] sm:$0xff]
        %v433 = vld [vmem:[%s399 + $0x60] sm:$0xff]
        %v434 = vld [vmem:[%s399 + $0x68] sm:$0xff]
        %v435 = vld [vmem:[%s399 + $0x70] sm:$0xff]
        %v436 = vld [vmem:[%s399 + $0x78] sm:$0xff]
        %v437 = vld [vmem:[%s399 + $0x80] sm:$0xff]
        %v438 = vld [vmem:[%s399 + $0x88] sm:$0xff]
        %v439 = vld [vmem:[%s399 + $0x90] sm:$0xff]
        %v440 = vld [vmem:[%s399 + $0x98] sm:$0xff]
        %v441 = vld [vmem:[%s399 + $0xa0] sm:$0xff]
        %v442 = vld [vmem:[%s399 + $0xa8] sm:$0xff]
        %v443 = vld [vmem:[%s399 + $0xb0] sm:$0xff]
        %v444 = vld [vmem:[%s399 + $0xb8] sm:$0xff]
        %v445 = vld [vmem:[%s399 + $0xc0] sm:$0xff]
        %v446 = vld [vmem:[%s399 + $0xc8] sm:$0xff]
        %v447 = vld [vmem:[%s399 + $0xd0] sm:$0xff]
        %v448 = vld [vmem:[%s399 + $0xd8] sm:$0xff]
        %v449 = vld [vmem:[%s399 + $0xe0] sm:$0xff]
        %v450 = vld [vmem:[%s399 + $0xe8] sm:$0xff]
        %v451 = vld [vmem:[%s399 + $0xf0] sm:$0xff]
        %v452 = vld [vmem:[%s399 + $0xf8] sm:$0xff]
        %v453 = vld [vmem:[%s399 + $0x100] sm:$0xff]
        %v454 = vld [vmem:[%s399 + $0x108] sm:$0xff]
        %v455 = vld [vmem:[%s399 + $0x110] sm:$0xff]
        %v456 = vld [vmem:[%s399 + $0x118] sm:$0xff]
        %v457 = vld [vmem:[%s399 + $0x120] sm:$0xff]
        %v458 = vld [vmem:[%s399 + $0x128] sm:$0xff]
        %v459 = vld [vmem:[%s399 + $0x130] sm:$0xff]
        %v460 = vld [vmem:[%s399 + $0x138] sm:$0xff]
        %v461 = vld [vmem:[%s399 + $0x140] sm:$0xff]
        %v462 = vld [vmem:[%s399 + $0x148] sm:$0xff]
        %v463 = vld [vmem:[%s399 + $0x150] sm:$0xff]
        %v464 = vld [vmem:[%s399 + $0x158] sm:$0xff]
        %v465 = vld [vmem:[%s399 + $0x160] sm:$0xff]
        %v466 = vld [vmem:[%s399 + $0x168] sm:$0xff]
        %v467 = vld [vmem:[%s399 + $0x170] sm:$0xff]
        %v468 = vld [vmem:[%s399 + $0x178] sm:$0xff]
        %v469 = vld [vmem:[%s399 + $0x180] sm:$0xff]
        %v470 = vld [vmem:[%s399 + $0x188] sm:$0xff]
        %v471 = vld [vmem:[%s399 + $0x190] sm:$0xff]
        %v472 = vld [vmem:[%s399 + $0x198] sm:$0xff]
        %v473 = vld [vmem:[%s399 + $0x1a0] sm:$0xff]
        %v474 = vld [vmem:[%s399 + $0x1a8] sm:$0xff]
        %v475 = vld [vmem:[%s399 + $0x1b0] sm:$0xff]
        %v476 = vld [vmem:[%s399 + $0x1b8] sm:$0xff]
        %v477 = vld [vmem:[%s399 + $0x1c0] sm:$0xff]
        %v478 = vld [vmem:[%s399 + $0x1c8] sm:$0xff]
        %v479 = vld [vmem:[%s399 + $0x1d0] sm:$0xff]
        %v480 = vld [vmem:[%s399 + $0x1d8] sm:$0xff]
        %v481 = vld [vmem:[%s399 + $0x1e0] sm:$0xff]
        %v482 = vld [vmem:[%s399 + $0x1e8] sm:$0xff]
        %v483 = vld [vmem:[%s399 + $0x1f0] sm:$0xff]
        %v484 = vld [vmem:[%s399 + $0x1f8] sm:$0xff]
        %v485 = vld [vmem:[%s399 + $0x200] sm:$0xff]
        %v486 = vld [vmem:[%s399 + $0x208] sm:$0xff]
        %v487 = vld [vmem:[%s399 + $0x210] sm:$0xff]
        %v488 = vld [vmem:[%s399 + $0x218] sm:$0xff]
        %v489 = vld [vmem:[%s399 + $0x220] sm:$0xff]
        %v490 = vld [vmem:[%s399 + $0x228] sm:$0xff]
        %v491 = vld [vmem:[%s399 + $0x230] sm:$0xff]
        %v492 = vld [vmem:[%s399 + $0x238] sm:$0xff]
        %v493 = vld [vmem:[%s399 + $0x240] sm:$0xff]
        %v494 = vld [vmem:[%s399 + $0x248] sm:$0xff]
        %v495 = vld [vmem:[%s399 + $0x250] sm:$0xff]
        %v496 = vld [vmem:[%s399 + $0x258] sm:$0xff]
        %v497 = vld [vmem:[%s399 + $0x260] sm:$0xff]
        %v498 = vld [vmem:[%s399 + $0x268] sm:$0xff]
        %v499 = vld [vmem:[%s399 + $0x270] sm:$0xff]
        %v500 = vld [vmem:[%s399 + $0x278] sm:$0xff]
        %v501 = vld [vmem:[%s399 + $0x280] sm:$0xff]
        %v502 = vld [vmem:[%s399 + $0x288] sm:$0xff]
        %v503 = vld [vmem:[%s399 + $0x290] sm:$0xff]
        %v504 = vld [vmem:[%s399 + $0x298] sm:$0xff]
        %v505 = vld [vmem:[%s399 + $0x2a0] sm:$0xff]
        %v506 = vld [vmem:[%s399 + $0x2a8] sm:$0xff]
        %v507 = vld [vmem:[%s399 + $0x2b0] sm:$0xff]
        %v508 = vld [vmem:[%s399 + $0x2b8] sm:$0xff]
        %v509 = vld [vmem:[%s399 + $0x2c0] sm:$0xff]
        %v510 = vld [vmem:[%s399 + $0x2c8] sm:$0xff]
        %v511 = vld [vmem:[%s399 + $0x2d0] sm:$0xff]
        %v512 = vld [vmem:[%s399 + $0x2d8] sm:$0xff]
        %v513 = vld [vmem:[%s399 + $0x2e0] sm:$0xff]
        %v514 = vld [vmem:[%s399 + $0x2e8] sm:$0xff]
        %v515 = vld [vmem:[%s399 + $0x2f0] sm:$0xff]
        %v516 = vld [vmem:[%s399 + $0x2f8] sm:$0xff]
        %v517 = vld [vmem:[%s399 + $0x300] sm:$0xff]
        %v518 = vld [vmem:[%s399 + $0x308] sm:$0xff]
        %v519 = vld [vmem:[%s399 + $0x310] sm:$0xff]
        %v520 = vld [vmem:[%s399 + $0x318] sm:$0xff]
        %v521 = vld [vmem:[%s399 + $0x320] sm:$0xff]
        %v522 = vld [vmem:[%s399 + $0x328] sm:$0xff]
        %v523 = vld [vmem:[%s399 + $0x330] sm:$0xff]
        %v524 = vld [vmem:[%s399 + $0x338] sm:$0xff]
        %v525 = vld [vmem:[%s399 + $0x340] sm:$0xff]
        %v526 = vld [vmem:[%s399 + $0x348] sm:$0xff]
        %v527 = vld [vmem:[%s399 + $0x350] sm:$0xff]
        %v528 = vld [vmem:[%s399 + $0x358] sm:$0xff]
        %v529 = vld [vmem:[%s399 + $0x360] sm:$0xff]
        %v530 = vld [vmem:[%s399 + $0x368] sm:$0xff]
        %v531 = vld [vmem:[%s399 + $0x370] sm:$0xff]
        %v532 = vld [vmem:[%s399 + $0x378] sm:$0xff]
        %v533 = vld [vmem:[%s399 + $0x380] sm:$0xff]
        %v534 = vld [vmem:[%s399 + $0x388] sm:$0xff]
        %v535 = vld [vmem:[%s399 + $0x390] sm:$0xff]
        %v536 = vld [vmem:[%s399 + $0x398] sm:$0xff]
        %v537 = vld [vmem:[%s399 + $0x3a0] sm:$0xff]
        %v538 = vld [vmem:[%s399 + $0x3a8] sm:$0xff]
        %v539 = vld [vmem:[%s399 + $0x3b0] sm:$0xff]
        %v540 = vld [vmem:[%s399 + $0x3b8] sm:$0xff]
        %v541 = vld [vmem:[%s399 + $0x3c0] sm:$0xff]
        %v542 = vld [vmem:[%s399 + $0x3c8] sm:$0xff]
        %v543 = vld [vmem:[%s399 + $0x3d0] sm:$0xff]
        %v544 = vld [vmem:[%s399 + $0x3d8] sm:$0xff]
        %v545 = vld [vmem:[%s399 + $0x3e0] sm:$0xff]
        %v546 = vld [vmem:[%s399 + $0x3e8] sm:$0xff]
        %v547 = vld [vmem:[%s399 + $0x3f0] sm:$0xff]
        %v548 = vld [vmem:[%s399 + $0x3f8] sm:$0xff]
        %v549 = vld [vmem:[%s410] sm:$0xff]
        %v550 = vld [vmem:[%s410 + $0x8] sm:$0xff]
        %v551 = vld [vmem:[%s410 + $0x10] sm:$0xff]
        %v552 = vld [vmem:[%s410 + $0x18] sm:$0xff]
        %v553 = vld [vmem:[%s410 + $0x20] sm:$0xff]
        %v554 = vld [vmem:[%s410 + $0x28] sm:$0xff]
        %v555 = vld [vmem:[%s410 + $0x30] sm:$0xff]
        %v556 = vld [vmem:[%s410 + $0x38] sm:$0xff]
        %v557 = vld [vmem:[%s410 + $0x40] sm:$0xff]
        %v558 = vld [vmem:[%s410 + $0x48] sm:$0xff]
        %v559 = vld [vmem:[%s410 + $0x50] sm:$0xff]
        %v560 = vld [vmem:[%s410 + $0x58] sm:$0xff]
        %v561 = vld [vmem:[%s410 + $0x60] sm:$0xff]
        %v562 = vld [vmem:[%s410 + $0x68] sm:$0xff]
        %v563 = vld [vmem:[%s410 + $0x70] sm:$0xff]
        %v564 = vld [vmem:[%s410 + $0x78] sm:$0xff]
        %v565 = vld [vmem:[%s410 + $0x80] sm:$0xff]
        %v566 = vld [vmem:[%s410 + $0x88] sm:$0xff]
        %v567 = vld [vmem:[%s410 + $0x90] sm:$0xff]
        %v568 = vld [vmem:[%s410 + $0x98] sm:$0xff]
        %v569 = vld [vmem:[%s410 + $0xa0] sm:$0xff]
        %v570 = vld [vmem:[%s410 + $0xa8] sm:$0xff]
        %v571 = vld [vmem:[%s410 + $0xb0] sm:$0xff]
        %v572 = vld [vmem:[%s410 + $0xb8] sm:$0xff]
        %v573 = vld [vmem:[%s410 + $0xc0] sm:$0xff]
        %v574 = vld [vmem:[%s410 + $0xc8] sm:$0xff]
        %v575 = vld [vmem:[%s410 + $0xd0] sm:$0xff]
        %v576 = vld [vmem:[%s410 + $0xd8] sm:$0xff]
        %v577 = vld [vmem:[%s410 + $0xe0] sm:$0xff]
        %v578 = vld [vmem:[%s410 + $0xe8] sm:$0xff]
        %v579 = vld [vmem:[%s410 + $0xf0] sm:$0xff]
        %v580 = vld [vmem:[%s410 + $0xf8] sm:$0xff]
        %v581 = vld [vmem:[%s410 + $0x100] sm:$0xff]
        %v582 = vld [vmem:[%s410 + $0x108] sm:$0xff]
        %v583 = vld [vmem:[%s410 + $0x110] sm:$0xff]
        %v584 = vld [vmem:[%s410 + $0x118] sm:$0xff]
        %v585 = vld [vmem:[%s410 + $0x120] sm:$0xff]
        %v586 = vld [vmem:[%s410 + $0x128] sm:$0xff]
        %v587 = vld [vmem:[%s410 + $0x130] sm:$0xff]
        %v588 = vld [vmem:[%s410 + $0x138] sm:$0xff]
        %v589 = vld [vmem:[%s410 + $0x140] sm:$0xff]
        %v590 = vld [vmem:[%s410 + $0x148] sm:$0xff]
        %v591 = vld [vmem:[%s410 + $0x150] sm:$0xff]
        %v592 = vld [vmem:[%s410 + $0x158] sm:$0xff]
        %v593 = vld [vmem:[%s410 + $0x160] sm:$0xff]
        %v594 = vld [vmem:[%s410 + $0x168] sm:$0xff]
        %v595 = vld [vmem:[%s410 + $0x170] sm:$0xff]
        %v596 = vld [vmem:[%s410 + $0x178] sm:$0xff]
        %v597 = vld [vmem:[%s410 + $0x180] sm:$0xff]
        %v598 = vld [vmem:[%s410 + $0x188] sm:$0xff]
        %v599 = vld [vmem:[%s410 + $0x190] sm:$0xff]
        %v600 = vld [vmem:[%s410 + $0x198] sm:$0xff]
        %v601 = vld [vmem:[%s410 + $0x1a0] sm:$0xff]
        %v602 = vld [vmem:[%s410 + $0x1a8] sm:$0xff]
        %v603 = vld [vmem:[%s410 + $0x1b0] sm:$0xff]
        %v604 = vld [vmem:[%s410 + $0x1b8] sm:$0xff]
        %v605 = vld [vmem:[%s410 + $0x1c0] sm:$0xff]
        %v606 = vld [vmem:[%s410 + $0x1c8] sm:$0xff]
        %v607 = vld [vmem:[%s410 + $0x1d0] sm:$0xff]
        %v608 = vld [vmem:[%s410 + $0x1d8] sm:$0xff]
        %v609 = vld [vmem:[%s410 + $0x1e0] sm:$0xff]
        %v610 = vld [vmem:[%s410 + $0x1e8] sm:$0xff]
        %v611 = vld [vmem:[%s410 + $0x1f0] sm:$0xff]
        %v612 = vld [vmem:[%s410 + $0x1f8] sm:$0xff]
        %v613 = vld [vmem:[%s410 + $0x200] sm:$0xff]
        %v614 = vld [vmem:[%s410 + $0x208] sm:$0xff]
        %v615 = vld [vmem:[%s410 + $0x210] sm:$0xff]
        %v616 = vld [vmem:[%s410 + $0x218] sm:$0xff]
        %v617 = vld [vmem:[%s410 + $0x220] sm:$0xff]
        %v618 = vld [vmem:[%s410 + $0x228] sm:$0xff]
        %v619 = vld [vmem:[%s410 + $0x230] sm:$0xff]
        %v620 = vld [vmem:[%s410 + $0x238] sm:$0xff]
        %v621 = vld [vmem:[%s410 + $0x240] sm:$0xff]
        %v622 = vld [vmem:[%s410 + $0x248] sm:$0xff]
        %v623 = vld [vmem:[%s410 + $0x250] sm:$0xff]
        %v624 = vld [vmem:[%s410 + $0x258] sm:$0xff]
        %v625 = vld [vmem:[%s410 + $0x260] sm:$0xff]
        %v626 = vld [vmem:[%s410 + $0x268] sm:$0xff]
        %v627 = vld [vmem:[%s410 + $0x270] sm:$0xff]
        %v628 = vld [vmem:[%s410 + $0x278] sm:$0xff]
        %v629 = vld [vmem:[%s410 + $0x280] sm:$0xff]
        %v630 = vld [vmem:[%s410 + $0x288] sm:$0xff]
        %v631 = vld [vmem:[%s410 + $0x290] sm:$0xff]
        %v632 = vld [vmem:[%s410 + $0x298] sm:$0xff]
        %v633 = vld [vmem:[%s410 + $0x2a0] sm:$0xff]
        %v634 = vld [vmem:[%s410 + $0x2a8] sm:$0xff]
        %v635 = vld [vmem:[%s410 + $0x2b0] sm:$0xff]
        %v636 = vld [vmem:[%s410 + $0x2b8] sm:$0xff]
        %v637 = vld [vmem:[%s410 + $0x2c0] sm:$0xff]
        %v638 = vld [vmem:[%s410 + $0x2c8] sm:$0xff]
        %v639 = vld [vmem:[%s410 + $0x2d0] sm:$0xff]
        %v640 = vld [vmem:[%s410 + $0x2d8] sm:$0xff]
        %v641 = vld [vmem:[%s410 + $0x2e0] sm:$0xff]
        %v642 = vld [vmem:[%s410 + $0x2e8] sm:$0xff]
        %v643 = vld [vmem:[%s410 + $0x2f0] sm:$0xff]
        %v644 = vld [vmem:[%s410 + $0x2f8] sm:$0xff]
        %v645 = vld [vmem:[%s410 + $0x300] sm:$0xff]
        %v646 = vld [vmem:[%s410 + $0x308] sm:$0xff]
        %v647 = vld [vmem:[%s410 + $0x310] sm:$0xff]
        %v648 = vld [vmem:[%s410 + $0x318] sm:$0xff]
        %v649 = vld [vmem:[%s410 + $0x320] sm:$0xff]
        %v650 = vld [vmem:[%s410 + $0x328] sm:$0xff]
        %v651 = vld [vmem:[%s410 + $0x330] sm:$0xff]
        %v652 = vld [vmem:[%s410 + $0x338] sm:$0xff]
        %v653 = vld [vmem:[%s410 + $0x340] sm:$0xff]
        %v654 = vld [vmem:[%s410 + $0x348] sm:$0xff]
        %v655 = vld [vmem:[%s410 + $0x350] sm:$0xff]
        %v656 = vld [vmem:[%s410 + $0x358] sm:$0xff]
        %v657 = vld [vmem:[%s410 + $0x360] sm:$0xff]
        %v658 = vld [vmem:[%s410 + $0x368] sm:$0xff]
        %v659 = vld [vmem:[%s410 + $0x370] sm:$0xff]
        %v660 = vld [vmem:[%s410 + $0x378] sm:$0xff]
        %v661 = vld [vmem:[%s410 + $0x380] sm:$0xff]
        %v662 = vld [vmem:[%s410 + $0x388] sm:$0xff]
        %v663 = vld [vmem:[%s410 + $0x390] sm:$0xff]
        %v664 = vld [vmem:[%s410 + $0x398] sm:$0xff]
        %v665 = vld [vmem:[%s410 + $0x3a0] sm:$0xff]
        %v666 = vld [vmem:[%s410 + $0x3a8] sm:$0xff]
        %v667 = vld [vmem:[%s410 + $0x3b0] sm:$0xff]
        %v668 = vld [vmem:[%s410 + $0x3b8] sm:$0xff]
        %v669 = vld [vmem:[%s410 + $0x3c0] sm:$0xff]
        %v670 = vld [vmem:[%s410 + $0x3c8] sm:$0xff]
        %v671 = vld [vmem:[%s410 + $0x3d0] sm:$0xff]
        %v672 = vld [vmem:[%s410 + $0x3d8] sm:$0xff]
        %v673 = vld [vmem:[%s410 + $0x3e0] sm:$0xff]
        %v674 = vld [vmem:[%s410 + $0x3e8] sm:$0xff]
        %v675 = vld [vmem:[%s410 + $0x3f0] sm:$0xff]
        %v676 = vld [vmem:[%s410 + $0x3f8] sm:$0xff]
        %v677 = vld [vmem:[%s6] sm:$0x1]
        %v678 = vld [vmem:[%s6 + $0x1] sm:$0x1]
        %v679 = vld [vmem:[%s7] sm:$0x1]
        %v680 = vld [vmem:[%s7 + $0x1] sm:$0x1]
        %v681 = vld [vmem:[%s7 + $0x2] sm:$0x1]
        %v682 = vld [vmem:[%s3] sm:$0xff]
        %v683 = vld [vmem:[%s3 + $0x8] sm:$0xff]
        %v684 = vld [vmem:[%s3 + $0x10] sm:$0xff]
        %v685 = vld [vmem:[%s3 + $0x18] sm:$0xff]
        %v686 = vperm.slane %v677, 0
        %vm687 = vcmask 261120
        %v689 = vsel %vm687, %v413, 0
        %v692 = vsel %vm687, %v414, 0
        %v695 = vsel %vm687, %v415, 0
        %v698 = vsel %vm687, %v416, 0
        %v701 = vsel %vm687, %v417, 0
        %v704 = vsel %vm687, %v418, 0
        %v707 = vsel %vm687, %v419, 0
        %v710 = vsel %vm687, %v420, 0
        %712 = vmatpush.msra.mxu0 0.0
        %713 = vmatpush.msra.mxu0 0.0
        %714 = vmatpush.msra.mxu0 0.0
        %715 = vmatpush.msra.mxu0 0.0
        %716 = vmatpush.msra.mxu0 0.0
        %717 = vmatpush.msra.mxu0 0.0
        %718 = vmatpush.msra.mxu0 0.0
        %719 = vmatpush.msra.mxu0 0.0
        %720 = vmatpush.msra.mxu0 0.0
        %721 = vmatpush.msra.mxu0 0.0
        %722 = vmatpush.msra.mxu0 0.0
        %723 = vmatpush.msra.mxu0 0.0
        %724 = vmatpush.msra.mxu0 %v685
        %725 = vmatpush.msra.mxu0 %v684
        %726 = vmatpush.msra.mxu0 %v683
        %727 = vmatpush.msra.mxu0 %v682
        %728 = vmatmul.f32.gmra.mxu0 %v689
        %v729 = vpop.f32.mrf.mxu0
        %v730 = vadd.f32 %v686, %v729
        %731 = vmatmul.f32.gmra.mxu0 %v692
        %v732 = vpop.f32.mrf.mxu0
        %v733 = vadd.f32 %v686, %v732
        %734 = vmatmul.f32.gmra.mxu0 %v695
        %v735 = vpop.f32.mrf.mxu0
        %v736 = vadd.f32 %v686, %v735
        %737 = vmatmul.f32.gmra.mxu0 %v698
        %v738 = vpop.f32.mrf.mxu0
        %v739 = vadd.f32 %v686, %v738
        %740 = vmatmul.f32.gmra.mxu0 %v701
        %v741 = vpop.f32.mrf.mxu0
        %v742 = vadd.f32 %v686, %v741
        %743 = vmatmul.f32.gmra.mxu0 %v704
        %v744 = vpop.f32.mrf.mxu0
        %v745 = vadd.f32 %v686, %v744
        %746 = vmatmul.f32.gmra.mxu0 %v707
        %v747 = vpop.f32.mrf.mxu0
        %v748 = vadd.f32 %v686, %v747
        %749 = vmatmul.f32.gmra.mxu0 %v710
        %v750 = vpop.f32.mrf.mxu0
        %v751 = vadd.f32 %v686, %v750
        %752 = vdwg.mxu0
        %v753 = vld [vmem:[%s4] sm:$0xff]
        %v754 = vld [vmem:[%s4 + $0x8] sm:$0xff]
        %v755 = vld [vmem:[%s4 + $0x10] sm:$0xff]
        %v756 = vld [vmem:[%s4 + $0x18] sm:$0xff]
        %v758 = vsel %vm687, %v421, 0
        %v761 = vsel %vm687, %v422, 0
        %v764 = vsel %vm687, %v423, 0
        %v767 = vsel %vm687, %v424, 0
        %v770 = vsel %vm687, %v425, 0
        %v773 = vsel %vm687, %v426, 0
        %v776 = vsel %vm687, %v427, 0
        %v779 = vsel %vm687, %v428, 0
        %v782 = vsel %vm687, %v429, 0
        %v785 = vsel %vm687, %v430, 0
        %v788 = vsel %vm687, %v431, 0
        %v791 = vsel %vm687, %v432, 0
        %v794 = vsel %vm687, %v433, 0
        %v797 = vsel %vm687, %v434, 0
        %v800 = vsel %vm687, %v435, 0
        %v803 = vsel %vm687, %v436, 0
        %v806 = vsel %vm687, %v437, 0
        %v809 = vsel %vm687, %v438, 0
        %v812 = vsel %vm687, %v439, 0
        %v815 = vsel %vm687, %v440, 0
        %v818 = vsel %vm687, %v441, 0
        %v821 = vsel %vm687, %v442, 0
        %v824 = vsel %vm687, %v443, 0
        %v827 = vsel %vm687, %v444, 0
        %v830 = vsel %vm687, %v445, 0
        %v833 = vsel %vm687, %v446, 0
        %v836 = vsel %vm687, %v447, 0
        %v839 = vsel %vm687, %v448, 0
        %v842 = vsel %vm687, %v449, 0
        %v845 = vsel %vm687, %v450, 0
        %v848 = vsel %vm687, %v451, 0
        %v851 = vsel %vm687, %v452, 0
        %v854 = vsel %vm687, %v453, 0
        %v857 = vsel %vm687, %v454, 0
        %v860 = vsel %vm687, %v455, 0
        %v863 = vsel %vm687, %v456, 0
        %v866 = vsel %vm687, %v457, 0
        %v869 = vsel %vm687, %v458, 0
        %v872 = vsel %vm687, %v459, 0
        %v875 = vsel %vm687, %v460, 0
        %v878 = vsel %vm687, %v461, 0
        %v881 = vsel %vm687, %v462, 0
        %v884 = vsel %vm687, %v463, 0
        %v887 = vsel %vm687, %v464, 0
        %v890 = vsel %vm687, %v465, 0
        %v893 = vsel %vm687, %v466, 0
        %v896 = vsel %vm687, %v467, 0
        %v899 = vsel %vm687, %v468, 0
        %v902 = vsel %vm687, %v469, 0
        %v905 = vsel %vm687, %v470, 0
        %v908 = vsel %vm687, %v471, 0
        %v911 = vsel %vm687, %v472, 0
        %v914 = vsel %vm687, %v473, 0
        %v917 = vsel %vm687, %v474, 0
        %v920 = vsel %vm687, %v475, 0
        %v923 = vsel %vm687, %v476, 0
        %v926 = vsel %vm687, %v477, 0
        %v929 = vsel %vm687, %v478, 0
        %v932 = vsel %vm687, %v479, 0
        %v935 = vsel %vm687, %v480, 0
        %v938 = vsel %vm687, %v481, 0
        %v941 = vsel %vm687, %v482, 0
        %v944 = vsel %vm687, %v483, 0
        %v947 = vsel %vm687, %v484, 0
        %v950 = vsel %vm687, %v485, 0
        %v953 = vsel %vm687, %v486, 0
        %v956 = vsel %vm687, %v487, 0
        %v959 = vsel %vm687, %v488, 0
        %v962 = vsel %vm687, %v489, 0
        %v965 = vsel %vm687, %v490, 0
        %v968 = vsel %vm687, %v491, 0
        %v971 = vsel %vm687, %v492, 0
        %v974 = vsel %vm687, %v493, 0
        %v977 = vsel %vm687, %v494, 0
        %v980 = vsel %vm687, %v495, 0
        %v983 = vsel %vm687, %v496, 0
        %v986 = vsel %vm687, %v497, 0
        %v989 = vsel %vm687, %v498, 0
        %v992 = vsel %vm687, %v499, 0
        %v995 = vsel %vm687, %v500, 0
        %v998 = vsel %vm687, %v501, 0
        %v1001 = vsel %vm687, %v502, 0
        %v1004 = vsel %vm687, %v503, 0
        %v1007 = vsel %vm687, %v504, 0
        %v1010 = vsel %vm687, %v505, 0
        %v1013 = vsel %vm687, %v506, 0
        %v1016 = vsel %vm687, %v507, 0
        %v1019 = vsel %vm687, %v508, 0
        %v1022 = vsel %vm687, %v509, 0
        %v1025 = vsel %vm687, %v510, 0
        %v1028 = vsel %vm687, %v511, 0
        %v1031 = vsel %vm687, %v512, 0
        %v1034 = vsel %vm687, %v513, 0
        %v1037 = vsel %vm687, %v514, 0
        %v1040 = vsel %vm687, %v515, 0
        %v1043 = vsel %vm687, %v516, 0
        %v1046 = vsel %vm687, %v517, 0
        %v1049 = vsel %vm687, %v518, 0
        %v1052 = vsel %vm687, %v519, 0
        %v1055 = vsel %vm687, %v520, 0
        %v1058 = vsel %vm687, %v521, 0
        %v1061 = vsel %vm687, %v522, 0
        %v1064 = vsel %vm687, %v523, 0
        %v1067 = vsel %vm687, %v524, 0
        %v1070 = vsel %vm687, %v525, 0
        %v1073 = vsel %vm687, %v526, 0
        %v1076 = vsel %vm687, %v527, 0
        %v1079 = vsel %vm687, %v528, 0
        %v1082 = vsel %vm687, %v529, 0
        %v1085 = vsel %vm687, %v530, 0
        %v1088 = vsel %vm687, %v531, 0
        %v1091 = vsel %vm687, %v532, 0
        %v1094 = vsel %vm687, %v533, 0
        %v1097 = vsel %vm687, %v534, 0
        %v1100 = vsel %vm687, %v535, 0
        %v1103 = vsel %vm687, %v536, 0
        %v1106 = vsel %vm687, %v537, 0
        %v1109 = vsel %vm687, %v538, 0
        %v1112 = vsel %vm687, %v539, 0
        %v1115 = vsel %vm687, %v540, 0
        %v1118 = vsel %vm687, %v541, 0
        %v1121 = vsel %vm687, %v542, 0
        %v1124 = vsel %vm687, %v543, 0
        %v1127 = vsel %vm687, %v544, 0
        %v1130 = vsel %vm687, %v545, 0
        %v1133 = vsel %vm687, %v546, 0
        %v1136 = vsel %vm687, %v547, 0
        %v1139 = vsel %vm687, %v548, 0
        %1141 = vmatpush.msra.mxu0 0.0
        %1142 = vmatpush.msra.mxu0 0.0
        %1143 = vmatpush.msra.mxu0 0.0
        %1144 = vmatpush.msra.mxu0 0.0
        %1145 = vmatpush.msra.mxu0 0.0
        %1146 = vmatpush.msra.mxu0 0.0
        %1147 = vmatpush.msra.mxu0 0.0
        %1148 = vmatpush.msra.mxu0 0.0
        %1149 = vmatpush.msra.mxu0 0.0
        %1150 = vmatpush.msra.mxu0 0.0
        %1151 = vmatpush.msra.mxu0 0.0
        %1152 = vmatpush.msra.mxu0 0.0
        %1153 = vmatpush.msra.mxu0 %v756
        %1154 = vmatpush.msra.mxu0 %v755
        %1155 = vmatpush.msra.mxu0 %v754
        %1156 = vmatpush.msra.mxu0 %v753
        %1157 = vmatmul.f32.gmra.mxu0 %v758
        %v1158 = vpop.f32.mrf.mxu0
        %v1159 = vadd.f32 0.0, %v1158
        %1160 = vmatmul.f32.gmra.mxu0 %v761
        %v1161 = vpop.f32.mrf.mxu0
        %v1162 = vadd.f32 0.0, %v1161
        %1163 = vmatmul.f32.gmra.mxu0 %v764
        %v1164 = vpop.f32.mrf.mxu0
        %v1165 = vadd.f32 0.0, %v1164
        %1166 = vmatmul.f32.gmra.mxu0 %v767
        %v1167 = vpop.f32.mrf.mxu0
        %v1168 = vadd.f32 0.0, %v1167
        %1169 = vmatmul.f32.gmra.mxu0 %v770
        %v1170 = vpop.f32.mrf.mxu0
        %v1171 = vadd.f32 0.0, %v1170
        %1172 = vmatmul.f32.gmra.mxu0 %v773
        %v1173 = vpop.f32.mrf.mxu0
        %v1174 = vadd.f32 0.0, %v1173
        %1175 = vmatmul.f32.gmra.mxu0 %v776
        %v1176 = vpop.f32.mrf.mxu0
        %v1177 = vadd.f32 0.0, %v1176
        %1178 = vmatmul.f32.gmra.mxu0 %v779
        %v1179 = vpop.f32.mrf.mxu0
        %v1180 = vadd.f32 0.0, %v1179
        %1181 = vmatmul.f32.gmra.mxu0 %v782
        %v1182 = vpop.f32.mrf.mxu0
        %v1183 = vadd.f32 0.0, %v1182
        %1184 = vmatmul.f32.gmra.mxu0 %v785
        %v1185 = vpop.f32.mrf.mxu0
        %v1186 = vadd.f32 0.0, %v1185
        %1187 = vmatmul.f32.gmra.mxu0 %v788
        %v1188 = vpop.f32.mrf.mxu0
        %v1189 = vadd.f32 0.0, %v1188
        %1190 = vmatmul.f32.gmra.mxu0 %v791
        %v1191 = vpop.f32.mrf.mxu0
        %v1192 = vadd.f32 0.0, %v1191
        %1193 = vmatmul.f32.gmra.mxu0 %v794
        %v1194 = vpop.f32.mrf.mxu0
        %v1195 = vadd.f32 0.0, %v1194
        %1196 = vmatmul.f32.gmra.mxu0 %v797
        %v1197 = vpop.f32.mrf.mxu0
        %v1198 = vadd.f32 0.0, %v1197
        %1199 = vmatmul.f32.gmra.mxu0 %v800
        %v1200 = vpop.f32.mrf.mxu0
        %v1201 = vadd.f32 0.0, %v1200
        %1202 = vmatmul.f32.gmra.mxu0 %v803
        %v1203 = vpop.f32.mrf.mxu0
        %v1204 = vadd.f32 0.0, %v1203
        %1205 = vmatmul.f32.gmra.mxu0 %v806
        %v1206 = vpop.f32.mrf.mxu0
        %v1207 = vadd.f32 0.0, %v1206
        %1208 = vmatmul.f32.gmra.mxu0 %v809
        %v1209 = vpop.f32.mrf.mxu0
        %v1210 = vadd.f32 0.0, %v1209
        %1211 = vmatmul.f32.gmra.mxu0 %v812
        %v1212 = vpop.f32.mrf.mxu0
        %v1213 = vadd.f32 0.0, %v1212
        %1214 = vmatmul.f32.gmra.mxu0 %v815
        %v1215 = vpop.f32.mrf.mxu0
        %v1216 = vadd.f32 0.0, %v1215
        %1217 = vmatmul.f32.gmra.mxu0 %v818
        %v1218 = vpop.f32.mrf.mxu0
        %v1219 = vadd.f32 0.0, %v1218
        %1220 = vmatmul.f32.gmra.mxu0 %v821
        %v1221 = vpop.f32.mrf.mxu0
        %v1222 = vadd.f32 0.0, %v1221
        %1223 = vmatmul.f32.gmra.mxu0 %v824
        %v1224 = vpop.f32.mrf.mxu0
        %v1225 = vadd.f32 0.0, %v1224
        %1226 = vmatmul.f32.gmra.mxu0 %v827
        %v1227 = vpop.f32.mrf.mxu0
        %v1228 = vadd.f32 0.0, %v1227
        %1229 = vmatmul.f32.gmra.mxu0 %v830
        %v1230 = vpop.f32.mrf.mxu0
        %v1231 = vadd.f32 0.0, %v1230
        %1232 = vmatmul.f32.gmra.mxu0 %v833
        %v1233 = vpop.f32.mrf.mxu0
        %v1234 = vadd.f32 0.0, %v1233
        %1235 = vmatmul.f32.gmra.mxu0 %v836
        %v1236 = vpop.f32.mrf.mxu0
        %v1237 = vadd.f32 0.0, %v1236
        %1238 = vmatmul.f32.gmra.mxu0 %v839
        %v1239 = vpop.f32.mrf.mxu0
        %v1240 = vadd.f32 0.0, %v1239
        %1241 = vmatmul.f32.gmra.mxu0 %v842
        %v1242 = vpop.f32.mrf.mxu0
        %v1243 = vadd.f32 0.0, %v1242
        %1244 = vmatmul.f32.gmra.mxu0 %v845
        %v1245 = vpop.f32.mrf.mxu0
        %v1246 = vadd.f32 0.0, %v1245
        %1247 = vmatmul.f32.gmra.mxu0 %v848
        %v1248 = vpop.f32.mrf.mxu0
        %v1249 = vadd.f32 0.0, %v1248
        %1250 = vmatmul.f32.gmra.mxu0 %v851
        %v1251 = vpop.f32.mrf.mxu0
        %v1252 = vadd.f32 0.0, %v1251
        %1253 = vmatmul.f32.gmra.mxu0 %v854
        %v1254 = vpop.f32.mrf.mxu0
        %v1255 = vadd.f32 0.0, %v1254
        %1256 = vmatmul.f32.gmra.mxu0 %v857
        %v1257 = vpop.f32.mrf.mxu0
        %v1258 = vadd.f32 0.0, %v1257
        %1259 = vmatmul.f32.gmra.mxu0 %v860
        %v1260 = vpop.f32.mrf.mxu0
        %v1261 = vadd.f32 0.0, %v1260
        %1262 = vmatmul.f32.gmra.mxu0 %v863
        %v1263 = vpop.f32.mrf.mxu0
        %v1264 = vadd.f32 0.0, %v1263
        %1265 = vmatmul.f32.gmra.mxu0 %v866
        %v1266 = vpop.f32.mrf.mxu0
        %v1267 = vadd.f32 0.0, %v1266
        %1268 = vmatmul.f32.gmra.mxu0 %v869
        %v1269 = vpop.f32.mrf.mxu0
        %v1270 = vadd.f32 0.0, %v1269
        %1271 = vmatmul.f32.gmra.mxu0 %v872
        %v1272 = vpop.f32.mrf.mxu0
        %v1273 = vadd.f32 0.0, %v1272
        %1274 = vmatmul.f32.gmra.mxu0 %v875
        %v1275 = vpop.f32.mrf.mxu0
        %v1276 = vadd.f32 0.0, %v1275
        %1277 = vmatmul.f32.gmra.mxu0 %v878
        %v1278 = vpop.f32.mrf.mxu0
        %v1279 = vadd.f32 0.0, %v1278
        %1280 = vmatmul.f32.gmra.mxu0 %v881
        %v1281 = vpop.f32.mrf.mxu0
        %v1282 = vadd.f32 0.0, %v1281
        %1283 = vmatmul.f32.gmra.mxu0 %v884
        %v1284 = vpop.f32.mrf.mxu0
        %v1285 = vadd.f32 0.0, %v1284
        %1286 = vmatmul.f32.gmra.mxu0 %v887
        %v1287 = vpop.f32.mrf.mxu0
        %v1288 = vadd.f32 0.0, %v1287
        %1289 = vmatmul.f32.gmra.mxu0 %v890
        %v1290 = vpop.f32.mrf.mxu0
        %v1291 = vadd.f32 0.0, %v1290
        %1292 = vmatmul.f32.gmra.mxu0 %v893
        %v1293 = vpop.f32.mrf.mxu0
        %v1294 = vadd.f32 0.0, %v1293
        %1295 = vmatmul.f32.gmra.mxu0 %v896
        %v1296 = vpop.f32.mrf.mxu0
        %v1297 = vadd.f32 0.0, %v1296
        %1298 = vmatmul.f32.gmra.mxu0 %v899
        %v1299 = vpop.f32.mrf.mxu0
        %v1300 = vadd.f32 0.0, %v1299
        %1301 = vmatmul.f32.gmra.mxu0 %v902
        %v1302 = vpop.f32.mrf.mxu0
        %v1303 = vadd.f32 0.0, %v1302
        %1304 = vmatmul.f32.gmra.mxu0 %v905
        %v1305 = vpop.f32.mrf.mxu0
        %v1306 = vadd.f32 0.0, %v1305
        %1307 = vmatmul.f32.gmra.mxu0 %v908
        %v1308 = vpop.f32.mrf.mxu0
        %v1309 = vadd.f32 0.0, %v1308
        %1310 = vmatmul.f32.gmra.mxu0 %v911
        %v1311 = vpop.f32.mrf.mxu0
        %v1312 = vadd.f32 0.0, %v1311
        %1313 = vmatmul.f32.gmra.mxu0 %v914
        %v1314 = vpop.f32.mrf.mxu0
        %v1315 = vadd.f32 0.0, %v1314
        %1316 = vmatmul.f32.gmra.mxu0 %v917
        %v1317 = vpop.f32.mrf.mxu0
        %v1318 = vadd.f32 0.0, %v1317
        %1319 = vmatmul.f32.gmra.mxu0 %v920
        %v1320 = vpop.f32.mrf.mxu0
        %v1321 = vadd.f32 0.0, %v1320
        %1322 = vmatmul.f32.gmra.mxu0 %v923
        %v1323 = vpop.f32.mrf.mxu0
        %v1324 = vadd.f32 0.0, %v1323
        %1325 = vmatmul.f32.gmra.mxu0 %v926
        %v1326 = vpop.f32.mrf.mxu0
        %v1327 = vadd.f32 0.0, %v1326
        %1328 = vmatmul.f32.gmra.mxu0 %v929
        %v1329 = vpop.f32.mrf.mxu0
        %v1330 = vadd.f32 0.0, %v1329
        %1331 = vmatmul.f32.gmra.mxu0 %v932
        %v1332 = vpop.f32.mrf.mxu0
        %v1333 = vadd.f32 0.0, %v1332
        %1334 = vmatmul.f32.gmra.mxu0 %v935
        %v1335 = vpop.f32.mrf.mxu0
        %v1336 = vadd.f32 0.0, %v1335
        %1337 = vmatmul.f32.gmra.mxu0 %v938
        %v1338 = vpop.f32.mrf.mxu0
        %v1339 = vadd.f32 0.0, %v1338
        %1340 = vmatmul.f32.gmra.mxu0 %v941
        %v1341 = vpop.f32.mrf.mxu0
        %v1342 = vadd.f32 0.0, %v1341
        %1343 = vmatmul.f32.gmra.mxu0 %v944
        %v1344 = vpop.f32.mrf.mxu0
        %v1345 = vadd.f32 0.0, %v1344
        %1346 = vmatmul.f32.gmra.mxu0 %v947
        %v1347 = vpop.f32.mrf.mxu0
        %v1348 = vadd.f32 0.0, %v1347
        %1349 = vmatmul.f32.gmra.mxu0 %v950
        %v1350 = vpop.f32.mrf.mxu0
        %v1351 = vadd.f32 0.0, %v1350
        %1352 = vmatmul.f32.gmra.mxu0 %v953
        %v1353 = vpop.f32.mrf.mxu0
        %v1354 = vadd.f32 0.0, %v1353
        %1355 = vmatmul.f32.gmra.mxu0 %v956
        %v1356 = vpop.f32.mrf.mxu0
        %v1357 = vadd.f32 0.0, %v1356
        %1358 = vmatmul.f32.gmra.mxu0 %v959
        %v1359 = vpop.f32.mrf.mxu0
        %v1360 = vadd.f32 0.0, %v1359
        %1361 = vmatmul.f32.gmra.mxu0 %v962
        %v1362 = vpop.f32.mrf.mxu0
        %v1363 = vadd.f32 0.0, %v1362
        %1364 = vmatmul.f32.gmra.mxu0 %v965
        %v1365 = vpop.f32.mrf.mxu0
        %v1366 = vadd.f32 0.0, %v1365
        %1367 = vmatmul.f32.gmra.mxu0 %v968
        %v1368 = vpop.f32.mrf.mxu0
        %v1369 = vadd.f32 0.0, %v1368
        %1370 = vmatmul.f32.gmra.mxu0 %v971
        %v1371 = vpop.f32.mrf.mxu0
        %v1372 = vadd.f32 0.0, %v1371
        %1373 = vmatmul.f32.gmra.mxu0 %v974
        %v1374 = vpop.f32.mrf.mxu0
        %v1375 = vadd.f32 0.0, %v1374
        %1376 = vmatmul.f32.gmra.mxu0 %v977
        %v1377 = vpop.f32.mrf.mxu0
        %v1378 = vadd.f32 0.0, %v1377
        %1379 = vmatmul.f32.gmra.mxu0 %v980
        %v1380 = vpop.f32.mrf.mxu0
        %v1381 = vadd.f32 0.0, %v1380
        %1382 = vmatmul.f32.gmra.mxu0 %v983
        %v1383 = vpop.f32.mrf.mxu0
        %v1384 = vadd.f32 0.0, %v1383
        %1385 = vmatmul.f32.gmra.mxu0 %v986
        %v1386 = vpop.f32.mrf.mxu0
        %v1387 = vadd.f32 0.0, %v1386
        %1388 = vmatmul.f32.gmra.mxu0 %v989
        %v1389 = vpop.f32.mrf.mxu0
        %v1390 = vadd.f32 0.0, %v1389
        %1391 = vmatmul.f32.gmra.mxu0 %v992
        %v1392 = vpop.f32.mrf.mxu0
        %v1393 = vadd.f32 0.0, %v1392
        %1394 = vmatmul.f32.gmra.mxu0 %v995
        %v1395 = vpop.f32.mrf.mxu0
        %v1396 = vadd.f32 0.0, %v1395
        %1397 = vmatmul.f32.gmra.mxu0 %v998
        %v1398 = vpop.f32.mrf.mxu0
        %v1399 = vadd.f32 0.0, %v1398
        %1400 = vmatmul.f32.gmra.mxu0 %v1001
        %v1401 = vpop.f32.mrf.mxu0
        %v1402 = vadd.f32 0.0, %v1401
        %1403 = vmatmul.f32.gmra.mxu0 %v1004
        %v1404 = vpop.f32.mrf.mxu0
        %v1405 = vadd.f32 0.0, %v1404
        %1406 = vmatmul.f32.gmra.mxu0 %v1007
        %v1407 = vpop.f32.mrf.mxu0
        %v1408 = vadd.f32 0.0, %v1407
        %1409 = vmatmul.f32.gmra.mxu0 %v1010
        %v1410 = vpop.f32.mrf.mxu0
        %v1411 = vadd.f32 0.0, %v1410
        %1412 = vmatmul.f32.gmra.mxu0 %v1013
        %v1413 = vpop.f32.mrf.mxu0
        %v1414 = vadd.f32 0.0, %v1413
        %1415 = vmatmul.f32.gmra.mxu0 %v1016
        %v1416 = vpop.f32.mrf.mxu0
        %v1417 = vadd.f32 0.0, %v1416
        %1418 = vmatmul.f32.gmra.mxu0 %v1019
        %v1419 = vpop.f32.mrf.mxu0
        %v1420 = vadd.f32 0.0, %v1419
        %1421 = vmatmul.f32.gmra.mxu0 %v1022
        %v1422 = vpop.f32.mrf.mxu0
        %v1423 = vadd.f32 0.0, %v1422
        %1424 = vmatmul.f32.gmra.mxu0 %v1025
        %v1425 = vpop.f32.mrf.mxu0
        %v1426 = vadd.f32 0.0, %v1425
        %1427 = vmatmul.f32.gmra.mxu0 %v1028
        %v1428 = vpop.f32.mrf.mxu0
        %v1429 = vadd.f32 0.0, %v1428
        %1430 = vmatmul.f32.gmra.mxu0 %v1031
        %v1431 = vpop.f32.mrf.mxu0
        %v1432 = vadd.f32 0.0, %v1431
        %1433 = vmatmul.f32.gmra.mxu0 %v1034
        %v1434 = vpop.f32.mrf.mxu0
        %v1435 = vadd.f32 0.0, %v1434
        %1436 = vmatmul.f32.gmra.mxu0 %v1037
        %v1437 = vpop.f32.mrf.mxu0
        %v1438 = vadd.f32 0.0, %v1437
        %1439 = vmatmul.f32.gmra.mxu0 %v1040
        %v1440 = vpop.f32.mrf.mxu0
        %v1441 = vadd.f32 0.0, %v1440
        %1442 = vmatmul.f32.gmra.mxu0 %v1043
        %v1443 = vpop.f32.mrf.mxu0
        %v1444 = vadd.f32 0.0, %v1443
        %1445 = vmatmul.f32.gmra.mxu0 %v1046
        %v1446 = vpop.f32.mrf.mxu0
        %v1447 = vadd.f32 0.0, %v1446
        %1448 = vmatmul.f32.gmra.mxu0 %v1049
        %v1449 = vpop.f32.mrf.mxu0
        %v1450 = vadd.f32 0.0, %v1449
        %1451 = vmatmul.f32.gmra.mxu0 %v1052
        %v1452 = vpop.f32.mrf.mxu0
        %v1453 = vadd.f32 0.0, %v1452
        %1454 = vmatmul.f32.gmra.mxu0 %v1055
        %v1455 = vpop.f32.mrf.mxu0
        %v1456 = vadd.f32 0.0, %v1455
        %1457 = vmatmul.f32.gmra.mxu0 %v1058
        %v1458 = vpop.f32.mrf.mxu0
        %v1459 = vadd.f32 0.0, %v1458
        %1460 = vmatmul.f32.gmra.mxu0 %v1061
        %v1461 = vpop.f32.mrf.mxu0
        %v1462 = vadd.f32 0.0, %v1461
        %1463 = vmatmul.f32.gmra.mxu0 %v1064
        %v1464 = vpop.f32.mrf.mxu0
        %v1465 = vadd.f32 0.0, %v1464
        %1466 = vmatmul.f32.gmra.mxu0 %v1067
        %v1467 = vpop.f32.mrf.mxu0
        %v1468 = vadd.f32 0.0, %v1467
        %1469 = vmatmul.f32.gmra.mxu0 %v1070
        %v1470 = vpop.f32.mrf.mxu0
        %v1471 = vadd.f32 0.0, %v1470
        %1472 = vmatmul.f32.gmra.mxu0 %v1073
        %v1473 = vpop.f32.mrf.mxu0
        %v1474 = vadd.f32 0.0, %v1473
        %1475 = vmatmul.f32.gmra.mxu0 %v1076
        %v1476 = vpop.f32.mrf.mxu0
        %v1477 = vadd.f32 0.0, %v1476
        %1478 = vmatmul.f32.gmra.mxu0 %v1079
        %v1479 = vpop.f32.mrf.mxu0
        %v1480 = vadd.f32 0.0, %v1479
        %1481 = vmatmul.f32.gmra.mxu0 %v1082
        %v1482 = vpop.f32.mrf.mxu0
        %v1483 = vadd.f32 0.0, %v1482
        %1484 = vmatmul.f32.gmra.mxu0 %v1085
        %v1485 = vpop.f32.mrf.mxu0
        %v1486 = vadd.f32 0.0, %v1485
        %1487 = vmatmul.f32.gmra.mxu0 %v1088
        %v1488 = vpop.f32.mrf.mxu0
        %v1489 = vadd.f32 0.0, %v1488
        %1490 = vmatmul.f32.gmra.mxu0 %v1091
        %v1491 = vpop.f32.mrf.mxu0
        %v1492 = vadd.f32 0.0, %v1491
        %1493 = vmatmul.f32.gmra.mxu0 %v1094
        %v1494 = vpop.f32.mrf.mxu0
        %v1495 = vadd.f32 0.0, %v1494
        %1496 = vmatmul.f32.gmra.mxu0 %v1097
        %v1497 = vpop.f32.mrf.mxu0
        %v1498 = vadd.f32 0.0, %v1497
        %1499 = vmatmul.f32.gmra.mxu0 %v1100
        %v1500 = vpop.f32.mrf.mxu0
        %v1501 = vadd.f32 0.0, %v1500
        %1502 = vmatmul.f32.gmra.mxu0 %v1103
        %v1503 = vpop.f32.mrf.mxu0
        %v1504 = vadd.f32 0.0, %v1503
        %1505 = vmatmul.f32.gmra.mxu0 %v1106
        %v1506 = vpop.f32.mrf.mxu0
        %v1507 = vadd.f32 0.0, %v1506
        %1508 = vmatmul.f32.gmra.mxu0 %v1109
        %v1509 = vpop.f32.mrf.mxu0
        %v1510 = vadd.f32 0.0, %v1509
        %1511 = vmatmul.f32.gmra.mxu0 %v1112
        %v1512 = vpop.f32.mrf.mxu0
        %v1513 = vadd.f32 0.0, %v1512
        %1514 = vmatmul.f32.gmra.mxu0 %v1115
        %v1515 = vpop.f32.mrf.mxu0
        %v1516 = vadd.f32 0.0, %v1515
        %1517 = vmatmul.f32.gmra.mxu0 %v1118
        %v1518 = vpop.f32.mrf.mxu0
        %v1519 = vadd.f32 0.0, %v1518
        %1520 = vmatmul.f32.gmra.mxu0 %v1121
        %v1521 = vpop.f32.mrf.mxu0
        %v1522 = vadd.f32 0.0, %v1521
        %1523 = vmatmul.f32.gmra.mxu0 %v1124
        %v1524 = vpop.f32.mrf.mxu0
        %v1525 = vadd.f32 0.0, %v1524
        %1526 = vmatmul.f32.gmra.mxu0 %v1127
        %v1527 = vpop.f32.mrf.mxu0
        %v1528 = vadd.f32 0.0, %v1527
        %1529 = vmatmul.f32.gmra.mxu0 %v1130
        %v1530 = vpop.f32.mrf.mxu0
        %v1531 = vadd.f32 0.0, %v1530
        %1532 = vmatmul.f32.gmra.mxu0 %v1133
        %v1533 = vpop.f32.mrf.mxu0
        %v1534 = vadd.f32 0.0, %v1533
        %1535 = vmatmul.f32.gmra.mxu0 %v1136
        %v1536 = vpop.f32.mrf.mxu0
        %v1537 = vadd.f32 0.0, %v1536
        %1538 = vmatmul.f32.gmra.mxu0 %v1139
        %v1539 = vpop.f32.mrf.mxu0
        %v1540 = vadd.f32 0.0, %v1539
        %1541 = vdwg.mxu0
        %v1550 = vrot.slane %v730, 1
        %v1551 = vrot.slane %v730, 2
        %v1552 = vrot.slane %v730, 3
        %v1553 = vrot.slane %v730, 4
        %v1554 = vrot.slane %v730, 5
        %v1555 = vrot.slane %v730, 6
        %v1556 = vrot.slane %v730, 7
        %v1557 = vrot.slane %v733, 1
        %v1558 = vrot.slane %v733, 2
        %v1559 = vrot.slane %v733, 3
        %v1560 = vrot.slane %v733, 4
        %v1561 = vrot.slane %v733, 5
        %v1562 = vrot.slane %v733, 6
        %v1563 = vrot.slane %v733, 7
        %v1564 = vrot.slane %v736, 1
        %v1565 = vrot.slane %v736, 2
        %v1566 = vrot.slane %v736, 3
        %v1567 = vrot.slane %v736, 4
        %v1568 = vrot.slane %v736, 5
        %v1569 = vrot.slane %v736, 6
        %v1570 = vrot.slane %v736, 7
        %v1571 = vrot.slane %v739, 1
        %v1572 = vrot.slane %v739, 2
        %v1573 = vrot.slane %v739, 3
        %v1574 = vrot.slane %v739, 4
        %v1575 = vrot.slane %v739, 5
        %v1576 = vrot.slane %v739, 6
        %v1577 = vrot.slane %v739, 7
        %v1578 = vrot.slane %v742, 1
        %v1579 = vrot.slane %v742, 2
        %v1580 = vrot.slane %v742, 3
        %v1581 = vrot.slane %v742, 4
        %v1582 = vrot.slane %v742, 5
        %v1583 = vrot.slane %v742, 6
        %v1584 = vrot.slane %v742, 7
        %v1585 = vrot.slane %v745, 1
        %v1586 = vrot.slane %v745, 2
        %v1587 = vrot.slane %v745, 3
        %v1588 = vrot.slane %v745, 4
        %v1589 = vrot.slane %v745, 5
        %v1590 = vrot.slane %v745, 6
        %v1591 = vrot.slane %v745, 7
        %v1592 = vrot.slane %v748, 1
        %v1593 = vrot.slane %v748, 2
        %v1594 = vrot.slane %v748, 3
        %v1595 = vrot.slane %v748, 4
        %v1596 = vrot.slane %v748, 5
        %v1597 = vrot.slane %v748, 6
        %v1598 = vrot.slane %v748, 7
        %v1599 = vrot.slane %v751, 1
        %v1600 = vrot.slane %v751, 2
        %v1601 = vrot.slane %v751, 3
        %v1602 = vrot.slane %v751, 4
        %v1603 = vrot.slane %v751, 5
        %v1604 = vrot.slane %v751, 6
        %v1605 = vrot.slane %v751, 7
        %v1606 = vperm.slane %v730, 0
        %v1607 = vperm.slane %v1550, 0
        %v1608 = vperm.slane %v1551, 0
        %v1609 = vperm.slane %v1552, 0
        %v1610 = vperm.slane %v1553, 0
        %v1611 = vperm.slane %v1554, 0
        %v1612 = vperm.slane %v1555, 0
        %v1613 = vperm.slane %v1556, 0
        %v1614 = vperm.slane %v733, 0
        %v1615 = vperm.slane %v1557, 0
        %v1616 = vperm.slane %v1558, 0
        %v1617 = vperm.slane %v1559, 0
        %v1618 = vperm.slane %v1560, 0
        %v1619 = vperm.slane %v1561, 0
        %v1620 = vperm.slane %v1562, 0
        %v1621 = vperm.slane %v1563, 0
        %v1622 = vperm.slane %v736, 0
        %v1623 = vperm.slane %v1564, 0
        %v1624 = vperm.slane %v1565, 0
        %v1625 = vperm.slane %v1566, 0
        %v1626 = vperm.slane %v1567, 0
        %v1627 = vperm.slane %v1568, 0
        %v1628 = vperm.slane %v1569, 0
        %v1629 = vperm.slane %v1570, 0
        %v1630 = vperm.slane %v739, 0
        %v1631 = vperm.slane %v1571, 0
        %v1632 = vperm.slane %v1572, 0
        %v1633 = vperm.slane %v1573, 0
        %v1634 = vperm.slane %v1574, 0
        %v1635 = vperm.slane %v1575, 0
        %v1636 = vperm.slane %v1576, 0
        %v1637 = vperm.slane %v1577, 0
        %v1638 = vperm.slane %v742, 0
        %v1639 = vperm.slane %v1578, 0
        %v1640 = vperm.slane %v1579, 0
        %v1641 = vperm.slane %v1580, 0
        %v1642 = vperm.slane %v1581, 0
        %v1643 = vperm.slane %v1582, 0
        %v1644 = vperm.slane %v1583, 0
        %v1645 = vperm.slane %v1584, 0
        %v1646 = vperm.slane %v745, 0
        %v1647 = vperm.slane %v1585, 0
        %v1648 = vperm.slane %v1586, 0
        %v1649 = vperm.slane %v1587, 0
        %v1650 = vperm.slane %v1588, 0
        %v1651 = vperm.slane %v1589, 0
        %v1652 = vperm.slane %v1590, 0
        %v1653 = vperm.slane %v1591, 0
        %v1654 = vperm.slane %v748, 0
        %v1655 = vperm.slane %v1592, 0
        %v1656 = vperm.slane %v1593, 0
        %v1657 = vperm.slane %v1594, 0
        %v1658 = vperm.slane %v1595, 0
        %v1659 = vperm.slane %v1596, 0
        %v1660 = vperm.slane %v1597, 0
        %v1661 = vperm.slane %v1598, 0
        %v1662 = vperm.slane %v751, 0
        %v1663 = vperm.slane %v1599, 0
        %v1664 = vperm.slane %v1600, 0
        %v1665 = vperm.slane %v1601, 0
        %v1666 = vperm.slane %v1602, 0
        %v1667 = vperm.slane %v1603, 0
        %v1668 = vperm.slane %v1604, 0
        %v1669 = vperm.slane %v1605, 0
        %v1734 = vadd.f32 %v1159, %v1606
        %v1735 = vadd.f32 %v1162, %v1606
        %v1736 = vadd.f32 %v1165, %v1607
        %v1737 = vadd.f32 %v1168, %v1607
        %v1738 = vadd.f32 %v1171, %v1608
        %v1739 = vadd.f32 %v1174, %v1608
        %v1740 = vadd.f32 %v1177, %v1609
        %v1741 = vadd.f32 %v1180, %v1609
        %v1742 = vadd.f32 %v1183, %v1610
        %v1743 = vadd.f32 %v1186, %v1610
        %v1744 = vadd.f32 %v1189, %v1611
        %v1745 = vadd.f32 %v1192, %v1611
        %v1746 = vadd.f32 %v1195, %v1612
        %v1747 = vadd.f32 %v1198, %v1612
        %v1748 = vadd.f32 %v1201, %v1613
        %v1749 = vadd.f32 %v1204, %v1613
        %v1750 = vadd.f32 %v1207, %v1614
        %v1751 = vadd.f32 %v1210, %v1614
        %v1752 = vadd.f32 %v1213, %v1615
        %v1753 = vadd.f32 %v1216, %v1615
        %v1754 = vadd.f32 %v1219, %v1616
        %v1755 = vadd.f32 %v1222, %v1616
        %v1756 = vadd.f32 %v1225, %v1617
        %v1757 = vadd.f32 %v1228, %v1617
        %v1758 = vadd.f32 %v1231, %v1618
        %v1759 = vadd.f32 %v1234, %v1618
        %v1760 = vadd.f32 %v1237, %v1619
        %v1761 = vadd.f32 %v1240, %v1619
        %v1762 = vadd.f32 %v1243, %v1620
        %v1763 = vadd.f32 %v1246, %v1620
        %v1764 = vadd.f32 %v1249, %v1621
        %v1765 = vadd.f32 %v1252, %v1621
        %v1766 = vadd.f32 %v1255, %v1622
        %v1767 = vadd.f32 %v1258, %v1622
        %v1768 = vadd.f32 %v1261, %v1623
        %v1769 = vadd.f32 %v1264, %v1623
        %v1770 = vadd.f32 %v1267, %v1624
        %v1771 = vadd.f32 %v1270, %v1624
        %v1772 = vadd.f32 %v1273, %v1625
        %v1773 = vadd.f32 %v1276, %v1625
        %v1774 = vadd.f32 %v1279, %v1626
        %v1775 = vadd.f32 %v1282, %v1626
        %v1776 = vadd.f32 %v1285, %v1627
        %v1777 = vadd.f32 %v1288, %v1627
        %v1778 = vadd.f32 %v1291, %v1628
        %v1779 = vadd.f32 %v1294, %v1628
        %v1780 = vadd.f32 %v1297, %v1629
        %v1781 = vadd.f32 %v1300, %v1629
        %v1782 = vadd.f32 %v1303, %v1630
        %v1783 = vadd.f32 %v1306, %v1630
        %v1784 = vadd.f32 %v1309, %v1631
        %v1785 = vadd.f32 %v1312, %v1631
        %v1786 = vadd.f32 %v1315, %v1632
        %v1787 = vadd.f32 %v1318, %v1632
        %v1788 = vadd.f32 %v1321, %v1633
        %v1789 = vadd.f32 %v1324, %v1633
        %v1790 = vadd.f32 %v1327, %v1634
        %v1791 = vadd.f32 %v1330, %v1634
        %v1792 = vadd.f32 %v1333, %v1635
        %v1793 = vadd.f32 %v1336, %v1635
        %v1794 = vadd.f32 %v1339, %v1636
        %v1795 = vadd.f32 %v1342, %v1636
        %v1796 = vadd.f32 %v1345, %v1637
        %v1797 = vadd.f32 %v1348, %v1637
        %v1798 = vadd.f32 %v1351, %v1638
        %v1799 = vadd.f32 %v1354, %v1638
        %v1800 = vadd.f32 %v1357, %v1639
        %v1801 = vadd.f32 %v1360, %v1639
        %v1802 = vadd.f32 %v1363, %v1640
        %v1803 = vadd.f32 %v1366, %v1640
        %v1804 = vadd.f32 %v1369, %v1641
        %v1805 = vadd.f32 %v1372, %v1641
        %v1806 = vadd.f32 %v1375, %v1642
        %v1807 = vadd.f32 %v1378, %v1642
        %v1808 = vadd.f32 %v1381, %v1643
        %v1809 = vadd.f32 %v1384, %v1643
        %v1810 = vadd.f32 %v1387, %v1644
        %v1811 = vadd.f32 %v1390, %v1644
        %v1812 = vadd.f32 %v1393, %v1645
        %v1813 = vadd.f32 %v1396, %v1645
        %v1814 = vadd.f32 %v1399, %v1646
        %v1815 = vadd.f32 %v1402, %v1646
        %v1816 = vadd.f32 %v1405, %v1647
        %v1817 = vadd.f32 %v1408, %v1647
        %v1818 = vadd.f32 %v1411, %v1648
        %v1819 = vadd.f32 %v1414, %v1648
        %v1820 = vadd.f32 %v1417, %v1649
        %v1821 = vadd.f32 %v1420, %v1649
        %v1822 = vadd.f32 %v1423, %v1650
        %v1823 = vadd.f32 %v1426, %v1650
        %v1824 = vadd.f32 %v1429, %v1651
        %v1825 = vadd.f32 %v1432, %v1651
        %v1826 = vadd.f32 %v1435, %v1652
        %v1827 = vadd.f32 %v1438, %v1652
        %v1828 = vadd.f32 %v1441, %v1653
        %v1829 = vadd.f32 %v1444, %v1653
        %v1830 = vadd.f32 %v1447, %v1654
        %v1831 = vadd.f32 %v1450, %v1654
        %v1832 = vadd.f32 %v1453, %v1655
        %v1833 = vadd.f32 %v1456, %v1655
        %v1834 = vadd.f32 %v1459, %v1656
        %v1835 = vadd.f32 %v1462, %v1656
        %v1836 = vadd.f32 %v1465, %v1657
        %v1837 = vadd.f32 %v1468, %v1657
        %v1838 = vadd.f32 %v1471, %v1658
        %v1839 = vadd.f32 %v1474, %v1658
        %v1840 = vadd.f32 %v1477, %v1659
        %v1841 = vadd.f32 %v1480, %v1659
        %v1842 = vadd.f32 %v1483, %v1660
        %v1843 = vadd.f32 %v1486, %v1660
        %v1844 = vadd.f32 %v1489, %v1661
        %v1845 = vadd.f32 %v1492, %v1661
        %v1846 = vadd.f32 %v1495, %v1662
        %v1847 = vadd.f32 %v1498, %v1662
        %v1848 = vadd.f32 %v1501, %v1663
        %v1849 = vadd.f32 %v1504, %v1663
        %v1850 = vadd.f32 %v1507, %v1664
        %v1851 = vadd.f32 %v1510, %v1664
        %v1852 = vadd.f32 %v1513, %v1665
        %v1853 = vadd.f32 %v1516, %v1665
        %v1854 = vadd.f32 %v1519, %v1666
        %v1855 = vadd.f32 %v1522, %v1666
        %v1856 = vadd.f32 %v1525, %v1667
        %v1857 = vadd.f32 %v1528, %v1667
        %v1858 = vadd.f32 %v1531, %v1668
        %v1859 = vadd.f32 %v1534, %v1668
        %v1860 = vadd.f32 %v1537, %v1669
        %v1861 = vadd.f32 %v1540, %v1669
        %v1862 = vmul.f32 %v1734, 0.5
        %v1863 = vmul.f32 %v1735, 0.5
        %v1864 = vmul.f32 %v1736, 0.5
        %v1865 = vmul.f32 %v1737, 0.5
        %v1866 = vmul.f32 %v1738, 0.5
        %v1867 = vmul.f32 %v1739, 0.5
        %v1868 = vmul.f32 %v1740, 0.5
        %v1869 = vmul.f32 %v1741, 0.5
        %v1870 = vmul.f32 %v1742, 0.5
        %v1871 = vmul.f32 %v1743, 0.5
        %v1872 = vmul.f32 %v1744, 0.5
        %v1873 = vmul.f32 %v1745, 0.5
        %v1874 = vmul.f32 %v1746, 0.5
        %v1875 = vmul.f32 %v1747, 0.5
        %v1876 = vmul.f32 %v1748, 0.5
        %v1877 = vmul.f32 %v1749, 0.5
        %v1878 = vmul.f32 %v1750, 0.5
        %v1879 = vmul.f32 %v1751, 0.5
        %v1880 = vmul.f32 %v1752, 0.5
        %v1881 = vmul.f32 %v1753, 0.5
        %v1882 = vmul.f32 %v1754, 0.5
        %v1883 = vmul.f32 %v1755, 0.5
        %v1884 = vmul.f32 %v1756, 0.5
        %v1885 = vmul.f32 %v1757, 0.5
        %v1886 = vmul.f32 %v1758, 0.5
        %v1887 = vmul.f32 %v1759, 0.5
        %v1888 = vmul.f32 %v1760, 0.5
        %v1889 = vmul.f32 %v1761, 0.5
        %v1890 = vmul.f32 %v1762, 0.5
        %v1891 = vmul.f32 %v1763, 0.5
        %v1892 = vmul.f32 %v1764, 0.5
        %v1893 = vmul.f32 %v1765, 0.5
        %v1894 = vmul.f32 %v1766, 0.5
        %v1895 = vmul.f32 %v1767, 0.5
        %v1896 = vmul.f32 %v1768, 0.5
        %v1897 = vmul.f32 %v1769, 0.5
        %v1898 = vmul.f32 %v1770, 0.5
        %v1899 = vmul.f32 %v1771, 0.5
        %v1900 = vmul.f32 %v1772, 0.5
        %v1901 = vmul.f32 %v1773, 0.5
        %v1902 = vmul.f32 %v1774, 0.5
        %v1903 = vmul.f32 %v1775, 0.5
        %v1904 = vmul.f32 %v1776, 0.5
        %v1905 = vmul.f32 %v1777, 0.5
        %v1906 = vmul.f32 %v1778, 0.5
        %v1907 = vmul.f32 %v1779, 0.5
        %v1908 = vmul.f32 %v1780, 0.5
        %v1909 = vmul.f32 %v1781, 0.5
        %v1910 = vmul.f32 %v1782, 0.5
        %v1911 = vmul.f32 %v1783, 0.5
        %v1912 = vmul.f32 %v1784, 0.5
        %v1913 = vmul.f32 %v1785, 0.5
        %v1914 = vmul.f32 %v1786, 0.5
        %v1915 = vmul.f32 %v1787, 0.5
        %v1916 = vmul.f32 %v1788, 0.5
        %v1917 = vmul.f32 %v1789, 0.5
        %v1918 = vmul.f32 %v1790, 0.5
        %v1919 = vmul.f32 %v1791, 0.5
        %v1920 = vmul.f32 %v1792, 0.5
        %v1921 = vmul.f32 %v1793, 0.5
        %v1922 = vmul.f32 %v1794, 0.5
        %v1923 = vmul.f32 %v1795, 0.5
        %v1924 = vmul.f32 %v1796, 0.5
        %v1925 = vmul.f32 %v1797, 0.5
        %v1926 = vmul.f32 %v1798, 0.5
        %v1927 = vmul.f32 %v1799, 0.5
        %v1928 = vmul.f32 %v1800, 0.5
        %v1929 = vmul.f32 %v1801, 0.5
        %v1930 = vmul.f32 %v1802, 0.5
        %v1931 = vmul.f32 %v1803, 0.5
        %v1932 = vmul.f32 %v1804, 0.5
        %v1933 = vmul.f32 %v1805, 0.5
        %v1934 = vmul.f32 %v1806, 0.5
        %v1935 = vmul.f32 %v1807, 0.5
        %v1936 = vmul.f32 %v1808, 0.5
        %v1937 = vmul.f32 %v1809, 0.5
        %v1938 = vmul.f32 %v1810, 0.5
        %v1939 = vmul.f32 %v1811, 0.5
        %v1940 = vmul.f32 %v1812, 0.5
        %v1941 = vmul.f32 %v1813, 0.5
        %v1942 = vmul.f32 %v1814, 0.5
        %v1943 = vmul.f32 %v1815, 0.5
        %v1944 = vmul.f32 %v1816, 0.5
        %v1945 = vmul.f32 %v1817, 0.5
        %v1946 = vmul.f32 %v1818, 0.5
        %v1947 = vmul.f32 %v1819, 0.5
        %v1948 = vmul.f32 %v1820, 0.5
        %v1949 = vmul.f32 %v1821, 0.5
        %v1950 = vmul.f32 %v1822, 0.5
        %v1951 = vmul.f32 %v1823, 0.5
        %v1952 = vmul.f32 %v1824, 0.5
        %v1953 = vmul.f32 %v1825, 0.5
        %v1954 = vmul.f32 %v1826, 0.5
        %v1955 = vmul.f32 %v1827, 0.5
        %v1956 = vmul.f32 %v1828, 0.5
        %v1957 = vmul.f32 %v1829, 0.5
        %v1958 = vmul.f32 %v1830, 0.5
        %v1959 = vmul.f32 %v1831, 0.5
        %v1960 = vmul.f32 %v1832, 0.5
        %v1961 = vmul.f32 %v1833, 0.5
        %v1962 = vmul.f32 %v1834, 0.5
        %v1963 = vmul.f32 %v1835, 0.5
        %v1964 = vmul.f32 %v1836, 0.5
        %v1965 = vmul.f32 %v1837, 0.5
        %v1966 = vmul.f32 %v1838, 0.5
        %v1967 = vmul.f32 %v1839, 0.5
        %v1968 = vmul.f32 %v1840, 0.5
        %v1969 = vmul.f32 %v1841, 0.5
        %v1970 = vmul.f32 %v1842, 0.5
        %v1971 = vmul.f32 %v1843, 0.5
        %v1972 = vmul.f32 %v1844, 0.5
        %v1973 = vmul.f32 %v1845, 0.5
        %v1974 = vmul.f32 %v1846, 0.5
        %v1975 = vmul.f32 %v1847, 0.5
        %v1976 = vmul.f32 %v1848, 0.5
        %v1977 = vmul.f32 %v1849, 0.5
        %v1978 = vmul.f32 %v1850, 0.5
        %v1979 = vmul.f32 %v1851, 0.5
        %v1980 = vmul.f32 %v1852, 0.5
        %v1981 = vmul.f32 %v1853, 0.5
        %v1982 = vmul.f32 %v1854, 0.5
        %v1983 = vmul.f32 %v1855, 0.5
        %v1984 = vmul.f32 %v1856, 0.5
        %v1985 = vmul.f32 %v1857, 0.5
        %v1986 = vmul.f32 %v1858, 0.5
        %v1987 = vmul.f32 %v1859, 0.5
        %v1988 = vmul.f32 %v1860, 0.5
        %v1989 = vmul.f32 %v1861, 0.5
        %v1990 = vmul.f32 %v1734, 0.044715
        %v1991 = vmul.f32 %v1735, 0.044715
        %v1992 = vmul.f32 %v1736, 0.044715
        %v1993 = vmul.f32 %v1737, 0.044715
        %v1994 = vmul.f32 %v1738, 0.044715
        %v1995 = vmul.f32 %v1739, 0.044715
        %v1996 = vmul.f32 %v1740, 0.044715
        %v1997 = vmul.f32 %v1741, 0.044715
        %v1998 = vmul.f32 %v1742, 0.044715
        %v1999 = vmul.f32 %v1743, 0.044715
        %v2000 = vmul.f32 %v1744, 0.044715
        %v2001 = vmul.f32 %v1745, 0.044715
        %v2002 = vmul.f32 %v1746, 0.044715
        %v2003 = vmul.f32 %v1747, 0.044715
        %v2004 = vmul.f32 %v1748, 0.044715
        %v2005 = vmul.f32 %v1749, 0.044715
        %v2006 = vmul.f32 %v1750, 0.044715
        %v2007 = vmul.f32 %v1751, 0.044715
        %v2008 = vmul.f32 %v1752, 0.044715
        %v2009 = vmul.f32 %v1753, 0.044715
        %v2010 = vmul.f32 %v1754, 0.044715
        %v2011 = vmul.f32 %v1755, 0.044715
        %v2012 = vmul.f32 %v1756, 0.044715
        %v2013 = vmul.f32 %v1757, 0.044715
        %v2014 = vmul.f32 %v1758, 0.044715
        %v2015 = vmul.f32 %v1759, 0.044715
        %v2016 = vmul.f32 %v1760, 0.044715
        %v2017 = vmul.f32 %v1761, 0.044715
        %v2018 = vmul.f32 %v1762, 0.044715
        %v2019 = vmul.f32 %v1763, 0.044715
        %v2020 = vmul.f32 %v1764, 0.044715
        %v2021 = vmul.f32 %v1765, 0.044715
        %v2022 = vmul.f32 %v1766, 0.044715
        %v2023 = vmul.f32 %v1767, 0.044715
        %v2024 = vmul.f32 %v1768, 0.044715
        %v2025 = vmul.f32 %v1769, 0.044715
        %v2026 = vmul.f32 %v1770, 0.044715
        %v2027 = vmul.f32 %v1771, 0.044715
        %v2028 = vmul.f32 %v1772, 0.044715
        %v2029 = vmul.f32 %v1773, 0.044715
        %v2030 = vmul.f32 %v1774, 0.044715
        %v2031 = vmul.f32 %v1775, 0.044715
        %v2032 = vmul.f32 %v1776, 0.044715
        %v2033 = vmul.f32 %v1777, 0.044715
        %v2034 = vmul.f32 %v1778, 0.044715
        %v2035 = vmul.f32 %v1779, 0.044715
        %v2036 = vmul.f32 %v1780, 0.044715
        %v2037 = vmul.f32 %v1781, 0.044715
        %v2038 = vmul.f32 %v1782, 0.044715
        %v2039 = vmul.f32 %v1783, 0.044715
        %v2040 = vmul.f32 %v1784, 0.044715
        %v2041 = vmul.f32 %v1785, 0.044715
        %v2042 = vmul.f32 %v1786, 0.044715
        %v2043 = vmul.f32 %v1787, 0.044715
        %v2044 = vmul.f32 %v1788, 0.044715
        %v2045 = vmul.f32 %v1789, 0.044715
        %v2046 = vmul.f32 %v1790, 0.044715
        %v2047 = vmul.f32 %v1791, 0.044715
        %v2048 = vmul.f32 %v1792, 0.044715
        %v2049 = vmul.f32 %v1793, 0.044715
        %v2050 = vmul.f32 %v1794, 0.044715
        %v2051 = vmul.f32 %v1795, 0.044715
        %v2052 = vmul.f32 %v1796, 0.044715
        %v2053 = vmul.f32 %v1797, 0.044715
        %v2054 = vmul.f32 %v1798, 0.044715
        %v2055 = vmul.f32 %v1799, 0.044715
        %v2056 = vmul.f32 %v1800, 0.044715
        %v2057 = vmul.f32 %v1801, 0.044715
        %v2058 = vmul.f32 %v1802, 0.044715
        %v2059 = vmul.f32 %v1803, 0.044715
        %v2060 = vmul.f32 %v1804, 0.044715
        %v2061 = vmul.f32 %v1805, 0.044715
        %v2062 = vmul.f32 %v1806, 0.044715
        %v2063 = vmul.f32 %v1807, 0.044715
        %v2064 = vmul.f32 %v1808, 0.044715
        %v2065 = vmul.f32 %v1809, 0.044715
        %v2066 = vmul.f32 %v1810, 0.044715
        %v2067 = vmul.f32 %v1811, 0.044715
        %v2068 = vmul.f32 %v1812, 0.044715
        %v2069 = vmul.f32 %v1813, 0.044715
        %v2070 = vmul.f32 %v1814, 0.044715
        %v2071 = vmul.f32 %v1815, 0.044715
        %v2072 = vmul.f32 %v1816, 0.044715
        %v2073 = vmul.f32 %v1817, 0.044715
        %v2074 = vmul.f32 %v1818, 0.044715
        %v2075 = vmul.f32 %v1819, 0.044715
        %v2076 = vmul.f32 %v1820, 0.044715
        %v2077 = vmul.f32 %v1821, 0.044715
        %v2078 = vmul.f32 %v1822, 0.044715
        %v2079 = vmul.f32 %v1823, 0.044715
        %v2080 = vmul.f32 %v1824, 0.044715
        %v2081 = vmul.f32 %v1825, 0.044715
        %v2082 = vmul.f32 %v1826, 0.044715
        %v2083 = vmul.f32 %v1827, 0.044715
        %v2084 = vmul.f32 %v1828, 0.044715
        %v2085 = vmul.f32 %v1829, 0.044715
        %v2086 = vmul.f32 %v1830, 0.044715
        %v2087 = vmul.f32 %v1831, 0.044715
        %v2088 = vmul.f32 %v1832, 0.044715
        %v2089 = vmul.f32 %v1833, 0.044715
        %v2090 = vmul.f32 %v1834, 0.044715
        %v2091 = vmul.f32 %v1835, 0.044715
        %v2092 = vmul.f32 %v1836, 0.044715
        %v2093 = vmul.f32 %v1837, 0.044715
        %v2094 = vmul.f32 %v1838, 0.044715
        %v2095 = vmul.f32 %v1839, 0.044715
        %v2096 = vmul.f32 %v1840, 0.044715
        %v2097 = vmul.f32 %v1841, 0.044715
        %v2098 = vmul.f32 %v1842, 0.044715
        %v2099 = vmul.f32 %v1843, 0.044715
        %v2100 = vmul.f32 %v1844, 0.044715
        %v2101 = vmul.f32 %v1845, 0.044715
        %v2102 = vmul.f32 %v1846, 0.044715
        %v2103 = vmul.f32 %v1847, 0.044715
        %v2104 = vmul.f32 %v1848, 0.044715
        %v2105 = vmul.f32 %v1849, 0.044715
        %v2106 = vmul.f32 %v1850, 0.044715
        %v2107 = vmul.f32 %v1851, 0.044715
        %v2108 = vmul.f32 %v1852, 0.044715
        %v2109 = vmul.f32 %v1853, 0.044715
        %v2110 = vmul.f32 %v1854, 0.044715
        %v2111 = vmul.f32 %v1855, 0.044715
        %v2112 = vmul.f32 %v1856, 0.044715
        %v2113 = vmul.f32 %v1857, 0.044715
        %v2114 = vmul.f32 %v1858, 0.044715
        %v2115 = vmul.f32 %v1859, 0.044715
        %v2116 = vmul.f32 %v1860, 0.044715
        %v2117 = vmul.f32 %v1861, 0.044715
        %v2118 = vmul.f32 %v1990, %v1734
        %v2119 = vmul.f32 %v1991, %v1735
        %v2120 = vmul.f32 %v1992, %v1736
        %v2121 = vmul.f32 %v1993, %v1737
        %v2122 = vmul.f32 %v1994, %v1738
        %v2123 = vmul.f32 %v1995, %v1739
        %v2124 = vmul.f32 %v1996, %v1740
        %v2125 = vmul.f32 %v1997, %v1741
        %v2126 = vmul.f32 %v1998, %v1742
        %v2127 = vmul.f32 %v1999, %v1743
        %v2128 = vmul.f32 %v2000, %v1744
        %v2129 = vmul.f32 %v2001, %v1745
        %v2130 = vmul.f32 %v2002, %v1746
        %v2131 = vmul.f32 %v2003, %v1747
        %v2132 = vmul.f32 %v2004, %v1748
        %v2133 = vmul.f32 %v2005, %v1749
        %v2134 = vmul.f32 %v2006, %v1750
        %v2135 = vmul.f32 %v2007, %v1751
        %v2136 = vmul.f32 %v2008, %v1752
        %v2137 = vmul.f32 %v2009, %v1753
        %v2138 = vmul.f32 %v2010, %v1754
        %v2139 = vmul.f32 %v2011, %v1755
        %v2140 = vmul.f32 %v2012, %v1756
        %v2141 = vmul.f32 %v2013, %v1757
        %v2142 = vmul.f32 %v2014, %v1758
        %v2143 = vmul.f32 %v2015, %v1759
        %v2144 = vmul.f32 %v2016, %v1760
        %v2145 = vmul.f32 %v2017, %v1761
        %v2146 = vmul.f32 %v2018, %v1762
        %v2147 = vmul.f32 %v2019, %v1763
        %v2148 = vmul.f32 %v2020, %v1764
        %v2149 = vmul.f32 %v2021, %v1765
        %v2150 = vmul.f32 %v2022, %v1766
        %v2151 = vmul.f32 %v2023, %v1767
        %v2152 = vmul.f32 %v2024, %v1768
        %v2153 = vmul.f32 %v2025, %v1769
        %v2154 = vmul.f32 %v2026, %v1770
        %v2155 = vmul.f32 %v2027, %v1771
        %v2156 = vmul.f32 %v2028, %v1772
        %v2157 = vmul.f32 %v2029, %v1773
        %v2158 = vmul.f32 %v2030, %v1774
        %v2159 = vmul.f32 %v2031, %v1775
        %v2160 = vmul.f32 %v2032, %v1776
        %v2161 = vmul.f32 %v2033, %v1777
        %v2162 = vmul.f32 %v2034, %v1778
        %v2163 = vmul.f32 %v2035, %v1779
        %v2164 = vmul.f32 %v2036, %v1780
        %v2165 = vmul.f32 %v2037, %v1781
        %v2166 = vmul.f32 %v2038, %v1782
        %v2167 = vmul.f32 %v2039, %v1783
        %v2168 = vmul.f32 %v2040, %v1784
        %v2169 = vmul.f32 %v2041, %v1785
        %v2170 = vmul.f32 %v2042, %v1786
        %v2171 = vmul.f32 %v2043, %v1787
        %v2172 = vmul.f32 %v2044, %v1788
        %v2173 = vmul.f32 %v2045, %v1789
        %v2174 = vmul.f32 %v2046, %v1790
        %v2175 = vmul.f32 %v2047, %v1791
        %v2176 = vmul.f32 %v2048, %v1792
        %v2177 = vmul.f32 %v2049, %v1793
        %v2178 = vmul.f32 %v2050, %v1794
        %v2179 = vmul.f32 %v2051, %v1795
        %v2180 = vmul.f32 %v2052, %v1796
        %v2181 = vmul.f32 %v2053, %v1797
        %v2182 = vmul.f32 %v2054, %v1798
        %v2183 = vmul.f32 %v2055, %v1799
        %v2184 = vmul.f32 %v2056, %v1800
        %v2185 = vmul.f32 %v2057, %v1801
        %v2186 = vmul.f32 %v2058, %v1802
        %v2187 = vmul.f32 %v2059, %v1803
        %v2188 = vmul.f32 %v2060, %v1804
        %v2189 = vmul.f32 %v2061, %v1805
        %v2190 = vmul.f32 %v2062, %v1806
        %v2191 = vmul.f32 %v2063, %v1807
        %v2192 = vmul.f32 %v2064, %v1808
        %v2193 = vmul.f32 %v2065, %v1809
        %v2194 = vmul.f32 %v2066, %v1810
        %v2195 = vmul.f32 %v2067, %v1811
        %v2196 = vmul.f32 %v2068, %v1812
        %v2197 = vmul.f32 %v2069, %v1813
        %v2198 = vmul.f32 %v2070, %v1814
        %v2199 = vmul.f32 %v2071, %v1815
        %v2200 = vmul.f32 %v2072, %v1816
        %v2201 = vmul.f32 %v2073, %v1817
        %v2202 = vmul.f32 %v2074, %v1818
        %v2203 = vmul.f32 %v2075, %v1819
        %v2204 = vmul.f32 %v2076, %v1820
        %v2205 = vmul.f32 %v2077, %v1821
        %v2206 = vmul.f32 %v2078, %v1822
        %v2207 = vmul.f32 %v2079, %v1823
        %v2208 = vmul.f32 %v2080, %v1824
        %v2209 = vmul.f32 %v2081, %v1825
        %v2210 = vmul.f32 %v2082, %v1826
        %v2211 = vmul.f32 %v2083, %v1827
        %v2212 = vmul.f32 %v2084, %v1828
        %v2213 = vmul.f32 %v2085, %v1829
        %v2214 = vmul.f32 %v2086, %v1830
        %v2215 = vmul.f32 %v2087, %v1831
        %v2216 = vmul.f32 %v2088, %v1832
        %v2217 = vmul.f32 %v2089, %v1833
        %v2218 = vmul.f32 %v2090, %v1834
        %v2219 = vmul.f32 %v2091, %v1835
        %v2220 = vmul.f32 %v2092, %v1836
        %v2221 = vmul.f32 %v2093, %v1837
        %v2222 = vmul.f32 %v2094, %v1838
        %v2223 = vmul.f32 %v2095, %v1839
        %v2224 = vmul.f32 %v2096, %v1840
        %v2225 = vmul.f32 %v2097, %v1841
        %v2226 = vmul.f32 %v2098, %v1842
        %v2227 = vmul.f32 %v2099, %v1843
        %v2228 = vmul.f32 %v2100, %v1844
        %v2229 = vmul.f32 %v2101, %v1845
        %v2230 = vmul.f32 %v2102, %v1846
        %v2231 = vmul.f32 %v2103, %v1847
        %v2232 = vmul.f32 %v2104, %v1848
        %v2233 = vmul.f32 %v2105, %v1849
        %v2234 = vmul.f32 %v2106, %v1850
        %v2235 = vmul.f32 %v2107, %v1851
        %v2236 = vmul.f32 %v2108, %v1852
        %v2237 = vmul.f32 %v2109, %v1853
        %v2238 = vmul.f32 %v2110, %v1854
        %v2239 = vmul.f32 %v2111, %v1855
        %v2240 = vmul.f32 %v2112, %v1856
        %v2241 = vmul.f32 %v2113, %v1857
        %v2242 = vmul.f32 %v2114, %v1858
        %v2243 = vmul.f32 %v2115, %v1859
        %v2244 = vmul.f32 %v2116, %v1860
        %v2245 = vmul.f32 %v2117, %v1861
        %v2246 = vmul.f32 %v2118, %v1734
        %v2247 = vmul.f32 %v2119, %v1735
        %v2248 = vmul.f32 %v2120, %v1736
        %v2249 = vmul.f32 %v2121, %v1737
        %v2250 = vmul.f32 %v2122, %v1738
        %v2251 = vmul.f32 %v2123, %v1739
        %v2252 = vmul.f32 %v2124, %v1740
        %v2253 = vmul.f32 %v2125, %v1741
        %v2254 = vmul.f32 %v2126, %v1742
        %v2255 = vmul.f32 %v2127, %v1743
        %v2256 = vmul.f32 %v2128, %v1744
        %v2257 = vmul.f32 %v2129, %v1745
        %v2258 = vmul.f32 %v2130, %v1746
        %v2259 = vmul.f32 %v2131, %v1747
        %v2260 = vmul.f32 %v2132, %v1748
        %v2261 = vmul.f32 %v2133, %v1749
        %v2262 = vmul.f32 %v2134, %v1750
        %v2263 = vmul.f32 %v2135, %v1751
        %v2264 = vmul.f32 %v2136, %v1752
        %v2265 = vmul.f32 %v2137, %v1753
        %v2266 = vmul.f32 %v2138, %v1754
        %v2267 = vmul.f32 %v2139, %v1755
        %v2268 = vmul.f32 %v2140, %v1756
        %v2269 = vmul.f32 %v2141, %v1757
        %v2270 = vmul.f32 %v2142, %v1758
        %v2271 = vmul.f32 %v2143, %v1759
        %v2272 = vmul.f32 %v2144, %v1760
        %v2273 = vmul.f32 %v2145, %v1761
        %v2274 = vmul.f32 %v2146, %v1762
        %v2275 = vmul.f32 %v2147, %v1763
        %v2276 = vmul.f32 %v2148, %v1764
        %v2277 = vmul.f32 %v2149, %v1765
        %v2278 = vmul.f32 %v2150, %v1766
        %v2279 = vmul.f32 %v2151, %v1767
        %v2280 = vmul.f32 %v2152, %v1768
        %v2281 = vmul.f32 %v2153, %v1769
        %v2282 = vmul.f32 %v2154, %v1770
        %v2283 = vmul.f32 %v2155, %v1771
        %v2284 = vmul.f32 %v2156, %v1772
        %v2285 = vmul.f32 %v2157, %v1773
        %v2286 = vmul.f32 %v2158, %v1774
        %v2287 = vmul.f32 %v2159, %v1775
        %v2288 = vmul.f32 %v2160, %v1776
        %v2289 = vmul.f32 %v2161, %v1777
        %v2290 = vmul.f32 %v2162, %v1778
        %v2291 = vmul.f32 %v2163, %v1779
        %v2292 = vmul.f32 %v2164, %v1780
        %v2293 = vmul.f32 %v2165, %v1781
        %v2294 = vmul.f32 %v2166, %v1782
        %v2295 = vmul.f32 %v2167, %v1783
        %v2296 = vmul.f32 %v2168, %v1784
        %v2297 = vmul.f32 %v2169, %v1785
        %v2298 = vmul.f32 %v2170, %v1786
        %v2299 = vmul.f32 %v2171, %v1787
        %v2300 = vmul.f32 %v2172, %v1788
        %v2301 = vmul.f32 %v2173, %v1789
        %v2302 = vmul.f32 %v2174, %v1790
        %v2303 = vmul.f32 %v2175, %v1791
        %v2304 = vmul.f32 %v2176, %v1792
        %v2305 = vmul.f32 %v2177, %v1793
        %v2306 = vmul.f32 %v2178, %v1794
        %v2307 = vmul.f32 %v2179, %v1795
        %v2308 = vmul.f32 %v2180, %v1796
        %v2309 = vmul.f32 %v2181, %v1797
        %v2310 = vmul.f32 %v2182, %v1798
        %v2311 = vmul.f32 %v2183, %v1799
        %v2312 = vmul.f32 %v2184, %v1800
        %v2313 = vmul.f32 %v2185, %v1801
        %v2314 = vmul.f32 %v2186, %v1802
        %v2315 = vmul.f32 %v2187, %v1803
        %v2316 = vmul.f32 %v2188, %v1804
        %v2317 = vmul.f32 %v2189, %v1805
        %v2318 = vmul.f32 %v2190, %v1806
        %v2319 = vmul.f32 %v2191, %v1807
        %v2320 = vmul.f32 %v2192, %v1808
        %v2321 = vmul.f32 %v2193, %v1809
        %v2322 = vmul.f32 %v2194, %v1810
        %v2323 = vmul.f32 %v2195, %v1811
        %v2324 = vmul.f32 %v2196, %v1812
        %v2325 = vmul.f32 %v2197, %v1813
        %v2326 = vmul.f32 %v2198, %v1814
        %v2327 = vmul.f32 %v2199, %v1815
        %v2328 = vmul.f32 %v2200, %v1816
        %v2329 = vmul.f32 %v2201, %v1817
        %v2330 = vmul.f32 %v2202, %v1818
        %v2331 = vmul.f32 %v2203, %v1819
        %v2332 = vmul.f32 %v2204, %v1820
        %v2333 = vmul.f32 %v2205, %v1821
        %v2334 = vmul.f32 %v2206, %v1822
        %v2335 = vmul.f32 %v2207, %v1823
        %v2336 = vmul.f32 %v2208, %v1824
        %v2337 = vmul.f32 %v2209, %v1825
        %v2338 = vmul.f32 %v2210, %v1826
        %v2339 = vmul.f32 %v2211, %v1827
        %v2340 = vmul.f32 %v2212, %v1828
        %v2341 = vmul.f32 %v2213, %v1829
        %v2342 = vmul.f32 %v2214, %v1830
        %v2343 = vmul.f32 %v2215, %v1831
        %v2344 = vmul.f32 %v2216, %v1832
        %v2345 = vmul.f32 %v2217, %v1833
        %v2346 = vmul.f32 %v2218, %v1834
        %v2347 = vmul.f32 %v2219, %v1835
        %v2348 = vmul.f32 %v2220, %v1836
        %v2349 = vmul.f32 %v2221, %v1837
        %v2350 = vmul.f32 %v2222, %v1838
        %v2351 = vmul.f32 %v2223, %v1839
        %v2352 = vmul.f32 %v2224, %v1840
        %v2353 = vmul.f32 %v2225, %v1841
        %v2354 = vmul.f32 %v2226, %v1842
        %v2355 = vmul.f32 %v2227, %v1843
        %v2356 = vmul.f32 %v2228, %v1844
        %v2357 = vmul.f32 %v2229, %v1845
        %v2358 = vmul.f32 %v2230, %v1846
        %v2359 = vmul.f32 %v2231, %v1847
        %v2360 = vmul.f32 %v2232, %v1848
        %v2361 = vmul.f32 %v2233, %v1849
        %v2362 = vmul.f32 %v2234, %v1850
        %v2363 = vmul.f32 %v2235, %v1851
        %v2364 = vmul.f32 %v2236, %v1852
        %v2365 = vmul.f32 %v2237, %v1853
        %v2366 = vmul.f32 %v2238, %v1854
        %v2367 = vmul.f32 %v2239, %v1855
        %v2368 = vmul.f32 %v2240, %v1856
        %v2369 = vmul.f32 %v2241, %v1857
        %v2370 = vmul.f32 %v2242, %v1858
        %v2371 = vmul.f32 %v2243, %v1859
        %v2372 = vmul.f32 %v2244, %v1860
        %v2373 = vmul.f32 %v2245, %v1861
        %v2374 = vadd.f32 %v1734, %v2246
        %v2375 = vadd.f32 %v1735, %v2247
        %v2376 = vadd.f32 %v1736, %v2248
        %v2377 = vadd.f32 %v1737, %v2249
        %v2378 = vadd.f32 %v1738, %v2250
        %v2379 = vadd.f32 %v1739, %v2251
        %v2380 = vadd.f32 %v1740, %v2252
        %v2381 = vadd.f32 %v1741, %v2253
        %v2382 = vadd.f32 %v1742, %v2254
        %v2383 = vadd.f32 %v1743, %v2255
        %v2384 = vadd.f32 %v1744, %v2256
        %v2385 = vadd.f32 %v1745, %v2257
        %v2386 = vadd.f32 %v1746, %v2258
        %v2387 = vadd.f32 %v1747, %v2259
        %v2388 = vadd.f32 %v1748, %v2260
        %v2389 = vadd.f32 %v1749, %v2261
        %v2390 = vadd.f32 %v1750, %v2262
        %v2391 = vadd.f32 %v1751, %v2263
        %v2392 = vadd.f32 %v1752, %v2264
        %v2393 = vadd.f32 %v1753, %v2265
        %v2394 = vadd.f32 %v1754, %v2266
        %v2395 = vadd.f32 %v1755, %v2267
        %v2396 = vadd.f32 %v1756, %v2268
        %v2397 = vadd.f32 %v1757, %v2269
        %v2398 = vadd.f32 %v1758, %v2270
        %v2399 = vadd.f32 %v1759, %v2271
        %v2400 = vadd.f32 %v1760, %v2272
        %v2401 = vadd.f32 %v1761, %v2273
        %v2402 = vadd.f32 %v1762, %v2274
        %v2403 = vadd.f32 %v1763, %v2275
        %v2404 = vadd.f32 %v1764, %v2276
        %v2405 = vadd.f32 %v1765, %v2277
        %v2406 = vadd.f32 %v1766, %v2278
        %v2407 = vadd.f32 %v1767, %v2279
        %v2408 = vadd.f32 %v1768, %v2280
        %v2409 = vadd.f32 %v1769, %v2281
        %v2410 = vadd.f32 %v1770, %v2282
        %v2411 = vadd.f32 %v1771, %v2283
        %v2412 = vadd.f32 %v1772, %v2284
        %v2413 = vadd.f32 %v1773, %v2285
        %v2414 = vadd.f32 %v1774, %v2286
        %v2415 = vadd.f32 %v1775, %v2287
        %v2416 = vadd.f32 %v1776, %v2288
        %v2417 = vadd.f32 %v1777, %v2289
        %v2418 = vadd.f32 %v1778, %v2290
        %v2419 = vadd.f32 %v1779, %v2291
        %v2420 = vadd.f32 %v1780, %v2292
        %v2421 = vadd.f32 %v1781, %v2293
        %v2422 = vadd.f32 %v1782, %v2294
        %v2423 = vadd.f32 %v1783, %v2295
        %v2424 = vadd.f32 %v1784, %v2296
        %v2425 = vadd.f32 %v1785, %v2297
        %v2426 = vadd.f32 %v1786, %v2298
        %v2427 = vadd.f32 %v1787, %v2299
        %v2428 = vadd.f32 %v1788, %v2300
        %v2429 = vadd.f32 %v1789, %v2301
        %v2430 = vadd.f32 %v1790, %v2302
        %v2431 = vadd.f32 %v1791, %v2303
        %v2432 = vadd.f32 %v1792, %v2304
        %v2433 = vadd.f32 %v1793, %v2305
        %v2434 = vadd.f32 %v1794, %v2306
        %v2435 = vadd.f32 %v1795, %v2307
        %v2436 = vadd.f32 %v1796, %v2308
        %v2437 = vadd.f32 %v1797, %v2309
        %v2438 = vadd.f32 %v1798, %v2310
        %v2439 = vadd.f32 %v1799, %v2311
        %v2440 = vadd.f32 %v1800, %v2312
        %v2441 = vadd.f32 %v1801, %v2313
        %v2442 = vadd.f32 %v1802, %v2314
        %v2443 = vadd.f32 %v1803, %v2315
        %v2444 = vadd.f32 %v1804, %v2316
        %v2445 = vadd.f32 %v1805, %v2317
        %v2446 = vadd.f32 %v1806, %v2318
        %v2447 = vadd.f32 %v1807, %v2319
        %v2448 = vadd.f32 %v1808, %v2320
        %v2449 = vadd.f32 %v1809, %v2321
        %v2450 = vadd.f32 %v1810, %v2322
        %v2451 = vadd.f32 %v1811, %v2323
        %v2452 = vadd.f32 %v1812, %v2324
        %v2453 = vadd.f32 %v1813, %v2325
        %v2454 = vadd.f32 %v1814, %v2326
        %v2455 = vadd.f32 %v1815, %v2327
        %v2456 = vadd.f32 %v1816, %v2328
        %v2457 = vadd.f32 %v1817, %v2329
        %v2458 = vadd.f32 %v1818, %v2330
        %v2459 = vadd.f32 %v1819, %v2331
        %v2460 = vadd.f32 %v1820, %v2332
        %v2461 = vadd.f32 %v1821, %v2333
        %v2462 = vadd.f32 %v1822, %v2334
        %v2463 = vadd.f32 %v1823, %v2335
        %v2464 = vadd.f32 %v1824, %v2336
        %v2465 = vadd.f32 %v1825, %v2337
        %v2466 = vadd.f32 %v1826, %v2338
        %v2467 = vadd.f32 %v1827, %v2339
        %v2468 = vadd.f32 %v1828, %v2340
        %v2469 = vadd.f32 %v1829, %v2341
        %v2470 = vadd.f32 %v1830, %v2342
        %v2471 = vadd.f32 %v1831, %v2343
        %v2472 = vadd.f32 %v1832, %v2344
        %v2473 = vadd.f32 %v1833, %v2345
        %v2474 = vadd.f32 %v1834, %v2346
        %v2475 = vadd.f32 %v1835, %v2347
        %v2476 = vadd.f32 %v1836, %v2348
        %v2477 = vadd.f32 %v1837, %v2349
        %v2478 = vadd.f32 %v1838, %v2350
        %v2479 = vadd.f32 %v1839, %v2351
        %v2480 = vadd.f32 %v1840, %v2352
        %v2481 = vadd.f32 %v1841, %v2353
        %v2482 = vadd.f32 %v1842, %v2354
        %v2483 = vadd.f32 %v1843, %v2355
        %v2484 = vadd.f32 %v1844, %v2356
        %v2485 = vadd.f32 %v1845, %v2357
        %v2486 = vadd.f32 %v1846, %v2358
        %v2487 = vadd.f32 %v1847, %v2359
        %v2488 = vadd.f32 %v1848, %v2360
        %v2489 = vadd.f32 %v1849, %v2361
        %v2490 = vadd.f32 %v1850, %v2362
        %v2491 = vadd.f32 %v1851, %v2363
        %v2492 = vadd.f32 %v1852, %v2364
        %v2493 = vadd.f32 %v1853, %v2365
        %v2494 = vadd.f32 %v1854, %v2366
        %v2495 = vadd.f32 %v1855, %v2367
        %v2496 = vadd.f32 %v1856, %v2368
        %v2497 = vadd.f32 %v1857, %v2369
        %v2498 = vadd.f32 %v1858, %v2370
        %v2499 = vadd.f32 %v1859, %v2371
        %v2500 = vadd.f32 %v1860, %v2372
        %v2501 = vadd.f32 %v1861, %v2373
        %v2502 = vmul.f32 %v2374, 0.7978846
        %v2503 = vmul.f32 %v2375, 0.7978846
        %v2504 = vmul.f32 %v2376, 0.7978846
        %v2505 = vmul.f32 %v2377, 0.7978846
        %v2506 = vmul.f32 %v2378, 0.7978846
        %v2507 = vmul.f32 %v2379, 0.7978846
        %v2508 = vmul.f32 %v2380, 0.7978846
        %v2509 = vmul.f32 %v2381, 0.7978846
        %v2510 = vmul.f32 %v2382, 0.7978846
        %v2511 = vmul.f32 %v2383, 0.7978846
        %v2512 = vmul.f32 %v2384, 0.7978846
        %v2513 = vmul.f32 %v2385, 0.7978846
        %v2514 = vmul.f32 %v2386, 0.7978846
        %v2515 = vmul.f32 %v2387, 0.7978846
        %v2516 = vmul.f32 %v2388, 0.7978846
        %v2517 = vmul.f32 %v2389, 0.7978846
        %v2518 = vmul.f32 %v2390, 0.7978846
        %v2519 = vmul.f32 %v2391, 0.7978846
        %v2520 = vmul.f32 %v2392, 0.7978846
        %v2521 = vmul.f32 %v2393, 0.7978846
        %v2522 = vmul.f32 %v2394, 0.7978846
        %v2523 = vmul.f32 %v2395, 0.7978846
        %v2524 = vmul.f32 %v2396, 0.7978846
        %v2525 = vmul.f32 %v2397, 0.7978846
        %v2526 = vmul.f32 %v2398, 0.7978846
        %v2527 = vmul.f32 %v2399, 0.7978846
        %v2528 = vmul.f32 %v2400, 0.7978846
        %v2529 = vmul.f32 %v2401, 0.7978846
        %v2530 = vmul.f32 %v2402, 0.7978846
        %v2531 = vmul.f32 %v2403, 0.7978846
        %v2532 = vmul.f32 %v2404, 0.7978846
        %v2533 = vmul.f32 %v2405, 0.7978846
        %v2534 = vmul.f32 %v2406, 0.7978846
        %v2535 = vmul.f32 %v2407, 0.7978846
        %v2536 = vmul.f32 %v2408, 0.7978846
        %v2537 = vmul.f32 %v2409, 0.7978846
        %v2538 = vmul.f32 %v2410, 0.7978846
        %v2539 = vmul.f32 %v2411, 0.7978846
        %v2540 = vmul.f32 %v2412, 0.7978846
        %v2541 = vmul.f32 %v2413, 0.7978846
        %v2542 = vmul.f32 %v2414, 0.7978846
        %v2543 = vmul.f32 %v2415, 0.7978846
        %v2544 = vmul.f32 %v2416, 0.7978846
        %v2545 = vmul.f32 %v2417, 0.7978846
        %v2546 = vmul.f32 %v2418, 0.7978846
        %v2547 = vmul.f32 %v2419, 0.7978846
        %v2548 = vmul.f32 %v2420, 0.7978846
        %v2549 = vmul.f32 %v2421, 0.7978846
        %v2550 = vmul.f32 %v2422, 0.7978846
        %v2551 = vmul.f32 %v2423, 0.7978846
        %v2552 = vmul.f32 %v2424, 0.7978846
        %v2553 = vmul.f32 %v2425, 0.7978846
        %v2554 = vmul.f32 %v2426, 0.7978846
        %v2555 = vmul.f32 %v2427, 0.7978846
        %v2556 = vmul.f32 %v2428, 0.7978846
        %v2557 = vmul.f32 %v2429, 0.7978846
        %v2558 = vmul.f32 %v2430, 0.7978846
        %v2559 = vmul.f32 %v2431, 0.7978846
        %v2560 = vmul.f32 %v2432, 0.7978846
        %v2561 = vmul.f32 %v2433, 0.7978846
        %v2562 = vmul.f32 %v2434, 0.7978846
        %v2563 = vmul.f32 %v2435, 0.7978846
        %v2564 = vmul.f32 %v2436, 0.7978846
        %v2565 = vmul.f32 %v2437, 0.7978846
        %v2566 = vmul.f32 %v2438, 0.7978846
        %v2567 = vmul.f32 %v2439, 0.7978846
        %v2568 = vmul.f32 %v2440, 0.7978846
        %v2569 = vmul.f32 %v2441, 0.7978846
        %v2570 = vmul.f32 %v2442, 0.7978846
        %v2571 = vmul.f32 %v2443, 0.7978846
        %v2572 = vmul.f32 %v2444, 0.7978846
        %v2573 = vmul.f32 %v2445, 0.7978846
        %v2574 = vmul.f32 %v2446, 0.7978846
        %v2575 = vmul.f32 %v2447, 0.7978846
        %v2576 = vmul.f32 %v2448, 0.7978846
        %v2577 = vmul.f32 %v2449, 0.7978846
        %v2578 = vmul.f32 %v2450, 0.7978846
        %v2579 = vmul.f32 %v2451, 0.7978846
        %v2580 = vmul.f32 %v2452, 0.7978846
        %v2581 = vmul.f32 %v2453, 0.7978846
        %v2582 = vmul.f32 %v2454, 0.7978846
        %v2583 = vmul.f32 %v2455, 0.7978846
        %v2584 = vmul.f32 %v2456, 0.7978846
        %v2585 = vmul.f32 %v2457, 0.7978846
        %v2586 = vmul.f32 %v2458, 0.7978846
        %v2587 = vmul.f32 %v2459, 0.7978846
        %v2588 = vmul.f32 %v2460, 0.7978846
        %v2589 = vmul.f32 %v2461, 0.7978846
        %v2590 = vmul.f32 %v2462, 0.7978846
        %v2591 = vmul.f32 %v2463, 0.7978846
        %v2592 = vmul.f32 %v2464, 0.7978846
        %v2593 = vmul.f32 %v2465, 0.7978846
        %v2594 = vmul.f32 %v2466, 0.7978846
        %v2595 = vmul.f32 %v2467, 0.7978846
        %v2596 = vmul.f32 %v2468, 0.7978846
        %v2597 = vmul.f32 %v2469, 0.7978846
        %v2598 = vmul.f32 %v2470, 0.7978846
        %v2599 = vmul.f32 %v2471, 0.7978846
        %v2600 = vmul.f32 %v2472, 0.7978846
        %v2601 = vmul.f32 %v2473, 0.7978846
        %v2602 = vmul.f32 %v2474, 0.7978846
        %v2603 = vmul.f32 %v2475, 0.7978846
        %v2604 = vmul.f32 %v2476, 0.7978846
        %v2605 = vmul.f32 %v2477, 0.7978846
        %v2606 = vmul.f32 %v2478, 0.7978846
        %v2607 = vmul.f32 %v2479, 0.7978846
        %v2608 = vmul.f32 %v2480, 0.7978846
        %v2609 = vmul.f32 %v2481, 0.7978846
        %v2610 = vmul.f32 %v2482, 0.7978846
        %v2611 = vmul.f32 %v2483, 0.7978846
        %v2612 = vmul.f32 %v2484, 0.7978846
        %v2613 = vmul.f32 %v2485, 0.7978846
        %v2614 = vmul.f32 %v2486, 0.7978846
        %v2615 = vmul.f32 %v2487, 0.7978846
        %v2616 = vmul.f32 %v2488, 0.7978846
        %v2617 = vmul.f32 %v2489, 0.7978846
        %v2618 = vmul.f32 %v2490, 0.7978846
        %v2619 = vmul.f32 %v2491, 0.7978846
        %v2620 = vmul.f32 %v2492, 0.7978846
        %v2621 = vmul.f32 %v2493, 0.7978846
        %v2622 = vmul.f32 %v2494, 0.7978846
        %v2623 = vmul.f32 %v2495, 0.7978846
        %v2624 = vmul.f32 %v2496, 0.7978846
        %v2625 = vmul.f32 %v2497, 0.7978846
        %v2626 = vmul.f32 %v2498, 0.7978846
        %v2627 = vmul.f32 %v2499, 0.7978846
        %v2628 = vmul.f32 %v2500, 0.7978846
        %v2629 = vmul.f32 %v2501, 0.7978846
        %v2630 = vtanh.pop %v2502
        %v2631 = vtanh.pop %v2503
        %v2632 = vtanh.pop %v2504
        %v2633 = vtanh.pop %v2505
        %v2634 = vtanh.pop %v2506
        %v2635 = vtanh.pop %v2507
        %v2636 = vtanh.pop %v2508
        %v2637 = vtanh.pop %v2509
        %v2638 = vtanh.pop %v2510
        %v2639 = vtanh.pop %v2511
        %v2640 = vtanh.pop %v2512
        %v2641 = vtanh.pop %v2513
        %v2642 = vtanh.pop %v2514
        %v2643 = vtanh.pop %v2515
        %v2644 = vtanh.pop %v2516
        %v2645 = vtanh.pop %v2517
        %v2646 = vtanh.pop %v2518
        %v2647 = vtanh.pop %v2519
        %v2648 = vtanh.pop %v2520
        %v2649 = vtanh.pop %v2521
        %v2650 = vtanh.pop %v2522
        %v2651 = vtanh.pop %v2523
        %v2652 = vtanh.pop %v2524
        %v2653 = vtanh.pop %v2525
        %v2654 = vtanh.pop %v2526
        %v2655 = vtanh.pop %v2527
        %v2656 = vtanh.pop %v2528
        %v2657 = vtanh.pop %v2529
        %v2658 = vtanh.pop %v2530
        %v2659 = vtanh.pop %v2531
        %v2660 = vtanh.pop %v2532
        %v2661 = vtanh.pop %v2533
        %v2662 = vtanh.pop %v2534
        %v2663 = vtanh.pop %v2535
        %v2664 = vtanh.pop %v2536
        %v2665 = vtanh.pop %v2537
        %v2666 = vtanh.pop %v2538
        %v2667 = vtanh.pop %v2539
        %v2668 = vtanh.pop %v2540
        %v2669 = vtanh.pop %v2541
        %v2670 = vtanh.pop %v2542
        %v2671 = vtanh.pop %v2543
        %v2672 = vtanh.pop %v2544
        %v2673 = vtanh.pop %v2545
        %v2674 = vtanh.pop %v2546
        %v2675 = vtanh.pop %v2547
        %v2676 = vtanh.pop %v2548
        %v2677 = vtanh.pop %v2549
        %v2678 = vtanh.pop %v2550
        %v2679 = vtanh.pop %v2551
        %v2680 = vtanh.pop %v2552
        %v2681 = vtanh.pop %v2553
        %v2682 = vtanh.pop %v2554
        %v2683 = vtanh.pop %v2555
        %v2684 = vtanh.pop %v2556
        %v2685 = vtanh.pop %v2557
        %v2686 = vtanh.pop %v2558
        %v2687 = vtanh.pop %v2559
        %v2688 = vtanh.pop %v2560
        %v2689 = vtanh.pop %v2561
        %v2690 = vtanh.pop %v2562
        %v2691 = vtanh.pop %v2563
        %v2692 = vtanh.pop %v2564
        %v2693 = vtanh.pop %v2565
        %v2694 = vtanh.pop %v2566
        %v2695 = vtanh.pop %v2567
        %v2696 = vtanh.pop %v2568
        %v2697 = vtanh.pop %v2569
        %v2698 = vtanh.pop %v2570
        %v2699 = vtanh.pop %v2571
        %v2700 = vtanh.pop %v2572
        %v2701 = vtanh.pop %v2573
        %v2702 = vtanh.pop %v2574
        %v2703 = vtanh.pop %v2575
        %v2704 = vtanh.pop %v2576
        %v2705 = vtanh.pop %v2577
        %v2706 = vtanh.pop %v2578
        %v2707 = vtanh.pop %v2579
        %v2708 = vtanh.pop %v2580
        %v2709 = vtanh.pop %v2581
        %v2710 = vtanh.pop %v2582
        %v2711 = vtanh.pop %v2583
        %v2712 = vtanh.pop %v2584
        %v2713 = vtanh.pop %v2585
        %v2714 = vtanh.pop %v2586
        %v2715 = vtanh.pop %v2587
        %v2716 = vtanh.pop %v2588
        %v2717 = vtanh.pop %v2589
        %v2718 = vtanh.pop %v2590
        %v2719 = vtanh.pop %v2591
        %v2720 = vtanh.pop %v2592
        %v2721 = vtanh.pop %v2593
        %v2722 = vtanh.pop %v2594
        %v2723 = vtanh.pop %v2595
        %v2724 = vtanh.pop %v2596
        %v2725 = vtanh.pop %v2597
        %v2726 = vtanh.pop %v2598
        %v2727 = vtanh.pop %v2599
        %v2728 = vtanh.pop %v2600
        %v2729 = vtanh.pop %v2601
        %v2730 = vtanh.pop %v2602
        %v2731 = vtanh.pop %v2603
        %v2732 = vtanh.pop %v2604
        %v2733 = vtanh.pop %v2605
        %v2734 = vtanh.pop %v2606
        %v2735 = vtanh.pop %v2607
        %v2736 = vtanh.pop %v2608
        %v2737 = vtanh.pop %v2609
        %v2738 = vtanh.pop %v2610
        %v2739 = vtanh.pop %v2611
        %v2740 = vtanh.pop %v2612
        %v2741 = vtanh.pop %v2613
        %v2742 = vtanh.pop %v2614
        %v2743 = vtanh.pop %v2615
        %v2744 = vtanh.pop %v2616
        %v2745 = vtanh.pop %v2617
        %v2746 = vtanh.pop %v2618
        %v2747 = vtanh.pop %v2619
        %v2748 = vtanh.pop %v2620
        %v2749 = vtanh.pop %v2621
        %v2750 = vtanh.pop %v2622
        %v2751 = vtanh.pop %v2623
        %v2752 = vtanh.pop %v2624
        %v2753 = vtanh.pop %v2625
        %v2754 = vtanh.pop %v2626
        %v2755 = vtanh.pop %v2627
        %v2756 = vtanh.pop %v2628
        %v2757 = vtanh.pop %v2629
        %v2758 = vadd.f32 %v2630, 1.0
        %v2759 = vadd.f32 %v2631, 1.0
        %v2760 = vadd.f32 %v2632, 1.0
        %v2761 = vadd.f32 %v2633, 1.0
        %v2762 = vadd.f32 %v2634, 1.0
        %v2763 = vadd.f32 %v2635, 1.0
        %v2764 = vadd.f32 %v2636, 1.0
        %v2765 = vadd.f32 %v2637, 1.0
        %v2766 = vadd.f32 %v2638, 1.0
        %v2767 = vadd.f32 %v2639, 1.0
        %v2768 = vadd.f32 %v2640, 1.0
        %v2769 = vadd.f32 %v2641, 1.0
        %v2770 = vadd.f32 %v2642, 1.0
        %v2771 = vadd.f32 %v2643, 1.0
        %v2772 = vadd.f32 %v2644, 1.0
        %v2773 = vadd.f32 %v2645, 1.0
        %v2774 = vadd.f32 %v2646, 1.0
        %v2775 = vadd.f32 %v2647, 1.0
        %v2776 = vadd.f32 %v2648, 1.0
        %v2777 = vadd.f32 %v2649, 1.0
        %v2778 = vadd.f32 %v2650, 1.0
        %v2779 = vadd.f32 %v2651, 1.0
        %v2780 = vadd.f32 %v2652, 1.0
        %v2781 = vadd.f32 %v2653, 1.0
        %v2782 = vadd.f32 %v2654, 1.0
        %v2783 = vadd.f32 %v2655, 1.0
        %v2784 = vadd.f32 %v2656, 1.0
        %v2785 = vadd.f32 %v2657, 1.0
        %v2786 = vadd.f32 %v2658, 1.0
        %v2787 = vadd.f32 %v2659, 1.0
        %v2788 = vadd.f32 %v2660, 1.0
        %v2789 = vadd.f32 %v2661, 1.0
        %v2790 = vadd.f32 %v2662, 1.0
        %v2791 = vadd.f32 %v2663, 1.0
        %v2792 = vadd.f32 %v2664, 1.0
        %v2793 = vadd.f32 %v2665, 1.0
        %v2794 = vadd.f32 %v2666, 1.0
        %v2795 = vadd.f32 %v2667, 1.0
        %v2796 = vadd.f32 %v2668, 1.0
        %v2797 = vadd.f32 %v2669, 1.0
        %v2798 = vadd.f32 %v2670, 1.0
        %v2799 = vadd.f32 %v2671, 1.0
        %v2800 = vadd.f32 %v2672, 1.0
        %v2801 = vadd.f32 %v2673, 1.0
        %v2802 = vadd.f32 %v2674, 1.0
        %v2803 = vadd.f32 %v2675, 1.0
        %v2804 = vadd.f32 %v2676, 1.0
        %v2805 = vadd.f32 %v2677, 1.0
        %v2806 = vadd.f32 %v2678, 1.0
        %v2807 = vadd.f32 %v2679, 1.0
        %v2808 = vadd.f32 %v2680, 1.0
        %v2809 = vadd.f32 %v2681, 1.0
        %v2810 = vadd.f32 %v2682, 1.0
        %v2811 = vadd.f32 %v2683, 1.0
        %v2812 = vadd.f32 %v2684, 1.0
        %v2813 = vadd.f32 %v2685, 1.0
        %v2814 = vadd.f32 %v2686, 1.0
        %v2815 = vadd.f32 %v2687, 1.0
        %v2816 = vadd.f32 %v2688, 1.0
        %v2817 = vadd.f32 %v2689, 1.0
        %v2818 = vadd.f32 %v2690, 1.0
        %v2819 = vadd.f32 %v2691, 1.0
        %v2820 = vadd.f32 %v2692, 1.0
        %v2821 = vadd.f32 %v2693, 1.0
        %v2822 = vadd.f32 %v2694, 1.0
        %v2823 = vadd.f32 %v2695, 1.0
        %v2824 = vadd.f32 %v2696, 1.0
        %v2825 = vadd.f32 %v2697, 1.0
        %v2826 = vadd.f32 %v2698, 1.0
        %v2827 = vadd.f32 %v2699, 1.0
        %v2828 = vadd.f32 %v2700, 1.0
        %v2829 = vadd.f32 %v2701, 1.0
        %v2830 = vadd.f32 %v2702, 1.0
        %v2831 = vadd.f32 %v2703, 1.0
        %v2832 = vadd.f32 %v2704, 1.0
        %v2833 = vadd.f32 %v2705, 1.0
        %v2834 = vadd.f32 %v2706, 1.0
        %v2835 = vadd.f32 %v2707, 1.0
        %v2836 = vadd.f32 %v2708, 1.0
        %v2837 = vadd.f32 %v2709, 1.0
        %v2838 = vadd.f32 %v2710, 1.0
        %v2839 = vadd.f32 %v2711, 1.0
        %v2840 = vadd.f32 %v2712, 1.0
        %v2841 = vadd.f32 %v2713, 1.0
        %v2842 = vadd.f32 %v2714, 1.0
        %v2843 = vadd.f32 %v2715, 1.0
        %v2844 = vadd.f32 %v2716, 1.0
        %v2845 = vadd.f32 %v2717, 1.0
        %v2846 = vadd.f32 %v2718, 1.0
        %v2847 = vadd.f32 %v2719, 1.0
        %v2848 = vadd.f32 %v2720, 1.0
        %v2849 = vadd.f32 %v2721, 1.0
        %v2850 = vadd.f32 %v2722, 1.0
        %v2851 = vadd.f32 %v2723, 1.0
        %v2852 = vadd.f32 %v2724, 1.0
        %v2853 = vadd.f32 %v2725, 1.0
        %v2854 = vadd.f32 %v2726, 1.0
        %v2855 = vadd.f32 %v2727, 1.0
        %v2856 = vadd.f32 %v2728, 1.0
        %v2857 = vadd.f32 %v2729, 1.0
        %v2858 = vadd.f32 %v2730, 1.0
        %v2859 = vadd.f32 %v2731, 1.0
        %v2860 = vadd.f32 %v2732, 1.0
        %v2861 = vadd.f32 %v2733, 1.0
        %v2862 = vadd.f32 %v2734, 1.0
        %v2863 = vadd.f32 %v2735, 1.0
        %v2864 = vadd.f32 %v2736, 1.0
        %v2865 = vadd.f32 %v2737, 1.0
        %v2866 = vadd.f32 %v2738, 1.0
        %v2867 = vadd.f32 %v2739, 1.0
        %v2868 = vadd.f32 %v2740, 1.0
        %v2869 = vadd.f32 %v2741, 1.0
        %v2870 = vadd.f32 %v2742, 1.0
        %v2871 = vadd.f32 %v2743, 1.0
        %v2872 = vadd.f32 %v2744, 1.0
        %v2873 = vadd.f32 %v2745, 1.0
        %v2874 = vadd.f32 %v2746, 1.0
        %v2875 = vadd.f32 %v2747, 1.0
        %v2876 = vadd.f32 %v2748, 1.0
        %v2877 = vadd.f32 %v2749, 1.0
        %v2878 = vadd.f32 %v2750, 1.0
        %v2879 = vadd.f32 %v2751, 1.0
        %v2880 = vadd.f32 %v2752, 1.0
        %v2881 = vadd.f32 %v2753, 1.0
        %v2882 = vadd.f32 %v2754, 1.0
        %v2883 = vadd.f32 %v2755, 1.0
        %v2884 = vadd.f32 %v2756, 1.0
        %v2885 = vadd.f32 %v2757, 1.0
        %v2886 = vmul.f32 %v1862, %v2758
        %v2887 = vmul.f32 %v1863, %v2759
        %v2888 = vmul.f32 %v1864, %v2760
        %v2889 = vmul.f32 %v1865, %v2761
        %v2890 = vmul.f32 %v1866, %v2762
        %v2891 = vmul.f32 %v1867, %v2763
        %v2892 = vmul.f32 %v1868, %v2764
        %v2893 = vmul.f32 %v1869, %v2765
        %v2894 = vmul.f32 %v1870, %v2766
        %v2895 = vmul.f32 %v1871, %v2767
        %v2896 = vmul.f32 %v1872, %v2768
        %v2897 = vmul.f32 %v1873, %v2769
        %v2898 = vmul.f32 %v1874, %v2770
        %v2899 = vmul.f32 %v1875, %v2771
        %v2900 = vmul.f32 %v1876, %v2772
        %v2901 = vmul.f32 %v1877, %v2773
        %v2902 = vmul.f32 %v1878, %v2774
        %v2903 = vmul.f32 %v1879, %v2775
        %v2904 = vmul.f32 %v1880, %v2776
        %v2905 = vmul.f32 %v1881, %v2777
        %v2906 = vmul.f32 %v1882, %v2778
        %v2907 = vmul.f32 %v1883, %v2779
        %v2908 = vmul.f32 %v1884, %v2780
        %v2909 = vmul.f32 %v1885, %v2781
        %v2910 = vmul.f32 %v1886, %v2782
        %v2911 = vmul.f32 %v1887, %v2783
        %v2912 = vmul.f32 %v1888, %v2784
        %v2913 = vmul.f32 %v1889, %v2785
        %v2914 = vmul.f32 %v1890, %v2786
        %v2915 = vmul.f32 %v1891, %v2787
        %v2916 = vmul.f32 %v1892, %v2788
        %v2917 = vmul.f32 %v1893, %v2789
        %v2918 = vmul.f32 %v1894, %v2790
        %v2919 = vmul.f32 %v1895, %v2791
        %v2920 = vmul.f32 %v1896, %v2792
        %v2921 = vmul.f32 %v1897, %v2793
        %v2922 = vmul.f32 %v1898, %v2794
        %v2923 = vmul.f32 %v1899, %v2795
        %v2924 = vmul.f32 %v1900, %v2796
        %v2925 = vmul.f32 %v1901, %v2797
        %v2926 = vmul.f32 %v1902, %v2798
        %v2927 = vmul.f32 %v1903, %v2799
        %v2928 = vmul.f32 %v1904, %v2800
        %v2929 = vmul.f32 %v1905, %v2801
        %v2930 = vmul.f32 %v1906, %v2802
        %v2931 = vmul.f32 %v1907, %v2803
        %v2932 = vmul.f32 %v1908, %v2804
        %v2933 = vmul.f32 %v1909, %v2805
        %v2934 = vmul.f32 %v1910, %v2806
        %v2935 = vmul.f32 %v1911, %v2807
        %v2936 = vmul.f32 %v1912, %v2808
        %v2937 = vmul.f32 %v1913, %v2809
        %v2938 = vmul.f32 %v1914, %v2810
        %v2939 = vmul.f32 %v1915, %v2811
        %v2940 = vmul.f32 %v1916, %v2812
        %v2941 = vmul.f32 %v1917, %v2813
        %v2942 = vmul.f32 %v1918, %v2814
        %v2943 = vmul.f32 %v1919, %v2815
        %v2944 = vmul.f32 %v1920, %v2816
        %v2945 = vmul.f32 %v1921, %v2817
        %v2946 = vmul.f32 %v1922, %v2818
        %v2947 = vmul.f32 %v1923, %v2819
        %v2948 = vmul.f32 %v1924, %v2820
        %v2949 = vmul.f32 %v1925, %v2821
        %v2950 = vmul.f32 %v1926, %v2822
        %v2951 = vmul.f32 %v1927, %v2823
        %v2952 = vmul.f32 %v1928, %v2824
        %v2953 = vmul.f32 %v1929, %v2825
        %v2954 = vmul.f32 %v1930, %v2826
        %v2955 = vmul.f32 %v1931, %v2827
        %v2956 = vmul.f32 %v1932, %v2828
        %v2957 = vmul.f32 %v1933, %v2829
        %v2958 = vmul.f32 %v1934, %v2830
        %v2959 = vmul.f32 %v1935, %v2831
        %v2960 = vmul.f32 %v1936, %v2832
        %v2961 = vmul.f32 %v1937, %v2833
        %v2962 = vmul.f32 %v1938, %v2834
        %v2963 = vmul.f32 %v1939, %v2835
        %v2964 = vmul.f32 %v1940, %v2836
        %v2965 = vmul.f32 %v1941, %v2837
        %v2966 = vmul.f32 %v1942, %v2838
        %v2967 = vmul.f32 %v1943, %v2839
        %v2968 = vmul.f32 %v1944, %v2840
        %v2969 = vmul.f32 %v1945, %v2841
        %v2970 = vmul.f32 %v1946, %v2842
        %v2971 = vmul.f32 %v1947, %v2843
        %v2972 = vmul.f32 %v1948, %v2844
        %v2973 = vmul.f32 %v1949, %v2845
        %v2974 = vmul.f32 %v1950, %v2846
        %v2975 = vmul.f32 %v1951, %v2847
        %v2976 = vmul.f32 %v1952, %v2848
        %v2977 = vmul.f32 %v1953, %v2849
        %v2978 = vmul.f32 %v1954, %v2850
        %v2979 = vmul.f32 %v1955, %v2851
        %v2980 = vmul.f32 %v1956, %v2852
        %v2981 = vmul.f32 %v1957, %v2853
        %v2982 = vmul.f32 %v1958, %v2854
        %v2983 = vmul.f32 %v1959, %v2855
        %v2984 = vmul.f32 %v1960, %v2856
        %v2985 = vmul.f32 %v1961, %v2857
        %v2986 = vmul.f32 %v1962, %v2858
        %v2987 = vmul.f32 %v1963, %v2859
        %v2988 = vmul.f32 %v1964, %v2860
        %v2989 = vmul.f32 %v1965, %v2861
        %v2990 = vmul.f32 %v1966, %v2862
        %v2991 = vmul.f32 %v1967, %v2863
        %v2992 = vmul.f32 %v1968, %v2864
        %v2993 = vmul.f32 %v1969, %v2865
        %v2994 = vmul.f32 %v1970, %v2866
        %v2995 = vmul.f32 %v1971, %v2867
        %v2996 = vmul.f32 %v1972, %v2868
        %v2997 = vmul.f32 %v1973, %v2869
        %v2998 = vmul.f32 %v1974, %v2870
        %v2999 = vmul.f32 %v1975, %v2871
        %v3000 = vmul.f32 %v1976, %v2872
        %v3001 = vmul.f32 %v1977, %v2873
        %v3002 = vmul.f32 %v1978, %v2874
        %v3003 = vmul.f32 %v1979, %v2875
        %v3004 = vmul.f32 %v1980, %v2876
        %v3005 = vmul.f32 %v1981, %v2877
        %v3006 = vmul.f32 %v1982, %v2878
        %v3007 = vmul.f32 %v1983, %v2879
        %v3008 = vmul.f32 %v1984, %v2880
        %v3009 = vmul.f32 %v1985, %v2881
        %v3010 = vmul.f32 %v1986, %v2882
        %v3011 = vmul.f32 %v1987, %v2883
        %v3012 = vmul.f32 %v1988, %v2884
        %v3013 = vmul.f32 %v1989, %v2885
        %v3014 = vperm.slane %v678, 0
        %v3015 = vmul.f32 %v2886, %v3014
        %v3016 = vmul.f32 %v2887, %v3014
        %v3017 = vmul.f32 %v2888, %v3014
        %v3018 = vmul.f32 %v2889, %v3014
        %v3019 = vmul.f32 %v2890, %v3014
        %v3020 = vmul.f32 %v2891, %v3014
        %v3021 = vmul.f32 %v2892, %v3014
        %v3022 = vmul.f32 %v2893, %v3014
        %v3023 = vmul.f32 %v2894, %v3014
        %v3024 = vmul.f32 %v2895, %v3014
        %v3025 = vmul.f32 %v2896, %v3014
        %v3026 = vmul.f32 %v2897, %v3014
        %v3027 = vmul.f32 %v2898, %v3014
        %v3028 = vmul.f32 %v2899, %v3014
        %v3029 = vmul.f32 %v2900, %v3014
        %v3030 = vmul.f32 %v2901, %v3014
        %v3031 = vmul.f32 %v2902, %v3014
        %v3032 = vmul.f32 %v2903, %v3014
        %v3033 = vmul.f32 %v2904, %v3014
        %v3034 = vmul.f32 %v2905, %v3014
        %v3035 = vmul.f32 %v2906, %v3014
        %v3036 = vmul.f32 %v2907, %v3014
        %v3037 = vmul.f32 %v2908, %v3014
        %v3038 = vmul.f32 %v2909, %v3014
        %v3039 = vmul.f32 %v2910, %v3014
        %v3040 = vmul.f32 %v2911, %v3014
        %v3041 = vmul.f32 %v2912, %v3014
        %v3042 = vmul.f32 %v2913, %v3014
        %v3043 = vmul.f32 %v2914, %v3014
        %v3044 = vmul.f32 %v2915, %v3014
        %v3045 = vmul.f32 %v2916, %v3014
        %v3046 = vmul.f32 %v2917, %v3014
        %v3047 = vmul.f32 %v2918, %v3014
        %v3048 = vmul.f32 %v2919, %v3014
        %v3049 = vmul.f32 %v2920, %v3014
        %v3050 = vmul.f32 %v2921, %v3014
        %v3051 = vmul.f32 %v2922, %v3014
        %v3052 = vmul.f32 %v2923, %v3014
        %v3053 = vmul.f32 %v2924, %v3014
        %v3054 = vmul.f32 %v2925, %v3014
        %v3055 = vmul.f32 %v2926, %v3014
        %v3056 = vmul.f32 %v2927, %v3014
        %v3057 = vmul.f32 %v2928, %v3014
        %v3058 = vmul.f32 %v2929, %v3014
        %v3059 = vmul.f32 %v2930, %v3014
        %v3060 = vmul.f32 %v2931, %v3014
        %v3061 = vmul.f32 %v2932, %v3014
        %v3062 = vmul.f32 %v2933, %v3014
        %v3063 = vmul.f32 %v2934, %v3014
        %v3064 = vmul.f32 %v2935, %v3014
        %v3065 = vmul.f32 %v2936, %v3014
        %v3066 = vmul.f32 %v2937, %v3014
        %v3067 = vmul.f32 %v2938, %v3014
        %v3068 = vmul.f32 %v2939, %v3014
        %v3069 = vmul.f32 %v2940, %v3014
        %v3070 = vmul.f32 %v2941, %v3014
        %v3071 = vmul.f32 %v2942, %v3014
        %v3072 = vmul.f32 %v2943, %v3014
        %v3073 = vmul.f32 %v2944, %v3014
        %v3074 = vmul.f32 %v2945, %v3014
        %v3075 = vmul.f32 %v2946, %v3014
        %v3076 = vmul.f32 %v2947, %v3014
        %v3077 = vmul.f32 %v2948, %v3014
        %v3078 = vmul.f32 %v2949, %v3014
        %v3079 = vmul.f32 %v2950, %v3014
        %v3080 = vmul.f32 %v2951, %v3014
        %v3081 = vmul.f32 %v2952, %v3014
        %v3082 = vmul.f32 %v2953, %v3014
        %v3083 = vmul.f32 %v2954, %v3014
        %v3084 = vmul.f32 %v2955, %v3014
        %v3085 = vmul.f32 %v2956, %v3014
        %v3086 = vmul.f32 %v2957, %v3014
        %v3087 = vmul.f32 %v2958, %v3014
        %v3088 = vmul.f32 %v2959, %v3014
        %v3089 = vmul.f32 %v2960, %v3014
        %v3090 = vmul.f32 %v2961, %v3014
        %v3091 = vmul.f32 %v2962, %v3014
        %v3092 = vmul.f32 %v2963, %v3014
        %v3093 = vmul.f32 %v2964, %v3014
        %v3094 = vmul.f32 %v2965, %v3014
        %v3095 = vmul.f32 %v2966, %v3014
        %v3096 = vmul.f32 %v2967, %v3014
        %v3097 = vmul.f32 %v2968, %v3014
        %v3098 = vmul.f32 %v2969, %v3014
        %v3099 = vmul.f32 %v2970, %v3014
        %v3100 = vmul.f32 %v2971, %v3014
        %v3101 = vmul.f32 %v2972, %v3014
        %v3102 = vmul.f32 %v2973, %v3014
        %v3103 = vmul.f32 %v2974, %v3014
        %v3104 = vmul.f32 %v2975, %v3014
        %v3105 = vmul.f32 %v2976, %v3014
        %v3106 = vmul.f32 %v2977, %v3014
        %v3107 = vmul.f32 %v2978, %v3014
        %v3108 = vmul.f32 %v2979, %v3014
        %v3109 = vmul.f32 %v2980, %v3014
        %v3110 = vmul.f32 %v2981, %v3014
        %v3111 = vmul.f32 %v2982, %v3014
        %v3112 = vmul.f32 %v2983, %v3014
        %v3113 = vmul.f32 %v2984, %v3014
        %v3114 = vmul.f32 %v2985, %v3014
        %v3115 = vmul.f32 %v2986, %v3014
        %v3116 = vmul.f32 %v2987, %v3014
        %v3117 = vmul.f32 %v2988, %v3014
        %v3118 = vmul.f32 %v2989, %v3014
        %v3119 = vmul.f32 %v2990, %v3014
        %v3120 = vmul.f32 %v2991, %v3014
        %v3121 = vmul.f32 %v2992, %v3014
        %v3122 = vmul.f32 %v2993, %v3014
        %v3123 = vmul.f32 %v2994, %v3014
        %v3124 = vmul.f32 %v2995, %v3014
        %v3125 = vmul.f32 %v2996, %v3014
        %v3126 = vmul.f32 %v2997, %v3014
        %v3127 = vmul.f32 %v2998, %v3014
        %v3128 = vmul.f32 %v2999, %v3014
        %v3129 = vmul.f32 %v3000, %v3014
        %v3130 = vmul.f32 %v3001, %v3014
        %v3131 = vmul.f32 %v3002, %v3014
        %v3132 = vmul.f32 %v3003, %v3014
        %v3133 = vmul.f32 %v3004, %v3014
        %v3134 = vmul.f32 %v3005, %v3014
        %v3135 = vmul.f32 %v3006, %v3014
        %v3136 = vmul.f32 %v3007, %v3014
        %v3137 = vmul.f32 %v3008, %v3014
        %v3138 = vmul.f32 %v3009, %v3014
        %v3139 = vmul.f32 %v3010, %v3014
        %v3140 = vmul.f32 %v3011, %v3014
        %v3141 = vmul.f32 %v3012, %v3014
        %v3142 = vmul.f32 %v3013, %v3014
        %v3143 = vsel %vm687, %v3015, 0.0
        %3144 = vadd.xlane.f32.xlu0 %v3143
        %v3145 = vpop.xlane.xlu0 %3144
        %v3146 = vsel %vm687, %v3016, 0.0
        %3147 = vadd.xlane.f32.xlu0 %v3146
        %v3148 = vpop.xlane.xlu0 %3147
        %v3149 = vsel %vm687, %v3017, 0.0
        %3150 = vadd.xlane.f32.xlu0 %v3149
        %v3151 = vpop.xlane.xlu0 %3150
        %v3152 = vsel %vm687, %v3018, 0.0
        %3153 = vadd.xlane.f32.xlu0 %v3152
        %v3154 = vpop.xlane.xlu0 %3153
        %v3155 = vsel %vm687, %v3019, 0.0
        %3156 = vadd.xlane.f32.xlu0 %v3155
        %v3157 = vpop.xlane.xlu0 %3156
        %v3158 = vsel %vm687, %v3020, 0.0
        %3159 = vadd.xlane.f32.xlu0 %v3158
        %v3160 = vpop.xlane.xlu0 %3159
        %v3161 = vsel %vm687, %v3021, 0.0
        %3162 = vadd.xlane.f32.xlu0 %v3161
        %v3163 = vpop.xlane.xlu0 %3162
        %v3164 = vsel %vm687, %v3022, 0.0
        %3165 = vadd.xlane.f32.xlu0 %v3164
        %v3166 = vpop.xlane.xlu0 %3165
        %v3167 = vsel %vm687, %v3023, 0.0
        %3168 = vadd.xlane.f32.xlu0 %v3167
        %v3169 = vpop.xlane.xlu0 %3168
        %v3170 = vsel %vm687, %v3024, 0.0
        %3171 = vadd.xlane.f32.xlu0 %v3170
        %v3172 = vpop.xlane.xlu0 %3171
        %v3173 = vsel %vm687, %v3025, 0.0
        %3174 = vadd.xlane.f32.xlu0 %v3173
        %v3175 = vpop.xlane.xlu0 %3174
        %v3176 = vsel %vm687, %v3026, 0.0
        %3177 = vadd.xlane.f32.xlu0 %v3176
        %v3178 = vpop.xlane.xlu0 %3177
        %v3179 = vsel %vm687, %v3027, 0.0
        %3180 = vadd.xlane.f32.xlu0 %v3179
        %v3181 = vpop.xlane.xlu0 %3180
        %v3182 = vsel %vm687, %v3028, 0.0
        %3183 = vadd.xlane.f32.xlu0 %v3182
        %v3184 = vpop.xlane.xlu0 %3183
        %v3185 = vsel %vm687, %v3029, 0.0
        %3186 = vadd.xlane.f32.xlu0 %v3185
        %v3187 = vpop.xlane.xlu0 %3186
        %v3188 = vsel %vm687, %v3030, 0.0
        %3189 = vadd.xlane.f32.xlu0 %v3188
        %v3190 = vpop.xlane.xlu0 %3189
        %v3191 = vsel %vm687, %v3031, 0.0
        %3192 = vadd.xlane.f32.xlu0 %v3191
        %v3193 = vpop.xlane.xlu0 %3192
        %v3194 = vsel %vm687, %v3032, 0.0
        %3195 = vadd.xlane.f32.xlu0 %v3194
        %v3196 = vpop.xlane.xlu0 %3195
        %v3197 = vsel %vm687, %v3033, 0.0
        %3198 = vadd.xlane.f32.xlu0 %v3197
        %v3199 = vpop.xlane.xlu0 %3198
        %v3200 = vsel %vm687, %v3034, 0.0
        %3201 = vadd.xlane.f32.xlu0 %v3200
        %v3202 = vpop.xlane.xlu0 %3201
        %v3203 = vsel %vm687, %v3035, 0.0
        %3204 = vadd.xlane.f32.xlu0 %v3203
        %v3205 = vpop.xlane.xlu0 %3204
        %v3206 = vsel %vm687, %v3036, 0.0
        %3207 = vadd.xlane.f32.xlu0 %v3206
        %v3208 = vpop.xlane.xlu0 %3207
        %v3209 = vsel %vm687, %v3037, 0.0
        %3210 = vadd.xlane.f32.xlu0 %v3209
        %v3211 = vpop.xlane.xlu0 %3210
        %v3212 = vsel %vm687, %v3038, 0.0
        %3213 = vadd.xlane.f32.xlu0 %v3212
        %v3214 = vpop.xlane.xlu0 %3213
        %v3215 = vsel %vm687, %v3039, 0.0
        %3216 = vadd.xlane.f32.xlu0 %v3215
        %v3217 = vpop.xlane.xlu0 %3216
        %v3218 = vsel %vm687, %v3040, 0.0
        %3219 = vadd.xlane.f32.xlu0 %v3218
        %v3220 = vpop.xlane.xlu0 %3219
        %v3221 = vsel %vm687, %v3041, 0.0
        %3222 = vadd.xlane.f32.xlu0 %v3221
        %v3223 = vpop.xlane.xlu0 %3222
        %v3224 = vsel %vm687, %v3042, 0.0
        %3225 = vadd.xlane.f32.xlu0 %v3224
        %v3226 = vpop.xlane.xlu0 %3225
        %v3227 = vsel %vm687, %v3043, 0.0
        %3228 = vadd.xlane.f32.xlu0 %v3227
        %v3229 = vpop.xlane.xlu0 %3228
        %v3230 = vsel %vm687, %v3044, 0.0
        %3231 = vadd.xlane.f32.xlu0 %v3230
        %v3232 = vpop.xlane.xlu0 %3231
        %v3233 = vsel %vm687, %v3045, 0.0
        %3234 = vadd.xlane.f32.xlu0 %v3233
        %v3235 = vpop.xlane.xlu0 %3234
        %v3236 = vsel %vm687, %v3046, 0.0
        %3237 = vadd.xlane.f32.xlu0 %v3236
        %v3238 = vpop.xlane.xlu0 %3237
        %v3239 = vsel %vm687, %v3047, 0.0
        %3240 = vadd.xlane.f32.xlu0 %v3239
        %v3241 = vpop.xlane.xlu0 %3240
        %v3242 = vsel %vm687, %v3048, 0.0
        %3243 = vadd.xlane.f32.xlu0 %v3242
        %v3244 = vpop.xlane.xlu0 %3243
        %v3245 = vsel %vm687, %v3049, 0.0
        %3246 = vadd.xlane.f32.xlu0 %v3245
        %v3247 = vpop.xlane.xlu0 %3246
        %v3248 = vsel %vm687, %v3050, 0.0
        %3249 = vadd.xlane.f32.xlu0 %v3248
        %v3250 = vpop.xlane.xlu0 %3249
        %v3251 = vsel %vm687, %v3051, 0.0
        %3252 = vadd.xlane.f32.xlu0 %v3251
        %v3253 = vpop.xlane.xlu0 %3252
        %v3254 = vsel %vm687, %v3052, 0.0
        %3255 = vadd.xlane.f32.xlu0 %v3254
        %v3256 = vpop.xlane.xlu0 %3255
        %v3257 = vsel %vm687, %v3053, 0.0
        %3258 = vadd.xlane.f32.xlu0 %v3257
        %v3259 = vpop.xlane.xlu0 %3258
        %v3260 = vsel %vm687, %v3054, 0.0
        %3261 = vadd.xlane.f32.xlu0 %v3260
        %v3262 = vpop.xlane.xlu0 %3261
        %v3263 = vsel %vm687, %v3055, 0.0
        %3264 = vadd.xlane.f32.xlu0 %v3263
        %v3265 = vpop.xlane.xlu0 %3264
        %v3266 = vsel %vm687, %v3056, 0.0
        %3267 = vadd.xlane.f32.xlu0 %v3266
        %v3268 = vpop.xlane.xlu0 %3267
        %v3269 = vsel %vm687, %v3057, 0.0
        %3270 = vadd.xlane.f32.xlu0 %v3269
        %v3271 = vpop.xlane.xlu0 %3270
        %v3272 = vsel %vm687, %v3058, 0.0
        %3273 = vadd.xlane.f32.xlu0 %v3272
        %v3274 = vpop.xlane.xlu0 %3273
        %v3275 = vsel %vm687, %v3059, 0.0
        %3276 = vadd.xlane.f32.xlu0 %v3275
        %v3277 = vpop.xlane.xlu0 %3276
        %v3278 = vsel %vm687, %v3060, 0.0
        %3279 = vadd.xlane.f32.xlu0 %v3278
        %v3280 = vpop.xlane.xlu0 %3279
        %v3281 = vsel %vm687, %v3061, 0.0
        %3282 = vadd.xlane.f32.xlu0 %v3281
        %v3283 = vpop.xlane.xlu0 %3282
        %v3284 = vsel %vm687, %v3062, 0.0
        %3285 = vadd.xlane.f32.xlu0 %v3284
        %v3286 = vpop.xlane.xlu0 %3285
        %v3287 = vsel %vm687, %v3063, 0.0
        %3288 = vadd.xlane.f32.xlu0 %v3287
        %v3289 = vpop.xlane.xlu0 %3288
        %v3290 = vsel %vm687, %v3064, 0.0
        %3291 = vadd.xlane.f32.xlu0 %v3290
        %v3292 = vpop.xlane.xlu0 %3291
        %v3293 = vsel %vm687, %v3065, 0.0
        %3294 = vadd.xlane.f32.xlu0 %v3293
        %v3295 = vpop.xlane.xlu0 %3294
        %v3296 = vsel %vm687, %v3066, 0.0
        %3297 = vadd.xlane.f32.xlu0 %v3296
        %v3298 = vpop.xlane.xlu0 %3297
        %v3299 = vsel %vm687, %v3067, 0.0
        %3300 = vadd.xlane.f32.xlu0 %v3299
        %v3301 = vpop.xlane.xlu0 %3300
        %v3302 = vsel %vm687, %v3068, 0.0
        %3303 = vadd.xlane.f32.xlu0 %v3302
        %v3304 = vpop.xlane.xlu0 %3303
        %v3305 = vsel %vm687, %v3069, 0.0
        %3306 = vadd.xlane.f32.xlu0 %v3305
        %v3307 = vpop.xlane.xlu0 %3306
        %v3308 = vsel %vm687, %v3070, 0.0
        %3309 = vadd.xlane.f32.xlu0 %v3308
        %v3310 = vpop.xlane.xlu0 %3309
        %v3311 = vsel %vm687, %v3071, 0.0
        %3312 = vadd.xlane.f32.xlu0 %v3311
        %v3313 = vpop.xlane.xlu0 %3312
        %v3314 = vsel %vm687, %v3072, 0.0
        %3315 = vadd.xlane.f32.xlu0 %v3314
        %v3316 = vpop.xlane.xlu0 %3315
        %v3317 = vsel %vm687, %v3073, 0.0
        %3318 = vadd.xlane.f32.xlu0 %v3317
        %v3319 = vpop.xlane.xlu0 %3318
        %v3320 = vsel %vm687, %v3074, 0.0
        %3321 = vadd.xlane.f32.xlu0 %v3320
        %v3322 = vpop.xlane.xlu0 %3321
        %v3323 = vsel %vm687, %v3075, 0.0
        %3324 = vadd.xlane.f32.xlu0 %v3323
        %v3325 = vpop.xlane.xlu0 %3324
        %v3326 = vsel %vm687, %v3076, 0.0
        %3327 = vadd.xlane.f32.xlu0 %v3326
        %v3328 = vpop.xlane.xlu0 %3327
        %v3329 = vsel %vm687, %v3077, 0.0
        %3330 = vadd.xlane.f32.xlu0 %v3329
        %v3331 = vpop.xlane.xlu0 %3330
        %v3332 = vsel %vm687, %v3078, 0.0
        %3333 = vadd.xlane.f32.xlu0 %v3332
        %v3334 = vpop.xlane.xlu0 %3333
        %v3335 = vsel %vm687, %v3079, 0.0
        %3336 = vadd.xlane.f32.xlu0 %v3335
        %v3337 = vpop.xlane.xlu0 %3336
        %v3338 = vsel %vm687, %v3080, 0.0
        %3339 = vadd.xlane.f32.xlu0 %v3338
        %v3340 = vpop.xlane.xlu0 %3339
        %v3341 = vsel %vm687, %v3081, 0.0
        %3342 = vadd.xlane.f32.xlu0 %v3341
        %v3343 = vpop.xlane.xlu0 %3342
        %v3344 = vsel %vm687, %v3082, 0.0
        %3345 = vadd.xlane.f32.xlu0 %v3344
        %v3346 = vpop.xlane.xlu0 %3345
        %v3347 = vsel %vm687, %v3083, 0.0
        %3348 = vadd.xlane.f32.xlu0 %v3347
        %v3349 = vpop.xlane.xlu0 %3348
        %v3350 = vsel %vm687, %v3084, 0.0
        %3351 = vadd.xlane.f32.xlu0 %v3350
        %v3352 = vpop.xlane.xlu0 %3351
        %v3353 = vsel %vm687, %v3085, 0.0
        %3354 = vadd.xlane.f32.xlu0 %v3353
        %v3355 = vpop.xlane.xlu0 %3354
        %v3356 = vsel %vm687, %v3086, 0.0
        %3357 = vadd.xlane.f32.xlu0 %v3356
        %v3358 = vpop.xlane.xlu0 %3357
        %v3359 = vsel %vm687, %v3087, 0.0
        %3360 = vadd.xlane.f32.xlu0 %v3359
        %v3361 = vpop.xlane.xlu0 %3360
        %v3362 = vsel %vm687, %v3088, 0.0
        %3363 = vadd.xlane.f32.xlu0 %v3362
        %v3364 = vpop.xlane.xlu0 %3363
        %v3365 = vsel %vm687, %v3089, 0.0
        %3366 = vadd.xlane.f32.xlu0 %v3365
        %v3367 = vpop.xlane.xlu0 %3366
        %v3368 = vsel %vm687, %v3090, 0.0
        %3369 = vadd.xlane.f32.xlu0 %v3368
        %v3370 = vpop.xlane.xlu0 %3369
        %v3371 = vsel %vm687, %v3091, 0.0
        %3372 = vadd.xlane.f32.xlu0 %v3371
        %v3373 = vpop.xlane.xlu0 %3372
        %v3374 = vsel %vm687, %v3092, 0.0
        %3375 = vadd.xlane.f32.xlu0 %v3374
        %v3376 = vpop.xlane.xlu0 %3375
        %v3377 = vsel %vm687, %v3093, 0.0
        %3378 = vadd.xlane.f32.xlu0 %v3377
        %v3379 = vpop.xlane.xlu0 %3378
        %v3380 = vsel %vm687, %v3094, 0.0
        %3381 = vadd.xlane.f32.xlu0 %v3380
        %v3382 = vpop.xlane.xlu0 %3381
        %v3383 = vsel %vm687, %v3095, 0.0
        %3384 = vadd.xlane.f32.xlu0 %v3383
        %v3385 = vpop.xlane.xlu0 %3384
        %v3386 = vsel %vm687, %v3096, 0.0
        %3387 = vadd.xlane.f32.xlu0 %v3386
        %v3388 = vpop.xlane.xlu0 %3387
        %v3389 = vsel %vm687, %v3097, 0.0
        %3390 = vadd.xlane.f32.xlu0 %v3389
        %v3391 = vpop.xlane.xlu0 %3390
        %v3392 = vsel %vm687, %v3098, 0.0
        %3393 = vadd.xlane.f32.xlu0 %v3392
        %v3394 = vpop.xlane.xlu0 %3393
        %v3395 = vsel %vm687, %v3099, 0.0
        %3396 = vadd.xlane.f32.xlu0 %v3395
        %v3397 = vpop.xlane.xlu0 %3396
        %v3398 = vsel %vm687, %v3100, 0.0
        %3399 = vadd.xlane.f32.xlu0 %v3398
        %v3400 = vpop.xlane.xlu0 %3399
        %v3401 = vsel %vm687, %v3101, 0.0
        %3402 = vadd.xlane.f32.xlu0 %v3401
        %v3403 = vpop.xlane.xlu0 %3402
        %v3404 = vsel %vm687, %v3102, 0.0
        %3405 = vadd.xlane.f32.xlu0 %v3404
        %v3406 = vpop.xlane.xlu0 %3405
        %v3407 = vsel %vm687, %v3103, 0.0
        %3408 = vadd.xlane.f32.xlu0 %v3407
        %v3409 = vpop.xlane.xlu0 %3408
        %v3410 = vsel %vm687, %v3104, 0.0
        %3411 = vadd.xlane.f32.xlu0 %v3410
        %v3412 = vpop.xlane.xlu0 %3411
        %v3413 = vsel %vm687, %v3105, 0.0
        %3414 = vadd.xlane.f32.xlu0 %v3413
        %v3415 = vpop.xlane.xlu0 %3414
        %v3416 = vsel %vm687, %v3106, 0.0
        %3417 = vadd.xlane.f32.xlu0 %v3416
        %v3418 = vpop.xlane.xlu0 %3417
        %v3419 = vsel %vm687, %v3107, 0.0
        %3420 = vadd.xlane.f32.xlu0 %v3419
        %v3421 = vpop.xlane.xlu0 %3420
        %v3422 = vsel %vm687, %v3108, 0.0
        %3423 = vadd.xlane.f32.xlu0 %v3422
        %v3424 = vpop.xlane.xlu0 %3423
        %v3425 = vsel %vm687, %v3109, 0.0
        %3426 = vadd.xlane.f32.xlu0 %v3425
        %v3427 = vpop.xlane.xlu0 %3426
        %v3428 = vsel %vm687, %v3110, 0.0
        %3429 = vadd.xlane.f32.xlu0 %v3428
        %v3430 = vpop.xlane.xlu0 %3429
        %v3431 = vsel %vm687, %v3111, 0.0
        %3432 = vadd.xlane.f32.xlu0 %v3431
        %v3433 = vpop.xlane.xlu0 %3432
        %v3434 = vsel %vm687, %v3112, 0.0
        %3435 = vadd.xlane.f32.xlu0 %v3434
        %v3436 = vpop.xlane.xlu0 %3435
        %v3437 = vsel %vm687, %v3113, 0.0
        %3438 = vadd.xlane.f32.xlu0 %v3437
        %v3439 = vpop.xlane.xlu0 %3438
        %v3440 = vsel %vm687, %v3114, 0.0
        %3441 = vadd.xlane.f32.xlu0 %v3440
        %v3442 = vpop.xlane.xlu0 %3441
        %v3443 = vsel %vm687, %v3115, 0.0
        %3444 = vadd.xlane.f32.xlu0 %v3443
        %v3445 = vpop.xlane.xlu0 %3444
        %v3446 = vsel %vm687, %v3116, 0.0
        %3447 = vadd.xlane.f32.xlu0 %v3446
        %v3448 = vpop.xlane.xlu0 %3447
        %v3449 = vsel %vm687, %v3117, 0.0
        %3450 = vadd.xlane.f32.xlu0 %v3449
        %v3451 = vpop.xlane.xlu0 %3450
        %v3452 = vsel %vm687, %v3118, 0.0
        %3453 = vadd.xlane.f32.xlu0 %v3452
        %v3454 = vpop.xlane.xlu0 %3453
        %v3455 = vsel %vm687, %v3119, 0.0
        %3456 = vadd.xlane.f32.xlu0 %v3455
        %v3457 = vpop.xlane.xlu0 %3456
        %v3458 = vsel %vm687, %v3120, 0.0
        %3459 = vadd.xlane.f32.xlu0 %v3458
        %v3460 = vpop.xlane.xlu0 %3459
        %v3461 = vsel %vm687, %v3121, 0.0
        %3462 = vadd.xlane.f32.xlu0 %v3461
        %v3463 = vpop.xlane.xlu0 %3462
        %v3464 = vsel %vm687, %v3122, 0.0
        %3465 = vadd.xlane.f32.xlu0 %v3464
        %v3466 = vpop.xlane.xlu0 %3465
        %v3467 = vsel %vm687, %v3123, 0.0
        %3468 = vadd.xlane.f32.xlu0 %v3467
        %v3469 = vpop.xlane.xlu0 %3468
        %v3470 = vsel %vm687, %v3124, 0.0
        %3471 = vadd.xlane.f32.xlu0 %v3470
        %v3472 = vpop.xlane.xlu0 %3471
        %v3473 = vsel %vm687, %v3125, 0.0
        %3474 = vadd.xlane.f32.xlu0 %v3473
        %v3475 = vpop.xlane.xlu0 %3474
        %v3476 = vsel %vm687, %v3126, 0.0
        %3477 = vadd.xlane.f32.xlu0 %v3476
        %v3478 = vpop.xlane.xlu0 %3477
        %v3479 = vsel %vm687, %v3127, 0.0
        %3480 = vadd.xlane.f32.xlu0 %v3479
        %v3481 = vpop.xlane.xlu0 %3480
        %v3482 = vsel %vm687, %v3128, 0.0
        %3483 = vadd.xlane.f32.xlu0 %v3482
        %v3484 = vpop.xlane.xlu0 %3483
        %v3485 = vsel %vm687, %v3129, 0.0
        %3486 = vadd.xlane.f32.xlu0 %v3485
        %v3487 = vpop.xlane.xlu0 %3486
        %v3488 = vsel %vm687, %v3130, 0.0
        %3489 = vadd.xlane.f32.xlu0 %v3488
        %v3490 = vpop.xlane.xlu0 %3489
        %v3491 = vsel %vm687, %v3131, 0.0
        %3492 = vadd.xlane.f32.xlu0 %v3491
        %v3493 = vpop.xlane.xlu0 %3492
        %v3494 = vsel %vm687, %v3132, 0.0
        %3495 = vadd.xlane.f32.xlu0 %v3494
        %v3496 = vpop.xlane.xlu0 %3495
        %v3497 = vsel %vm687, %v3133, 0.0
        %3498 = vadd.xlane.f32.xlu0 %v3497
        %v3499 = vpop.xlane.xlu0 %3498
        %v3500 = vsel %vm687, %v3134, 0.0
        %3501 = vadd.xlane.f32.xlu0 %v3500
        %v3502 = vpop.xlane.xlu0 %3501
        %v3503 = vsel %vm687, %v3135, 0.0
        %3504 = vadd.xlane.f32.xlu0 %v3503
        %v3505 = vpop.xlane.xlu0 %3504
        %v3506 = vsel %vm687, %v3136, 0.0
        %3507 = vadd.xlane.f32.xlu0 %v3506
        %v3508 = vpop.xlane.xlu0 %3507
        %v3509 = vsel %vm687, %v3137, 0.0
        %3510 = vadd.xlane.f32.xlu0 %v3509
        %v3511 = vpop.xlane.xlu0 %3510
        %v3512 = vsel %vm687, %v3138, 0.0
        %3513 = vadd.xlane.f32.xlu0 %v3512
        %v3514 = vpop.xlane.xlu0 %3513
        %v3515 = vsel %vm687, %v3139, 0.0
        %3516 = vadd.xlane.f32.xlu0 %v3515
        %v3517 = vpop.xlane.xlu0 %3516
        %v3518 = vsel %vm687, %v3140, 0.0
        %3519 = vadd.xlane.f32.xlu0 %v3518
        %v3520 = vpop.xlane.xlu0 %3519
        %v3521 = vsel %vm687, %v3141, 0.0
        %3522 = vadd.xlane.f32.xlu0 %v3521
        %v3523 = vpop.xlane.xlu0 %3522
        %v3524 = vsel %vm687, %v3142, 0.0
        %3525 = vadd.xlane.f32.xlu0 %v3524
        %v3526 = vpop.xlane.xlu0 %3525
        %vm3527 = vcmp.gt.f32.partialorder %v549, 0.5
        %vm3528 = vcmp.gt.f32.partialorder %v550, 0.5
        %vm3529 = vcmp.gt.f32.partialorder %v551, 0.5
        %vm3530 = vcmp.gt.f32.partialorder %v552, 0.5
        %vm3531 = vcmp.gt.f32.partialorder %v553, 0.5
        %vm3532 = vcmp.gt.f32.partialorder %v554, 0.5
        %vm3533 = vcmp.gt.f32.partialorder %v555, 0.5
        %vm3534 = vcmp.gt.f32.partialorder %v556, 0.5
        %vm3535 = vcmp.gt.f32.partialorder %v557, 0.5
        %vm3536 = vcmp.gt.f32.partialorder %v558, 0.5
        %vm3537 = vcmp.gt.f32.partialorder %v559, 0.5
        %vm3538 = vcmp.gt.f32.partialorder %v560, 0.5
        %vm3539 = vcmp.gt.f32.partialorder %v561, 0.5
        %vm3540 = vcmp.gt.f32.partialorder %v562, 0.5
        %vm3541 = vcmp.gt.f32.partialorder %v563, 0.5
        %vm3542 = vcmp.gt.f32.partialorder %v564, 0.5
        %vm3543 = vcmp.gt.f32.partialorder %v565, 0.5
        %vm3544 = vcmp.gt.f32.partialorder %v566, 0.5
        %vm3545 = vcmp.gt.f32.partialorder %v567, 0.5
        %vm3546 = vcmp.gt.f32.partialorder %v568, 0.5
        %vm3547 = vcmp.gt.f32.partialorder %v569, 0.5
        %vm3548 = vcmp.gt.f32.partialorder %v570, 0.5
        %vm3549 = vcmp.gt.f32.partialorder %v571, 0.5
        %vm3550 = vcmp.gt.f32.partialorder %v572, 0.5
        %vm3551 = vcmp.gt.f32.partialorder %v573, 0.5
        %vm3552 = vcmp.gt.f32.partialorder %v574, 0.5
        %vm3553 = vcmp.gt.f32.partialorder %v575, 0.5
        %vm3554 = vcmp.gt.f32.partialorder %v576, 0.5
        %vm3555 = vcmp.gt.f32.partialorder %v577, 0.5
        %vm3556 = vcmp.gt.f32.partialorder %v578, 0.5
        %vm3557 = vcmp.gt.f32.partialorder %v579, 0.5
        %vm3558 = vcmp.gt.f32.partialorder %v580, 0.5
        %vm3559 = vcmp.gt.f32.partialorder %v581, 0.5
        %vm3560 = vcmp.gt.f32.partialorder %v582, 0.5
        %vm3561 = vcmp.gt.f32.partialorder %v583, 0.5
        %vm3562 = vcmp.gt.f32.partialorder %v584, 0.5
        %vm3563 = vcmp.gt.f32.partialorder %v585, 0.5
        %vm3564 = vcmp.gt.f32.partialorder %v586, 0.5
        %vm3565 = vcmp.gt.f32.partialorder %v587, 0.5
        %vm3566 = vcmp.gt.f32.partialorder %v588, 0.5
        %vm3567 = vcmp.gt.f32.partialorder %v589, 0.5
        %vm3568 = vcmp.gt.f32.partialorder %v590, 0.5
        %vm3569 = vcmp.gt.f32.partialorder %v591, 0.5
        %vm3570 = vcmp.gt.f32.partialorder %v592, 0.5
        %vm3571 = vcmp.gt.f32.partialorder %v593, 0.5
        %vm3572 = vcmp.gt.f32.partialorder %v594, 0.5
        %vm3573 = vcmp.gt.f32.partialorder %v595, 0.5
        %vm3574 = vcmp.gt.f32.partialorder %v596, 0.5
        %vm3575 = vcmp.gt.f32.partialorder %v597, 0.5
        %vm3576 = vcmp.gt.f32.partialorder %v598, 0.5
        %vm3577 = vcmp.gt.f32.partialorder %v599, 0.5
        %vm3578 = vcmp.gt.f32.partialorder %v600, 0.5
        %vm3579 = vcmp.gt.f32.partialorder %v601, 0.5
        %vm3580 = vcmp.gt.f32.partialorder %v602, 0.5
        %vm3581 = vcmp.gt.f32.partialorder %v603, 0.5
        %vm3582 = vcmp.gt.f32.partialorder %v604, 0.5
        %vm3583 = vcmp.gt.f32.partialorder %v605, 0.5
        %vm3584 = vcmp.gt.f32.partialorder %v606, 0.5
        %vm3585 = vcmp.gt.f32.partialorder %v607, 0.5
        %vm3586 = vcmp.gt.f32.partialorder %v608, 0.5
        %vm3587 = vcmp.gt.f32.partialorder %v609, 0.5
        %vm3588 = vcmp.gt.f32.partialorder %v610, 0.5
        %vm3589 = vcmp.gt.f32.partialorder %v611, 0.5
        %vm3590 = vcmp.gt.f32.partialorder %v612, 0.5
        %vm3591 = vcmp.gt.f32.partialorder %v613, 0.5
        %vm3592 = vcmp.gt.f32.partialorder %v614, 0.5
        %vm3593 = vcmp.gt.f32.partialorder %v615, 0.5
        %vm3594 = vcmp.gt.f32.partialorder %v616, 0.5
        %vm3595 = vcmp.gt.f32.partialorder %v617, 0.5
        %vm3596 = vcmp.gt.f32.partialorder %v618, 0.5
        %vm3597 = vcmp.gt.f32.partialorder %v619, 0.5
        %vm3598 = vcmp.gt.f32.partialorder %v620, 0.5
        %vm3599 = vcmp.gt.f32.partialorder %v621, 0.5
        %vm3600 = vcmp.gt.f32.partialorder %v622, 0.5
        %vm3601 = vcmp.gt.f32.partialorder %v623, 0.5
        %vm3602 = vcmp.gt.f32.partialorder %v624, 0.5
        %vm3603 = vcmp.gt.f32.partialorder %v625, 0.5
        %vm3604 = vcmp.gt.f32.partialorder %v626, 0.5
        %vm3605 = vcmp.gt.f32.partialorder %v627, 0.5
        %vm3606 = vcmp.gt.f32.partialorder %v628, 0.5
        %vm3607 = vcmp.gt.f32.partialorder %v629, 0.5
        %vm3608 = vcmp.gt.f32.partialorder %v630, 0.5
        %vm3609 = vcmp.gt.f32.partialorder %v631, 0.5
        %vm3610 = vcmp.gt.f32.partialorder %v632, 0.5
        %vm3611 = vcmp.gt.f32.partialorder %v633, 0.5
        %vm3612 = vcmp.gt.f32.partialorder %v634, 0.5
        %vm3613 = vcmp.gt.f32.partialorder %v635, 0.5
        %vm3614 = vcmp.gt.f32.partialorder %v636, 0.5
        %vm3615 = vcmp.gt.f32.partialorder %v637, 0.5
        %vm3616 = vcmp.gt.f32.partialorder %v638, 0.5
        %vm3617 = vcmp.gt.f32.partialorder %v639, 0.5
        %vm3618 = vcmp.gt.f32.partialorder %v640, 0.5
        %vm3619 = vcmp.gt.f32.partialorder %v641, 0.5
        %vm3620 = vcmp.gt.f32.partialorder %v642, 0.5
        %vm3621 = vcmp.gt.f32.partialorder %v643, 0.5
        %vm3622 = vcmp.gt.f32.partialorder %v644, 0.5
        %vm3623 = vcmp.gt.f32.partialorder %v645, 0.5
        %vm3624 = vcmp.gt.f32.partialorder %v646, 0.5
        %vm3625 = vcmp.gt.f32.partialorder %v647, 0.5
        %vm3626 = vcmp.gt.f32.partialorder %v648, 0.5
        %vm3627 = vcmp.gt.f32.partialorder %v649, 0.5
        %vm3628 = vcmp.gt.f32.partialorder %v650, 0.5
        %vm3629 = vcmp.gt.f32.partialorder %v651, 0.5
        %vm3630 = vcmp.gt.f32.partialorder %v652, 0.5
        %vm3631 = vcmp.gt.f32.partialorder %v653, 0.5
        %vm3632 = vcmp.gt.f32.partialorder %v654, 0.5
        %vm3633 = vcmp.gt.f32.partialorder %v655, 0.5
        %vm3634 = vcmp.gt.f32.partialorder %v656, 0.5
        %vm3635 = vcmp.gt.f32.partialorder %v657, 0.5
        %vm3636 = vcmp.gt.f32.partialorder %v658, 0.5
        %vm3637 = vcmp.gt.f32.partialorder %v659, 0.5
        %vm3638 = vcmp.gt.f32.partialorder %v660, 0.5
        %vm3639 = vcmp.gt.f32.partialorder %v661, 0.5
        %vm3640 = vcmp.gt.f32.partialorder %v662, 0.5
        %vm3641 = vcmp.gt.f32.partialorder %v663, 0.5
        %vm3642 = vcmp.gt.f32.partialorder %v664, 0.5
        %vm3643 = vcmp.gt.f32.partialorder %v665, 0.5
        %vm3644 = vcmp.gt.f32.partialorder %v666, 0.5
        %vm3645 = vcmp.gt.f32.partialorder %v667, 0.5
        %vm3646 = vcmp.gt.f32.partialorder %v668, 0.5
        %vm3647 = vcmp.gt.f32.partialorder %v669, 0.5
        %vm3648 = vcmp.gt.f32.partialorder %v670, 0.5
        %vm3649 = vcmp.gt.f32.partialorder %v671, 0.5
        %vm3650 = vcmp.gt.f32.partialorder %v672, 0.5
        %vm3651 = vcmp.gt.f32.partialorder %v673, 0.5
        %vm3652 = vcmp.gt.f32.partialorder %v674, 0.5
        %vm3653 = vcmp.gt.f32.partialorder %v675, 0.5
        %vm3654 = vcmp.gt.f32.partialorder %v676, 0.5
        %v3655 = vsel %vm3527, -10000.0, %v3145
        %v3656 = vsel %vm3528, -10000.0, %v3148
        %v3657 = vsel %vm3529, -10000.0, %v3151
        %v3658 = vsel %vm3530, -10000.0, %v3154
        %v3659 = vsel %vm3531, -10000.0, %v3157
        %v3660 = vsel %vm3532, -10000.0, %v3160
        %v3661 = vsel %vm3533, -10000.0, %v3163
        %v3662 = vsel %vm3534, -10000.0, %v3166
        %v3663 = vsel %vm3535, -10000.0, %v3169
        %v3664 = vsel %vm3536, -10000.0, %v3172
        %v3665 = vsel %vm3537, -10000.0, %v3175
        %v3666 = vsel %vm3538, -10000.0, %v3178
        %v3667 = vsel %vm3539, -10000.0, %v3181
        %v3668 = vsel %vm3540, -10000.0, %v3184
        %v3669 = vsel %vm3541, -10000.0, %v3187
        %v3670 = vsel %vm3542, -10000.0, %v3190
        %v3671 = vsel %vm3543, -10000.0, %v3193
        %v3672 = vsel %vm3544, -10000.0, %v3196
        %v3673 = vsel %vm3545, -10000.0, %v3199
        %v3674 = vsel %vm3546, -10000.0, %v3202
        %v3675 = vsel %vm3547, -10000.0, %v3205
        %v3676 = vsel %vm3548, -10000.0, %v3208
        %v3677 = vsel %vm3549, -10000.0, %v3211
        %v3678 = vsel %vm3550, -10000.0, %v3214
        %v3679 = vsel %vm3551, -10000.0, %v3217
        %v3680 = vsel %vm3552, -10000.0, %v3220
        %v3681 = vsel %vm3553, -10000.0, %v3223
        %v3682 = vsel %vm3554, -10000.0, %v3226
        %v3683 = vsel %vm3555, -10000.0, %v3229
        %v3684 = vsel %vm3556, -10000.0, %v3232
        %v3685 = vsel %vm3557, -10000.0, %v3235
        %v3686 = vsel %vm3558, -10000.0, %v3238
        %v3687 = vsel %vm3559, -10000.0, %v3241
        %v3688 = vsel %vm3560, -10000.0, %v3244
        %v3689 = vsel %vm3561, -10000.0, %v3247
        %v3690 = vsel %vm3562, -10000.0, %v3250
        %v3691 = vsel %vm3563, -10000.0, %v3253
        %v3692 = vsel %vm3564, -10000.0, %v3256
        %v3693 = vsel %vm3565, -10000.0, %v3259
        %v3694 = vsel %vm3566, -10000.0, %v3262
        %v3695 = vsel %vm3567, -10000.0, %v3265
        %v3696 = vsel %vm3568, -10000.0, %v3268
        %v3697 = vsel %vm3569, -10000.0, %v3271
        %v3698 = vsel %vm3570, -10000.0, %v3274
        %v3699 = vsel %vm3571, -10000.0, %v3277
        %v3700 = vsel %vm3572, -10000.0, %v3280
        %v3701 = vsel %vm3573, -10000.0, %v3283
        %v3702 = vsel %vm3574, -10000.0, %v3286
        %v3703 = vsel %vm3575, -10000.0, %v3289
        %v3704 = vsel %vm3576, -10000.0, %v3292
        %v3705 = vsel %vm3577, -10000.0, %v3295
        %v3706 = vsel %vm3578, -10000.0, %v3298
        %v3707 = vsel %vm3579, -10000.0, %v3301
        %v3708 = vsel %vm3580, -10000.0, %v3304
        %v3709 = vsel %vm3581, -10000.0, %v3307
        %v3710 = vsel %vm3582, -10000.0, %v3310
        %v3711 = vsel %vm3583, -10000.0, %v3313
        %v3712 = vsel %vm3584, -10000.0, %v3316
        %v3713 = vsel %vm3585, -10000.0, %v3319
        %v3714 = vsel %vm3586, -10000.0, %v3322
        %v3715 = vsel %vm3587, -10000.0, %v3325
        %v3716 = vsel %vm3588, -10000.0, %v3328
        %v3717 = vsel %vm3589, -10000.0, %v3331
        %v3718 = vsel %vm3590, -10000.0, %v3334
        %v3719 = vsel %vm3591, -10000.0, %v3337
        %v3720 = vsel %vm3592, -10000.0, %v3340
        %v3721 = vsel %vm3593, -10000.0, %v3343
        %v3722 = vsel %vm3594, -10000.0, %v3346
        %v3723 = vsel %vm3595, -10000.0, %v3349
        %v3724 = vsel %vm3596, -10000.0, %v3352
        %v3725 = vsel %vm3597, -10000.0, %v3355
        %v3726 = vsel %vm3598, -10000.0, %v3358
        %v3727 = vsel %vm3599, -10000.0, %v3361
        %v3728 = vsel %vm3600, -10000.0, %v3364
        %v3729 = vsel %vm3601, -10000.0, %v3367
        %v3730 = vsel %vm3602, -10000.0, %v3370
        %v3731 = vsel %vm3603, -10000.0, %v3373
        %v3732 = vsel %vm3604, -10000.0, %v3376
        %v3733 = vsel %vm3605, -10000.0, %v3379
        %v3734 = vsel %vm3606, -10000.0, %v3382
        %v3735 = vsel %vm3607, -10000.0, %v3385
        %v3736 = vsel %vm3608, -10000.0, %v3388
        %v3737 = vsel %vm3609, -10000.0, %v3391
        %v3738 = vsel %vm3610, -10000.0, %v3394
        %v3739 = vsel %vm3611, -10000.0, %v3397
        %v3740 = vsel %vm3612, -10000.0, %v3400
        %v3741 = vsel %vm3613, -10000.0, %v3403
        %v3742 = vsel %vm3614, -10000.0, %v3406
        %v3743 = vsel %vm3615, -10000.0, %v3409
        %v3744 = vsel %vm3616, -10000.0, %v3412
        %v3745 = vsel %vm3617, -10000.0, %v3415
        %v3746 = vsel %vm3618, -10000.0, %v3418
        %v3747 = vsel %vm3619, -10000.0, %v3421
        %v3748 = vsel %vm3620, -10000.0, %v3424
        %v3749 = vsel %vm3621, -10000.0, %v3427
        %v3750 = vsel %vm3622, -10000.0, %v3430
        %v3751 = vsel %vm3623, -10000.0, %v3433
        %v3752 = vsel %vm3624, -10000.0, %v3436
        %v3753 = vsel %vm3625, -10000.0, %v3439
        %v3754 = vsel %vm3626, -10000.0, %v3442
        %v3755 = vsel %vm3627, -10000.0, %v3445
        %v3756 = vsel %vm3628, -10000.0, %v3448
        %v3757 = vsel %vm3629, -10000.0, %v3451
        %v3758 = vsel %vm3630, -10000.0, %v3454
        %v3759 = vsel %vm3631, -10000.0, %v3457
        %v3760 = vsel %vm3632, -10000.0, %v3460
        %v3761 = vsel %vm3633, -10000.0, %v3463
        %v3762 = vsel %vm3634, -10000.0, %v3466
        %v3763 = vsel %vm3635, -10000.0, %v3469
        %v3764 = vsel %vm3636, -10000.0, %v3472
        %v3765 = vsel %vm3637, -10000.0, %v3475
        %v3766 = vsel %vm3638, -10000.0, %v3478
        %v3767 = vsel %vm3639, -10000.0, %v3481
        %v3768 = vsel %vm3640, -10000.0, %v3484
        %v3769 = vsel %vm3641, -10000.0, %v3487
        %v3770 = vsel %vm3642, -10000.0, %v3490
        %v3771 = vsel %vm3643, -10000.0, %v3493
        %v3772 = vsel %vm3644, -10000.0, %v3496
        %v3773 = vsel %vm3645, -10000.0, %v3499
        %v3774 = vsel %vm3646, -10000.0, %v3502
        %v3775 = vsel %vm3647, -10000.0, %v3505
        %v3776 = vsel %vm3648, -10000.0, %v3508
        %v3777 = vsel %vm3649, -10000.0, %v3511
        %v3778 = vsel %vm3650, -10000.0, %v3514
        %v3779 = vsel %vm3651, -10000.0, %v3517
        %v3780 = vsel %vm3652, -10000.0, %v3520
        %v3781 = vsel %vm3653, -10000.0, %v3523
        %v3782 = vsel %vm3654, -10000.0, %v3526
        %vm3783 = vcmask 7168
        %v3784 = vsel %vm3783, %v3655, -inf
        %v3785 = vsel %vm3783, %v3656, -inf
        %v3786 = vmax.f32 %v3784, %v3785
        %v3787 = vrot.slane %v3786, 4
        %v3788 = vmax.f32 %v3786, %v3787
        %v3789 = vrot.slane %v3788, 2
        %v3790 = vmax.f32 %v3788, %v3789
        %v3791 = vrot.slane %v3790, 1
        %v3792 = vmax.f32 %v3790, %v3791
        %v3793 = vsel %vm3783, %v3657, -inf
        %v3794 = vsel %vm3783, %v3658, -inf
        %v3795 = vmax.f32 %v3793, %v3794
        %v3796 = vrot.slane %v3795, 4
        %v3797 = vmax.f32 %v3795, %v3796
        %v3798 = vrot.slane %v3797, 2
        %v3799 = vmax.f32 %v3797, %v3798
        %v3800 = vrot.slane %v3799, 1
        %v3801 = vmax.f32 %v3799, %v3800
        %v3802 = vsel %vm3783, %v3659, -inf
        %v3803 = vsel %vm3783, %v3660, -inf
        %v3804 = vmax.f32 %v3802, %v3803
        %v3805 = vrot.slane %v3804, 4
        %v3806 = vmax.f32 %v3804, %v3805
        %v3807 = vrot.slane %v3806, 2
        %v3808 = vmax.f32 %v3806, %v3807
        %v3809 = vrot.slane %v3808, 1
        %v3810 = vmax.f32 %v3808, %v3809
        %v3811 = vsel %vm3783, %v3661, -inf
        %v3812 = vsel %vm3783, %v3662, -inf
        %v3813 = vmax.f32 %v3811, %v3812
        %v3814 = vrot.slane %v3813, 4
        %v3815 = vmax.f32 %v3813, %v3814
        %v3816 = vrot.slane %v3815, 2
        %v3817 = vmax.f32 %v3815, %v3816
        %v3818 = vrot.slane %v3817, 1
        %v3819 = vmax.f32 %v3817, %v3818
        %v3820 = vsel %vm3783, %v3663, -inf
        %v3821 = vsel %vm3783, %v3664, -inf
        %v3822 = vmax.f32 %v3820, %v3821
        %v3823 = vrot.slane %v3822, 4
        %v3824 = vmax.f32 %v3822, %v3823
        %v3825 = vrot.slane %v3824, 2
        %v3826 = vmax.f32 %v3824, %v3825
        %v3827 = vrot.slane %v3826, 1
        %v3828 = vmax.f32 %v3826, %v3827
        %v3829 = vsel %vm3783, %v3665, -inf
        %v3830 = vsel %vm3783, %v3666, -inf
        %v3831 = vmax.f32 %v3829, %v3830
        %v3832 = vrot.slane %v3831, 4
        %v3833 = vmax.f32 %v3831, %v3832
        %v3834 = vrot.slane %v3833, 2
        %v3835 = vmax.f32 %v3833, %v3834
        %v3836 = vrot.slane %v3835, 1
        %v3837 = vmax.f32 %v3835, %v3836
        %v3838 = vsel %vm3783, %v3667, -inf
        %v3839 = vsel %vm3783, %v3668, -inf
        %v3840 = vmax.f32 %v3838, %v3839
        %v3841 = vrot.slane %v3840, 4
        %v3842 = vmax.f32 %v3840, %v3841
        %v3843 = vrot.slane %v3842, 2
        %v3844 = vmax.f32 %v3842, %v3843
        %v3845 = vrot.slane %v3844, 1
        %v3846 = vmax.f32 %v3844, %v3845
        %v3847 = vsel %vm3783, %v3669, -inf
        %v3848 = vsel %vm3783, %v3670, -inf
        %v3849 = vmax.f32 %v3847, %v3848
        %v3850 = vrot.slane %v3849, 4
        %v3851 = vmax.f32 %v3849, %v3850
        %v3852 = vrot.slane %v3851, 2
        %v3853 = vmax.f32 %v3851, %v3852
        %v3854 = vrot.slane %v3853, 1
        %v3855 = vmax.f32 %v3853, %v3854
        %v3856 = vsel %vm3783, %v3671, -inf
        %v3857 = vsel %vm3783, %v3672, -inf
        %v3858 = vmax.f32 %v3856, %v3857
        %v3859 = vrot.slane %v3858, 4
        %v3860 = vmax.f32 %v3858, %v3859
        %v3861 = vrot.slane %v3860, 2
        %v3862 = vmax.f32 %v3860, %v3861
        %v3863 = vrot.slane %v3862, 1
        %v3864 = vmax.f32 %v3862, %v3863
        %v3865 = vsel %vm3783, %v3673, -inf
        %v3866 = vsel %vm3783, %v3674, -inf
        %v3867 = vmax.f32 %v3865, %v3866
        %v3868 = vrot.slane %v3867, 4
        %v3869 = vmax.f32 %v3867, %v3868
        %v3870 = vrot.slane %v3869, 2
        %v3871 = vmax.f32 %v3869, %v3870
        %v3872 = vrot.slane %v3871, 1
        %v3873 = vmax.f32 %v3871, %v3872
        %v3874 = vsel %vm3783, %v3675, -inf
        %v3875 = vsel %vm3783, %v3676, -inf
        %v3876 = vmax.f32 %v3874, %v3875
        %v3877 = vrot.slane %v3876, 4
        %v3878 = vmax.f32 %v3876, %v3877
        %v3879 = vrot.slane %v3878, 2
        %v3880 = vmax.f32 %v3878, %v3879
        %v3881 = vrot.slane %v3880, 1
        %v3882 = vmax.f32 %v3880, %v3881
        %v3883 = vsel %vm3783, %v3677, -inf
        %v3884 = vsel %vm3783, %v3678, -inf
        %v3885 = vmax.f32 %v3883, %v3884
        %v3886 = vrot.slane %v3885, 4
        %v3887 = vmax.f32 %v3885, %v3886
        %v3888 = vrot.slane %v3887, 2
        %v3889 = vmax.f32 %v3887, %v3888
        %v3890 = vrot.slane %v3889, 1
        %v3891 = vmax.f32 %v3889, %v3890
        %v3892 = vsel %vm3783, %v3679, -inf
        %v3893 = vsel %vm3783, %v3680, -inf
        %v3894 = vmax.f32 %v3892, %v3893
        %v3895 = vrot.slane %v3894, 4
        %v3896 = vmax.f32 %v3894, %v3895
        %v3897 = vrot.slane %v3896, 2
        %v3898 = vmax.f32 %v3896, %v3897
        %v3899 = vrot.slane %v3898, 1
        %v3900 = vmax.f32 %v3898, %v3899
        %v3901 = vsel %vm3783, %v3681, -inf
        %v3902 = vsel %vm3783, %v3682, -inf
        %v3903 = vmax.f32 %v3901, %v3902
        %v3904 = vrot.slane %v3903, 4
        %v3905 = vmax.f32 %v3903, %v3904
        %v3906 = vrot.slane %v3905, 2
        %v3907 = vmax.f32 %v3905, %v3906
        %v3908 = vrot.slane %v3907, 1
        %v3909 = vmax.f32 %v3907, %v3908
        %v3910 = vsel %vm3783, %v3683, -inf
        %v3911 = vsel %vm3783, %v3684, -inf
        %v3912 = vmax.f32 %v3910, %v3911
        %v3913 = vrot.slane %v3912, 4
        %v3914 = vmax.f32 %v3912, %v3913
        %v3915 = vrot.slane %v3914, 2
        %v3916 = vmax.f32 %v3914, %v3915
        %v3917 = vrot.slane %v3916, 1
        %v3918 = vmax.f32 %v3916, %v3917
        %v3919 = vsel %vm3783, %v3685, -inf
        %v3920 = vsel %vm3783, %v3686, -inf
        %v3921 = vmax.f32 %v3919, %v3920
        %v3922 = vrot.slane %v3921, 4
        %v3923 = vmax.f32 %v3921, %v3922
        %v3924 = vrot.slane %v3923, 2
        %v3925 = vmax.f32 %v3923, %v3924
        %v3926 = vrot.slane %v3925, 1
        %v3927 = vmax.f32 %v3925, %v3926
        %v3928 = vsel %vm3783, %v3687, -inf
        %v3929 = vsel %vm3783, %v3688, -inf
        %v3930 = vmax.f32 %v3928, %v3929
        %v3931 = vrot.slane %v3930, 4
        %v3932 = vmax.f32 %v3930, %v3931
        %v3933 = vrot.slane %v3932, 2
        %v3934 = vmax.f32 %v3932, %v3933
        %v3935 = vrot.slane %v3934, 1
        %v3936 = vmax.f32 %v3934, %v3935
        %v3937 = vsel %vm3783, %v3689, -inf
        %v3938 = vsel %vm3783, %v3690, -inf
        %v3939 = vmax.f32 %v3937, %v3938
        %v3940 = vrot.slane %v3939, 4
        %v3941 = vmax.f32 %v3939, %v3940
        %v3942 = vrot.slane %v3941, 2
        %v3943 = vmax.f32 %v3941, %v3942
        %v3944 = vrot.slane %v3943, 1
        %v3945 = vmax.f32 %v3943, %v3944
        %v3946 = vsel %vm3783, %v3691, -inf
        %v3947 = vsel %vm3783, %v3692, -inf
        %v3948 = vmax.f32 %v3946, %v3947
        %v3949 = vrot.slane %v3948, 4
        %v3950 = vmax.f32 %v3948, %v3949
        %v3951 = vrot.slane %v3950, 2
        %v3952 = vmax.f32 %v3950, %v3951
        %v3953 = vrot.slane %v3952, 1
        %v3954 = vmax.f32 %v3952, %v3953
        %v3955 = vsel %vm3783, %v3693, -inf
        %v3956 = vsel %vm3783, %v3694, -inf
        %v3957 = vmax.f32 %v3955, %v3956
        %v3958 = vrot.slane %v3957, 4
        %v3959 = vmax.f32 %v3957, %v3958
        %v3960 = vrot.slane %v3959, 2
        %v3961 = vmax.f32 %v3959, %v3960
        %v3962 = vrot.slane %v3961, 1
        %v3963 = vmax.f32 %v3961, %v3962
        %v3964 = vsel %vm3783, %v3695, -inf
        %v3965 = vsel %vm3783, %v3696, -inf
        %v3966 = vmax.f32 %v3964, %v3965
        %v3967 = vrot.slane %v3966, 4
        %v3968 = vmax.f32 %v3966, %v3967
        %v3969 = vrot.slane %v3968, 2
        %v3970 = vmax.f32 %v3968, %v3969
        %v3971 = vrot.slane %v3970, 1
        %v3972 = vmax.f32 %v3970, %v3971
        %v3973 = vsel %vm3783, %v3697, -inf
        %v3974 = vsel %vm3783, %v3698, -inf
        %v3975 = vmax.f32 %v3973, %v3974
        %v3976 = vrot.slane %v3975, 4
        %v3977 = vmax.f32 %v3975, %v3976
        %v3978 = vrot.slane %v3977, 2
        %v3979 = vmax.f32 %v3977, %v3978
        %v3980 = vrot.slane %v3979, 1
        %v3981 = vmax.f32 %v3979, %v3980
        %v3982 = vsel %vm3783, %v3699, -inf
        %v3983 = vsel %vm3783, %v3700, -inf
        %v3984 = vmax.f32 %v3982, %v3983
        %v3985 = vrot.slane %v3984, 4
        %v3986 = vmax.f32 %v3984, %v3985
        %v3987 = vrot.slane %v3986, 2
        %v3988 = vmax.f32 %v3986, %v3987
        %v3989 = vrot.slane %v3988, 1
        %v3990 = vmax.f32 %v3988, %v3989
        %v3991 = vsel %vm3783, %v3701, -inf
        %v3992 = vsel %vm3783, %v3702, -inf
        %v3993 = vmax.f32 %v3991, %v3992
        %v3994 = vrot.slane %v3993, 4
        %v3995 = vmax.f32 %v3993, %v3994
        %v3996 = vrot.slane %v3995, 2
        %v3997 = vmax.f32 %v3995, %v3996
        %v3998 = vrot.slane %v3997, 1
        %v3999 = vmax.f32 %v3997, %v3998
        %v4000 = vsel %vm3783, %v3703, -inf
        %v4001 = vsel %vm3783, %v3704, -inf
        %v4002 = vmax.f32 %v4000, %v4001
        %v4003 = vrot.slane %v4002, 4
        %v4004 = vmax.f32 %v4002, %v4003
        %v4005 = vrot.slane %v4004, 2
        %v4006 = vmax.f32 %v4004, %v4005
        %v4007 = vrot.slane %v4006, 1
        %v4008 = vmax.f32 %v4006, %v4007
        %v4009 = vsel %vm3783, %v3705, -inf
        %v4010 = vsel %vm3783, %v3706, -inf
        %v4011 = vmax.f32 %v4009, %v4010
        %v4012 = vrot.slane %v4011, 4
        %v4013 = vmax.f32 %v4011, %v4012
        %v4014 = vrot.slane %v4013, 2
        %v4015 = vmax.f32 %v4013, %v4014
        %v4016 = vrot.slane %v4015, 1
        %v4017 = vmax.f32 %v4015, %v4016
        %v4018 = vsel %vm3783, %v3707, -inf
        %v4019 = vsel %vm3783, %v3708, -inf
        %v4020 = vmax.f32 %v4018, %v4019
        %v4021 = vrot.slane %v4020, 4
        %v4022 = vmax.f32 %v4020, %v4021
        %v4023 = vrot.slane %v4022, 2
        %v4024 = vmax.f32 %v4022, %v4023
        %v4025 = vrot.slane %v4024, 1
        %v4026 = vmax.f32 %v4024, %v4025
        %v4027 = vsel %vm3783, %v3709, -inf
        %v4028 = vsel %vm3783, %v3710, -inf
        %v4029 = vmax.f32 %v4027, %v4028
        %v4030 = vrot.slane %v4029, 4
        %v4031 = vmax.f32 %v4029, %v4030
        %v4032 = vrot.slane %v4031, 2
        %v4033 = vmax.f32 %v4031, %v4032
        %v4034 = vrot.slane %v4033, 1
        %v4035 = vmax.f32 %v4033, %v4034
        %v4036 = vsel %vm3783, %v3711, -inf
        %v4037 = vsel %vm3783, %v3712, -inf
        %v4038 = vmax.f32 %v4036, %v4037
        %v4039 = vrot.slane %v4038, 4
        %v4040 = vmax.f32 %v4038, %v4039
        %v4041 = vrot.slane %v4040, 2
        %v4042 = vmax.f32 %v4040, %v4041
        %v4043 = vrot.slane %v4042, 1
        %v4044 = vmax.f32 %v4042, %v4043
        %v4045 = vsel %vm3783, %v3713, -inf
        %v4046 = vsel %vm3783, %v3714, -inf
        %v4047 = vmax.f32 %v4045, %v4046
        %v4048 = vrot.slane %v4047, 4
        %v4049 = vmax.f32 %v4047, %v4048
        %v4050 = vrot.slane %v4049, 2
        %v4051 = vmax.f32 %v4049, %v4050
        %v4052 = vrot.slane %v4051, 1
        %v4053 = vmax.f32 %v4051, %v4052
        %v4054 = vsel %vm3783, %v3715, -inf
        %v4055 = vsel %vm3783, %v3716, -inf
        %v4056 = vmax.f32 %v4054, %v4055
        %v4057 = vrot.slane %v4056, 4
        %v4058 = vmax.f32 %v4056, %v4057
        %v4059 = vrot.slane %v4058, 2
        %v4060 = vmax.f32 %v4058, %v4059
        %v4061 = vrot.slane %v4060, 1
        %v4062 = vmax.f32 %v4060, %v4061
        %v4063 = vsel %vm3783, %v3717, -inf
        %v4064 = vsel %vm3783, %v3718, -inf
        %v4065 = vmax.f32 %v4063, %v4064
        %v4066 = vrot.slane %v4065, 4
        %v4067 = vmax.f32 %v4065, %v4066
        %v4068 = vrot.slane %v4067, 2
        %v4069 = vmax.f32 %v4067, %v4068
        %v4070 = vrot.slane %v4069, 1
        %v4071 = vmax.f32 %v4069, %v4070
        %v4072 = vsel %vm3783, %v3719, -inf
        %v4073 = vsel %vm3783, %v3720, -inf
        %v4074 = vmax.f32 %v4072, %v4073
        %v4075 = vrot.slane %v4074, 4
        %v4076 = vmax.f32 %v4074, %v4075
        %v4077 = vrot.slane %v4076, 2
        %v4078 = vmax.f32 %v4076, %v4077
        %v4079 = vrot.slane %v4078, 1
        %v4080 = vmax.f32 %v4078, %v4079
        %v4081 = vsel %vm3783, %v3721, -inf
        %v4082 = vsel %vm3783, %v3722, -inf
        %v4083 = vmax.f32 %v4081, %v4082
        %v4084 = vrot.slane %v4083, 4
        %v4085 = vmax.f32 %v4083, %v4084
        %v4086 = vrot.slane %v4085, 2
        %v4087 = vmax.f32 %v4085, %v4086
        %v4088 = vrot.slane %v4087, 1
        %v4089 = vmax.f32 %v4087, %v4088
        %v4090 = vsel %vm3783, %v3723, -inf
        %v4091 = vsel %vm3783, %v3724, -inf
        %v4092 = vmax.f32 %v4090, %v4091
        %v4093 = vrot.slane %v4092, 4
        %v4094 = vmax.f32 %v4092, %v4093
        %v4095 = vrot.slane %v4094, 2
        %v4096 = vmax.f32 %v4094, %v4095
        %v4097 = vrot.slane %v4096, 1
        %v4098 = vmax.f32 %v4096, %v4097
        %v4099 = vsel %vm3783, %v3725, -inf
        %v4100 = vsel %vm3783, %v3726, -inf
        %v4101 = vmax.f32 %v4099, %v4100
        %v4102 = vrot.slane %v4101, 4
        %v4103 = vmax.f32 %v4101, %v4102
        %v4104 = vrot.slane %v4103, 2
        %v4105 = vmax.f32 %v4103, %v4104
        %v4106 = vrot.slane %v4105, 1
        %v4107 = vmax.f32 %v4105, %v4106
        %v4108 = vsel %vm3783, %v3727, -inf
        %v4109 = vsel %vm3783, %v3728, -inf
        %v4110 = vmax.f32 %v4108, %v4109
        %v4111 = vrot.slane %v4110, 4
        %v4112 = vmax.f32 %v4110, %v4111
        %v4113 = vrot.slane %v4112, 2
        %v4114 = vmax.f32 %v4112, %v4113
        %v4115 = vrot.slane %v4114, 1
        %v4116 = vmax.f32 %v4114, %v4115
        %v4117 = vsel %vm3783, %v3729, -inf
        %v4118 = vsel %vm3783, %v3730, -inf
        %v4119 = vmax.f32 %v4117, %v4118
        %v4120 = vrot.slane %v4119, 4
        %v4121 = vmax.f32 %v4119, %v4120
        %v4122 = vrot.slane %v4121, 2
        %v4123 = vmax.f32 %v4121, %v4122
        %v4124 = vrot.slane %v4123, 1
        %v4125 = vmax.f32 %v4123, %v4124
        %v4126 = vsel %vm3783, %v3731, -inf
        %v4127 = vsel %vm3783, %v3732, -inf
        %v4128 = vmax.f32 %v4126, %v4127
        %v4129 = vrot.slane %v4128, 4
        %v4130 = vmax.f32 %v4128, %v4129
        %v4131 = vrot.slane %v4130, 2
        %v4132 = vmax.f32 %v4130, %v4131
        %v4133 = vrot.slane %v4132, 1
        %v4134 = vmax.f32 %v4132, %v4133
        %v4135 = vsel %vm3783, %v3733, -inf
        %v4136 = vsel %vm3783, %v3734, -inf
        %v4137 = vmax.f32 %v4135, %v4136
        %v4138 = vrot.slane %v4137, 4
        %v4139 = vmax.f32 %v4137, %v4138
        %v4140 = vrot.slane %v4139, 2
        %v4141 = vmax.f32 %v4139, %v4140
        %v4142 = vrot.slane %v4141, 1
        %v4143 = vmax.f32 %v4141, %v4142
        %v4144 = vsel %vm3783, %v3735, -inf
        %v4145 = vsel %vm3783, %v3736, -inf
        %v4146 = vmax.f32 %v4144, %v4145
        %v4147 = vrot.slane %v4146, 4
        %v4148 = vmax.f32 %v4146, %v4147
        %v4149 = vrot.slane %v4148, 2
        %v4150 = vmax.f32 %v4148, %v4149
        %v4151 = vrot.slane %v4150, 1
        %v4152 = vmax.f32 %v4150, %v4151
        %v4153 = vsel %vm3783, %v3737, -inf
        %v4154 = vsel %vm3783, %v3738, -inf
        %v4155 = vmax.f32 %v4153, %v4154
        %v4156 = vrot.slane %v4155, 4
        %v4157 = vmax.f32 %v4155, %v4156
        %v4158 = vrot.slane %v4157, 2
        %v4159 = vmax.f32 %v4157, %v4158
        %v4160 = vrot.slane %v4159, 1
        %v4161 = vmax.f32 %v4159, %v4160
        %v4162 = vsel %vm3783, %v3739, -inf
        %v4163 = vsel %vm3783, %v3740, -inf
        %v4164 = vmax.f32 %v4162, %v4163
        %v4165 = vrot.slane %v4164, 4
        %v4166 = vmax.f32 %v4164, %v4165
        %v4167 = vrot.slane %v4166, 2
        %v4168 = vmax.f32 %v4166, %v4167
        %v4169 = vrot.slane %v4168, 1
        %v4170 = vmax.f32 %v4168, %v4169
        %v4171 = vsel %vm3783, %v3741, -inf
        %v4172 = vsel %vm3783, %v3742, -inf
        %v4173 = vmax.f32 %v4171, %v4172
        %v4174 = vrot.slane %v4173, 4
        %v4175 = vmax.f32 %v4173, %v4174
        %v4176 = vrot.slane %v4175, 2
        %v4177 = vmax.f32 %v4175, %v4176
        %v4178 = vrot.slane %v4177, 1
        %v4179 = vmax.f32 %v4177, %v4178
        %v4180 = vsel %vm3783, %v3743, -inf
        %v4181 = vsel %vm3783, %v3744, -inf
        %v4182 = vmax.f32 %v4180, %v4181
        %v4183 = vrot.slane %v4182, 4
        %v4184 = vmax.f32 %v4182, %v4183
        %v4185 = vrot.slane %v4184, 2
        %v4186 = vmax.f32 %v4184, %v4185
        %v4187 = vrot.slane %v4186, 1
        %v4188 = vmax.f32 %v4186, %v4187
        %v4189 = vsel %vm3783, %v3745, -inf
        %v4190 = vsel %vm3783, %v3746, -inf
        %v4191 = vmax.f32 %v4189, %v4190
        %v4192 = vrot.slane %v4191, 4
        %v4193 = vmax.f32 %v4191, %v4192
        %v4194 = vrot.slane %v4193, 2
        %v4195 = vmax.f32 %v4193, %v4194
        %v4196 = vrot.slane %v4195, 1
        %v4197 = vmax.f32 %v4195, %v4196
        %v4198 = vsel %vm3783, %v3747, -inf
        %v4199 = vsel %vm3783, %v3748, -inf
        %v4200 = vmax.f32 %v4198, %v4199
        %v4201 = vrot.slane %v4200, 4
        %v4202 = vmax.f32 %v4200, %v4201
        %v4203 = vrot.slane %v4202, 2
        %v4204 = vmax.f32 %v4202, %v4203
        %v4205 = vrot.slane %v4204, 1
        %v4206 = vmax.f32 %v4204, %v4205
        %v4207 = vsel %vm3783, %v3749, -inf
        %v4208 = vsel %vm3783, %v3750, -inf
        %v4209 = vmax.f32 %v4207, %v4208
        %v4210 = vrot.slane %v4209, 4
        %v4211 = vmax.f32 %v4209, %v4210
        %v4212 = vrot.slane %v4211, 2
        %v4213 = vmax.f32 %v4211, %v4212
        %v4214 = vrot.slane %v4213, 1
        %v4215 = vmax.f32 %v4213, %v4214
        %v4216 = vsel %vm3783, %v3751, -inf
        %v4217 = vsel %vm3783, %v3752, -inf
        %v4218 = vmax.f32 %v4216, %v4217
        %v4219 = vrot.slane %v4218, 4
        %v4220 = vmax.f32 %v4218, %v4219
        %v4221 = vrot.slane %v4220, 2
        %v4222 = vmax.f32 %v4220, %v4221
        %v4223 = vrot.slane %v4222, 1
        %v4224 = vmax.f32 %v4222, %v4223
        %v4225 = vsel %vm3783, %v3753, -inf
        %v4226 = vsel %vm3783, %v3754, -inf
        %v4227 = vmax.f32 %v4225, %v4226
        %v4228 = vrot.slane %v4227, 4
        %v4229 = vmax.f32 %v4227, %v4228
        %v4230 = vrot.slane %v4229, 2
        %v4231 = vmax.f32 %v4229, %v4230
        %v4232 = vrot.slane %v4231, 1
        %v4233 = vmax.f32 %v4231, %v4232
        %v4234 = vsel %vm3783, %v3755, -inf
        %v4235 = vsel %vm3783, %v3756, -inf
        %v4236 = vmax.f32 %v4234, %v4235
        %v4237 = vrot.slane %v4236, 4
        %v4238 = vmax.f32 %v4236, %v4237
        %v4239 = vrot.slane %v4238, 2
        %v4240 = vmax.f32 %v4238, %v4239
        %v4241 = vrot.slane %v4240, 1
        %v4242 = vmax.f32 %v4240, %v4241
        %v4243 = vsel %vm3783, %v3757, -inf
        %v4244 = vsel %vm3783, %v3758, -inf
        %v4245 = vmax.f32 %v4243, %v4244
        %v4246 = vrot.slane %v4245, 4
        %v4247 = vmax.f32 %v4245, %v4246
        %v4248 = vrot.slane %v4247, 2
        %v4249 = vmax.f32 %v4247, %v4248
        %v4250 = vrot.slane %v4249, 1
        %v4251 = vmax.f32 %v4249, %v4250
        %v4252 = vsel %vm3783, %v3759, -inf
        %v4253 = vsel %vm3783, %v3760, -inf
        %v4254 = vmax.f32 %v4252, %v4253
        %v4255 = vrot.slane %v4254, 4
        %v4256 = vmax.f32 %v4254, %v4255
        %v4257 = vrot.slane %v4256, 2
        %v4258 = vmax.f32 %v4256, %v4257
        %v4259 = vrot.slane %v4258, 1
        %v4260 = vmax.f32 %v4258, %v4259
        %v4261 = vsel %vm3783, %v3761, -inf
        %v4262 = vsel %vm3783, %v3762, -inf
        %v4263 = vmax.f32 %v4261, %v4262
        %v4264 = vrot.slane %v4263, 4
        %v4265 = vmax.f32 %v4263, %v4264
        %v4266 = vrot.slane %v4265, 2
        %v4267 = vmax.f32 %v4265, %v4266
        %v4268 = vrot.slane %v4267, 1
        %v4269 = vmax.f32 %v4267, %v4268
        %v4270 = vsel %vm3783, %v3763, -inf
        %v4271 = vsel %vm3783, %v3764, -inf
        %v4272 = vmax.f32 %v4270, %v4271
        %v4273 = vrot.slane %v4272, 4
        %v4274 = vmax.f32 %v4272, %v4273
        %v4275 = vrot.slane %v4274, 2
        %v4276 = vmax.f32 %v4274, %v4275
        %v4277 = vrot.slane %v4276, 1
        %v4278 = vmax.f32 %v4276, %v4277
        %v4279 = vsel %vm3783, %v3765, -inf
        %v4280 = vsel %vm3783, %v3766, -inf
        %v4281 = vmax.f32 %v4279, %v4280
        %v4282 = vrot.slane %v4281, 4
        %v4283 = vmax.f32 %v4281, %v4282
        %v4284 = vrot.slane %v4283, 2
        %v4285 = vmax.f32 %v4283, %v4284
        %v4286 = vrot.slane %v4285, 1
        %v4287 = vmax.f32 %v4285, %v4286
        %v4288 = vsel %vm3783, %v3767, -inf
        %v4289 = vsel %vm3783, %v3768, -inf
        %v4290 = vmax.f32 %v4288, %v4289
        %v4291 = vrot.slane %v4290, 4
        %v4292 = vmax.f32 %v4290, %v4291
        %v4293 = vrot.slane %v4292, 2
        %v4294 = vmax.f32 %v4292, %v4293
        %v4295 = vrot.slane %v4294, 1
        %v4296 = vmax.f32 %v4294, %v4295
        %v4297 = vsel %vm3783, %v3769, -inf
        %v4298 = vsel %vm3783, %v3770, -inf
        %v4299 = vmax.f32 %v4297, %v4298
        %v4300 = vrot.slane %v4299, 4
        %v4301 = vmax.f32 %v4299, %v4300
        %v4302 = vrot.slane %v4301, 2
        %v4303 = vmax.f32 %v4301, %v4302
        %v4304 = vrot.slane %v4303, 1
        %v4305 = vmax.f32 %v4303, %v4304
        %v4306 = vsel %vm3783, %v3771, -inf
        %v4307 = vsel %vm3783, %v3772, -inf
        %v4308 = vmax.f32 %v4306, %v4307
        %v4309 = vrot.slane %v4308, 4
        %v4310 = vmax.f32 %v4308, %v4309
        %v4311 = vrot.slane %v4310, 2
        %v4312 = vmax.f32 %v4310, %v4311
        %v4313 = vrot.slane %v4312, 1
        %v4314 = vmax.f32 %v4312, %v4313
        %v4315 = vsel %vm3783, %v3773, -inf
        %v4316 = vsel %vm3783, %v3774, -inf
        %v4317 = vmax.f32 %v4315, %v4316
        %v4318 = vrot.slane %v4317, 4
        %v4319 = vmax.f32 %v4317, %v4318
        %v4320 = vrot.slane %v4319, 2
        %v4321 = vmax.f32 %v4319, %v4320
        %v4322 = vrot.slane %v4321, 1
        %v4323 = vmax.f32 %v4321, %v4322
        %v4324 = vsel %vm3783, %v3775, -inf
        %v4325 = vsel %vm3783, %v3776, -inf
        %v4326 = vmax.f32 %v4324, %v4325
        %v4327 = vrot.slane %v4326, 4
        %v4328 = vmax.f32 %v4326, %v4327
        %v4329 = vrot.slane %v4328, 2
        %v4330 = vmax.f32 %v4328, %v4329
        %v4331 = vrot.slane %v4330, 1
        %v4332 = vmax.f32 %v4330, %v4331
        %v4333 = vsel %vm3783, %v3777, -inf
        %v4334 = vsel %vm3783, %v3778, -inf
        %v4335 = vmax.f32 %v4333, %v4334
        %v4336 = vrot.slane %v4335, 4
        %v4337 = vmax.f32 %v4335, %v4336
        %v4338 = vrot.slane %v4337, 2
        %v4339 = vmax.f32 %v4337, %v4338
        %v4340 = vrot.slane %v4339, 1
        %v4341 = vmax.f32 %v4339, %v4340
        %v4342 = vsel %vm3783, %v3779, -inf
        %v4343 = vsel %vm3783, %v3780, -inf
        %v4344 = vmax.f32 %v4342, %v4343
        %v4345 = vrot.slane %v4344, 4
        %v4346 = vmax.f32 %v4344, %v4345
        %v4347 = vrot.slane %v4346, 2
        %v4348 = vmax.f32 %v4346, %v4347
        %v4349 = vrot.slane %v4348, 1
        %v4350 = vmax.f32 %v4348, %v4349
        %v4351 = vsel %vm3783, %v3781, -inf
        %v4352 = vsel %vm3783, %v3782, -inf
        %v4353 = vmax.f32 %v4351, %v4352
        %v4354 = vrot.slane %v4353, 4
        %v4355 = vmax.f32 %v4353, %v4354
        %v4356 = vrot.slane %v4355, 2
        %v4357 = vmax.f32 %v4355, %v4356
        %v4358 = vrot.slane %v4357, 1
        %v4359 = vmax.f32 %v4357, %v4358
        %v4360 = vsub.f32 %v3655, %v3792
        %v4361 = vsub.f32 %v3656, %v3792
        %v4362 = vsub.f32 %v3657, %v3801
        %v4363 = vsub.f32 %v3658, %v3801
        %v4364 = vsub.f32 %v3659, %v3810
        %v4365 = vsub.f32 %v3660, %v3810
        %v4366 = vsub.f32 %v3661, %v3819
        %v4367 = vsub.f32 %v3662, %v3819
        %v4368 = vsub.f32 %v3663, %v3828
        %v4369 = vsub.f32 %v3664, %v3828
        %v4370 = vsub.f32 %v3665, %v3837
        %v4371 = vsub.f32 %v3666, %v3837
        %v4372 = vsub.f32 %v3667, %v3846
        %v4373 = vsub.f32 %v3668, %v3846
        %v4374 = vsub.f32 %v3669, %v3855
        %v4375 = vsub.f32 %v3670, %v3855
        %v4376 = vsub.f32 %v3671, %v3864
        %v4377 = vsub.f32 %v3672, %v3864
        %v4378 = vsub.f32 %v3673, %v3873
        %v4379 = vsub.f32 %v3674, %v3873
        %v4380 = vsub.f32 %v3675, %v3882
        %v4381 = vsub.f32 %v3676, %v3882
        %v4382 = vsub.f32 %v3677, %v3891
        %v4383 = vsub.f32 %v3678, %v3891
        %v4384 = vsub.f32 %v3679, %v3900
        %v4385 = vsub.f32 %v3680, %v3900
        %v4386 = vsub.f32 %v3681, %v3909
        %v4387 = vsub.f32 %v3682, %v3909
        %v4388 = vsub.f32 %v3683, %v3918
        %v4389 = vsub.f32 %v3684, %v3918
        %v4390 = vsub.f32 %v3685, %v3927
        %v4391 = vsub.f32 %v3686, %v3927
        %v4392 = vsub.f32 %v3687, %v3936
        %v4393 = vsub.f32 %v3688, %v3936
        %v4394 = vsub.f32 %v3689, %v3945
        %v4395 = vsub.f32 %v3690, %v3945
        %v4396 = vsub.f32 %v3691, %v3954
        %v4397 = vsub.f32 %v3692, %v3954
        %v4398 = vsub.f32 %v3693, %v3963
        %v4399 = vsub.f32 %v3694, %v3963
        %v4400 = vsub.f32 %v3695, %v3972
        %v4401 = vsub.f32 %v3696, %v3972
        %v4402 = vsub.f32 %v3697, %v3981
        %v4403 = vsub.f32 %v3698, %v3981
        %v4404 = vsub.f32 %v3699, %v3990
        %v4405 = vsub.f32 %v3700, %v3990
        %v4406 = vsub.f32 %v3701, %v3999
        %v4407 = vsub.f32 %v3702, %v3999
        %v4408 = vsub.f32 %v3703, %v4008
        %v4409 = vsub.f32 %v3704, %v4008
        %v4410 = vsub.f32 %v3705, %v4017
        %v4411 = vsub.f32 %v3706, %v4017
        %v4412 = vsub.f32 %v3707, %v4026
        %v4413 = vsub.f32 %v3708, %v4026
        %v4414 = vsub.f32 %v3709, %v4035
        %v4415 = vsub.f32 %v3710, %v4035
        %v4416 = vsub.f32 %v3711, %v4044
        %v4417 = vsub.f32 %v3712, %v4044
        %v4418 = vsub.f32 %v3713, %v4053
        %v4419 = vsub.f32 %v3714, %v4053
        %v4420 = vsub.f32 %v3715, %v4062
        %v4421 = vsub.f32 %v3716, %v4062
        %v4422 = vsub.f32 %v3717, %v4071
        %v4423 = vsub.f32 %v3718, %v4071
        %v4424 = vsub.f32 %v3719, %v4080
        %v4425 = vsub.f32 %v3720, %v4080
        %v4426 = vsub.f32 %v3721, %v4089
        %v4427 = vsub.f32 %v3722, %v4089
        %v4428 = vsub.f32 %v3723, %v4098
        %v4429 = vsub.f32 %v3724, %v4098
        %v4430 = vsub.f32 %v3725, %v4107
        %v4431 = vsub.f32 %v3726, %v4107
        %v4432 = vsub.f32 %v3727, %v4116
        %v4433 = vsub.f32 %v3728, %v4116
        %v4434 = vsub.f32 %v3729, %v4125
        %v4435 = vsub.f32 %v3730, %v4125
        %v4436 = vsub.f32 %v3731, %v4134
        %v4437 = vsub.f32 %v3732, %v4134
        %v4438 = vsub.f32 %v3733, %v4143
        %v4439 = vsub.f32 %v3734, %v4143
        %v4440 = vsub.f32 %v3735, %v4152
        %v4441 = vsub.f32 %v3736, %v4152
        %v4442 = vsub.f32 %v3737, %v4161
        %v4443 = vsub.f32 %v3738, %v4161
        %v4444 = vsub.f32 %v3739, %v4170
        %v4445 = vsub.f32 %v3740, %v4170
        %v4446 = vsub.f32 %v3741, %v4179
        %v4447 = vsub.f32 %v3742, %v4179
        %v4448 = vsub.f32 %v3743, %v4188
        %v4449 = vsub.f32 %v3744, %v4188
        %v4450 = vsub.f32 %v3745, %v4197
        %v4451 = vsub.f32 %v3746, %v4197
        %v4452 = vsub.f32 %v3747, %v4206
        %v4453 = vsub.f32 %v3748, %v4206
        %v4454 = vsub.f32 %v3749, %v4215
        %v4455 = vsub.f32 %v3750, %v4215
        %v4456 = vsub.f32 %v3751, %v4224
        %v4457 = vsub.f32 %v3752, %v4224
        %v4458 = vsub.f32 %v3753, %v4233
        %v4459 = vsub.f32 %v3754, %v4233
        %v4460 = vsub.f32 %v3755, %v4242
        %v4461 = vsub.f32 %v3756, %v4242
        %v4462 = vsub.f32 %v3757, %v4251
        %v4463 = vsub.f32 %v3758, %v4251
        %v4464 = vsub.f32 %v3759, %v4260
        %v4465 = vsub.f32 %v3760, %v4260
        %v4466 = vsub.f32 %v3761, %v4269
        %v4467 = vsub.f32 %v3762, %v4269
        %v4468 = vsub.f32 %v3763, %v4278
        %v4469 = vsub.f32 %v3764, %v4278
        %v4470 = vsub.f32 %v3765, %v4287
        %v4471 = vsub.f32 %v3766, %v4287
        %v4472 = vsub.f32 %v3767, %v4296
        %v4473 = vsub.f32 %v3768, %v4296
        %v4474 = vsub.f32 %v3769, %v4305
        %v4475 = vsub.f32 %v3770, %v4305
        %v4476 = vsub.f32 %v3771, %v4314
        %v4477 = vsub.f32 %v3772, %v4314
        %v4478 = vsub.f32 %v3773, %v4323
        %v4479 = vsub.f32 %v3774, %v4323
        %v4480 = vsub.f32 %v3775, %v4332
        %v4481 = vsub.f32 %v3776, %v4332
        %v4482 = vsub.f32 %v3777, %v4341
        %v4483 = vsub.f32 %v3778, %v4341
        %v4484 = vsub.f32 %v3779, %v4350
        %v4485 = vsub.f32 %v3780, %v4350
        %v4486 = vsub.f32 %v3781, %v4359
        %v4487 = vsub.f32 %v3782, %v4359
        %v4488 = vmul.f32 %v4360, 1.442695
        %v4489 = vpow.pop %v4488
        %v4490 = vmul.f32 %v4361, 1.442695
        %v4491 = vpow.pop %v4490
        %v4492 = vmul.f32 %v4362, 1.442695
        %v4493 = vpow.pop %v4492
        %v4494 = vmul.f32 %v4363, 1.442695
        %v4495 = vpow.pop %v4494
        %v4496 = vmul.f32 %v4364, 1.442695
        %v4497 = vpow.pop %v4496
        %v4498 = vmul.f32 %v4365, 1.442695
        %v4499 = vpow.pop %v4498
        %v4500 = vmul.f32 %v4366, 1.442695
        %v4501 = vpow.pop %v4500
        %v4502 = vmul.f32 %v4367, 1.442695
        %v4503 = vpow.pop %v4502
        %v4504 = vmul.f32 %v4368, 1.442695
        %v4505 = vpow.pop %v4504
        %v4506 = vmul.f32 %v4369, 1.442695
        %v4507 = vpow.pop %v4506
        %v4508 = vmul.f32 %v4370, 1.442695
        %v4509 = vpow.pop %v4508
        %v4510 = vmul.f32 %v4371, 1.442695
        %v4511 = vpow.pop %v4510
        %v4512 = vmul.f32 %v4372, 1.442695
        %v4513 = vpow.pop %v4512
        %v4514 = vmul.f32 %v4373, 1.442695
        %v4515 = vpow.pop %v4514
        %v4516 = vmul.f32 %v4374, 1.442695
        %v4517 = vpow.pop %v4516
        %v4518 = vmul.f32 %v4375, 1.442695
        %v4519 = vpow.pop %v4518
        %v4520 = vmul.f32 %v4376, 1.442695
        %v4521 = vpow.pop %v4520
        %v4522 = vmul.f32 %v4377, 1.442695
        %v4523 = vpow.pop %v4522
        %v4524 = vmul.f32 %v4378, 1.442695
        %v4525 = vpow.pop %v4524
        %v4526 = vmul.f32 %v4379, 1.442695
        %v4527 = vpow.pop %v4526
        %v4528 = vmul.f32 %v4380, 1.442695
        %v4529 = vpow.pop %v4528
        %v4530 = vmul.f32 %v4381, 1.442695
        %v4531 = vpow.pop %v4530
        %v4532 = vmul.f32 %v4382, 1.442695
        %v4533 = vpow.pop %v4532
        %v4534 = vmul.f32 %v4383, 1.442695
        %v4535 = vpow.pop %v4534
        %v4536 = vmul.f32 %v4384, 1.442695
        %v4537 = vpow.pop %v4536
        %v4538 = vmul.f32 %v4385, 1.442695
        %v4539 = vpow.pop %v4538
        %v4540 = vmul.f32 %v4386, 1.442695
        %v4541 = vpow.pop %v4540
        %v4542 = vmul.f32 %v4387, 1.442695
        %v4543 = vpow.pop %v4542
        %v4544 = vmul.f32 %v4388, 1.442695
        %v4545 = vpow.pop %v4544
        %v4546 = vmul.f32 %v4389, 1.442695
        %v4547 = vpow.pop %v4546
        %v4548 = vmul.f32 %v4390, 1.442695
        %v4549 = vpow.pop %v4548
        %v4550 = vmul.f32 %v4391, 1.442695
        %v4551 = vpow.pop %v4550
        %v4552 = vmul.f32 %v4392, 1.442695
        %v4553 = vpow.pop %v4552
        %v4554 = vmul.f32 %v4393, 1.442695
        %v4555 = vpow.pop %v4554
        %v4556 = vmul.f32 %v4394, 1.442695
        %v4557 = vpow.pop %v4556
        %v4558 = vmul.f32 %v4395, 1.442695
        %v4559 = vpow.pop %v4558
        %v4560 = vmul.f32 %v4396, 1.442695
        %v4561 = vpow.pop %v4560
        %v4562 = vmul.f32 %v4397, 1.442695
        %v4563 = vpow.pop %v4562
        %v4564 = vmul.f32 %v4398, 1.442695
        %v4565 = vpow.pop %v4564
        %v4566 = vmul.f32 %v4399, 1.442695
        %v4567 = vpow.pop %v4566
        %v4568 = vmul.f32 %v4400, 1.442695
        %v4569 = vpow.pop %v4568
        %v4570 = vmul.f32 %v4401, 1.442695
        %v4571 = vpow.pop %v4570
        %v4572 = vmul.f32 %v4402, 1.442695
        %v4573 = vpow.pop %v4572
        %v4574 = vmul.f32 %v4403, 1.442695
        %v4575 = vpow.pop %v4574
        %v4576 = vmul.f32 %v4404, 1.442695
        %v4577 = vpow.pop %v4576
        %v4578 = vmul.f32 %v4405, 1.442695
        %v4579 = vpow.pop %v4578
        %v4580 = vmul.f32 %v4406, 1.442695
        %v4581 = vpow.pop %v4580
        %v4582 = vmul.f32 %v4407, 1.442695
        %v4583 = vpow.pop %v4582
        %v4584 = vmul.f32 %v4408, 1.442695
        %v4585 = vpow.pop %v4584
        %v4586 = vmul.f32 %v4409, 1.442695
        %v4587 = vpow.pop %v4586
        %v4588 = vmul.f32 %v4410, 1.442695
        %v4589 = vpow.pop %v4588
        %v4590 = vmul.f32 %v4411, 1.442695
        %v4591 = vpow.pop %v4590
        %v4592 = vmul.f32 %v4412, 1.442695
        %v4593 = vpow.pop %v4592
        %v4594 = vmul.f32 %v4413, 1.442695
        %v4595 = vpow.pop %v4594
        %v4596 = vmul.f32 %v4414, 1.442695
        %v4597 = vpow.pop %v4596
        %v4598 = vmul.f32 %v4415, 1.442695
        %v4599 = vpow.pop %v4598
        %v4600 = vmul.f32 %v4416, 1.442695
        %v4601 = vpow.pop %v4600
        %v4602 = vmul.f32 %v4417, 1.442695
        %v4603 = vpow.pop %v4602
        %v4604 = vmul.f32 %v4418, 1.442695
        %v4605 = vpow.pop %v4604
        %v4606 = vmul.f32 %v4419, 1.442695
        %v4607 = vpow.pop %v4606
        %v4608 = vmul.f32 %v4420, 1.442695
        %v4609 = vpow.pop %v4608
        %v4610 = vmul.f32 %v4421, 1.442695
        %v4611 = vpow.pop %v4610
        %v4612 = vmul.f32 %v4422, 1.442695
        %v4613 = vpow.pop %v4612
        %v4614 = vmul.f32 %v4423, 1.442695
        %v4615 = vpow.pop %v4614
        %v4616 = vmul.f32 %v4424, 1.442695
        %v4617 = vpow.pop %v4616
        %v4618 = vmul.f32 %v4425, 1.442695
        %v4619 = vpow.pop %v4618
        %v4620 = vmul.f32 %v4426, 1.442695
        %v4621 = vpow.pop %v4620
        %v4622 = vmul.f32 %v4427, 1.442695
        %v4623 = vpow.pop %v4622
        %v4624 = vmul.f32 %v4428, 1.442695
        %v4625 = vpow.pop %v4624
        %v4626 = vmul.f32 %v4429, 1.442695
        %v4627 = vpow.pop %v4626
        %v4628 = vmul.f32 %v4430, 1.442695
        %v4629 = vpow.pop %v4628
        %v4630 = vmul.f32 %v4431, 1.442695
        %v4631 = vpow.pop %v4630
        %v4632 = vmul.f32 %v4432, 1.442695
        %v4633 = vpow.pop %v4632
        %v4634 = vmul.f32 %v4433, 1.442695
        %v4635 = vpow.pop %v4634
        %v4636 = vmul.f32 %v4434, 1.442695
        %v4637 = vpow.pop %v4636
        %v4638 = vmul.f32 %v4435, 1.442695
        %v4639 = vpow.pop %v4638
        %v4640 = vmul.f32 %v4436, 1.442695
        %v4641 = vpow.pop %v4640
        %v4642 = vmul.f32 %v4437, 1.442695
        %v4643 = vpow.pop %v4642
        %v4644 = vmul.f32 %v4438, 1.442695
        %v4645 = vpow.pop %v4644
        %v4646 = vmul.f32 %v4439, 1.442695
        %v4647 = vpow.pop %v4646
        %v4648 = vmul.f32 %v4440, 1.442695
        %v4649 = vpow.pop %v4648
        %v4650 = vmul.f32 %v4441, 1.442695
        %v4651 = vpow.pop %v4650
        %v4652 = vmul.f32 %v4442, 1.442695
        %v4653 = vpow.pop %v4652
        %v4654 = vmul.f32 %v4443, 1.442695
        %v4655 = vpow.pop %v4654
        %v4656 = vmul.f32 %v4444, 1.442695
        %v4657 = vpow.pop %v4656
        %v4658 = vmul.f32 %v4445, 1.442695
        %v4659 = vpow.pop %v4658
        %v4660 = vmul.f32 %v4446, 1.442695
        %v4661 = vpow.pop %v4660
        %v4662 = vmul.f32 %v4447, 1.442695
        %v4663 = vpow.pop %v4662
        %v4664 = vmul.f32 %v4448, 1.442695
        %v4665 = vpow.pop %v4664
        %v4666 = vmul.f32 %v4449, 1.442695
        %v4667 = vpow.pop %v4666
        %v4668 = vmul.f32 %v4450, 1.442695
        %v4669 = vpow.pop %v4668
        %v4670 = vmul.f32 %v4451, 1.442695
        %v4671 = vpow.pop %v4670
        %v4672 = vmul.f32 %v4452, 1.442695
        %v4673 = vpow.pop %v4672
        %v4674 = vmul.f32 %v4453, 1.442695
        %v4675 = vpow.pop %v4674
        %v4676 = vmul.f32 %v4454, 1.442695
        %v4677 = vpow.pop %v4676
        %v4678 = vmul.f32 %v4455, 1.442695
        %v4679 = vpow.pop %v4678
        %v4680 = vmul.f32 %v4456, 1.442695
        %v4681 = vpow.pop %v4680
        %v4682 = vmul.f32 %v4457, 1.442695
        %v4683 = vpow.pop %v4682
        %v4684 = vmul.f32 %v4458, 1.442695
        %v4685 = vpow.pop %v4684
        %v4686 = vmul.f32 %v4459, 1.442695
        %v4687 = vpow.pop %v4686
        %v4688 = vmul.f32 %v4460, 1.442695
        %v4689 = vpow.pop %v4688
        %v4690 = vmul.f32 %v4461, 1.442695
        %v4691 = vpow.pop %v4690
        %v4692 = vmul.f32 %v4462, 1.442695
        %v4693 = vpow.pop %v4692
        %v4694 = vmul.f32 %v4463, 1.442695
        %v4695 = vpow.pop %v4694
        %v4696 = vmul.f32 %v4464, 1.442695
        %v4697 = vpow.pop %v4696
        %v4698 = vmul.f32 %v4465, 1.442695
        %v4699 = vpow.pop %v4698
        %v4700 = vmul.f32 %v4466, 1.442695
        %v4701 = vpow.pop %v4700
        %v4702 = vmul.f32 %v4467, 1.442695
        %v4703 = vpow.pop %v4702
        %v4704 = vmul.f32 %v4468, 1.442695
        %v4705 = vpow.pop %v4704
        %v4706 = vmul.f32 %v4469, 1.442695
        %v4707 = vpow.pop %v4706
        %v4708 = vmul.f32 %v4470, 1.442695
        %v4709 = vpow.pop %v4708
        %v4710 = vmul.f32 %v4471, 1.442695
        %v4711 = vpow.pop %v4710
        %v4712 = vmul.f32 %v4472, 1.442695
        %v4713 = vpow.pop %v4712
        %v4714 = vmul.f32 %v4473, 1.442695
        %v4715 = vpow.pop %v4714
        %v4716 = vmul.f32 %v4474, 1.442695
        %v4717 = vpow.pop %v4716
        %v4718 = vmul.f32 %v4475, 1.442695
        %v4719 = vpow.pop %v4718
        %v4720 = vmul.f32 %v4476, 1.442695
        %v4721 = vpow.pop %v4720
        %v4722 = vmul.f32 %v4477, 1.442695
        %v4723 = vpow.pop %v4722
        %v4724 = vmul.f32 %v4478, 1.442695
        %v4725 = vpow.pop %v4724
        %v4726 = vmul.f32 %v4479, 1.442695
        %v4727 = vpow.pop %v4726
        %v4728 = vmul.f32 %v4480, 1.442695
        %v4729 = vpow.pop %v4728
        %v4730 = vmul.f32 %v4481, 1.442695
        %v4731 = vpow.pop %v4730
        %v4732 = vmul.f32 %v4482, 1.442695
        %v4733 = vpow.pop %v4732
        %v4734 = vmul.f32 %v4483, 1.442695
        %v4735 = vpow.pop %v4734
        %v4736 = vmul.f32 %v4484, 1.442695
        %v4737 = vpow.pop %v4736
        %v4738 = vmul.f32 %v4485, 1.442695
        %v4739 = vpow.pop %v4738
        %v4740 = vmul.f32 %v4486, 1.442695
        %v4741 = vpow.pop %v4740
        %v4742 = vmul.f32 %v4487, 1.442695
        %v4743 = vpow.pop %v4742
        %v4744 = vsel %vm3783, %v4489, 0.0
        %v4745 = vsel %vm3783, %v4491, 0.0
        %v4746 = vadd.f32 %v4744, %v4745
        %v4747 = vrot.slane %v4746, 4
        %v4748 = vadd.f32 %v4746, %v4747
        %v4749 = vrot.slane %v4748, 2
        %v4750 = vadd.f32 %v4748, %v4749
        %v4751 = vrot.slane %v4750, 1
        %v4752 = vadd.f32 %v4750, %v4751
        %v4753 = vsel %vm3783, %v4493, 0.0
        %v4754 = vsel %vm3783, %v4495, 0.0
        %v4755 = vadd.f32 %v4753, %v4754
        %v4756 = vrot.slane %v4755, 4
        %v4757 = vadd.f32 %v4755, %v4756
        %v4758 = vrot.slane %v4757, 2
        %v4759 = vadd.f32 %v4757, %v4758
        %v4760 = vrot.slane %v4759, 1
        %v4761 = vadd.f32 %v4759, %v4760
        %v4762 = vsel %vm3783, %v4497, 0.0
        %v4763 = vsel %vm3783, %v4499, 0.0
        %v4764 = vadd.f32 %v4762, %v4763
        %v4765 = vrot.slane %v4764, 4
        %v4766 = vadd.f32 %v4764, %v4765
        %v4767 = vrot.slane %v4766, 2
        %v4768 = vadd.f32 %v4766, %v4767
        %v4769 = vrot.slane %v4768, 1
        %v4770 = vadd.f32 %v4768, %v4769
        %v4771 = vsel %vm3783, %v4501, 0.0
        %v4772 = vsel %vm3783, %v4503, 0.0
        %v4773 = vadd.f32 %v4771, %v4772
        %v4774 = vrot.slane %v4773, 4
        %v4775 = vadd.f32 %v4773, %v4774
        %v4776 = vrot.slane %v4775, 2
        %v4777 = vadd.f32 %v4775, %v4776
        %v4778 = vrot.slane %v4777, 1
        %v4779 = vadd.f32 %v4777, %v4778
        %v4780 = vsel %vm3783, %v4505, 0.0
        %v4781 = vsel %vm3783, %v4507, 0.0
        %v4782 = vadd.f32 %v4780, %v4781
        %v4783 = vrot.slane %v4782, 4
        %v4784 = vadd.f32 %v4782, %v4783
        %v4785 = vrot.slane %v4784, 2
        %v4786 = vadd.f32 %v4784, %v4785
        %v4787 = vrot.slane %v4786, 1
        %v4788 = vadd.f32 %v4786, %v4787
        %v4789 = vsel %vm3783, %v4509, 0.0
        %v4790 = vsel %vm3783, %v4511, 0.0
        %v4791 = vadd.f32 %v4789, %v4790
        %v4792 = vrot.slane %v4791, 4
        %v4793 = vadd.f32 %v4791, %v4792
        %v4794 = vrot.slane %v4793, 2
        %v4795 = vadd.f32 %v4793, %v4794
        %v4796 = vrot.slane %v4795, 1
        %v4797 = vadd.f32 %v4795, %v4796
        %v4798 = vsel %vm3783, %v4513, 0.0
        %v4799 = vsel %vm3783, %v4515, 0.0
        %v4800 = vadd.f32 %v4798, %v4799
        %v4801 = vrot.slane %v4800, 4
        %v4802 = vadd.f32 %v4800, %v4801
        %v4803 = vrot.slane %v4802, 2
        %v4804 = vadd.f32 %v4802, %v4803
        %v4805 = vrot.slane %v4804, 1
        %v4806 = vadd.f32 %v4804, %v4805
        %v4807 = vsel %vm3783, %v4517, 0.0
        %v4808 = vsel %vm3783, %v4519, 0.0
        %v4809 = vadd.f32 %v4807, %v4808
        %v4810 = vrot.slane %v4809, 4
        %v4811 = vadd.f32 %v4809, %v4810
        %v4812 = vrot.slane %v4811, 2
        %v4813 = vadd.f32 %v4811, %v4812
        %v4814 = vrot.slane %v4813, 1
        %v4815 = vadd.f32 %v4813, %v4814
        %v4816 = vsel %vm3783, %v4521, 0.0
        %v4817 = vsel %vm3783, %v4523, 0.0
        %v4818 = vadd.f32 %v4816, %v4817
        %v4819 = vrot.slane %v4818, 4
        %v4820 = vadd.f32 %v4818, %v4819
        %v4821 = vrot.slane %v4820, 2
        %v4822 = vadd.f32 %v4820, %v4821
        %v4823 = vrot.slane %v4822, 1
        %v4824 = vadd.f32 %v4822, %v4823
        %v4825 = vsel %vm3783, %v4525, 0.0
        %v4826 = vsel %vm3783, %v4527, 0.0
        %v4827 = vadd.f32 %v4825, %v4826
        %v4828 = vrot.slane %v4827, 4
        %v4829 = vadd.f32 %v4827, %v4828
        %v4830 = vrot.slane %v4829, 2
        %v4831 = vadd.f32 %v4829, %v4830
        %v4832 = vrot.slane %v4831, 1
        %v4833 = vadd.f32 %v4831, %v4832
        %v4834 = vsel %vm3783, %v4529, 0.0
        %v4835 = vsel %vm3783, %v4531, 0.0
        %v4836 = vadd.f32 %v4834, %v4835
        %v4837 = vrot.slane %v4836, 4
        %v4838 = vadd.f32 %v4836, %v4837
        %v4839 = vrot.slane %v4838, 2
        %v4840 = vadd.f32 %v4838, %v4839
        %v4841 = vrot.slane %v4840, 1
        %v4842 = vadd.f32 %v4840, %v4841
        %v4843 = vsel %vm3783, %v4533, 0.0
        %v4844 = vsel %vm3783, %v4535, 0.0
        %v4845 = vadd.f32 %v4843, %v4844
        %v4846 = vrot.slane %v4845, 4
        %v4847 = vadd.f32 %v4845, %v4846
        %v4848 = vrot.slane %v4847, 2
        %v4849 = vadd.f32 %v4847, %v4848
        %v4850 = vrot.slane %v4849, 1
        %v4851 = vadd.f32 %v4849, %v4850
        %v4852 = vsel %vm3783, %v4537, 0.0
        %v4853 = vsel %vm3783, %v4539, 0.0
        %v4854 = vadd.f32 %v4852, %v4853
        %v4855 = vrot.slane %v4854, 4
        %v4856 = vadd.f32 %v4854, %v4855
        %v4857 = vrot.slane %v4856, 2
        %v4858 = vadd.f32 %v4856, %v4857
        %v4859 = vrot.slane %v4858, 1
        %v4860 = vadd.f32 %v4858, %v4859
        %v4861 = vsel %vm3783, %v4541, 0.0
        %v4862 = vsel %vm3783, %v4543, 0.0
        %v4863 = vadd.f32 %v4861, %v4862
        %v4864 = vrot.slane %v4863, 4
        %v4865 = vadd.f32 %v4863, %v4864
        %v4866 = vrot.slane %v4865, 2
        %v4867 = vadd.f32 %v4865, %v4866
        %v4868 = vrot.slane %v4867, 1
        %v4869 = vadd.f32 %v4867, %v4868
        %v4870 = vsel %vm3783, %v4545, 0.0
        %v4871 = vsel %vm3783, %v4547, 0.0
        %v4872 = vadd.f32 %v4870, %v4871
        %v4873 = vrot.slane %v4872, 4
        %v4874 = vadd.f32 %v4872, %v4873
        %v4875 = vrot.slane %v4874, 2
        %v4876 = vadd.f32 %v4874, %v4875
        %v4877 = vrot.slane %v4876, 1
        %v4878 = vadd.f32 %v4876, %v4877
        %v4879 = vsel %vm3783, %v4549, 0.0
        %v4880 = vsel %vm3783, %v4551, 0.0
        %v4881 = vadd.f32 %v4879, %v4880
        %v4882 = vrot.slane %v4881, 4
        %v4883 = vadd.f32 %v4881, %v4882
        %v4884 = vrot.slane %v4883, 2
        %v4885 = vadd.f32 %v4883, %v4884
        %v4886 = vrot.slane %v4885, 1
        %v4887 = vadd.f32 %v4885, %v4886
        %v4888 = vsel %vm3783, %v4553, 0.0
        %v4889 = vsel %vm3783, %v4555, 0.0
        %v4890 = vadd.f32 %v4888, %v4889
        %v4891 = vrot.slane %v4890, 4
        %v4892 = vadd.f32 %v4890, %v4891
        %v4893 = vrot.slane %v4892, 2
        %v4894 = vadd.f32 %v4892, %v4893
        %v4895 = vrot.slane %v4894, 1
        %v4896 = vadd.f32 %v4894, %v4895
        %v4897 = vsel %vm3783, %v4557, 0.0
        %v4898 = vsel %vm3783, %v4559, 0.0
        %v4899 = vadd.f32 %v4897, %v4898
        %v4900 = vrot.slane %v4899, 4
        %v4901 = vadd.f32 %v4899, %v4900
        %v4902 = vrot.slane %v4901, 2
        %v4903 = vadd.f32 %v4901, %v4902
        %v4904 = vrot.slane %v4903, 1
        %v4905 = vadd.f32 %v4903, %v4904
        %v4906 = vsel %vm3783, %v4561, 0.0
        %v4907 = vsel %vm3783, %v4563, 0.0
        %v4908 = vadd.f32 %v4906, %v4907
        %v4909 = vrot.slane %v4908, 4
        %v4910 = vadd.f32 %v4908, %v4909
        %v4911 = vrot.slane %v4910, 2
        %v4912 = vadd.f32 %v4910, %v4911
        %v4913 = vrot.slane %v4912, 1
        %v4914 = vadd.f32 %v4912, %v4913
        %v4915 = vsel %vm3783, %v4565, 0.0
        %v4916 = vsel %vm3783, %v4567, 0.0
        %v4917 = vadd.f32 %v4915, %v4916
        %v4918 = vrot.slane %v4917, 4
        %v4919 = vadd.f32 %v4917, %v4918
        %v4920 = vrot.slane %v4919, 2
        %v4921 = vadd.f32 %v4919, %v4920
        %v4922 = vrot.slane %v4921, 1
        %v4923 = vadd.f32 %v4921, %v4922
        %v4924 = vsel %vm3783, %v4569, 0.0
        %v4925 = vsel %vm3783, %v4571, 0.0
        %v4926 = vadd.f32 %v4924, %v4925
        %v4927 = vrot.slane %v4926, 4
        %v4928 = vadd.f32 %v4926, %v4927
        %v4929 = vrot.slane %v4928, 2
        %v4930 = vadd.f32 %v4928, %v4929
        %v4931 = vrot.slane %v4930, 1
        %v4932 = vadd.f32 %v4930, %v4931
        %v4933 = vsel %vm3783, %v4573, 0.0
        %v4934 = vsel %vm3783, %v4575, 0.0
        %v4935 = vadd.f32 %v4933, %v4934
        %v4936 = vrot.slane %v4935, 4
        %v4937 = vadd.f32 %v4935, %v4936
        %v4938 = vrot.slane %v4937, 2
        %v4939 = vadd.f32 %v4937, %v4938
        %v4940 = vrot.slane %v4939, 1
        %v4941 = vadd.f32 %v4939, %v4940
        %v4942 = vsel %vm3783, %v4577, 0.0
        %v4943 = vsel %vm3783, %v4579, 0.0
        %v4944 = vadd.f32 %v4942, %v4943
        %v4945 = vrot.slane %v4944, 4
        %v4946 = vadd.f32 %v4944, %v4945
        %v4947 = vrot.slane %v4946, 2
        %v4948 = vadd.f32 %v4946, %v4947
        %v4949 = vrot.slane %v4948, 1
        %v4950 = vadd.f32 %v4948, %v4949
        %v4951 = vsel %vm3783, %v4581, 0.0
        %v4952 = vsel %vm3783, %v4583, 0.0
        %v4953 = vadd.f32 %v4951, %v4952
        %v4954 = vrot.slane %v4953, 4
        %v4955 = vadd.f32 %v4953, %v4954
        %v4956 = vrot.slane %v4955, 2
        %v4957 = vadd.f32 %v4955, %v4956
        %v4958 = vrot.slane %v4957, 1
        %v4959 = vadd.f32 %v4957, %v4958
        %v4960 = vsel %vm3783, %v4585, 0.0
        %v4961 = vsel %vm3783, %v4587, 0.0
        %v4962 = vadd.f32 %v4960, %v4961
        %v4963 = vrot.slane %v4962, 4
        %v4964 = vadd.f32 %v4962, %v4963
        %v4965 = vrot.slane %v4964, 2
        %v4966 = vadd.f32 %v4964, %v4965
        %v4967 = vrot.slane %v4966, 1
        %v4968 = vadd.f32 %v4966, %v4967
        %v4969 = vsel %vm3783, %v4589, 0.0
        %v4970 = vsel %vm3783, %v4591, 0.0
        %v4971 = vadd.f32 %v4969, %v4970
        %v4972 = vrot.slane %v4971, 4
        %v4973 = vadd.f32 %v4971, %v4972
        %v4974 = vrot.slane %v4973, 2
        %v4975 = vadd.f32 %v4973, %v4974
        %v4976 = vrot.slane %v4975, 1
        %v4977 = vadd.f32 %v4975, %v4976
        %v4978 = vsel %vm3783, %v4593, 0.0
        %v4979 = vsel %vm3783, %v4595, 0.0
        %v4980 = vadd.f32 %v4978, %v4979
        %v4981 = vrot.slane %v4980, 4
        %v4982 = vadd.f32 %v4980, %v4981
        %v4983 = vrot.slane %v4982, 2
        %v4984 = vadd.f32 %v4982, %v4983
        %v4985 = vrot.slane %v4984, 1
        %v4986 = vadd.f32 %v4984, %v4985
        %v4987 = vsel %vm3783, %v4597, 0.0
        %v4988 = vsel %vm3783, %v4599, 0.0
        %v4989 = vadd.f32 %v4987, %v4988
        %v4990 = vrot.slane %v4989, 4
        %v4991 = vadd.f32 %v4989, %v4990
        %v4992 = vrot.slane %v4991, 2
        %v4993 = vadd.f32 %v4991, %v4992
        %v4994 = vrot.slane %v4993, 1
        %v4995 = vadd.f32 %v4993, %v4994
        %v4996 = vsel %vm3783, %v4601, 0.0
        %v4997 = vsel %vm3783, %v4603, 0.0
        %v4998 = vadd.f32 %v4996, %v4997
        %v4999 = vrot.slane %v4998, 4
        %v5000 = vadd.f32 %v4998, %v4999
        %v5001 = vrot.slane %v5000, 2
        %v5002 = vadd.f32 %v5000, %v5001
        %v5003 = vrot.slane %v5002, 1
        %v5004 = vadd.f32 %v5002, %v5003
        %v5005 = vsel %vm3783, %v4605, 0.0
        %v5006 = vsel %vm3783, %v4607, 0.0
        %v5007 = vadd.f32 %v5005, %v5006
        %v5008 = vrot.slane %v5007, 4
        %v5009 = vadd.f32 %v5007, %v5008
        %v5010 = vrot.slane %v5009, 2
        %v5011 = vadd.f32 %v5009, %v5010
        %v5012 = vrot.slane %v5011, 1
        %v5013 = vadd.f32 %v5011, %v5012
        %v5014 = vsel %vm3783, %v4609, 0.0
        %v5015 = vsel %vm3783, %v4611, 0.0
        %v5016 = vadd.f32 %v5014, %v5015
        %v5017 = vrot.slane %v5016, 4
        %v5018 = vadd.f32 %v5016, %v5017
        %v5019 = vrot.slane %v5018, 2
        %v5020 = vadd.f32 %v5018, %v5019
        %v5021 = vrot.slane %v5020, 1
        %v5022 = vadd.f32 %v5020, %v5021
        %v5023 = vsel %vm3783, %v4613, 0.0
        %v5024 = vsel %vm3783, %v4615, 0.0
        %v5025 = vadd.f32 %v5023, %v5024
        %v5026 = vrot.slane %v5025, 4
        %v5027 = vadd.f32 %v5025, %v5026
        %v5028 = vrot.slane %v5027, 2
        %v5029 = vadd.f32 %v5027, %v5028
        %v5030 = vrot.slane %v5029, 1
        %v5031 = vadd.f32 %v5029, %v5030
        %v5032 = vsel %vm3783, %v4617, 0.0
        %v5033 = vsel %vm3783, %v4619, 0.0
        %v5034 = vadd.f32 %v5032, %v5033
        %v5035 = vrot.slane %v5034, 4
        %v5036 = vadd.f32 %v5034, %v5035
        %v5037 = vrot.slane %v5036, 2
        %v5038 = vadd.f32 %v5036, %v5037
        %v5039 = vrot.slane %v5038, 1
        %v5040 = vadd.f32 %v5038, %v5039
        %v5041 = vsel %vm3783, %v4621, 0.0
        %v5042 = vsel %vm3783, %v4623, 0.0
        %v5043 = vadd.f32 %v5041, %v5042
        %v5044 = vrot.slane %v5043, 4
        %v5045 = vadd.f32 %v5043, %v5044
        %v5046 = vrot.slane %v5045, 2
        %v5047 = vadd.f32 %v5045, %v5046
        %v5048 = vrot.slane %v5047, 1
        %v5049 = vadd.f32 %v5047, %v5048
        %v5050 = vsel %vm3783, %v4625, 0.0
        %v5051 = vsel %vm3783, %v4627, 0.0
        %v5052 = vadd.f32 %v5050, %v5051
        %v5053 = vrot.slane %v5052, 4
        %v5054 = vadd.f32 %v5052, %v5053
        %v5055 = vrot.slane %v5054, 2
        %v5056 = vadd.f32 %v5054, %v5055
        %v5057 = vrot.slane %v5056, 1
        %v5058 = vadd.f32 %v5056, %v5057
        %v5059 = vsel %vm3783, %v4629, 0.0
        %v5060 = vsel %vm3783, %v4631, 0.0
        %v5061 = vadd.f32 %v5059, %v5060
        %v5062 = vrot.slane %v5061, 4
        %v5063 = vadd.f32 %v5061, %v5062
        %v5064 = vrot.slane %v5063, 2
        %v5065 = vadd.f32 %v5063, %v5064
        %v5066 = vrot.slane %v5065, 1
        %v5067 = vadd.f32 %v5065, %v5066
        %v5068 = vsel %vm3783, %v4633, 0.0
        %v5069 = vsel %vm3783, %v4635, 0.0
        %v5070 = vadd.f32 %v5068, %v5069
        %v5071 = vrot.slane %v5070, 4
        %v5072 = vadd.f32 %v5070, %v5071
        %v5073 = vrot.slane %v5072, 2
        %v5074 = vadd.f32 %v5072, %v5073
        %v5075 = vrot.slane %v5074, 1
        %v5076 = vadd.f32 %v5074, %v5075
        %v5077 = vsel %vm3783, %v4637, 0.0
        %v5078 = vsel %vm3783, %v4639, 0.0
        %v5079 = vadd.f32 %v5077, %v5078
        %v5080 = vrot.slane %v5079, 4
        %v5081 = vadd.f32 %v5079, %v5080
        %v5082 = vrot.slane %v5081, 2
        %v5083 = vadd.f32 %v5081, %v5082
        %v5084 = vrot.slane %v5083, 1
        %v5085 = vadd.f32 %v5083, %v5084
        %v5086 = vsel %vm3783, %v4641, 0.0
        %v5087 = vsel %vm3783, %v4643, 0.0
        %v5088 = vadd.f32 %v5086, %v5087
        %v5089 = vrot.slane %v5088, 4
        %v5090 = vadd.f32 %v5088, %v5089
        %v5091 = vrot.slane %v5090, 2
        %v5092 = vadd.f32 %v5090, %v5091
        %v5093 = vrot.slane %v5092, 1
        %v5094 = vadd.f32 %v5092, %v5093
        %v5095 = vsel %vm3783, %v4645, 0.0
        %v5096 = vsel %vm3783, %v4647, 0.0
        %v5097 = vadd.f32 %v5095, %v5096
        %v5098 = vrot.slane %v5097, 4
        %v5099 = vadd.f32 %v5097, %v5098
        %v5100 = vrot.slane %v5099, 2
        %v5101 = vadd.f32 %v5099, %v5100
        %v5102 = vrot.slane %v5101, 1
        %v5103 = vadd.f32 %v5101, %v5102
        %v5104 = vsel %vm3783, %v4649, 0.0
        %v5105 = vsel %vm3783, %v4651, 0.0
        %v5106 = vadd.f32 %v5104, %v5105
        %v5107 = vrot.slane %v5106, 4
        %v5108 = vadd.f32 %v5106, %v5107
        %v5109 = vrot.slane %v5108, 2
        %v5110 = vadd.f32 %v5108, %v5109
        %v5111 = vrot.slane %v5110, 1
        %v5112 = vadd.f32 %v5110, %v5111
        %v5113 = vsel %vm3783, %v4653, 0.0
        %v5114 = vsel %vm3783, %v4655, 0.0
        %v5115 = vadd.f32 %v5113, %v5114
        %v5116 = vrot.slane %v5115, 4
        %v5117 = vadd.f32 %v5115, %v5116
        %v5118 = vrot.slane %v5117, 2
        %v5119 = vadd.f32 %v5117, %v5118
        %v5120 = vrot.slane %v5119, 1
        %v5121 = vadd.f32 %v5119, %v5120
        %v5122 = vsel %vm3783, %v4657, 0.0
        %v5123 = vsel %vm3783, %v4659, 0.0
        %v5124 = vadd.f32 %v5122, %v5123
        %v5125 = vrot.slane %v5124, 4
        %v5126 = vadd.f32 %v5124, %v5125
        %v5127 = vrot.slane %v5126, 2
        %v5128 = vadd.f32 %v5126, %v5127
        %v5129 = vrot.slane %v5128, 1
        %v5130 = vadd.f32 %v5128, %v5129
        %v5131 = vsel %vm3783, %v4661, 0.0
        %v5132 = vsel %vm3783, %v4663, 0.0
        %v5133 = vadd.f32 %v5131, %v5132
        %v5134 = vrot.slane %v5133, 4
        %v5135 = vadd.f32 %v5133, %v5134
        %v5136 = vrot.slane %v5135, 2
        %v5137 = vadd.f32 %v5135, %v5136
        %v5138 = vrot.slane %v5137, 1
        %v5139 = vadd.f32 %v5137, %v5138
        %v5140 = vsel %vm3783, %v4665, 0.0
        %v5141 = vsel %vm3783, %v4667, 0.0
        %v5142 = vadd.f32 %v5140, %v5141
        %v5143 = vrot.slane %v5142, 4
        %v5144 = vadd.f32 %v5142, %v5143
        %v5145 = vrot.slane %v5144, 2
        %v5146 = vadd.f32 %v5144, %v5145
        %v5147 = vrot.slane %v5146, 1
        %v5148 = vadd.f32 %v5146, %v5147
        %v5149 = vsel %vm3783, %v4669, 0.0
        %v5150 = vsel %vm3783, %v4671, 0.0
        %v5151 = vadd.f32 %v5149, %v5150
        %v5152 = vrot.slane %v5151, 4
        %v5153 = vadd.f32 %v5151, %v5152
        %v5154 = vrot.slane %v5153, 2
        %v5155 = vadd.f32 %v5153, %v5154
        %v5156 = vrot.slane %v5155, 1
        %v5157 = vadd.f32 %v5155, %v5156
        %v5158 = vsel %vm3783, %v4673, 0.0
        %v5159 = vsel %vm3783, %v4675, 0.0
        %v5160 = vadd.f32 %v5158, %v5159
        %v5161 = vrot.slane %v5160, 4
        %v5162 = vadd.f32 %v5160, %v5161
        %v5163 = vrot.slane %v5162, 2
        %v5164 = vadd.f32 %v5162, %v5163
        %v5165 = vrot.slane %v5164, 1
        %v5166 = vadd.f32 %v5164, %v5165
        %v5167 = vsel %vm3783, %v4677, 0.0
        %v5168 = vsel %vm3783, %v4679, 0.0
        %v5169 = vadd.f32 %v5167, %v5168
        %v5170 = vrot.slane %v5169, 4
        %v5171 = vadd.f32 %v5169, %v5170
        %v5172 = vrot.slane %v5171, 2
        %v5173 = vadd.f32 %v5171, %v5172
        %v5174 = vrot.slane %v5173, 1
        %v5175 = vadd.f32 %v5173, %v5174
        %v5176 = vsel %vm3783, %v4681, 0.0
        %v5177 = vsel %vm3783, %v4683, 0.0
        %v5178 = vadd.f32 %v5176, %v5177
        %v5179 = vrot.slane %v5178, 4
        %v5180 = vadd.f32 %v5178, %v5179
        %v5181 = vrot.slane %v5180, 2
        %v5182 = vadd.f32 %v5180, %v5181
        %v5183 = vrot.slane %v5182, 1
        %v5184 = vadd.f32 %v5182, %v5183
        %v5185 = vsel %vm3783, %v4685, 0.0
        %v5186 = vsel %vm3783, %v4687, 0.0
        %v5187 = vadd.f32 %v5185, %v5186
        %v5188 = vrot.slane %v5187, 4
        %v5189 = vadd.f32 %v5187, %v5188
        %v5190 = vrot.slane %v5189, 2
        %v5191 = vadd.f32 %v5189, %v5190
        %v5192 = vrot.slane %v5191, 1
        %v5193 = vadd.f32 %v5191, %v5192
        %v5194 = vsel %vm3783, %v4689, 0.0
        %v5195 = vsel %vm3783, %v4691, 0.0
        %v5196 = vadd.f32 %v5194, %v5195
        %v5197 = vrot.slane %v5196, 4
        %v5198 = vadd.f32 %v5196, %v5197
        %v5199 = vrot.slane %v5198, 2
        %v5200 = vadd.f32 %v5198, %v5199
        %v5201 = vrot.slane %v5200, 1
        %v5202 = vadd.f32 %v5200, %v5201
        %v5203 = vsel %vm3783, %v4693, 0.0
        %v5204 = vsel %vm3783, %v4695, 0.0
        %v5205 = vadd.f32 %v5203, %v5204
        %v5206 = vrot.slane %v5205, 4
        %v5207 = vadd.f32 %v5205, %v5206
        %v5208 = vrot.slane %v5207, 2
        %v5209 = vadd.f32 %v5207, %v5208
        %v5210 = vrot.slane %v5209, 1
        %v5211 = vadd.f32 %v5209, %v5210
        %v5212 = vsel %vm3783, %v4697, 0.0
        %v5213 = vsel %vm3783, %v4699, 0.0
        %v5214 = vadd.f32 %v5212, %v5213
        %v5215 = vrot.slane %v5214, 4
        %v5216 = vadd.f32 %v5214, %v5215
        %v5217 = vrot.slane %v5216, 2
        %v5218 = vadd.f32 %v5216, %v5217
        %v5219 = vrot.slane %v5218, 1
        %v5220 = vadd.f32 %v5218, %v5219
        %v5221 = vsel %vm3783, %v4701, 0.0
        %v5222 = vsel %vm3783, %v4703, 0.0
        %v5223 = vadd.f32 %v5221, %v5222
        %v5224 = vrot.slane %v5223, 4
        %v5225 = vadd.f32 %v5223, %v5224
        %v5226 = vrot.slane %v5225, 2
        %v5227 = vadd.f32 %v5225, %v5226
        %v5228 = vrot.slane %v5227, 1
        %v5229 = vadd.f32 %v5227, %v5228
        %v5230 = vsel %vm3783, %v4705, 0.0
        %v5231 = vsel %vm3783, %v4707, 0.0
        %v5232 = vadd.f32 %v5230, %v5231
        %v5233 = vrot.slane %v5232, 4
        %v5234 = vadd.f32 %v5232, %v5233
        %v5235 = vrot.slane %v5234, 2
        %v5236 = vadd.f32 %v5234, %v5235
        %v5237 = vrot.slane %v5236, 1
        %v5238 = vadd.f32 %v5236, %v5237
        %v5239 = vsel %vm3783, %v4709, 0.0
        %v5240 = vsel %vm3783, %v4711, 0.0
        %v5241 = vadd.f32 %v5239, %v5240
        %v5242 = vrot.slane %v5241, 4
        %v5243 = vadd.f32 %v5241, %v5242
        %v5244 = vrot.slane %v5243, 2
        %v5245 = vadd.f32 %v5243, %v5244
        %v5246 = vrot.slane %v5245, 1
        %v5247 = vadd.f32 %v5245, %v5246
        %v5248 = vsel %vm3783, %v4713, 0.0
        %v5249 = vsel %vm3783, %v4715, 0.0
        %v5250 = vadd.f32 %v5248, %v5249
        %v5251 = vrot.slane %v5250, 4
        %v5252 = vadd.f32 %v5250, %v5251
        %v5253 = vrot.slane %v5252, 2
        %v5254 = vadd.f32 %v5252, %v5253
        %v5255 = vrot.slane %v5254, 1
        %v5256 = vadd.f32 %v5254, %v5255
        %v5257 = vsel %vm3783, %v4717, 0.0
        %v5258 = vsel %vm3783, %v4719, 0.0
        %v5259 = vadd.f32 %v5257, %v5258
        %v5260 = vrot.slane %v5259, 4
        %v5261 = vadd.f32 %v5259, %v5260
        %v5262 = vrot.slane %v5261, 2
        %v5263 = vadd.f32 %v5261, %v5262
        %v5264 = vrot.slane %v5263, 1
        %v5265 = vadd.f32 %v5263, %v5264
        %v5266 = vsel %vm3783, %v4721, 0.0
        %v5267 = vsel %vm3783, %v4723, 0.0
        %v5268 = vadd.f32 %v5266, %v5267
        %v5269 = vrot.slane %v5268, 4
        %v5270 = vadd.f32 %v5268, %v5269
        %v5271 = vrot.slane %v5270, 2
        %v5272 = vadd.f32 %v5270, %v5271
        %v5273 = vrot.slane %v5272, 1
        %v5274 = vadd.f32 %v5272, %v5273
        %v5275 = vsel %vm3783, %v4725, 0.0
        %v5276 = vsel %vm3783, %v4727, 0.0
        %v5277 = vadd.f32 %v5275, %v5276
        %v5278 = vrot.slane %v5277, 4
        %v5279 = vadd.f32 %v5277, %v5278
        %v5280 = vrot.slane %v5279, 2
        %v5281 = vadd.f32 %v5279, %v5280
        %v5282 = vrot.slane %v5281, 1
        %v5283 = vadd.f32 %v5281, %v5282
        %v5284 = vsel %vm3783, %v4729, 0.0
        %v5285 = vsel %vm3783, %v4731, 0.0
        %v5286 = vadd.f32 %v5284, %v5285
        %v5287 = vrot.slane %v5286, 4
        %v5288 = vadd.f32 %v5286, %v5287
        %v5289 = vrot.slane %v5288, 2
        %v5290 = vadd.f32 %v5288, %v5289
        %v5291 = vrot.slane %v5290, 1
        %v5292 = vadd.f32 %v5290, %v5291
        %v5293 = vsel %vm3783, %v4733, 0.0
        %v5294 = vsel %vm3783, %v4735, 0.0
        %v5295 = vadd.f32 %v5293, %v5294
        %v5296 = vrot.slane %v5295, 4
        %v5297 = vadd.f32 %v5295, %v5296
        %v5298 = vrot.slane %v5297, 2
        %v5299 = vadd.f32 %v5297, %v5298
        %v5300 = vrot.slane %v5299, 1
        %v5301 = vadd.f32 %v5299, %v5300
        %v5302 = vsel %vm3783, %v4737, 0.0
        %v5303 = vsel %vm3783, %v4739, 0.0
        %v5304 = vadd.f32 %v5302, %v5303
        %v5305 = vrot.slane %v5304, 4
        %v5306 = vadd.f32 %v5304, %v5305
        %v5307 = vrot.slane %v5306, 2
        %v5308 = vadd.f32 %v5306, %v5307
        %v5309 = vrot.slane %v5308, 1
        %v5310 = vadd.f32 %v5308, %v5309
        %v5311 = vsel %vm3783, %v4741, 0.0
        %v5312 = vsel %vm3783, %v4743, 0.0
        %v5313 = vadd.f32 %v5311, %v5312
        %v5314 = vrot.slane %v5313, 4
        %v5315 = vadd.f32 %v5313, %v5314
        %v5316 = vrot.slane %v5315, 2
        %v5317 = vadd.f32 %v5315, %v5316
        %v5318 = vrot.slane %v5317, 1
        %v5319 = vadd.f32 %v5317, %v5318
        %v5320 = vrcp.pop %v4752
        %v5321 = vmul.f32 %v4752, %v5320
        %v5322 = vsub.f32 1.0, %v5321
        %v5323 = vmul.f32 %v5320, %v5322
        %v5324 = vadd.f32 %v5320, %v5323
        %vm5325 = vweird.f32 %v4752
        %vm5326 = vweird.f32 %v5320
        %vm5327 = vmor %vm5325, %vm5326
        %v5328 = vsel %vm5327, %v5320, %v5324
        %v5329 = vand.u32 2147483647, %v4752
        %vm5330 = vcmp.eq.f32.partialorder %v5329, 8.507059e+37
        %v5331 = vand.u32 %v4752, 2147483648
        %v5332 = vor.u32 1.1754944e-38, %v5331
        %v5333 = vsel %vm5330, %v5332, %v5328
        %v5334 = vmul.f32 %v4489, %v5333
        %v5335 = vmul.f32 %v4491, %v5333
        %v5336 = vrcp.pop %v4761
        %v5337 = vmul.f32 %v4761, %v5336
        %v5338 = vsub.f32 1.0, %v5337
        %v5339 = vmul.f32 %v5336, %v5338
        %v5340 = vadd.f32 %v5336, %v5339
        %vm5341 = vweird.f32 %v4761
        %vm5342 = vweird.f32 %v5336
        %vm5343 = vmor %vm5341, %vm5342
        %v5344 = vsel %vm5343, %v5336, %v5340
        %v5345 = vand.u32 2147483647, %v4761
        %vm5346 = vcmp.eq.f32.partialorder %v5345, 8.507059e+37
        %v5347 = vand.u32 %v4761, 2147483648
        %v5348 = vor.u32 1.1754944e-38, %v5347
        %v5349 = vsel %vm5346, %v5348, %v5344
        %v5350 = vmul.f32 %v4493, %v5349
        %v5351 = vmul.f32 %v4495, %v5349
        %v5352 = vrcp.pop %v4770
        %v5353 = vmul.f32 %v4770, %v5352
        %v5354 = vsub.f32 1.0, %v5353
        %v5355 = vmul.f32 %v5352, %v5354
        %v5356 = vadd.f32 %v5352, %v5355
        %vm5357 = vweird.f32 %v4770
        %vm5358 = vweird.f32 %v5352
        %vm5359 = vmor %vm5357, %vm5358
        %v5360 = vsel %vm5359, %v5352, %v5356
        %v5361 = vand.u32 2147483647, %v4770
        %vm5362 = vcmp.eq.f32.partialorder %v5361, 8.507059e+37
        %v5363 = vand.u32 %v4770, 2147483648
        %v5364 = vor.u32 1.1754944e-38, %v5363
        %v5365 = vsel %vm5362, %v5364, %v5360
        %v5366 = vmul.f32 %v4497, %v5365
        %v5367 = vmul.f32 %v4499, %v5365
        %v5368 = vrcp.pop %v4779
        %v5369 = vmul.f32 %v4779, %v5368
        %v5370 = vsub.f32 1.0, %v5369
        %v5371 = vmul.f32 %v5368, %v5370
        %v5372 = vadd.f32 %v5368, %v5371
        %vm5373 = vweird.f32 %v4779
        %vm5374 = vweird.f32 %v5368
        %vm5375 = vmor %vm5373, %vm5374
        %v5376 = vsel %vm5375, %v5368, %v5372
        %v5377 = vand.u32 2147483647, %v4779
        %vm5378 = vcmp.eq.f32.partialorder %v5377, 8.507059e+37
        %v5379 = vand.u32 %v4779, 2147483648
        %v5380 = vor.u32 1.1754944e-38, %v5379
        %v5381 = vsel %vm5378, %v5380, %v5376
        %v5382 = vmul.f32 %v4501, %v5381
        %v5383 = vmul.f32 %v4503, %v5381
        %v5384 = vrcp.pop %v4788
        %v5385 = vmul.f32 %v4788, %v5384
        %v5386 = vsub.f32 1.0, %v5385
        %v5387 = vmul.f32 %v5384, %v5386
        %v5388 = vadd.f32 %v5384, %v5387
        %vm5389 = vweird.f32 %v4788
        %vm5390 = vweird.f32 %v5384
        %vm5391 = vmor %vm5389, %vm5390
        %v5392 = vsel %vm5391, %v5384, %v5388
        %v5393 = vand.u32 2147483647, %v4788
        %vm5394 = vcmp.eq.f32.partialorder %v5393, 8.507059e+37
        %v5395 = vand.u32 %v4788, 2147483648
        %v5396 = vor.u32 1.1754944e-38, %v5395
        %v5397 = vsel %vm5394, %v5396, %v5392
        %v5398 = vmul.f32 %v4505, %v5397
        %v5399 = vmul.f32 %v4507, %v5397
        %v5400 = vrcp.pop %v4797
        %v5401 = vmul.f32 %v4797, %v5400
        %v5402 = vsub.f32 1.0, %v5401
        %v5403 = vmul.f32 %v5400, %v5402
        %v5404 = vadd.f32 %v5400, %v5403
        %vm5405 = vweird.f32 %v4797
        %vm5406 = vweird.f32 %v5400
        %vm5407 = vmor %vm5405, %vm5406
        %v5408 = vsel %vm5407, %v5400, %v5404
        %v5409 = vand.u32 2147483647, %v4797
        %vm5410 = vcmp.eq.f32.partialorder %v5409, 8.507059e+37
        %v5411 = vand.u32 %v4797, 2147483648
        %v5412 = vor.u32 1.1754944e-38, %v5411
        %v5413 = vsel %vm5410, %v5412, %v5408
        %v5414 = vmul.f32 %v4509, %v5413
        %v5415 = vmul.f32 %v4511, %v5413
        %v5416 = vrcp.pop %v4806
        %v5417 = vmul.f32 %v4806, %v5416
        %v5418 = vsub.f32 1.0, %v5417
        %v5419 = vmul.f32 %v5416, %v5418
        %v5420 = vadd.f32 %v5416, %v5419
        %vm5421 = vweird.f32 %v4806
        %vm5422 = vweird.f32 %v5416
        %vm5423 = vmor %vm5421, %vm5422
        %v5424 = vsel %vm5423, %v5416, %v5420
        %v5425 = vand.u32 2147483647, %v4806
        %vm5426 = vcmp.eq.f32.partialorder %v5425, 8.507059e+37
        %v5427 = vand.u32 %v4806, 2147483648
        %v5428 = vor.u32 1.1754944e-38, %v5427
        %v5429 = vsel %vm5426, %v5428, %v5424
        %v5430 = vmul.f32 %v4513, %v5429
        %v5431 = vmul.f32 %v4515, %v5429
        %v5432 = vrcp.pop %v4815
        %v5433 = vmul.f32 %v4815, %v5432
        %v5434 = vsub.f32 1.0, %v5433
        %v5435 = vmul.f32 %v5432, %v5434
        %v5436 = vadd.f32 %v5432, %v5435
        %vm5437 = vweird.f32 %v4815
        %vm5438 = vweird.f32 %v5432
        %vm5439 = vmor %vm5437, %vm5438
        %v5440 = vsel %vm5439, %v5432, %v5436
        %v5441 = vand.u32 2147483647, %v4815
        %vm5442 = vcmp.eq.f32.partialorder %v5441, 8.507059e+37
        %v5443 = vand.u32 %v4815, 2147483648
        %v5444 = vor.u32 1.1754944e-38, %v5443
        %v5445 = vsel %vm5442, %v5444, %v5440
        %v5446 = vmul.f32 %v4517, %v5445
        %v5447 = vmul.f32 %v4519, %v5445
        %v5448 = vrcp.pop %v4824
        %v5449 = vmul.f32 %v4824, %v5448
        %v5450 = vsub.f32 1.0, %v5449
        %v5451 = vmul.f32 %v5448, %v5450
        %v5452 = vadd.f32 %v5448, %v5451
        %vm5453 = vweird.f32 %v4824
        %vm5454 = vweird.f32 %v5448
        %vm5455 = vmor %vm5453, %vm5454
        %v5456 = vsel %vm5455, %v5448, %v5452
        %v5457 = vand.u32 2147483647, %v4824
        %vm5458 = vcmp.eq.f32.partialorder %v5457, 8.507059e+37
        %v5459 = vand.u32 %v4824, 2147483648
        %v5460 = vor.u32 1.1754944e-38, %v5459
        %v5461 = vsel %vm5458, %v5460, %v5456
        %v5462 = vmul.f32 %v4521, %v5461
        %v5463 = vmul.f32 %v4523, %v5461
        %v5464 = vrcp.pop %v4833
        %v5465 = vmul.f32 %v4833, %v5464
        %v5466 = vsub.f32 1.0, %v5465
        %v5467 = vmul.f32 %v5464, %v5466
        %v5468 = vadd.f32 %v5464, %v5467
        %vm5469 = vweird.f32 %v4833
        %vm5470 = vweird.f32 %v5464
        %vm5471 = vmor %vm5469, %vm5470
        %v5472 = vsel %vm5471, %v5464, %v5468
        %v5473 = vand.u32 2147483647, %v4833
        %vm5474 = vcmp.eq.f32.partialorder %v5473, 8.507059e+37
        %v5475 = vand.u32 %v4833, 2147483648
        %v5476 = vor.u32 1.1754944e-38, %v5475
        %v5477 = vsel %vm5474, %v5476, %v5472
        %v5478 = vmul.f32 %v4525, %v5477
        %v5479 = vmul.f32 %v4527, %v5477
        %v5480 = vrcp.pop %v4842
        %v5481 = vmul.f32 %v4842, %v5480
        %v5482 = vsub.f32 1.0, %v5481
        %v5483 = vmul.f32 %v5480, %v5482
        %v5484 = vadd.f32 %v5480, %v5483
        %vm5485 = vweird.f32 %v4842
        %vm5486 = vweird.f32 %v5480
        %vm5487 = vmor %vm5485, %vm5486
        %v5488 = vsel %vm5487, %v5480, %v5484
        %v5489 = vand.u32 2147483647, %v4842
        %vm5490 = vcmp.eq.f32.partialorder %v5489, 8.507059e+37
        %v5491 = vand.u32 %v4842, 2147483648
        %v5492 = vor.u32 1.1754944e-38, %v5491
        %v5493 = vsel %vm5490, %v5492, %v5488
        %v5494 = vmul.f32 %v4529, %v5493
        %v5495 = vmul.f32 %v4531, %v5493
        %v5496 = vrcp.pop %v4851
        %v5497 = vmul.f32 %v4851, %v5496
        %v5498 = vsub.f32 1.0, %v5497
        %v5499 = vmul.f32 %v5496, %v5498
        %v5500 = vadd.f32 %v5496, %v5499
        %vm5501 = vweird.f32 %v4851
        %vm5502 = vweird.f32 %v5496
        %vm5503 = vmor %vm5501, %vm5502
        %v5504 = vsel %vm5503, %v5496, %v5500
        %v5505 = vand.u32 2147483647, %v4851
        %vm5506 = vcmp.eq.f32.partialorder %v5505, 8.507059e+37
        %v5507 = vand.u32 %v4851, 2147483648
        %v5508 = vor.u32 1.1754944e-38, %v5507
        %v5509 = vsel %vm5506, %v5508, %v5504
        %v5510 = vmul.f32 %v4533, %v5509
        %v5511 = vmul.f32 %v4535, %v5509
        %v5512 = vrcp.pop %v4860
        %v5513 = vmul.f32 %v4860, %v5512
        %v5514 = vsub.f32 1.0, %v5513
        %v5515 = vmul.f32 %v5512, %v5514
        %v5516 = vadd.f32 %v5512, %v5515
        %vm5517 = vweird.f32 %v4860
        %vm5518 = vweird.f32 %v5512
        %vm5519 = vmor %vm5517, %vm5518
        %v5520 = vsel %vm5519, %v5512, %v5516
        %v5521 = vand.u32 2147483647, %v4860
        %vm5522 = vcmp.eq.f32.partialorder %v5521, 8.507059e+37
        %v5523 = vand.u32 %v4860, 2147483648
        %v5524 = vor.u32 1.1754944e-38, %v5523
        %v5525 = vsel %vm5522, %v5524, %v5520
        %v5526 = vmul.f32 %v4537, %v5525
        %v5527 = vmul.f32 %v4539, %v5525
        %v5528 = vrcp.pop %v4869
        %v5529 = vmul.f32 %v4869, %v5528
        %v5530 = vsub.f32 1.0, %v5529
        %v5531 = vmul.f32 %v5528, %v5530
        %v5532 = vadd.f32 %v5528, %v5531
        %vm5533 = vweird.f32 %v4869
        %vm5534 = vweird.f32 %v5528
        %vm5535 = vmor %vm5533, %vm5534
        %v5536 = vsel %vm5535, %v5528, %v5532
        %v5537 = vand.u32 2147483647, %v4869
        %vm5538 = vcmp.eq.f32.partialorder %v5537, 8.507059e+37
        %v5539 = vand.u32 %v4869, 2147483648
        %v5540 = vor.u32 1.1754944e-38, %v5539
        %v5541 = vsel %vm5538, %v5540, %v5536
        %v5542 = vmul.f32 %v4541, %v5541
        %v5543 = vmul.f32 %v4543, %v5541
        %v5544 = vrcp.pop %v4878
        %v5545 = vmul.f32 %v4878, %v5544
        %v5546 = vsub.f32 1.0, %v5545
        %v5547 = vmul.f32 %v5544, %v5546
        %v5548 = vadd.f32 %v5544, %v5547
        %vm5549 = vweird.f32 %v4878
        %vm5550 = vweird.f32 %v5544
        %vm5551 = vmor %vm5549, %vm5550
        %v5552 = vsel %vm5551, %v5544, %v5548
        %v5553 = vand.u32 2147483647, %v4878
        %vm5554 = vcmp.eq.f32.partialorder %v5553, 8.507059e+37
        %v5555 = vand.u32 %v4878, 2147483648
        %v5556 = vor.u32 1.1754944e-38, %v5555
        %v5557 = vsel %vm5554, %v5556, %v5552
        %v5558 = vmul.f32 %v4545, %v5557
        %v5559 = vmul.f32 %v4547, %v5557
        %v5560 = vrcp.pop %v4887
        %v5561 = vmul.f32 %v4887, %v5560
        %v5562 = vsub.f32 1.0, %v5561
        %v5563 = vmul.f32 %v5560, %v5562
        %v5564 = vadd.f32 %v5560, %v5563
        %vm5565 = vweird.f32 %v4887
        %vm5566 = vweird.f32 %v5560
        %vm5567 = vmor %vm5565, %vm5566
        %v5568 = vsel %vm5567, %v5560, %v5564
        %v5569 = vand.u32 2147483647, %v4887
        %vm5570 = vcmp.eq.f32.partialorder %v5569, 8.507059e+37
        %v5571 = vand.u32 %v4887, 2147483648
        %v5572 = vor.u32 1.1754944e-38, %v5571
        %v5573 = vsel %vm5570, %v5572, %v5568
        %v5574 = vmul.f32 %v4549, %v5573
        %v5575 = vmul.f32 %v4551, %v5573
        %v5576 = vrcp.pop %v4896
        %v5577 = vmul.f32 %v4896, %v5576
        %v5578 = vsub.f32 1.0, %v5577
        %v5579 = vmul.f32 %v5576, %v5578
        %v5580 = vadd.f32 %v5576, %v5579
        %vm5581 = vweird.f32 %v4896
        %vm5582 = vweird.f32 %v5576
        %vm5583 = vmor %vm5581, %vm5582
        %v5584 = vsel %vm5583, %v5576, %v5580
        %v5585 = vand.u32 2147483647, %v4896
        %vm5586 = vcmp.eq.f32.partialorder %v5585, 8.507059e+37
        %v5587 = vand.u32 %v4896, 2147483648
        %v5588 = vor.u32 1.1754944e-38, %v5587
        %v5589 = vsel %vm5586, %v5588, %v5584
        %v5590 = vmul.f32 %v4553, %v5589
        %v5591 = vmul.f32 %v4555, %v5589
        %v5592 = vrcp.pop %v4905
        %v5593 = vmul.f32 %v4905, %v5592
        %v5594 = vsub.f32 1.0, %v5593
        %v5595 = vmul.f32 %v5592, %v5594
        %v5596 = vadd.f32 %v5592, %v5595
        %vm5597 = vweird.f32 %v4905
        %vm5598 = vweird.f32 %v5592
        %vm5599 = vmor %vm5597, %vm5598
        %v5600 = vsel %vm5599, %v5592, %v5596
        %v5601 = vand.u32 2147483647, %v4905
        %vm5602 = vcmp.eq.f32.partialorder %v5601, 8.507059e+37
        %v5603 = vand.u32 %v4905, 2147483648
        %v5604 = vor.u32 1.1754944e-38, %v5603
        %v5605 = vsel %vm5602, %v5604, %v5600
        %v5606 = vmul.f32 %v4557, %v5605
        %v5607 = vmul.f32 %v4559, %v5605
        %v5608 = vrcp.pop %v4914
        %v5609 = vmul.f32 %v4914, %v5608
        %v5610 = vsub.f32 1.0, %v5609
        %v5611 = vmul.f32 %v5608, %v5610
        %v5612 = vadd.f32 %v5608, %v5611
        %vm5613 = vweird.f32 %v4914
        %vm5614 = vweird.f32 %v5608
        %vm5615 = vmor %vm5613, %vm5614
        %v5616 = vsel %vm5615, %v5608, %v5612
        %v5617 = vand.u32 2147483647, %v4914
        %vm5618 = vcmp.eq.f32.partialorder %v5617, 8.507059e+37
        %v5619 = vand.u32 %v4914, 2147483648
        %v5620 = vor.u32 1.1754944e-38, %v5619
        %v5621 = vsel %vm5618, %v5620, %v5616
        %v5622 = vmul.f32 %v4561, %v5621
        %v5623 = vmul.f32 %v4563, %v5621
        %v5624 = vrcp.pop %v4923
        %v5625 = vmul.f32 %v4923, %v5624
        %v5626 = vsub.f32 1.0, %v5625
        %v5627 = vmul.f32 %v5624, %v5626
        %v5628 = vadd.f32 %v5624, %v5627
        %vm5629 = vweird.f32 %v4923
        %vm5630 = vweird.f32 %v5624
        %vm5631 = vmor %vm5629, %vm5630
        %v5632 = vsel %vm5631, %v5624, %v5628
        %v5633 = vand.u32 2147483647, %v4923
        %vm5634 = vcmp.eq.f32.partialorder %v5633, 8.507059e+37
        %v5635 = vand.u32 %v4923, 2147483648
        %v5636 = vor.u32 1.1754944e-38, %v5635
        %v5637 = vsel %vm5634, %v5636, %v5632
        %v5638 = vmul.f32 %v4565, %v5637
        %v5639 = vmul.f32 %v4567, %v5637
        %v5640 = vrcp.pop %v4932
        %v5641 = vmul.f32 %v4932, %v5640
        %v5642 = vsub.f32 1.0, %v5641
        %v5643 = vmul.f32 %v5640, %v5642
        %v5644 = vadd.f32 %v5640, %v5643
        %vm5645 = vweird.f32 %v4932
        %vm5646 = vweird.f32 %v5640
        %vm5647 = vmor %vm5645, %vm5646
        %v5648 = vsel %vm5647, %v5640, %v5644
        %v5649 = vand.u32 2147483647, %v4932
        %vm5650 = vcmp.eq.f32.partialorder %v5649, 8.507059e+37
        %v5651 = vand.u32 %v4932, 2147483648
        %v5652 = vor.u32 1.1754944e-38, %v5651
        %v5653 = vsel %vm5650, %v5652, %v5648
        %v5654 = vmul.f32 %v4569, %v5653
        %v5655 = vmul.f32 %v4571, %v5653
        %v5656 = vrcp.pop %v4941
        %v5657 = vmul.f32 %v4941, %v5656
        %v5658 = vsub.f32 1.0, %v5657
        %v5659 = vmul.f32 %v5656, %v5658
        %v5660 = vadd.f32 %v5656, %v5659
        %vm5661 = vweird.f32 %v4941
        %vm5662 = vweird.f32 %v5656
        %vm5663 = vmor %vm5661, %vm5662
        %v5664 = vsel %vm5663, %v5656, %v5660
        %v5665 = vand.u32 2147483647, %v4941
        %vm5666 = vcmp.eq.f32.partialorder %v5665, 8.507059e+37
        %v5667 = vand.u32 %v4941, 2147483648
        %v5668 = vor.u32 1.1754944e-38, %v5667
        %v5669 = vsel %vm5666, %v5668, %v5664
        %v5670 = vmul.f32 %v4573, %v5669
        %v5671 = vmul.f32 %v4575, %v5669
        %v5672 = vrcp.pop %v4950
        %v5673 = vmul.f32 %v4950, %v5672
        %v5674 = vsub.f32 1.0, %v5673
        %v5675 = vmul.f32 %v5672, %v5674
        %v5676 = vadd.f32 %v5672, %v5675
        %vm5677 = vweird.f32 %v4950
        %vm5678 = vweird.f32 %v5672
        %vm5679 = vmor %vm5677, %vm5678
        %v5680 = vsel %vm5679, %v5672, %v5676
        %v5681 = vand.u32 2147483647, %v4950
        %vm5682 = vcmp.eq.f32.partialorder %v5681, 8.507059e+37
        %v5683 = vand.u32 %v4950, 2147483648
        %v5684 = vor.u32 1.1754944e-38, %v5683
        %v5685 = vsel %vm5682, %v5684, %v5680
        %v5686 = vmul.f32 %v4577, %v5685
        %v5687 = vmul.f32 %v4579, %v5685
        %v5688 = vrcp.pop %v4959
        %v5689 = vmul.f32 %v4959, %v5688
        %v5690 = vsub.f32 1.0, %v5689
        %v5691 = vmul.f32 %v5688, %v5690
        %v5692 = vadd.f32 %v5688, %v5691
        %vm5693 = vweird.f32 %v4959
        %vm5694 = vweird.f32 %v5688
        %vm5695 = vmor %vm5693, %vm5694
        %v5696 = vsel %vm5695, %v5688, %v5692
        %v5697 = vand.u32 2147483647, %v4959
        %vm5698 = vcmp.eq.f32.partialorder %v5697, 8.507059e+37
        %v5699 = vand.u32 %v4959, 2147483648
        %v5700 = vor.u32 1.1754944e-38, %v5699
        %v5701 = vsel %vm5698, %v5700, %v5696
        %v5702 = vmul.f32 %v4581, %v5701
        %v5703 = vmul.f32 %v4583, %v5701
        %v5704 = vrcp.pop %v4968
        %v5705 = vmul.f32 %v4968, %v5704
        %v5706 = vsub.f32 1.0, %v5705
        %v5707 = vmul.f32 %v5704, %v5706
        %v5708 = vadd.f32 %v5704, %v5707
        %vm5709 = vweird.f32 %v4968
        %vm5710 = vweird.f32 %v5704
        %vm5711 = vmor %vm5709, %vm5710
        %v5712 = vsel %vm5711, %v5704, %v5708
        %v5713 = vand.u32 2147483647, %v4968
        %vm5714 = vcmp.eq.f32.partialorder %v5713, 8.507059e+37
        %v5715 = vand.u32 %v4968, 2147483648
        %v5716 = vor.u32 1.1754944e-38, %v5715
        %v5717 = vsel %vm5714, %v5716, %v5712
        %v5718 = vmul.f32 %v4585, %v5717
        %v5719 = vmul.f32 %v4587, %v5717
        %v5720 = vrcp.pop %v4977
        %v5721 = vmul.f32 %v4977, %v5720
        %v5722 = vsub.f32 1.0, %v5721
        %v5723 = vmul.f32 %v5720, %v5722
        %v5724 = vadd.f32 %v5720, %v5723
        %vm5725 = vweird.f32 %v4977
        %vm5726 = vweird.f32 %v5720
        %vm5727 = vmor %vm5725, %vm5726
        %v5728 = vsel %vm5727, %v5720, %v5724
        %v5729 = vand.u32 2147483647, %v4977
        %vm5730 = vcmp.eq.f32.partialorder %v5729, 8.507059e+37
        %v5731 = vand.u32 %v4977, 2147483648
        %v5732 = vor.u32 1.1754944e-38, %v5731
        %v5733 = vsel %vm5730, %v5732, %v5728
        %v5734 = vmul.f32 %v4589, %v5733
        %v5735 = vmul.f32 %v4591, %v5733
        %v5736 = vrcp.pop %v4986
        %v5737 = vmul.f32 %v4986, %v5736
        %v5738 = vsub.f32 1.0, %v5737
        %v5739 = vmul.f32 %v5736, %v5738
        %v5740 = vadd.f32 %v5736, %v5739
        %vm5741 = vweird.f32 %v4986
        %vm5742 = vweird.f32 %v5736
        %vm5743 = vmor %vm5741, %vm5742
        %v5744 = vsel %vm5743, %v5736, %v5740
        %v5745 = vand.u32 2147483647, %v4986
        %vm5746 = vcmp.eq.f32.partialorder %v5745, 8.507059e+37
        %v5747 = vand.u32 %v4986, 2147483648
        %v5748 = vor.u32 1.1754944e-38, %v5747
        %v5749 = vsel %vm5746, %v5748, %v5744
        %v5750 = vmul.f32 %v4593, %v5749
        %v5751 = vmul.f32 %v4595, %v5749
        %v5752 = vrcp.pop %v4995
        %v5753 = vmul.f32 %v4995, %v5752
        %v5754 = vsub.f32 1.0, %v5753
        %v5755 = vmul.f32 %v5752, %v5754
        %v5756 = vadd.f32 %v5752, %v5755
        %vm5757 = vweird.f32 %v4995
        %vm5758 = vweird.f32 %v5752
        %vm5759 = vmor %vm5757, %vm5758
        %v5760 = vsel %vm5759, %v5752, %v5756
        %v5761 = vand.u32 2147483647, %v4995
        %vm5762 = vcmp.eq.f32.partialorder %v5761, 8.507059e+37
        %v5763 = vand.u32 %v4995, 2147483648
        %v5764 = vor.u32 1.1754944e-38, %v5763
        %v5765 = vsel %vm5762, %v5764, %v5760
        %v5766 = vmul.f32 %v4597, %v5765
        %v5767 = vmul.f32 %v4599, %v5765
        %v5768 = vrcp.pop %v5004
        %v5769 = vmul.f32 %v5004, %v5768
        %v5770 = vsub.f32 1.0, %v5769
        %v5771 = vmul.f32 %v5768, %v5770
        %v5772 = vadd.f32 %v5768, %v5771
        %vm5773 = vweird.f32 %v5004
        %vm5774 = vweird.f32 %v5768
        %vm5775 = vmor %vm5773, %vm5774
        %v5776 = vsel %vm5775, %v5768, %v5772
        %v5777 = vand.u32 2147483647, %v5004
        %vm5778 = vcmp.eq.f32.partialorder %v5777, 8.507059e+37
        %v5779 = vand.u32 %v5004, 2147483648
        %v5780 = vor.u32 1.1754944e-38, %v5779
        %v5781 = vsel %vm5778, %v5780, %v5776
        %v5782 = vmul.f32 %v4601, %v5781
        %v5783 = vmul.f32 %v4603, %v5781
        %v5784 = vrcp.pop %v5013
        %v5785 = vmul.f32 %v5013, %v5784
        %v5786 = vsub.f32 1.0, %v5785
        %v5787 = vmul.f32 %v5784, %v5786
        %v5788 = vadd.f32 %v5784, %v5787
        %vm5789 = vweird.f32 %v5013
        %vm5790 = vweird.f32 %v5784
        %vm5791 = vmor %vm5789, %vm5790
        %v5792 = vsel %vm5791, %v5784, %v5788
        %v5793 = vand.u32 2147483647, %v5013
        %vm5794 = vcmp.eq.f32.partialorder %v5793, 8.507059e+37
        %v5795 = vand.u32 %v5013, 2147483648
        %v5796 = vor.u32 1.1754944e-38, %v5795
        %v5797 = vsel %vm5794, %v5796, %v5792
        %v5798 = vmul.f32 %v4605, %v5797
        %v5799 = vmul.f32 %v4607, %v5797
        %v5800 = vrcp.pop %v5022
        %v5801 = vmul.f32 %v5022, %v5800
        %v5802 = vsub.f32 1.0, %v5801
        %v5803 = vmul.f32 %v5800, %v5802
        %v5804 = vadd.f32 %v5800, %v5803
        %vm5805 = vweird.f32 %v5022
        %vm5806 = vweird.f32 %v5800
        %vm5807 = vmor %vm5805, %vm5806
        %v5808 = vsel %vm5807, %v5800, %v5804
        %v5809 = vand.u32 2147483647, %v5022
        %vm5810 = vcmp.eq.f32.partialorder %v5809, 8.507059e+37
        %v5811 = vand.u32 %v5022, 2147483648
        %v5812 = vor.u32 1.1754944e-38, %v5811
        %v5813 = vsel %vm5810, %v5812, %v5808
        %v5814 = vmul.f32 %v4609, %v5813
        %v5815 = vmul.f32 %v4611, %v5813
        %v5816 = vrcp.pop %v5031
        %v5817 = vmul.f32 %v5031, %v5816
        %v5818 = vsub.f32 1.0, %v5817
        %v5819 = vmul.f32 %v5816, %v5818
        %v5820 = vadd.f32 %v5816, %v5819
        %vm5821 = vweird.f32 %v5031
        %vm5822 = vweird.f32 %v5816
        %vm5823 = vmor %vm5821, %vm5822
        %v5824 = vsel %vm5823, %v5816, %v5820
        %v5825 = vand.u32 2147483647, %v5031
        %vm5826 = vcmp.eq.f32.partialorder %v5825, 8.507059e+37
        %v5827 = vand.u32 %v5031, 2147483648
        %v5828 = vor.u32 1.1754944e-38, %v5827
        %v5829 = vsel %vm5826, %v5828, %v5824
        %v5830 = vmul.f32 %v4613, %v5829
        %v5831 = vmul.f32 %v4615, %v5829
        %v5832 = vrcp.pop %v5040
        %v5833 = vmul.f32 %v5040, %v5832
        %v5834 = vsub.f32 1.0, %v5833
        %v5835 = vmul.f32 %v5832, %v5834
        %v5836 = vadd.f32 %v5832, %v5835
        %vm5837 = vweird.f32 %v5040
        %vm5838 = vweird.f32 %v5832
        %vm5839 = vmor %vm5837, %vm5838
        %v5840 = vsel %vm5839, %v5832, %v5836
        %v5841 = vand.u32 2147483647, %v5040
        %vm5842 = vcmp.eq.f32.partialorder %v5841, 8.507059e+37
        %v5843 = vand.u32 %v5040, 2147483648
        %v5844 = vor.u32 1.1754944e-38, %v5843
        %v5845 = vsel %vm5842, %v5844, %v5840
        %v5846 = vmul.f32 %v4617, %v5845
        %v5847 = vmul.f32 %v4619, %v5845
        %v5848 = vrcp.pop %v5049
        %v5849 = vmul.f32 %v5049, %v5848
        %v5850 = vsub.f32 1.0, %v5849
        %v5851 = vmul.f32 %v5848, %v5850
        %v5852 = vadd.f32 %v5848, %v5851
        %vm5853 = vweird.f32 %v5049
        %vm5854 = vweird.f32 %v5848
        %vm5855 = vmor %vm5853, %vm5854
        %v5856 = vsel %vm5855, %v5848, %v5852
        %v5857 = vand.u32 2147483647, %v5049
        %vm5858 = vcmp.eq.f32.partialorder %v5857, 8.507059e+37
        %v5859 = vand.u32 %v5049, 2147483648
        %v5860 = vor.u32 1.1754944e-38, %v5859
        %v5861 = vsel %vm5858, %v5860, %v5856
        %v5862 = vmul.f32 %v4621, %v5861
        %v5863 = vmul.f32 %v4623, %v5861
        %v5864 = vrcp.pop %v5058
        %v5865 = vmul.f32 %v5058, %v5864
        %v5866 = vsub.f32 1.0, %v5865
        %v5867 = vmul.f32 %v5864, %v5866
        %v5868 = vadd.f32 %v5864, %v5867
        %vm5869 = vweird.f32 %v5058
        %vm5870 = vweird.f32 %v5864
        %vm5871 = vmor %vm5869, %vm5870
        %v5872 = vsel %vm5871, %v5864, %v5868
        %v5873 = vand.u32 2147483647, %v5058
        %vm5874 = vcmp.eq.f32.partialorder %v5873, 8.507059e+37
        %v5875 = vand.u32 %v5058, 2147483648
        %v5876 = vor.u32 1.1754944e-38, %v5875
        %v5877 = vsel %vm5874, %v5876, %v5872
        %v5878 = vmul.f32 %v4625, %v5877
        %v5879 = vmul.f32 %v4627, %v5877
        %v5880 = vrcp.pop %v5067
        %v5881 = vmul.f32 %v5067, %v5880
        %v5882 = vsub.f32 1.0, %v5881
        %v5883 = vmul.f32 %v5880, %v5882
        %v5884 = vadd.f32 %v5880, %v5883
        %vm5885 = vweird.f32 %v5067
        %vm5886 = vweird.f32 %v5880
        %vm5887 = vmor %vm5885, %vm5886
        %v5888 = vsel %vm5887, %v5880, %v5884
        %v5889 = vand.u32 2147483647, %v5067
        %vm5890 = vcmp.eq.f32.partialorder %v5889, 8.507059e+37
        %v5891 = vand.u32 %v5067, 2147483648
        %v5892 = vor.u32 1.1754944e-38, %v5891
        %v5893 = vsel %vm5890, %v5892, %v5888
        %v5894 = vmul.f32 %v4629, %v5893
        %v5895 = vmul.f32 %v4631, %v5893
        %v5896 = vrcp.pop %v5076
        %v5897 = vmul.f32 %v5076, %v5896
        %v5898 = vsub.f32 1.0, %v5897
        %v5899 = vmul.f32 %v5896, %v5898
        %v5900 = vadd.f32 %v5896, %v5899
        %vm5901 = vweird.f32 %v5076
        %vm5902 = vweird.f32 %v5896
        %vm5903 = vmor %vm5901, %vm5902
        %v5904 = vsel %vm5903, %v5896, %v5900
        %v5905 = vand.u32 2147483647, %v5076
        %vm5906 = vcmp.eq.f32.partialorder %v5905, 8.507059e+37
        %v5907 = vand.u32 %v5076, 2147483648
        %v5908 = vor.u32 1.1754944e-38, %v5907
        %v5909 = vsel %vm5906, %v5908, %v5904
        %v5910 = vmul.f32 %v4633, %v5909
        %v5911 = vmul.f32 %v4635, %v5909
        %v5912 = vrcp.pop %v5085
        %v5913 = vmul.f32 %v5085, %v5912
        %v5914 = vsub.f32 1.0, %v5913
        %v5915 = vmul.f32 %v5912, %v5914
        %v5916 = vadd.f32 %v5912, %v5915
        %vm5917 = vweird.f32 %v5085
        %vm5918 = vweird.f32 %v5912
        %vm5919 = vmor %vm5917, %vm5918
        %v5920 = vsel %vm5919, %v5912, %v5916
        %v5921 = vand.u32 2147483647, %v5085
        %vm5922 = vcmp.eq.f32.partialorder %v5921, 8.507059e+37
        %v5923 = vand.u32 %v5085, 2147483648
        %v5924 = vor.u32 1.1754944e-38, %v5923
        %v5925 = vsel %vm5922, %v5924, %v5920
        %v5926 = vmul.f32 %v4637, %v5925
        %v5927 = vmul.f32 %v4639, %v5925
        %v5928 = vrcp.pop %v5094
        %v5929 = vmul.f32 %v5094, %v5928
        %v5930 = vsub.f32 1.0, %v5929
        %v5931 = vmul.f32 %v5928, %v5930
        %v5932 = vadd.f32 %v5928, %v5931
        %vm5933 = vweird.f32 %v5094
        %vm5934 = vweird.f32 %v5928
        %vm5935 = vmor %vm5933, %vm5934
        %v5936 = vsel %vm5935, %v5928, %v5932
        %v5937 = vand.u32 2147483647, %v5094
        %vm5938 = vcmp.eq.f32.partialorder %v5937, 8.507059e+37
        %v5939 = vand.u32 %v5094, 2147483648
        %v5940 = vor.u32 1.1754944e-38, %v5939
        %v5941 = vsel %vm5938, %v5940, %v5936
        %v5942 = vmul.f32 %v4641, %v5941
        %v5943 = vmul.f32 %v4643, %v5941
        %v5944 = vrcp.pop %v5103
        %v5945 = vmul.f32 %v5103, %v5944
        %v5946 = vsub.f32 1.0, %v5945
        %v5947 = vmul.f32 %v5944, %v5946
        %v5948 = vadd.f32 %v5944, %v5947
        %vm5949 = vweird.f32 %v5103
        %vm5950 = vweird.f32 %v5944
        %vm5951 = vmor %vm5949, %vm5950
        %v5952 = vsel %vm5951, %v5944, %v5948
        %v5953 = vand.u32 2147483647, %v5103
        %vm5954 = vcmp.eq.f32.partialorder %v5953, 8.507059e+37
        %v5955 = vand.u32 %v5103, 2147483648
        %v5956 = vor.u32 1.1754944e-38, %v5955
        %v5957 = vsel %vm5954, %v5956, %v5952
        %v5958 = vmul.f32 %v4645, %v5957
        %v5959 = vmul.f32 %v4647, %v5957
        %v5960 = vrcp.pop %v5112
        %v5961 = vmul.f32 %v5112, %v5960
        %v5962 = vsub.f32 1.0, %v5961
        %v5963 = vmul.f32 %v5960, %v5962
        %v5964 = vadd.f32 %v5960, %v5963
        %vm5965 = vweird.f32 %v5112
        %vm5966 = vweird.f32 %v5960
        %vm5967 = vmor %vm5965, %vm5966
        %v5968 = vsel %vm5967, %v5960, %v5964
        %v5969 = vand.u32 2147483647, %v5112
        %vm5970 = vcmp.eq.f32.partialorder %v5969, 8.507059e+37
        %v5971 = vand.u32 %v5112, 2147483648
        %v5972 = vor.u32 1.1754944e-38, %v5971
        %v5973 = vsel %vm5970, %v5972, %v5968
        %v5974 = vmul.f32 %v4649, %v5973
        %v5975 = vmul.f32 %v4651, %v5973
        %v5976 = vrcp.pop %v5121
        %v5977 = vmul.f32 %v5121, %v5976
        %v5978 = vsub.f32 1.0, %v5977
        %v5979 = vmul.f32 %v5976, %v5978
        %v5980 = vadd.f32 %v5976, %v5979
        %vm5981 = vweird.f32 %v5121
        %vm5982 = vweird.f32 %v5976
        %vm5983 = vmor %vm5981, %vm5982
        %v5984 = vsel %vm5983, %v5976, %v5980
        %v5985 = vand.u32 2147483647, %v5121
        %vm5986 = vcmp.eq.f32.partialorder %v5985, 8.507059e+37
        %v5987 = vand.u32 %v5121, 2147483648
        %v5988 = vor.u32 1.1754944e-38, %v5987
        %v5989 = vsel %vm5986, %v5988, %v5984
        %v5990 = vmul.f32 %v4653, %v5989
        %v5991 = vmul.f32 %v4655, %v5989
        %v5992 = vrcp.pop %v5130
        %v5993 = vmul.f32 %v5130, %v5992
        %v5994 = vsub.f32 1.0, %v5993
        %v5995 = vmul.f32 %v5992, %v5994
        %v5996 = vadd.f32 %v5992, %v5995
        %vm5997 = vweird.f32 %v5130
        %vm5998 = vweird.f32 %v5992
        %vm5999 = vmor %vm5997, %vm5998
        %v6000 = vsel %vm5999, %v5992, %v5996
        %v6001 = vand.u32 2147483647, %v5130
        %vm6002 = vcmp.eq.f32.partialorder %v6001, 8.507059e+37
        %v6003 = vand.u32 %v5130, 2147483648
        %v6004 = vor.u32 1.1754944e-38, %v6003
        %v6005 = vsel %vm6002, %v6004, %v6000
        %v6006 = vmul.f32 %v4657, %v6005
        %v6007 = vmul.f32 %v4659, %v6005
        %v6008 = vrcp.pop %v5139
        %v6009 = vmul.f32 %v5139, %v6008
        %v6010 = vsub.f32 1.0, %v6009
        %v6011 = vmul.f32 %v6008, %v6010
        %v6012 = vadd.f32 %v6008, %v6011
        %vm6013 = vweird.f32 %v5139
        %vm6014 = vweird.f32 %v6008
        %vm6015 = vmor %vm6013, %vm6014
        %v6016 = vsel %vm6015, %v6008, %v6012
        %v6017 = vand.u32 2147483647, %v5139
        %vm6018 = vcmp.eq.f32.partialorder %v6017, 8.507059e+37
        %v6019 = vand.u32 %v5139, 2147483648
        %v6020 = vor.u32 1.1754944e-38, %v6019
        %v6021 = vsel %vm6018, %v6020, %v6016
        %v6022 = vmul.f32 %v4661, %v6021
        %v6023 = vmul.f32 %v4663, %v6021
        %v6024 = vrcp.pop %v5148
        %v6025 = vmul.f32 %v5148, %v6024
        %v6026 = vsub.f32 1.0, %v6025
        %v6027 = vmul.f32 %v6024, %v6026
        %v6028 = vadd.f32 %v6024, %v6027
        %vm6029 = vweird.f32 %v5148
        %vm6030 = vweird.f32 %v6024
        %vm6031 = vmor %vm6029, %vm6030
        %v6032 = vsel %vm6031, %v6024, %v6028
        %v6033 = vand.u32 2147483647, %v5148
        %vm6034 = vcmp.eq.f32.partialorder %v6033, 8.507059e+37
        %v6035 = vand.u32 %v5148, 2147483648
        %v6036 = vor.u32 1.1754944e-38, %v6035
        %v6037 = vsel %vm6034, %v6036, %v6032
        %v6038 = vmul.f32 %v4665, %v6037
        %v6039 = vmul.f32 %v4667, %v6037
        %v6040 = vrcp.pop %v5157
        %v6041 = vmul.f32 %v5157, %v6040
        %v6042 = vsub.f32 1.0, %v6041
        %v6043 = vmul.f32 %v6040, %v6042
        %v6044 = vadd.f32 %v6040, %v6043
        %vm6045 = vweird.f32 %v5157
        %vm6046 = vweird.f32 %v6040
        %vm6047 = vmor %vm6045, %vm6046
        %v6048 = vsel %vm6047, %v6040, %v6044
        %v6049 = vand.u32 2147483647, %v5157
        %vm6050 = vcmp.eq.f32.partialorder %v6049, 8.507059e+37
        %v6051 = vand.u32 %v5157, 2147483648
        %v6052 = vor.u32 1.1754944e-38, %v6051
        %v6053 = vsel %vm6050, %v6052, %v6048
        %v6054 = vmul.f32 %v4669, %v6053
        %v6055 = vmul.f32 %v4671, %v6053
        %v6056 = vrcp.pop %v5166
        %v6057 = vmul.f32 %v5166, %v6056
        %v6058 = vsub.f32 1.0, %v6057
        %v6059 = vmul.f32 %v6056, %v6058
        %v6060 = vadd.f32 %v6056, %v6059
        %vm6061 = vweird.f32 %v5166
        %vm6062 = vweird.f32 %v6056
        %vm6063 = vmor %vm6061, %vm6062
        %v6064 = vsel %vm6063, %v6056, %v6060
        %v6065 = vand.u32 2147483647, %v5166
        %vm6066 = vcmp.eq.f32.partialorder %v6065, 8.507059e+37
        %v6067 = vand.u32 %v5166, 2147483648
        %v6068 = vor.u32 1.1754944e-38, %v6067
        %v6069 = vsel %vm6066, %v6068, %v6064
        %v6070 = vmul.f32 %v4673, %v6069
        %v6071 = vmul.f32 %v4675, %v6069
        %v6072 = vrcp.pop %v5175
        %v6073 = vmul.f32 %v5175, %v6072
        %v6074 = vsub.f32 1.0, %v6073
        %v6075 = vmul.f32 %v6072, %v6074
        %v6076 = vadd.f32 %v6072, %v6075
        %vm6077 = vweird.f32 %v5175
        %vm6078 = vweird.f32 %v6072
        %vm6079 = vmor %vm6077, %vm6078
        %v6080 = vsel %vm6079, %v6072, %v6076
        %v6081 = vand.u32 2147483647, %v5175
        %vm6082 = vcmp.eq.f32.partialorder %v6081, 8.507059e+37
        %v6083 = vand.u32 %v5175, 2147483648
        %v6084 = vor.u32 1.1754944e-38, %v6083
        %v6085 = vsel %vm6082, %v6084, %v6080
        %v6086 = vmul.f32 %v4677, %v6085
        %v6087 = vmul.f32 %v4679, %v6085
        %v6088 = vrcp.pop %v5184
        %v6089 = vmul.f32 %v5184, %v6088
        %v6090 = vsub.f32 1.0, %v6089
        %v6091 = vmul.f32 %v6088, %v6090
        %v6092 = vadd.f32 %v6088, %v6091
        %vm6093 = vweird.f32 %v5184
        %vm6094 = vweird.f32 %v6088
        %vm6095 = vmor %vm6093, %vm6094
        %v6096 = vsel %vm6095, %v6088, %v6092
        %v6097 = vand.u32 2147483647, %v5184
        %vm6098 = vcmp.eq.f32.partialorder %v6097, 8.507059e+37
        %v6099 = vand.u32 %v5184, 2147483648
        %v6100 = vor.u32 1.1754944e-38, %v6099
        %v6101 = vsel %vm6098, %v6100, %v6096
        %v6102 = vmul.f32 %v4681, %v6101
        %v6103 = vmul.f32 %v4683, %v6101
        %v6104 = vrcp.pop %v5193
        %v6105 = vmul.f32 %v5193, %v6104
        %v6106 = vsub.f32 1.0, %v6105
        %v6107 = vmul.f32 %v6104, %v6106
        %v6108 = vadd.f32 %v6104, %v6107
        %vm6109 = vweird.f32 %v5193
        %vm6110 = vweird.f32 %v6104
        %vm6111 = vmor %vm6109, %vm6110
        %v6112 = vsel %vm6111, %v6104, %v6108
        %v6113 = vand.u32 2147483647, %v5193
        %vm6114 = vcmp.eq.f32.partialorder %v6113, 8.507059e+37
        %v6115 = vand.u32 %v5193, 2147483648
        %v6116 = vor.u32 1.1754944e-38, %v6115
        %v6117 = vsel %vm6114, %v6116, %v6112
        %v6118 = vmul.f32 %v4685, %v6117
        %v6119 = vmul.f32 %v4687, %v6117
        %v6120 = vrcp.pop %v5202
        %v6121 = vmul.f32 %v5202, %v6120
        %v6122 = vsub.f32 1.0, %v6121
        %v6123 = vmul.f32 %v6120, %v6122
        %v6124 = vadd.f32 %v6120, %v6123
        %vm6125 = vweird.f32 %v5202
        %vm6126 = vweird.f32 %v6120
        %vm6127 = vmor %vm6125, %vm6126
        %v6128 = vsel %vm6127, %v6120, %v6124
        %v6129 = vand.u32 2147483647, %v5202
        %vm6130 = vcmp.eq.f32.partialorder %v6129, 8.507059e+37
        %v6131 = vand.u32 %v5202, 2147483648
        %v6132 = vor.u32 1.1754944e-38, %v6131
        %v6133 = vsel %vm6130, %v6132, %v6128
        %v6134 = vmul.f32 %v4689, %v6133
        %v6135 = vmul.f32 %v4691, %v6133
        %v6136 = vrcp.pop %v5211
        %v6137 = vmul.f32 %v5211, %v6136
        %v6138 = vsub.f32 1.0, %v6137
        %v6139 = vmul.f32 %v6136, %v6138
        %v6140 = vadd.f32 %v6136, %v6139
        %vm6141 = vweird.f32 %v5211
        %vm6142 = vweird.f32 %v6136
        %vm6143 = vmor %vm6141, %vm6142
        %v6144 = vsel %vm6143, %v6136, %v6140
        %v6145 = vand.u32 2147483647, %v5211
        %vm6146 = vcmp.eq.f32.partialorder %v6145, 8.507059e+37
        %v6147 = vand.u32 %v5211, 2147483648
        %v6148 = vor.u32 1.1754944e-38, %v6147
        %v6149 = vsel %vm6146, %v6148, %v6144
        %v6150 = vmul.f32 %v4693, %v6149
        %v6151 = vmul.f32 %v4695, %v6149
        %v6152 = vrcp.pop %v5220
        %v6153 = vmul.f32 %v5220, %v6152
        %v6154 = vsub.f32 1.0, %v6153
        %v6155 = vmul.f32 %v6152, %v6154
        %v6156 = vadd.f32 %v6152, %v6155
        %vm6157 = vweird.f32 %v5220
        %vm6158 = vweird.f32 %v6152
        %vm6159 = vmor %vm6157, %vm6158
        %v6160 = vsel %vm6159, %v6152, %v6156
        %v6161 = vand.u32 2147483647, %v5220
        %vm6162 = vcmp.eq.f32.partialorder %v6161, 8.507059e+37
        %v6163 = vand.u32 %v5220, 2147483648
        %v6164 = vor.u32 1.1754944e-38, %v6163
        %v6165 = vsel %vm6162, %v6164, %v6160
        %v6166 = vmul.f32 %v4697, %v6165
        %v6167 = vmul.f32 %v4699, %v6165
        %v6168 = vrcp.pop %v5229
        %v6169 = vmul.f32 %v5229, %v6168
        %v6170 = vsub.f32 1.0, %v6169
        %v6171 = vmul.f32 %v6168, %v6170
        %v6172 = vadd.f32 %v6168, %v6171
        %vm6173 = vweird.f32 %v5229
        %vm6174 = vweird.f32 %v6168
        %vm6175 = vmor %vm6173, %vm6174
        %v6176 = vsel %vm6175, %v6168, %v6172
        %v6177 = vand.u32 2147483647, %v5229
        %vm6178 = vcmp.eq.f32.partialorder %v6177, 8.507059e+37
        %v6179 = vand.u32 %v5229, 2147483648
        %v6180 = vor.u32 1.1754944e-38, %v6179
        %v6181 = vsel %vm6178, %v6180, %v6176
        %v6182 = vmul.f32 %v4701, %v6181
        %v6183 = vmul.f32 %v4703, %v6181
        %v6184 = vrcp.pop %v5238
        %v6185 = vmul.f32 %v5238, %v6184
        %v6186 = vsub.f32 1.0, %v6185
        %v6187 = vmul.f32 %v6184, %v6186
        %v6188 = vadd.f32 %v6184, %v6187
        %vm6189 = vweird.f32 %v5238
        %vm6190 = vweird.f32 %v6184
        %vm6191 = vmor %vm6189, %vm6190
        %v6192 = vsel %vm6191, %v6184, %v6188
        %v6193 = vand.u32 2147483647, %v5238
        %vm6194 = vcmp.eq.f32.partialorder %v6193, 8.507059e+37
        %v6195 = vand.u32 %v5238, 2147483648
        %v6196 = vor.u32 1.1754944e-38, %v6195
        %v6197 = vsel %vm6194, %v6196, %v6192
        %v6198 = vmul.f32 %v4705, %v6197
        %v6199 = vmul.f32 %v4707, %v6197
        %v6200 = vrcp.pop %v5247
        %v6201 = vmul.f32 %v5247, %v6200
        %v6202 = vsub.f32 1.0, %v6201
        %v6203 = vmul.f32 %v6200, %v6202
        %v6204 = vadd.f32 %v6200, %v6203
        %vm6205 = vweird.f32 %v5247
        %vm6206 = vweird.f32 %v6200
        %vm6207 = vmor %vm6205, %vm6206
        %v6208 = vsel %vm6207, %v6200, %v6204
        %v6209 = vand.u32 2147483647, %v5247
        %vm6210 = vcmp.eq.f32.partialorder %v6209, 8.507059e+37
        %v6211 = vand.u32 %v5247, 2147483648
        %v6212 = vor.u32 1.1754944e-38, %v6211
        %v6213 = vsel %vm6210, %v6212, %v6208
        %v6214 = vmul.f32 %v4709, %v6213
        %v6215 = vmul.f32 %v4711, %v6213
        %v6216 = vrcp.pop %v5256
        %v6217 = vmul.f32 %v5256, %v6216
        %v6218 = vsub.f32 1.0, %v6217
        %v6219 = vmul.f32 %v6216, %v6218
        %v6220 = vadd.f32 %v6216, %v6219
        %vm6221 = vweird.f32 %v5256
        %vm6222 = vweird.f32 %v6216
        %vm6223 = vmor %vm6221, %vm6222
        %v6224 = vsel %vm6223, %v6216, %v6220
        %v6225 = vand.u32 2147483647, %v5256
        %vm6226 = vcmp.eq.f32.partialorder %v6225, 8.507059e+37
        %v6227 = vand.u32 %v5256, 2147483648
        %v6228 = vor.u32 1.1754944e-38, %v6227
        %v6229 = vsel %vm6226, %v6228, %v6224
        %v6230 = vmul.f32 %v4713, %v6229
        %v6231 = vmul.f32 %v4715, %v6229
        %v6232 = vrcp.pop %v5265
        %v6233 = vmul.f32 %v5265, %v6232
        %v6234 = vsub.f32 1.0, %v6233
        %v6235 = vmul.f32 %v6232, %v6234
        %v6236 = vadd.f32 %v6232, %v6235
        %vm6237 = vweird.f32 %v5265
        %vm6238 = vweird.f32 %v6232
        %vm6239 = vmor %vm6237, %vm6238
        %v6240 = vsel %vm6239, %v6232, %v6236
        %v6241 = vand.u32 2147483647, %v5265
        %vm6242 = vcmp.eq.f32.partialorder %v6241, 8.507059e+37
        %v6243 = vand.u32 %v5265, 2147483648
        %v6244 = vor.u32 1.1754944e-38, %v6243
        %v6245 = vsel %vm6242, %v6244, %v6240
        %v6246 = vmul.f32 %v4717, %v6245
        %v6247 = vmul.f32 %v4719, %v6245
        %v6248 = vrcp.pop %v5274
        %v6249 = vmul.f32 %v5274, %v6248
        %v6250 = vsub.f32 1.0, %v6249
        %v6251 = vmul.f32 %v6248, %v6250
        %v6252 = vadd.f32 %v6248, %v6251
        %vm6253 = vweird.f32 %v5274
        %vm6254 = vweird.f32 %v6248
        %vm6255 = vmor %vm6253, %vm6254
        %v6256 = vsel %vm6255, %v6248, %v6252
        %v6257 = vand.u32 2147483647, %v5274
        %vm6258 = vcmp.eq.f32.partialorder %v6257, 8.507059e+37
        %v6259 = vand.u32 %v5274, 2147483648
        %v6260 = vor.u32 1.1754944e-38, %v6259
        %v6261 = vsel %vm6258, %v6260, %v6256
        %v6262 = vmul.f32 %v4721, %v6261
        %v6263 = vmul.f32 %v4723, %v6261
        %v6264 = vrcp.pop %v5283
        %v6265 = vmul.f32 %v5283, %v6264
        %v6266 = vsub.f32 1.0, %v6265
        %v6267 = vmul.f32 %v6264, %v6266
        %v6268 = vadd.f32 %v6264, %v6267
        %vm6269 = vweird.f32 %v5283
        %vm6270 = vweird.f32 %v6264
        %vm6271 = vmor %vm6269, %vm6270
        %v6272 = vsel %vm6271, %v6264, %v6268
        %v6273 = vand.u32 2147483647, %v5283
        %vm6274 = vcmp.eq.f32.partialorder %v6273, 8.507059e+37
        %v6275 = vand.u32 %v5283, 2147483648
        %v6276 = vor.u32 1.1754944e-38, %v6275
        %v6277 = vsel %vm6274, %v6276, %v6272
        %v6278 = vmul.f32 %v4725, %v6277
        %v6279 = vmul.f32 %v4727, %v6277
        %v6280 = vrcp.pop %v5292
        %v6281 = vmul.f32 %v5292, %v6280
        %v6282 = vsub.f32 1.0, %v6281
        %v6283 = vmul.f32 %v6280, %v6282
        %v6284 = vadd.f32 %v6280, %v6283
        %vm6285 = vweird.f32 %v5292
        %vm6286 = vweird.f32 %v6280
        %vm6287 = vmor %vm6285, %vm6286
        %v6288 = vsel %vm6287, %v6280, %v6284
        %v6289 = vand.u32 2147483647, %v5292
        %vm6290 = vcmp.eq.f32.partialorder %v6289, 8.507059e+37
        %v6291 = vand.u32 %v5292, 2147483648
        %v6292 = vor.u32 1.1754944e-38, %v6291
        %v6293 = vsel %vm6290, %v6292, %v6288
        %v6294 = vmul.f32 %v4729, %v6293
        %v6295 = vmul.f32 %v4731, %v6293
        %v6296 = vrcp.pop %v5301
        %v6297 = vmul.f32 %v5301, %v6296
        %v6298 = vsub.f32 1.0, %v6297
        %v6299 = vmul.f32 %v6296, %v6298
        %v6300 = vadd.f32 %v6296, %v6299
        %vm6301 = vweird.f32 %v5301
        %vm6302 = vweird.f32 %v6296
        %vm6303 = vmor %vm6301, %vm6302
        %v6304 = vsel %vm6303, %v6296, %v6300
        %v6305 = vand.u32 2147483647, %v5301
        %vm6306 = vcmp.eq.f32.partialorder %v6305, 8.507059e+37
        %v6307 = vand.u32 %v5301, 2147483648
        %v6308 = vor.u32 1.1754944e-38, %v6307
        %v6309 = vsel %vm6306, %v6308, %v6304
        %v6310 = vmul.f32 %v4733, %v6309
        %v6311 = vmul.f32 %v4735, %v6309
        %v6312 = vrcp.pop %v5310
        %v6313 = vmul.f32 %v5310, %v6312
        %v6314 = vsub.f32 1.0, %v6313
        %v6315 = vmul.f32 %v6312, %v6314
        %v6316 = vadd.f32 %v6312, %v6315
        %vm6317 = vweird.f32 %v5310
        %vm6318 = vweird.f32 %v6312
        %vm6319 = vmor %vm6317, %vm6318
        %v6320 = vsel %vm6319, %v6312, %v6316
        %v6321 = vand.u32 2147483647, %v5310
        %vm6322 = vcmp.eq.f32.partialorder %v6321, 8.507059e+37
        %v6323 = vand.u32 %v5310, 2147483648
        %v6324 = vor.u32 1.1754944e-38, %v6323
        %v6325 = vsel %vm6322, %v6324, %v6320
        %v6326 = vmul.f32 %v4737, %v6325
        %v6327 = vmul.f32 %v4739, %v6325
        %v6328 = vrcp.pop %v5319
        %v6329 = vmul.f32 %v5319, %v6328
        %v6330 = vsub.f32 1.0, %v6329
        %v6331 = vmul.f32 %v6328, %v6330
        %v6332 = vadd.f32 %v6328, %v6331
        %vm6333 = vweird.f32 %v5319
        %vm6334 = vweird.f32 %v6328
        %vm6335 = vmor %vm6333, %vm6334
        %v6336 = vsel %vm6335, %v6328, %v6332
        %v6337 = vand.u32 2147483647, %v5319
        %vm6338 = vcmp.eq.f32.partialorder %v6337, 8.507059e+37
        %v6339 = vand.u32 %v5319, 2147483648
        %v6340 = vor.u32 1.1754944e-38, %v6339
        %v6341 = vsel %vm6338, %v6340, %v6336
        %v6342 = vmul.f32 %v4741, %v6341
        %v6343 = vmul.f32 %v4743, %v6341
        %6345 = vset.pattern.permute.xlu0 0
        %6346 = vperm.xlu0 %6345, %v5334
        %v6347 = vpop.permute.xlu0 %6346
        %6350 = vset.pattern.permute.xlu0 0
        %6351 = vperm.xlu0 %6350, %v5335
        %v6352 = vpop.permute.xlu0 %6351
        %6355 = vset.pattern.permute.xlu0 0
        %6356 = vperm.xlu0 %6355, %v5350
        %v6357 = vpop.permute.xlu0 %6356
        %6360 = vset.pattern.permute.xlu0 0
        %6361 = vperm.xlu0 %6360, %v5351
        %v6362 = vpop.permute.xlu0 %6361
        %6365 = vset.pattern.permute.xlu0 0
        %6366 = vperm.xlu0 %6365, %v5366
        %v6367 = vpop.permute.xlu0 %6366
        %6370 = vset.pattern.permute.xlu0 0
        %6371 = vperm.xlu0 %6370, %v5367
        %v6372 = vpop.permute.xlu0 %6371
        %6375 = vset.pattern.permute.xlu0 0
        %6376 = vperm.xlu0 %6375, %v5382
        %v6377 = vpop.permute.xlu0 %6376
        %6380 = vset.pattern.permute.xlu0 0
        %6381 = vperm.xlu0 %6380, %v5383
        %v6382 = vpop.permute.xlu0 %6381
        %6385 = vset.pattern.permute.xlu0 0
        %6386 = vperm.xlu0 %6385, %v5398
        %v6387 = vpop.permute.xlu0 %6386
        %6390 = vset.pattern.permute.xlu0 0
        %6391 = vperm.xlu0 %6390, %v5399
        %v6392 = vpop.permute.xlu0 %6391
        %6395 = vset.pattern.permute.xlu0 0
        %6396 = vperm.xlu0 %6395, %v5414
        %v6397 = vpop.permute.xlu0 %6396
        %6400 = vset.pattern.permute.xlu0 0
        %6401 = vperm.xlu0 %6400, %v5415
        %v6402 = vpop.permute.xlu0 %6401
        %6405 = vset.pattern.permute.xlu0 0
        %6406 = vperm.xlu0 %6405, %v5430
        %v6407 = vpop.permute.xlu0 %6406
        %6410 = vset.pattern.permute.xlu0 0
        %6411 = vperm.xlu0 %6410, %v5431
        %v6412 = vpop.permute.xlu0 %6411
        %6415 = vset.pattern.permute.xlu0 0
        %6416 = vperm.xlu0 %6415, %v5446
        %v6417 = vpop.permute.xlu0 %6416
        %6420 = vset.pattern.permute.xlu0 0
        %6421 = vperm.xlu0 %6420, %v5447
        %v6422 = vpop.permute.xlu0 %6421
        %6425 = vset.pattern.permute.xlu0 0
        %6426 = vperm.xlu0 %6425, %v5462
        %v6427 = vpop.permute.xlu0 %6426
        %6430 = vset.pattern.permute.xlu0 0
        %6431 = vperm.xlu0 %6430, %v5463
        %v6432 = vpop.permute.xlu0 %6431
        %6435 = vset.pattern.permute.xlu0 0
        %6436 = vperm.xlu0 %6435, %v5478
        %v6437 = vpop.permute.xlu0 %6436
        %6440 = vset.pattern.permute.xlu0 0
        %6441 = vperm.xlu0 %6440, %v5479
        %v6442 = vpop.permute.xlu0 %6441
        %6445 = vset.pattern.permute.xlu0 0
        %6446 = vperm.xlu0 %6445, %v5494
        %v6447 = vpop.permute.xlu0 %6446
        %6450 = vset.pattern.permute.xlu0 0
        %6451 = vperm.xlu0 %6450, %v5495
        %v6452 = vpop.permute.xlu0 %6451
        %6455 = vset.pattern.permute.xlu0 0
        %6456 = vperm.xlu0 %6455, %v5510
        %v6457 = vpop.permute.xlu0 %6456
        %6460 = vset.pattern.permute.xlu0 0
        %6461 = vperm.xlu0 %6460, %v5511
        %v6462 = vpop.permute.xlu0 %6461
        %6465 = vset.pattern.permute.xlu0 0
        %6466 = vperm.xlu0 %6465, %v5526
        %v6467 = vpop.permute.xlu0 %6466
        %6470 = vset.pattern.permute.xlu0 0
        %6471 = vperm.xlu0 %6470, %v5527
        %v6472 = vpop.permute.xlu0 %6471
        %6475 = vset.pattern.permute.xlu0 0
        %6476 = vperm.xlu0 %6475, %v5542
        %v6477 = vpop.permute.xlu0 %6476
        %6480 = vset.pattern.permute.xlu0 0
        %6481 = vperm.xlu0 %6480, %v5543
        %v6482 = vpop.permute.xlu0 %6481
        %6485 = vset.pattern.permute.xlu0 0
        %6486 = vperm.xlu0 %6485, %v5558
        %v6487 = vpop.permute.xlu0 %6486
        %6490 = vset.pattern.permute.xlu0 0
        %6491 = vperm.xlu0 %6490, %v5559
        %v6492 = vpop.permute.xlu0 %6491
        %6495 = vset.pattern.permute.xlu0 0
        %6496 = vperm.xlu0 %6495, %v5574
        %v6497 = vpop.permute.xlu0 %6496
        %6500 = vset.pattern.permute.xlu0 0
        %6501 = vperm.xlu0 %6500, %v5575
        %v6502 = vpop.permute.xlu0 %6501
        %6505 = vset.pattern.permute.xlu0 0
        %6506 = vperm.xlu0 %6505, %v5590
        %v6507 = vpop.permute.xlu0 %6506
        %6510 = vset.pattern.permute.xlu0 0
        %6511 = vperm.xlu0 %6510, %v5591
        %v6512 = vpop.permute.xlu0 %6511
        %6515 = vset.pattern.permute.xlu0 0
        %6516 = vperm.xlu0 %6515, %v5606
        %v6517 = vpop.permute.xlu0 %6516
        %6520 = vset.pattern.permute.xlu0 0
        %6521 = vperm.xlu0 %6520, %v5607
        %v6522 = vpop.permute.xlu0 %6521
        %6525 = vset.pattern.permute.xlu0 0
        %6526 = vperm.xlu0 %6525, %v5622
        %v6527 = vpop.permute.xlu0 %6526
        %6530 = vset.pattern.permute.xlu0 0
        %6531 = vperm.xlu0 %6530, %v5623
        %v6532 = vpop.permute.xlu0 %6531
        %6535 = vset.pattern.permute.xlu0 0
        %6536 = vperm.xlu0 %6535, %v5638
        %v6537 = vpop.permute.xlu0 %6536
        %6540 = vset.pattern.permute.xlu0 0
        %6541 = vperm.xlu0 %6540, %v5639
        %v6542 = vpop.permute.xlu0 %6541
        %6545 = vset.pattern.permute.xlu0 0
        %6546 = vperm.xlu0 %6545, %v5654
        %v6547 = vpop.permute.xlu0 %6546
        %6550 = vset.pattern.permute.xlu0 0
        %6551 = vperm.xlu0 %6550, %v5655
        %v6552 = vpop.permute.xlu0 %6551
        %6555 = vset.pattern.permute.xlu0 0
        %6556 = vperm.xlu0 %6555, %v5670
        %v6557 = vpop.permute.xlu0 %6556
        %6560 = vset.pattern.permute.xlu0 0
        %6561 = vperm.xlu0 %6560, %v5671
        %v6562 = vpop.permute.xlu0 %6561
        %6565 = vset.pattern.permute.xlu0 0
        %6566 = vperm.xlu0 %6565, %v5686
        %v6567 = vpop.permute.xlu0 %6566
        %6570 = vset.pattern.permute.xlu0 0
        %6571 = vperm.xlu0 %6570, %v5687
        %v6572 = vpop.permute.xlu0 %6571
        %6575 = vset.pattern.permute.xlu0 0
        %6576 = vperm.xlu0 %6575, %v5702
        %v6577 = vpop.permute.xlu0 %6576
        %6580 = vset.pattern.permute.xlu0 0
        %6581 = vperm.xlu0 %6580, %v5703
        %v6582 = vpop.permute.xlu0 %6581
        %6585 = vset.pattern.permute.xlu0 0
        %6586 = vperm.xlu0 %6585, %v5718
        %v6587 = vpop.permute.xlu0 %6586
        %6590 = vset.pattern.permute.xlu0 0
        %6591 = vperm.xlu0 %6590, %v5719
        %v6592 = vpop.permute.xlu0 %6591
        %6595 = vset.pattern.permute.xlu0 0
        %6596 = vperm.xlu0 %6595, %v5734
        %v6597 = vpop.permute.xlu0 %6596
        %6600 = vset.pattern.permute.xlu0 0
        %6601 = vperm.xlu0 %6600, %v5735
        %v6602 = vpop.permute.xlu0 %6601
        %6605 = vset.pattern.permute.xlu0 0
        %6606 = vperm.xlu0 %6605, %v5750
        %v6607 = vpop.permute.xlu0 %6606
        %6610 = vset.pattern.permute.xlu0 0
        %6611 = vperm.xlu0 %6610, %v5751
        %v6612 = vpop.permute.xlu0 %6611
        %6615 = vset.pattern.permute.xlu0 0
        %6616 = vperm.xlu0 %6615, %v5766
        %v6617 = vpop.permute.xlu0 %6616
        %6620 = vset.pattern.permute.xlu0 0
        %6621 = vperm.xlu0 %6620, %v5767
        %v6622 = vpop.permute.xlu0 %6621
        %6625 = vset.pattern.permute.xlu0 0
        %6626 = vperm.xlu0 %6625, %v5782
        %v6627 = vpop.permute.xlu0 %6626
        %6630 = vset.pattern.permute.xlu0 0
        %6631 = vperm.xlu0 %6630, %v5783
        %v6632 = vpop.permute.xlu0 %6631
        %6635 = vset.pattern.permute.xlu0 0
        %6636 = vperm.xlu0 %6635, %v5798
        %v6637 = vpop.permute.xlu0 %6636
        %6640 = vset.pattern.permute.xlu0 0
        %6641 = vperm.xlu0 %6640, %v5799
        %v6642 = vpop.permute.xlu0 %6641
        %6645 = vset.pattern.permute.xlu0 0
        %6646 = vperm.xlu0 %6645, %v5814
        %v6647 = vpop.permute.xlu0 %6646
        %6650 = vset.pattern.permute.xlu0 0
        %6651 = vperm.xlu0 %6650, %v5815
        %v6652 = vpop.permute.xlu0 %6651
        %6655 = vset.pattern.permute.xlu0 0
        %6656 = vperm.xlu0 %6655, %v5830
        %v6657 = vpop.permute.xlu0 %6656
        %6660 = vset.pattern.permute.xlu0 0
        %6661 = vperm.xlu0 %6660, %v5831
        %v6662 = vpop.permute.xlu0 %6661
        %6665 = vset.pattern.permute.xlu0 0
        %6666 = vperm.xlu0 %6665, %v5846
        %v6667 = vpop.permute.xlu0 %6666
        %6670 = vset.pattern.permute.xlu0 0
        %6671 = vperm.xlu0 %6670, %v5847
        %v6672 = vpop.permute.xlu0 %6671
        %6675 = vset.pattern.permute.xlu0 0
        %6676 = vperm.xlu0 %6675, %v5862
        %v6677 = vpop.permute.xlu0 %6676
        %6680 = vset.pattern.permute.xlu0 0
        %6681 = vperm.xlu0 %6680, %v5863
        %v6682 = vpop.permute.xlu0 %6681
        %6685 = vset.pattern.permute.xlu0 0
        %6686 = vperm.xlu0 %6685, %v5878
        %v6687 = vpop.permute.xlu0 %6686
        %6690 = vset.pattern.permute.xlu0 0
        %6691 = vperm.xlu0 %6690, %v5879
        %v6692 = vpop.permute.xlu0 %6691
        %6695 = vset.pattern.permute.xlu0 0
        %6696 = vperm.xlu0 %6695, %v5894
        %v6697 = vpop.permute.xlu0 %6696
        %6700 = vset.pattern.permute.xlu0 0
        %6701 = vperm.xlu0 %6700, %v5895
        %v6702 = vpop.permute.xlu0 %6701
        %6705 = vset.pattern.permute.xlu0 0
        %6706 = vperm.xlu0 %6705, %v5910
        %v6707 = vpop.permute.xlu0 %6706
        %6710 = vset.pattern.permute.xlu0 0
        %6711 = vperm.xlu0 %6710, %v5911
        %v6712 = vpop.permute.xlu0 %6711
        %6715 = vset.pattern.permute.xlu0 0
        %6716 = vperm.xlu0 %6715, %v5926
        %v6717 = vpop.permute.xlu0 %6716
        %6720 = vset.pattern.permute.xlu0 0
        %6721 = vperm.xlu0 %6720, %v5927
        %v6722 = vpop.permute.xlu0 %6721
        %6725 = vset.pattern.permute.xlu0 0
        %6726 = vperm.xlu0 %6725, %v5942
        %v6727 = vpop.permute.xlu0 %6726
        %6730 = vset.pattern.permute.xlu0 0
        %6731 = vperm.xlu0 %6730, %v5943
        %v6732 = vpop.permute.xlu0 %6731
        %6735 = vset.pattern.permute.xlu0 0
        %6736 = vperm.xlu0 %6735, %v5958
        %v6737 = vpop.permute.xlu0 %6736
        %6740 = vset.pattern.permute.xlu0 0
        %6741 = vperm.xlu0 %6740, %v5959
        %v6742 = vpop.permute.xlu0 %6741
        %6745 = vset.pattern.permute.xlu0 0
        %6746 = vperm.xlu0 %6745, %v5974
        %v6747 = vpop.permute.xlu0 %6746
        %6750 = vset.pattern.permute.xlu0 0
        %6751 = vperm.xlu0 %6750, %v5975
        %v6752 = vpop.permute.xlu0 %6751
        %6755 = vset.pattern.permute.xlu0 0
        %6756 = vperm.xlu0 %6755, %v5990
        %v6757 = vpop.permute.xlu0 %6756
        %6760 = vset.pattern.permute.xlu0 0
        %6761 = vperm.xlu0 %6760, %v5991
        %v6762 = vpop.permute.xlu0 %6761
        %6765 = vset.pattern.permute.xlu0 0
        %6766 = vperm.xlu0 %6765, %v6006
        %v6767 = vpop.permute.xlu0 %6766
        %6770 = vset.pattern.permute.xlu0 0
        %6771 = vperm.xlu0 %6770, %v6007
        %v6772 = vpop.permute.xlu0 %6771
        %6775 = vset.pattern.permute.xlu0 0
        %6776 = vperm.xlu0 %6775, %v6022
        %v6777 = vpop.permute.xlu0 %6776
        %6780 = vset.pattern.permute.xlu0 0
        %6781 = vperm.xlu0 %6780, %v6023
        %v6782 = vpop.permute.xlu0 %6781
        %6785 = vset.pattern.permute.xlu0 0
        %6786 = vperm.xlu0 %6785, %v6038
        %v6787 = vpop.permute.xlu0 %6786
        %6790 = vset.pattern.permute.xlu0 0
        %6791 = vperm.xlu0 %6790, %v6039
        %v6792 = vpop.permute.xlu0 %6791
        %6795 = vset.pattern.permute.xlu0 0
        %6796 = vperm.xlu0 %6795, %v6054
        %v6797 = vpop.permute.xlu0 %6796
        %6800 = vset.pattern.permute.xlu0 0
        %6801 = vperm.xlu0 %6800, %v6055
        %v6802 = vpop.permute.xlu0 %6801
        %6805 = vset.pattern.permute.xlu0 0
        %6806 = vperm.xlu0 %6805, %v6070
        %v6807 = vpop.permute.xlu0 %6806
        %6810 = vset.pattern.permute.xlu0 0
        %6811 = vperm.xlu0 %6810, %v6071
        %v6812 = vpop.permute.xlu0 %6811
        %6815 = vset.pattern.permute.xlu0 0
        %6816 = vperm.xlu0 %6815, %v6086
        %v6817 = vpop.permute.xlu0 %6816
        %6820 = vset.pattern.permute.xlu0 0
        %6821 = vperm.xlu0 %6820, %v6087
        %v6822 = vpop.permute.xlu0 %6821
        %6825 = vset.pattern.permute.xlu0 0
        %6826 = vperm.xlu0 %6825, %v6102
        %v6827 = vpop.permute.xlu0 %6826
        %6830 = vset.pattern.permute.xlu0 0
        %6831 = vperm.xlu0 %6830, %v6103
        %v6832 = vpop.permute.xlu0 %6831
        %6835 = vset.pattern.permute.xlu0 0
        %6836 = vperm.xlu0 %6835, %v6118
        %v6837 = vpop.permute.xlu0 %6836
        %6840 = vset.pattern.permute.xlu0 0
        %6841 = vperm.xlu0 %6840, %v6119
        %v6842 = vpop.permute.xlu0 %6841
        %6845 = vset.pattern.permute.xlu0 0
        %6846 = vperm.xlu0 %6845, %v6134
        %v6847 = vpop.permute.xlu0 %6846
        %6850 = vset.pattern.permute.xlu0 0
        %6851 = vperm.xlu0 %6850, %v6135
        %v6852 = vpop.permute.xlu0 %6851
        %6855 = vset.pattern.permute.xlu0 0
        %6856 = vperm.xlu0 %6855, %v6150
        %v6857 = vpop.permute.xlu0 %6856
        %6860 = vset.pattern.permute.xlu0 0
        %6861 = vperm.xlu0 %6860, %v6151
        %v6862 = vpop.permute.xlu0 %6861
        %6865 = vset.pattern.permute.xlu0 0
        %6866 = vperm.xlu0 %6865, %v6166
        %v6867 = vpop.permute.xlu0 %6866
        %6870 = vset.pattern.permute.xlu0 0
        %6871 = vperm.xlu0 %6870, %v6167
        %v6872 = vpop.permute.xlu0 %6871
        %6875 = vset.pattern.permute.xlu0 0
        %6876 = vperm.xlu0 %6875, %v6182
        %v6877 = vpop.permute.xlu0 %6876
        %6880 = vset.pattern.permute.xlu0 0
        %6881 = vperm.xlu0 %6880, %v6183
        %v6882 = vpop.permute.xlu0 %6881
        %6885 = vset.pattern.permute.xlu0 0
        %6886 = vperm.xlu0 %6885, %v6198
        %v6887 = vpop.permute.xlu0 %6886
        %6890 = vset.pattern.permute.xlu0 0
        %6891 = vperm.xlu0 %6890, %v6199
        %v6892 = vpop.permute.xlu0 %6891
        %6895 = vset.pattern.permute.xlu0 0
        %6896 = vperm.xlu0 %6895, %v6214
        %v6897 = vpop.permute.xlu0 %6896
        %6900 = vset.pattern.permute.xlu0 0
        %6901 = vperm.xlu0 %6900, %v6215
        %v6902 = vpop.permute.xlu0 %6901
        %6905 = vset.pattern.permute.xlu0 0
        %6906 = vperm.xlu0 %6905, %v6230
        %v6907 = vpop.permute.xlu0 %6906
        %6910 = vset.pattern.permute.xlu0 0
        %6911 = vperm.xlu0 %6910, %v6231
        %v6912 = vpop.permute.xlu0 %6911
        %6915 = vset.pattern.permute.xlu0 0
        %6916 = vperm.xlu0 %6915, %v6246
        %v6917 = vpop.permute.xlu0 %6916
        %6920 = vset.pattern.permute.xlu0 0
        %6921 = vperm.xlu0 %6920, %v6247
        %v6922 = vpop.permute.xlu0 %6921
        %6925 = vset.pattern.permute.xlu0 0
        %6926 = vperm.xlu0 %6925, %v6262
        %v6927 = vpop.permute.xlu0 %6926
        %6930 = vset.pattern.permute.xlu0 0
        %6931 = vperm.xlu0 %6930, %v6263
        %v6932 = vpop.permute.xlu0 %6931
        %6935 = vset.pattern.permute.xlu0 0
        %6936 = vperm.xlu0 %6935, %v6278
        %v6937 = vpop.permute.xlu0 %6936
        %6940 = vset.pattern.permute.xlu0 0
        %6941 = vperm.xlu0 %6940, %v6279
        %v6942 = vpop.permute.xlu0 %6941
        %6945 = vset.pattern.permute.xlu0 0
        %6946 = vperm.xlu0 %6945, %v6294
        %v6947 = vpop.permute.xlu0 %6946
        %6950 = vset.pattern.permute.xlu0 0
        %6951 = vperm.xlu0 %6950, %v6295
        %v6952 = vpop.permute.xlu0 %6951
        %6955 = vset.pattern.permute.xlu0 0
        %6956 = vperm.xlu0 %6955, %v6310
        %v6957 = vpop.permute.xlu0 %6956
        %6960 = vset.pattern.permute.xlu0 0
        %6961 = vperm.xlu0 %6960, %v6311
        %v6962 = vpop.permute.xlu0 %6961
        %6965 = vset.pattern.permute.xlu0 0
        %6966 = vperm.xlu0 %6965, %v6326
        %v6967 = vpop.permute.xlu0 %6966
        %6970 = vset.pattern.permute.xlu0 0
        %6971 = vperm.xlu0 %6970, %v6327
        %v6972 = vpop.permute.xlu0 %6971
        %6975 = vset.pattern.permute.xlu0 0
        %6976 = vperm.xlu0 %6975, %v6342
        %v6977 = vpop.permute.xlu0 %6976
        %6980 = vset.pattern.permute.xlu0 0
        %6981 = vperm.xlu0 %6980, %v6343
        %v6982 = vpop.permute.xlu0 %6981
        %v6984 = vmul.f32 %v421, %v6347
        %v6985 = vmul.f32 %v422, %v6352
        %v6986 = vmul.f32 %v423, %v6357
        %v6987 = vmul.f32 %v424, %v6362
        %v6988 = vmul.f32 %v425, %v6367
        %v6989 = vmul.f32 %v426, %v6372
        %v6990 = vmul.f32 %v427, %v6377
        %v6991 = vmul.f32 %v428, %v6382
        %v6992 = vmul.f32 %v429, %v6387
        %v6993 = vmul.f32 %v430, %v6392
        %v6994 = vmul.f32 %v431, %v6397
        %v6995 = vmul.f32 %v432, %v6402
        %v6996 = vmul.f32 %v433, %v6407
        %v6997 = vmul.f32 %v434, %v6412
        %v6998 = vmul.f32 %v435, %v6417
        %v6999 = vmul.f32 %v436, %v6422
        %v7000 = vmul.f32 %v437, %v6427
        %v7001 = vmul.f32 %v438, %v6432
        %v7002 = vmul.f32 %v439, %v6437
        %v7003 = vmul.f32 %v440, %v6442
        %v7004 = vmul.f32 %v441, %v6447
        %v7005 = vmul.f32 %v442, %v6452
        %v7006 = vmul.f32 %v443, %v6457
        %v7007 = vmul.f32 %v444, %v6462
        %v7008 = vmul.f32 %v445, %v6467
        %v7009 = vmul.f32 %v446, %v6472
        %v7010 = vmul.f32 %v447, %v6477
        %v7011 = vmul.f32 %v448, %v6482
        %v7012 = vmul.f32 %v449, %v6487
        %v7013 = vmul.f32 %v450, %v6492
        %v7014 = vmul.f32 %v451, %v6497
        %v7015 = vmul.f32 %v452, %v6502
        %v7016 = vmul.f32 %v453, %v6507
        %v7017 = vmul.f32 %v454, %v6512
        %v7018 = vmul.f32 %v455, %v6517
        %v7019 = vmul.f32 %v456, %v6522
        %v7020 = vmul.f32 %v457, %v6527
        %v7021 = vmul.f32 %v458, %v6532
        %v7022 = vmul.f32 %v459, %v6537
        %v7023 = vmul.f32 %v460, %v6542
        %v7024 = vmul.f32 %v461, %v6547
        %v7025 = vmul.f32 %v462, %v6552
        %v7026 = vmul.f32 %v463, %v6557
        %v7027 = vmul.f32 %v464, %v6562
        %v7028 = vmul.f32 %v465, %v6567
        %v7029 = vmul.f32 %v466, %v6572
        %v7030 = vmul.f32 %v467, %v6577
        %v7031 = vmul.f32 %v468, %v6582
        %v7032 = vmul.f32 %v469, %v6587
        %v7033 = vmul.f32 %v470, %v6592
        %v7034 = vmul.f32 %v471, %v6597
        %v7035 = vmul.f32 %v472, %v6602
        %v7036 = vmul.f32 %v473, %v6607
        %v7037 = vmul.f32 %v474, %v6612
        %v7038 = vmul.f32 %v475, %v6617
        %v7039 = vmul.f32 %v476, %v6622
        %v7040 = vmul.f32 %v477, %v6627
        %v7041 = vmul.f32 %v478, %v6632
        %v7042 = vmul.f32 %v479, %v6637
        %v7043 = vmul.f32 %v480, %v6642
        %v7044 = vmul.f32 %v481, %v6647
        %v7045 = vmul.f32 %v482, %v6652
        %v7046 = vmul.f32 %v483, %v6657
        %v7047 = vmul.f32 %v484, %v6662
        %v7048 = vmul.f32 %v485, %v6667
        %v7049 = vmul.f32 %v486, %v6672
        %v7050 = vmul.f32 %v487, %v6677
        %v7051 = vmul.f32 %v488, %v6682
        %v7052 = vmul.f32 %v489, %v6687
        %v7053 = vmul.f32 %v490, %v6692
        %v7054 = vmul.f32 %v491, %v6697
        %v7055 = vmul.f32 %v492, %v6702
        %v7056 = vmul.f32 %v493, %v6707
        %v7057 = vmul.f32 %v494, %v6712
        %v7058 = vmul.f32 %v495, %v6717
        %v7059 = vmul.f32 %v496, %v6722
        %v7060 = vmul.f32 %v497, %v6727
        %v7061 = vmul.f32 %v498, %v6732
        %v7062 = vmul.f32 %v499, %v6737
        %v7063 = vmul.f32 %v500, %v6742
        %v7064 = vmul.f32 %v501, %v6747
        %v7065 = vmul.f32 %v502, %v6752
        %v7066 = vmul.f32 %v503, %v6757
        %v7067 = vmul.f32 %v504, %v6762
        %v7068 = vmul.f32 %v505, %v6767
        %v7069 = vmul.f32 %v506, %v6772
        %v7070 = vmul.f32 %v507, %v6777
        %v7071 = vmul.f32 %v508, %v6782
        %v7072 = vmul.f32 %v509, %v6787
        %v7073 = vmul.f32 %v510, %v6792
        %v7074 = vmul.f32 %v511, %v6797
        %v7075 = vmul.f32 %v512, %v6802
        %v7076 = vmul.f32 %v513, %v6807
        %v7077 = vmul.f32 %v514, %v6812
        %v7078 = vmul.f32 %v515, %v6817
        %v7079 = vmul.f32 %v516, %v6822
        %v7080 = vmul.f32 %v517, %v6827
        %v7081 = vmul.f32 %v518, %v6832
        %v7082 = vmul.f32 %v519, %v6837
        %v7083 = vmul.f32 %v520, %v6842
        %v7084 = vmul.f32 %v521, %v6847
        %v7085 = vmul.f32 %v522, %v6852
        %v7086 = vmul.f32 %v523, %v6857
        %v7087 = vmul.f32 %v524, %v6862
        %v7088 = vmul.f32 %v525, %v6867
        %v7089 = vmul.f32 %v526, %v6872
        %v7090 = vmul.f32 %v527, %v6877
        %v7091 = vmul.f32 %v528, %v6882
        %v7092 = vmul.f32 %v529, %v6887
        %v7093 = vmul.f32 %v530, %v6892
        %v7094 = vmul.f32 %v531, %v6897
        %v7095 = vmul.f32 %v532, %v6902
        %v7096 = vmul.f32 %v533, %v6907
        %v7097 = vmul.f32 %v534, %v6912
        %v7098 = vmul.f32 %v535, %v6917
        %v7099 = vmul.f32 %v536, %v6922
        %v7100 = vmul.f32 %v537, %v6927
        %v7101 = vmul.f32 %v538, %v6932
        %v7102 = vmul.f32 %v539, %v6937
        %v7103 = vmul.f32 %v540, %v6942
        %v7104 = vmul.f32 %v541, %v6947
        %v7105 = vmul.f32 %v542, %v6952
        %v7106 = vmul.f32 %v543, %v6957
        %v7107 = vmul.f32 %v544, %v6962
        %v7108 = vmul.f32 %v545, %v6967
        %v7109 = vmul.f32 %v546, %v6972
        %v7110 = vmul.f32 %v547, %v6977
        %v7111 = vmul.f32 %v548, %v6982
        %v7112 = vsel %vm687, %v6984, 0.0
        %v7113 = vsel %vm687, %v6985, 0.0
        %v7114 = vadd.f32 %v7112, %v7113
        %v7115 = vrot.slane %v7114, 4
        %v7116 = vadd.f32 %v7114, %v7115
        %v7117 = vrot.slane %v7116, 2
        %v7118 = vadd.f32 %v7116, %v7117
        %v7119 = vrot.slane %v7118, 1
        %v7120 = vadd.f32 %v7118, %v7119
        %v7121 = vsel %vm687, %v6986, 0.0
        %v7122 = vsel %vm687, %v6987, 0.0
        %v7123 = vadd.f32 %v7121, %v7122
        %v7124 = vrot.slane %v7123, 4
        %v7125 = vadd.f32 %v7123, %v7124
        %v7126 = vrot.slane %v7125, 2
        %v7127 = vadd.f32 %v7125, %v7126
        %v7128 = vrot.slane %v7127, 1
        %v7129 = vadd.f32 %v7127, %v7128
        %v7130 = vsel %vm687, %v6988, 0.0
        %v7131 = vsel %vm687, %v6989, 0.0
        %v7132 = vadd.f32 %v7130, %v7131
        %v7133 = vrot.slane %v7132, 4
        %v7134 = vadd.f32 %v7132, %v7133
        %v7135 = vrot.slane %v7134, 2
        %v7136 = vadd.f32 %v7134, %v7135
        %v7137 = vrot.slane %v7136, 1
        %v7138 = vadd.f32 %v7136, %v7137
        %v7139 = vsel %vm687, %v6990, 0.0
        %v7140 = vsel %vm687, %v6991, 0.0
        %v7141 = vadd.f32 %v7139, %v7140
        %v7142 = vrot.slane %v7141, 4
        %v7143 = vadd.f32 %v7141, %v7142
        %v7144 = vrot.slane %v7143, 2
        %v7145 = vadd.f32 %v7143, %v7144
        %v7146 = vrot.slane %v7145, 1
        %v7147 = vadd.f32 %v7145, %v7146
        %v7148 = vsel %vm687, %v6992, 0.0
        %v7149 = vsel %vm687, %v6993, 0.0
        %v7150 = vadd.f32 %v7148, %v7149
        %v7151 = vrot.slane %v7150, 4
        %v7152 = vadd.f32 %v7150, %v7151
        %v7153 = vrot.slane %v7152, 2
        %v7154 = vadd.f32 %v7152, %v7153
        %v7155 = vrot.slane %v7154, 1
        %v7156 = vadd.f32 %v7154, %v7155
        %v7157 = vsel %vm687, %v6994, 0.0
        %v7158 = vsel %vm687, %v6995, 0.0
        %v7159 = vadd.f32 %v7157, %v7158
        %v7160 = vrot.slane %v7159, 4
        %v7161 = vadd.f32 %v7159, %v7160
        %v7162 = vrot.slane %v7161, 2
        %v7163 = vadd.f32 %v7161, %v7162
        %v7164 = vrot.slane %v7163, 1
        %v7165 = vadd.f32 %v7163, %v7164
        %v7166 = vsel %vm687, %v6996, 0.0
        %v7167 = vsel %vm687, %v6997, 0.0
        %v7168 = vadd.f32 %v7166, %v7167
        %v7169 = vrot.slane %v7168, 4
        %v7170 = vadd.f32 %v7168, %v7169
        %v7171 = vrot.slane %v7170, 2
        %v7172 = vadd.f32 %v7170, %v7171
        %v7173 = vrot.slane %v7172, 1
        %v7174 = vadd.f32 %v7172, %v7173
        %v7175 = vsel %vm687, %v6998, 0.0
        %v7176 = vsel %vm687, %v6999, 0.0
        %v7177 = vadd.f32 %v7175, %v7176
        %v7178 = vrot.slane %v7177, 4
        %v7179 = vadd.f32 %v7177, %v7178
        %v7180 = vrot.slane %v7179, 2
        %v7181 = vadd.f32 %v7179, %v7180
        %v7182 = vrot.slane %v7181, 1
        %v7183 = vadd.f32 %v7181, %v7182
        %v7184 = vsel %vm687, %v7000, 0.0
        %v7185 = vsel %vm687, %v7001, 0.0
        %v7186 = vadd.f32 %v7184, %v7185
        %v7187 = vrot.slane %v7186, 4
        %v7188 = vadd.f32 %v7186, %v7187
        %v7189 = vrot.slane %v7188, 2
        %v7190 = vadd.f32 %v7188, %v7189
        %v7191 = vrot.slane %v7190, 1
        %v7192 = vadd.f32 %v7190, %v7191
        %v7193 = vsel %vm687, %v7002, 0.0
        %v7194 = vsel %vm687, %v7003, 0.0
        %v7195 = vadd.f32 %v7193, %v7194
        %v7196 = vrot.slane %v7195, 4
        %v7197 = vadd.f32 %v7195, %v7196
        %v7198 = vrot.slane %v7197, 2
        %v7199 = vadd.f32 %v7197, %v7198
        %v7200 = vrot.slane %v7199, 1
        %v7201 = vadd.f32 %v7199, %v7200
        %v7202 = vsel %vm687, %v7004, 0.0
        %v7203 = vsel %vm687, %v7005, 0.0
        %v7204 = vadd.f32 %v7202, %v7203
        %v7205 = vrot.slane %v7204, 4
        %v7206 = vadd.f32 %v7204, %v7205
        %v7207 = vrot.slane %v7206, 2
        %v7208 = vadd.f32 %v7206, %v7207
        %v7209 = vrot.slane %v7208, 1
        %v7210 = vadd.f32 %v7208, %v7209
        %v7211 = vsel %vm687, %v7006, 0.0
        %v7212 = vsel %vm687, %v7007, 0.0
        %v7213 = vadd.f32 %v7211, %v7212
        %v7214 = vrot.slane %v7213, 4
        %v7215 = vadd.f32 %v7213, %v7214
        %v7216 = vrot.slane %v7215, 2
        %v7217 = vadd.f32 %v7215, %v7216
        %v7218 = vrot.slane %v7217, 1
        %v7219 = vadd.f32 %v7217, %v7218
        %v7220 = vsel %vm687, %v7008, 0.0
        %v7221 = vsel %vm687, %v7009, 0.0
        %v7222 = vadd.f32 %v7220, %v7221
        %v7223 = vrot.slane %v7222, 4
        %v7224 = vadd.f32 %v7222, %v7223
        %v7225 = vrot.slane %v7224, 2
        %v7226 = vadd.f32 %v7224, %v7225
        %v7227 = vrot.slane %v7226, 1
        %v7228 = vadd.f32 %v7226, %v7227
        %v7229 = vsel %vm687, %v7010, 0.0
        %v7230 = vsel %vm687, %v7011, 0.0
        %v7231 = vadd.f32 %v7229, %v7230
        %v7232 = vrot.slane %v7231, 4
        %v7233 = vadd.f32 %v7231, %v7232
        %v7234 = vrot.slane %v7233, 2
        %v7235 = vadd.f32 %v7233, %v7234
        %v7236 = vrot.slane %v7235, 1
        %v7237 = vadd.f32 %v7235, %v7236
        %v7238 = vsel %vm687, %v7012, 0.0
        %v7239 = vsel %vm687, %v7013, 0.0
        %v7240 = vadd.f32 %v7238, %v7239
        %v7241 = vrot.slane %v7240, 4
        %v7242 = vadd.f32 %v7240, %v7241
        %v7243 = vrot.slane %v7242, 2
        %v7244 = vadd.f32 %v7242, %v7243
        %v7245 = vrot.slane %v7244, 1
        %v7246 = vadd.f32 %v7244, %v7245
        %v7247 = vsel %vm687, %v7014, 0.0
        %v7248 = vsel %vm687, %v7015, 0.0
        %v7249 = vadd.f32 %v7247, %v7248
        %v7250 = vrot.slane %v7249, 4
        %v7251 = vadd.f32 %v7249, %v7250
        %v7252 = vrot.slane %v7251, 2
        %v7253 = vadd.f32 %v7251, %v7252
        %v7254 = vrot.slane %v7253, 1
        %v7255 = vadd.f32 %v7253, %v7254
        %v7256 = vsel %vm687, %v7016, 0.0
        %v7257 = vsel %vm687, %v7017, 0.0
        %v7258 = vadd.f32 %v7256, %v7257
        %v7259 = vrot.slane %v7258, 4
        %v7260 = vadd.f32 %v7258, %v7259
        %v7261 = vrot.slane %v7260, 2
        %v7262 = vadd.f32 %v7260, %v7261
        %v7263 = vrot.slane %v7262, 1
        %v7264 = vadd.f32 %v7262, %v7263
        %v7265 = vsel %vm687, %v7018, 0.0
        %v7266 = vsel %vm687, %v7019, 0.0
        %v7267 = vadd.f32 %v7265, %v7266
        %v7268 = vrot.slane %v7267, 4
        %v7269 = vadd.f32 %v7267, %v7268
        %v7270 = vrot.slane %v7269, 2
        %v7271 = vadd.f32 %v7269, %v7270
        %v7272 = vrot.slane %v7271, 1
        %v7273 = vadd.f32 %v7271, %v7272
        %v7274 = vsel %vm687, %v7020, 0.0
        %v7275 = vsel %vm687, %v7021, 0.0
        %v7276 = vadd.f32 %v7274, %v7275
        %v7277 = vrot.slane %v7276, 4
        %v7278 = vadd.f32 %v7276, %v7277
        %v7279 = vrot.slane %v7278, 2
        %v7280 = vadd.f32 %v7278, %v7279
        %v7281 = vrot.slane %v7280, 1
        %v7282 = vadd.f32 %v7280, %v7281
        %v7283 = vsel %vm687, %v7022, 0.0
        %v7284 = vsel %vm687, %v7023, 0.0
        %v7285 = vadd.f32 %v7283, %v7284
        %v7286 = vrot.slane %v7285, 4
        %v7287 = vadd.f32 %v7285, %v7286
        %v7288 = vrot.slane %v7287, 2
        %v7289 = vadd.f32 %v7287, %v7288
        %v7290 = vrot.slane %v7289, 1
        %v7291 = vadd.f32 %v7289, %v7290
        %v7292 = vsel %vm687, %v7024, 0.0
        %v7293 = vsel %vm687, %v7025, 0.0
        %v7294 = vadd.f32 %v7292, %v7293
        %v7295 = vrot.slane %v7294, 4
        %v7296 = vadd.f32 %v7294, %v7295
        %v7297 = vrot.slane %v7296, 2
        %v7298 = vadd.f32 %v7296, %v7297
        %v7299 = vrot.slane %v7298, 1
        %v7300 = vadd.f32 %v7298, %v7299
        %v7301 = vsel %vm687, %v7026, 0.0
        %v7302 = vsel %vm687, %v7027, 0.0
        %v7303 = vadd.f32 %v7301, %v7302
        %v7304 = vrot.slane %v7303, 4
        %v7305 = vadd.f32 %v7303, %v7304
        %v7306 = vrot.slane %v7305, 2
        %v7307 = vadd.f32 %v7305, %v7306
        %v7308 = vrot.slane %v7307, 1
        %v7309 = vadd.f32 %v7307, %v7308
        %v7310 = vsel %vm687, %v7028, 0.0
        %v7311 = vsel %vm687, %v7029, 0.0
        %v7312 = vadd.f32 %v7310, %v7311
        %v7313 = vrot.slane %v7312, 4
        %v7314 = vadd.f32 %v7312, %v7313
        %v7315 = vrot.slane %v7314, 2
        %v7316 = vadd.f32 %v7314, %v7315
        %v7317 = vrot.slane %v7316, 1
        %v7318 = vadd.f32 %v7316, %v7317
        %v7319 = vsel %vm687, %v7030, 0.0
        %v7320 = vsel %vm687, %v7031, 0.0
        %v7321 = vadd.f32 %v7319, %v7320
        %v7322 = vrot.slane %v7321, 4
        %v7323 = vadd.f32 %v7321, %v7322
        %v7324 = vrot.slane %v7323, 2
        %v7325 = vadd.f32 %v7323, %v7324
        %v7326 = vrot.slane %v7325, 1
        %v7327 = vadd.f32 %v7325, %v7326
        %v7328 = vsel %vm687, %v7032, 0.0
        %v7329 = vsel %vm687, %v7033, 0.0
        %v7330 = vadd.f32 %v7328, %v7329
        %v7331 = vrot.slane %v7330, 4
        %v7332 = vadd.f32 %v7330, %v7331
        %v7333 = vrot.slane %v7332, 2
        %v7334 = vadd.f32 %v7332, %v7333
        %v7335 = vrot.slane %v7334, 1
        %v7336 = vadd.f32 %v7334, %v7335
        %v7337 = vsel %vm687, %v7034, 0.0
        %v7338 = vsel %vm687, %v7035, 0.0
        %v7339 = vadd.f32 %v7337, %v7338
        %v7340 = vrot.slane %v7339, 4
        %v7341 = vadd.f32 %v7339, %v7340
        %v7342 = vrot.slane %v7341, 2
        %v7343 = vadd.f32 %v7341, %v7342
        %v7344 = vrot.slane %v7343, 1
        %v7345 = vadd.f32 %v7343, %v7344
        %v7346 = vsel %vm687, %v7036, 0.0
        %v7347 = vsel %vm687, %v7037, 0.0
        %v7348 = vadd.f32 %v7346, %v7347
        %v7349 = vrot.slane %v7348, 4
        %v7350 = vadd.f32 %v7348, %v7349
        %v7351 = vrot.slane %v7350, 2
        %v7352 = vadd.f32 %v7350, %v7351
        %v7353 = vrot.slane %v7352, 1
        %v7354 = vadd.f32 %v7352, %v7353
        %v7355 = vsel %vm687, %v7038, 0.0
        %v7356 = vsel %vm687, %v7039, 0.0
        %v7357 = vadd.f32 %v7355, %v7356
        %v7358 = vrot.slane %v7357, 4
        %v7359 = vadd.f32 %v7357, %v7358
        %v7360 = vrot.slane %v7359, 2
        %v7361 = vadd.f32 %v7359, %v7360
        %v7362 = vrot.slane %v7361, 1
        %v7363 = vadd.f32 %v7361, %v7362
        %v7364 = vsel %vm687, %v7040, 0.0
        %v7365 = vsel %vm687, %v7041, 0.0
        %v7366 = vadd.f32 %v7364, %v7365
        %v7367 = vrot.slane %v7366, 4
        %v7368 = vadd.f32 %v7366, %v7367
        %v7369 = vrot.slane %v7368, 2
        %v7370 = vadd.f32 %v7368, %v7369
        %v7371 = vrot.slane %v7370, 1
        %v7372 = vadd.f32 %v7370, %v7371
        %v7373 = vsel %vm687, %v7042, 0.0
        %v7374 = vsel %vm687, %v7043, 0.0
        %v7375 = vadd.f32 %v7373, %v7374
        %v7376 = vrot.slane %v7375, 4
        %v7377 = vadd.f32 %v7375, %v7376
        %v7378 = vrot.slane %v7377, 2
        %v7379 = vadd.f32 %v7377, %v7378
        %v7380 = vrot.slane %v7379, 1
        %v7381 = vadd.f32 %v7379, %v7380
        %v7382 = vsel %vm687, %v7044, 0.0
        %v7383 = vsel %vm687, %v7045, 0.0
        %v7384 = vadd.f32 %v7382, %v7383
        %v7385 = vrot.slane %v7384, 4
        %v7386 = vadd.f32 %v7384, %v7385
        %v7387 = vrot.slane %v7386, 2
        %v7388 = vadd.f32 %v7386, %v7387
        %v7389 = vrot.slane %v7388, 1
        %v7390 = vadd.f32 %v7388, %v7389
        %v7391 = vsel %vm687, %v7046, 0.0
        %v7392 = vsel %vm687, %v7047, 0.0
        %v7393 = vadd.f32 %v7391, %v7392
        %v7394 = vrot.slane %v7393, 4
        %v7395 = vadd.f32 %v7393, %v7394
        %v7396 = vrot.slane %v7395, 2
        %v7397 = vadd.f32 %v7395, %v7396
        %v7398 = vrot.slane %v7397, 1
        %v7399 = vadd.f32 %v7397, %v7398
        %v7400 = vsel %vm687, %v7048, 0.0
        %v7401 = vsel %vm687, %v7049, 0.0
        %v7402 = vadd.f32 %v7400, %v7401
        %v7403 = vrot.slane %v7402, 4
        %v7404 = vadd.f32 %v7402, %v7403
        %v7405 = vrot.slane %v7404, 2
        %v7406 = vadd.f32 %v7404, %v7405
        %v7407 = vrot.slane %v7406, 1
        %v7408 = vadd.f32 %v7406, %v7407
        %v7409 = vsel %vm687, %v7050, 0.0
        %v7410 = vsel %vm687, %v7051, 0.0
        %v7411 = vadd.f32 %v7409, %v7410
        %v7412 = vrot.slane %v7411, 4
        %v7413 = vadd.f32 %v7411, %v7412
        %v7414 = vrot.slane %v7413, 2
        %v7415 = vadd.f32 %v7413, %v7414
        %v7416 = vrot.slane %v7415, 1
        %v7417 = vadd.f32 %v7415, %v7416
        %v7418 = vsel %vm687, %v7052, 0.0
        %v7419 = vsel %vm687, %v7053, 0.0
        %v7420 = vadd.f32 %v7418, %v7419
        %v7421 = vrot.slane %v7420, 4
        %v7422 = vadd.f32 %v7420, %v7421
        %v7423 = vrot.slane %v7422, 2
        %v7424 = vadd.f32 %v7422, %v7423
        %v7425 = vrot.slane %v7424, 1
        %v7426 = vadd.f32 %v7424, %v7425
        %v7427 = vsel %vm687, %v7054, 0.0
        %v7428 = vsel %vm687, %v7055, 0.0
        %v7429 = vadd.f32 %v7427, %v7428
        %v7430 = vrot.slane %v7429, 4
        %v7431 = vadd.f32 %v7429, %v7430
        %v7432 = vrot.slane %v7431, 2
        %v7433 = vadd.f32 %v7431, %v7432
        %v7434 = vrot.slane %v7433, 1
        %v7435 = vadd.f32 %v7433, %v7434
        %v7436 = vsel %vm687, %v7056, 0.0
        %v7437 = vsel %vm687, %v7057, 0.0
        %v7438 = vadd.f32 %v7436, %v7437
        %v7439 = vrot.slane %v7438, 4
        %v7440 = vadd.f32 %v7438, %v7439
        %v7441 = vrot.slane %v7440, 2
        %v7442 = vadd.f32 %v7440, %v7441
        %v7443 = vrot.slane %v7442, 1
        %v7444 = vadd.f32 %v7442, %v7443
        %v7445 = vsel %vm687, %v7058, 0.0
        %v7446 = vsel %vm687, %v7059, 0.0
        %v7447 = vadd.f32 %v7445, %v7446
        %v7448 = vrot.slane %v7447, 4
        %v7449 = vadd.f32 %v7447, %v7448
        %v7450 = vrot.slane %v7449, 2
        %v7451 = vadd.f32 %v7449, %v7450
        %v7452 = vrot.slane %v7451, 1
        %v7453 = vadd.f32 %v7451, %v7452
        %v7454 = vsel %vm687, %v7060, 0.0
        %v7455 = vsel %vm687, %v7061, 0.0
        %v7456 = vadd.f32 %v7454, %v7455
        %v7457 = vrot.slane %v7456, 4
        %v7458 = vadd.f32 %v7456, %v7457
        %v7459 = vrot.slane %v7458, 2
        %v7460 = vadd.f32 %v7458, %v7459
        %v7461 = vrot.slane %v7460, 1
        %v7462 = vadd.f32 %v7460, %v7461
        %v7463 = vsel %vm687, %v7062, 0.0
        %v7464 = vsel %vm687, %v7063, 0.0
        %v7465 = vadd.f32 %v7463, %v7464
        %v7466 = vrot.slane %v7465, 4
        %v7467 = vadd.f32 %v7465, %v7466
        %v7468 = vrot.slane %v7467, 2
        %v7469 = vadd.f32 %v7467, %v7468
        %v7470 = vrot.slane %v7469, 1
        %v7471 = vadd.f32 %v7469, %v7470
        %v7472 = vsel %vm687, %v7064, 0.0
        %v7473 = vsel %vm687, %v7065, 0.0
        %v7474 = vadd.f32 %v7472, %v7473
        %v7475 = vrot.slane %v7474, 4
        %v7476 = vadd.f32 %v7474, %v7475
        %v7477 = vrot.slane %v7476, 2
        %v7478 = vadd.f32 %v7476, %v7477
        %v7479 = vrot.slane %v7478, 1
        %v7480 = vadd.f32 %v7478, %v7479
        %v7481 = vsel %vm687, %v7066, 0.0
        %v7482 = vsel %vm687, %v7067, 0.0
        %v7483 = vadd.f32 %v7481, %v7482
        %v7484 = vrot.slane %v7483, 4
        %v7485 = vadd.f32 %v7483, %v7484
        %v7486 = vrot.slane %v7485, 2
        %v7487 = vadd.f32 %v7485, %v7486
        %v7488 = vrot.slane %v7487, 1
        %v7489 = vadd.f32 %v7487, %v7488
        %v7490 = vsel %vm687, %v7068, 0.0
        %v7491 = vsel %vm687, %v7069, 0.0
        %v7492 = vadd.f32 %v7490, %v7491
        %v7493 = vrot.slane %v7492, 4
        %v7494 = vadd.f32 %v7492, %v7493
        %v7495 = vrot.slane %v7494, 2
        %v7496 = vadd.f32 %v7494, %v7495
        %v7497 = vrot.slane %v7496, 1
        %v7498 = vadd.f32 %v7496, %v7497
        %v7499 = vsel %vm687, %v7070, 0.0
        %v7500 = vsel %vm687, %v7071, 0.0
        %v7501 = vadd.f32 %v7499, %v7500
        %v7502 = vrot.slane %v7501, 4
        %v7503 = vadd.f32 %v7501, %v7502
        %v7504 = vrot.slane %v7503, 2
        %v7505 = vadd.f32 %v7503, %v7504
        %v7506 = vrot.slane %v7505, 1
        %v7507 = vadd.f32 %v7505, %v7506
        %v7508 = vsel %vm687, %v7072, 0.0
        %v7509 = vsel %vm687, %v7073, 0.0
        %v7510 = vadd.f32 %v7508, %v7509
        %v7511 = vrot.slane %v7510, 4
        %v7512 = vadd.f32 %v7510, %v7511
        %v7513 = vrot.slane %v7512, 2
        %v7514 = vadd.f32 %v7512, %v7513
        %v7515 = vrot.slane %v7514, 1
        %v7516 = vadd.f32 %v7514, %v7515
        %v7517 = vsel %vm687, %v7074, 0.0
        %v7518 = vsel %vm687, %v7075, 0.0
        %v7519 = vadd.f32 %v7517, %v7518
        %v7520 = vrot.slane %v7519, 4
        %v7521 = vadd.f32 %v7519, %v7520
        %v7522 = vrot.slane %v7521, 2
        %v7523 = vadd.f32 %v7521, %v7522
        %v7524 = vrot.slane %v7523, 1
        %v7525 = vadd.f32 %v7523, %v7524
        %v7526 = vsel %vm687, %v7076, 0.0
        %v7527 = vsel %vm687, %v7077, 0.0
        %v7528 = vadd.f32 %v7526, %v7527
        %v7529 = vrot.slane %v7528, 4
        %v7530 = vadd.f32 %v7528, %v7529
        %v7531 = vrot.slane %v7530, 2
        %v7532 = vadd.f32 %v7530, %v7531
        %v7533 = vrot.slane %v7532, 1
        %v7534 = vadd.f32 %v7532, %v7533
        %v7535 = vsel %vm687, %v7078, 0.0
        %v7536 = vsel %vm687, %v7079, 0.0
        %v7537 = vadd.f32 %v7535, %v7536
        %v7538 = vrot.slane %v7537, 4
        %v7539 = vadd.f32 %v7537, %v7538
        %v7540 = vrot.slane %v7539, 2
        %v7541 = vadd.f32 %v7539, %v7540
        %v7542 = vrot.slane %v7541, 1
        %v7543 = vadd.f32 %v7541, %v7542
        %v7544 = vsel %vm687, %v7080, 0.0
        %v7545 = vsel %vm687, %v7081, 0.0
        %v7546 = vadd.f32 %v7544, %v7545
        %v7547 = vrot.slane %v7546, 4
        %v7548 = vadd.f32 %v7546, %v7547
        %v7549 = vrot.slane %v7548, 2
        %v7550 = vadd.f32 %v7548, %v7549
        %v7551 = vrot.slane %v7550, 1
        %v7552 = vadd.f32 %v7550, %v7551
        %v7553 = vsel %vm687, %v7082, 0.0
        %v7554 = vsel %vm687, %v7083, 0.0
        %v7555 = vadd.f32 %v7553, %v7554
        %v7556 = vrot.slane %v7555, 4
        %v7557 = vadd.f32 %v7555, %v7556
        %v7558 = vrot.slane %v7557, 2
        %v7559 = vadd.f32 %v7557, %v7558
        %v7560 = vrot.slane %v7559, 1
        %v7561 = vadd.f32 %v7559, %v7560
        %v7562 = vsel %vm687, %v7084, 0.0
        %v7563 = vsel %vm687, %v7085, 0.0
        %v7564 = vadd.f32 %v7562, %v7563
        %v7565 = vrot.slane %v7564, 4
        %v7566 = vadd.f32 %v7564, %v7565
        %v7567 = vrot.slane %v7566, 2
        %v7568 = vadd.f32 %v7566, %v7567
        %v7569 = vrot.slane %v7568, 1
        %v7570 = vadd.f32 %v7568, %v7569
        %v7571 = vsel %vm687, %v7086, 0.0
        %v7572 = vsel %vm687, %v7087, 0.0
        %v7573 = vadd.f32 %v7571, %v7572
        %v7574 = vrot.slane %v7573, 4
        %v7575 = vadd.f32 %v7573, %v7574
        %v7576 = vrot.slane %v7575, 2
        %v7577 = vadd.f32 %v7575, %v7576
        %v7578 = vrot.slane %v7577, 1
        %v7579 = vadd.f32 %v7577, %v7578
        %v7580 = vsel %vm687, %v7088, 0.0
        %v7581 = vsel %vm687, %v7089, 0.0
        %v7582 = vadd.f32 %v7580, %v7581
        %v7583 = vrot.slane %v7582, 4
        %v7584 = vadd.f32 %v7582, %v7583
        %v7585 = vrot.slane %v7584, 2
        %v7586 = vadd.f32 %v7584, %v7585
        %v7587 = vrot.slane %v7586, 1
        %v7588 = vadd.f32 %v7586, %v7587
        %v7589 = vsel %vm687, %v7090, 0.0
        %v7590 = vsel %vm687, %v7091, 0.0
        %v7591 = vadd.f32 %v7589, %v7590
        %v7592 = vrot.slane %v7591, 4
        %v7593 = vadd.f32 %v7591, %v7592
        %v7594 = vrot.slane %v7593, 2
        %v7595 = vadd.f32 %v7593, %v7594
        %v7596 = vrot.slane %v7595, 1
        %v7597 = vadd.f32 %v7595, %v7596
        %v7598 = vsel %vm687, %v7092, 0.0
        %v7599 = vsel %vm687, %v7093, 0.0
        %v7600 = vadd.f32 %v7598, %v7599
        %v7601 = vrot.slane %v7600, 4
        %v7602 = vadd.f32 %v7600, %v7601
        %v7603 = vrot.slane %v7602, 2
        %v7604 = vadd.f32 %v7602, %v7603
        %v7605 = vrot.slane %v7604, 1
        %v7606 = vadd.f32 %v7604, %v7605
        %v7607 = vsel %vm687, %v7094, 0.0
        %v7608 = vsel %vm687, %v7095, 0.0
        %v7609 = vadd.f32 %v7607, %v7608
        %v7610 = vrot.slane %v7609, 4
        %v7611 = vadd.f32 %v7609, %v7610
        %v7612 = vrot.slane %v7611, 2
        %v7613 = vadd.f32 %v7611, %v7612
        %v7614 = vrot.slane %v7613, 1
        %v7615 = vadd.f32 %v7613, %v7614
        %v7616 = vsel %vm687, %v7096, 0.0
        %v7617 = vsel %vm687, %v7097, 0.0
        %v7618 = vadd.f32 %v7616, %v7617
        %v7619 = vrot.slane %v7618, 4
        %v7620 = vadd.f32 %v7618, %v7619
        %v7621 = vrot.slane %v7620, 2
        %v7622 = vadd.f32 %v7620, %v7621
        %v7623 = vrot.slane %v7622, 1
        %v7624 = vadd.f32 %v7622, %v7623
        %v7625 = vsel %vm687, %v7098, 0.0
        %v7626 = vsel %vm687, %v7099, 0.0
        %v7627 = vadd.f32 %v7625, %v7626
        %v7628 = vrot.slane %v7627, 4
        %v7629 = vadd.f32 %v7627, %v7628
        %v7630 = vrot.slane %v7629, 2
        %v7631 = vadd.f32 %v7629, %v7630
        %v7632 = vrot.slane %v7631, 1
        %v7633 = vadd.f32 %v7631, %v7632
        %v7634 = vsel %vm687, %v7100, 0.0
        %v7635 = vsel %vm687, %v7101, 0.0
        %v7636 = vadd.f32 %v7634, %v7635
        %v7637 = vrot.slane %v7636, 4
        %v7638 = vadd.f32 %v7636, %v7637
        %v7639 = vrot.slane %v7638, 2
        %v7640 = vadd.f32 %v7638, %v7639
        %v7641 = vrot.slane %v7640, 1
        %v7642 = vadd.f32 %v7640, %v7641
        %v7643 = vsel %vm687, %v7102, 0.0
        %v7644 = vsel %vm687, %v7103, 0.0
        %v7645 = vadd.f32 %v7643, %v7644
        %v7646 = vrot.slane %v7645, 4
        %v7647 = vadd.f32 %v7645, %v7646
        %v7648 = vrot.slane %v7647, 2
        %v7649 = vadd.f32 %v7647, %v7648
        %v7650 = vrot.slane %v7649, 1
        %v7651 = vadd.f32 %v7649, %v7650
        %v7652 = vsel %vm687, %v7104, 0.0
        %v7653 = vsel %vm687, %v7105, 0.0
        %v7654 = vadd.f32 %v7652, %v7653
        %v7655 = vrot.slane %v7654, 4
        %v7656 = vadd.f32 %v7654, %v7655
        %v7657 = vrot.slane %v7656, 2
        %v7658 = vadd.f32 %v7656, %v7657
        %v7659 = vrot.slane %v7658, 1
        %v7660 = vadd.f32 %v7658, %v7659
        %v7661 = vsel %vm687, %v7106, 0.0
        %v7662 = vsel %vm687, %v7107, 0.0
        %v7663 = vadd.f32 %v7661, %v7662
        %v7664 = vrot.slane %v7663, 4
        %v7665 = vadd.f32 %v7663, %v7664
        %v7666 = vrot.slane %v7665, 2
        %v7667 = vadd.f32 %v7665, %v7666
        %v7668 = vrot.slane %v7667, 1
        %v7669 = vadd.f32 %v7667, %v7668
        %v7670 = vsel %vm687, %v7108, 0.0
        %v7671 = vsel %vm687, %v7109, 0.0
        %v7672 = vadd.f32 %v7670, %v7671
        %v7673 = vrot.slane %v7672, 4
        %v7674 = vadd.f32 %v7672, %v7673
        %v7675 = vrot.slane %v7674, 2
        %v7676 = vadd.f32 %v7674, %v7675
        %v7677 = vrot.slane %v7676, 1
        %v7678 = vadd.f32 %v7676, %v7677
        %v7679 = vsel %vm687, %v7110, 0.0
        %v7680 = vsel %vm687, %v7111, 0.0
        %v7681 = vadd.f32 %v7679, %v7680
        %v7682 = vrot.slane %v7681, 4
        %v7683 = vadd.f32 %v7681, %v7682
        %v7684 = vrot.slane %v7683, 2
        %v7685 = vadd.f32 %v7683, %v7684
        %v7686 = vrot.slane %v7685, 1
        %v7687 = vadd.f32 %v7685, %v7686
        %v7688 = vld [vmem:[%s5] sm:$0xff]
        %v7689 = vld [vmem:[%s5 + $0x8] sm:$0xff]
        %v7690 = vld [vmem:[%s5 + $0x10] sm:$0xff]
        %v7691 = vld [vmem:[%s5 + $0x18] sm:$0xff]
        %v7692 = vperm.slane %v679, 0
        %vm7757 = vcmask 1041409
        %v7758 = vsel %vm7757, %v7129, %v7120
        %vm7759 = vcmask 1042434
        %v7760 = vsel %vm7759, %v7138, %v7758
        %vm7761 = vcmask 1043459
        %v7762 = vsel %vm7761, %v7147, %v7760
        %vm7763 = vcmask 1044484
        %v7764 = vsel %vm7763, %v7156, %v7762
        %vm7765 = vcmask 1045509
        %v7766 = vsel %vm7765, %v7165, %v7764
        %vm7767 = vcmask 1046534
        %v7768 = vsel %vm7767, %v7174, %v7766
        %vm7769 = vcmask 1047559
        %v7770 = vsel %vm7769, %v7183, %v7768
        %v7771 = vsel %vm7757, %v7201, %v7192
        %v7772 = vsel %vm7759, %v7210, %v7771
        %v7773 = vsel %vm7761, %v7219, %v7772
        %v7774 = vsel %vm7763, %v7228, %v7773
        %v7775 = vsel %vm7765, %v7237, %v7774
        %v7776 = vsel %vm7767, %v7246, %v7775
        %v7777 = vsel %vm7769, %v7255, %v7776
        %v7778 = vsel %vm7757, %v7273, %v7264
        %v7779 = vsel %vm7759, %v7282, %v7778
        %v7780 = vsel %vm7761, %v7291, %v7779
        %v7781 = vsel %vm7763, %v7300, %v7780
        %v7782 = vsel %vm7765, %v7309, %v7781
        %v7783 = vsel %vm7767, %v7318, %v7782
        %v7784 = vsel %vm7769, %v7327, %v7783
        %v7785 = vsel %vm7757, %v7345, %v7336
        %v7786 = vsel %vm7759, %v7354, %v7785
        %v7787 = vsel %vm7761, %v7363, %v7786
        %v7788 = vsel %vm7763, %v7372, %v7787
        %v7789 = vsel %vm7765, %v7381, %v7788
        %v7790 = vsel %vm7767, %v7390, %v7789
        %v7791 = vsel %vm7769, %v7399, %v7790
        %v7792 = vsel %vm7757, %v7417, %v7408
        %v7793 = vsel %vm7759, %v7426, %v7792
        %v7794 = vsel %vm7761, %v7435, %v7793
        %v7795 = vsel %vm7763, %v7444, %v7794
        %v7796 = vsel %vm7765, %v7453, %v7795
        %v7797 = vsel %vm7767, %v7462, %v7796
        %v7798 = vsel %vm7769, %v7471, %v7797
        %v7799 = vsel %vm7757, %v7489, %v7480
        %v7800 = vsel %vm7759, %v7498, %v7799
        %v7801 = vsel %vm7761, %v7507, %v7800
        %v7802 = vsel %vm7763, %v7516, %v7801
        %v7803 = vsel %vm7765, %v7525, %v7802
        %v7804 = vsel %vm7767, %v7534, %v7803
        %v7805 = vsel %vm7769, %v7543, %v7804
        %v7806 = vsel %vm7757, %v7561, %v7552
        %v7807 = vsel %vm7759, %v7570, %v7806
        %v7808 = vsel %vm7761, %v7579, %v7807
        %v7809 = vsel %vm7763, %v7588, %v7808
        %v7810 = vsel %vm7765, %v7597, %v7809
        %v7811 = vsel %vm7767, %v7606, %v7810
        %v7812 = vsel %vm7769, %v7615, %v7811
        %v7813 = vsel %vm7757, %v7633, %v7624
        %v7814 = vsel %vm7759, %v7642, %v7813
        %v7815 = vsel %vm7761, %v7651, %v7814
        %v7816 = vsel %vm7763, %v7660, %v7815
        %v7817 = vsel %vm7765, %v7669, %v7816
        %v7818 = vsel %vm7767, %v7678, %v7817
        %v7819 = vsel %vm7769, %v7687, %v7818
        %v7820 = vsel %vm687, %v7770, 0
        %v7822 = vsel %vm687, %v7777, 0
        %v7824 = vsel %vm687, %v7784, 0
        %v7826 = vsel %vm687, %v7791, 0
        %v7828 = vsel %vm687, %v7798, 0
        %v7830 = vsel %vm687, %v7805, 0
        %v7832 = vsel %vm687, %v7812, 0
        %v7834 = vsel %vm687, %v7819, 0
        %7836 = vmatpush.msra.mxu0 0.0
        %7837 = vmatpush.msra.mxu0 0.0
        %7838 = vmatpush.msra.mxu0 0.0
        %7839 = vmatpush.msra.mxu0 0.0
        %7840 = vmatpush.msra.mxu0 0.0
        %7841 = vmatpush.msra.mxu0 0.0
        %7842 = vmatpush.msra.mxu0 0.0
        %7843 = vmatpush.msra.mxu0 0.0
        %7844 = vmatpush.msra.mxu0 0.0
        %7845 = vmatpush.msra.mxu0 0.0
        %7846 = vmatpush.msra.mxu0 0.0
        %7847 = vmatpush.msra.mxu0 0.0
        %7848 = vmatpush.msra.mxu0 %v7691
        %7849 = vmatpush.msra.mxu0 %v7690
        %7850 = vmatpush.msra.mxu0 %v7689
        %7851 = vmatpush.msra.mxu0 %v7688
        %7852 = vmatmul.f32.gmra.mxu0 %v7820
        %v7853 = vpop.f32.mrf.mxu0
        %v7854 = vadd.f32 %v7692, %v7853
        %7855 = vmatmul.f32.gmra.mxu0 %v7822
        %v7856 = vpop.f32.mrf.mxu0
        %v7857 = vadd.f32 %v7692, %v7856
        %7858 = vmatmul.f32.gmra.mxu0 %v7824
        %v7859 = vpop.f32.mrf.mxu0
        %v7860 = vadd.f32 %v7692, %v7859
        %7861 = vmatmul.f32.gmra.mxu0 %v7826
        %v7862 = vpop.f32.mrf.mxu0
        %v7863 = vadd.f32 %v7692, %v7862
        %7864 = vmatmul.f32.gmra.mxu0 %v7828
        %v7865 = vpop.f32.mrf.mxu0
        %v7866 = vadd.f32 %v7692, %v7865
        %7867 = vmatmul.f32.gmra.mxu0 %v7830
        %v7868 = vpop.f32.mrf.mxu0
        %v7869 = vadd.f32 %v7692, %v7868
        %7870 = vmatmul.f32.gmra.mxu0 %v7832
        %v7871 = vpop.f32.mrf.mxu0
        %v7872 = vadd.f32 %v7692, %v7871
        %7873 = vmatmul.f32.gmra.mxu0 %v7834
        %v7874 = vpop.f32.mrf.mxu0
        %v7875 = vadd.f32 %v7692, %v7874
        %7876 = vdwg.mxu0
        %v7877 = vadd.f32 %v7854, %v413
        %v7878 = vadd.f32 %v7857, %v414
        %v7879 = vadd.f32 %v7860, %v415
        %v7880 = vadd.f32 %v7863, %v416
        %v7881 = vadd.f32 %v7866, %v417
        %v7882 = vadd.f32 %v7869, %v418
        %v7883 = vadd.f32 %v7872, %v419
        %v7884 = vadd.f32 %v7875, %v420
        %v7885 = vsel %vm687, %v7877, 0.0
        %7886 = vadd.xlane.f32.xlu0 %v7885
        %v7887 = vpop.xlane.xlu0 %7886
        %v7888 = vsel %vm687, %v7878, 0.0
        %7889 = vadd.xlane.f32.xlu0 %v7888
        %v7890 = vpop.xlane.xlu0 %7889
        %v7891 = vsel %vm687, %v7879, 0.0
        %7892 = vadd.xlane.f32.xlu0 %v7891
        %v7893 = vpop.xlane.xlu0 %7892
        %v7894 = vsel %vm687, %v7880, 0.0
        %7895 = vadd.xlane.f32.xlu0 %v7894
        %v7896 = vpop.xlane.xlu0 %7895
        %v7897 = vsel %vm687, %v7881, 0.0
        %7898 = vadd.xlane.f32.xlu0 %v7897
        %v7899 = vpop.xlane.xlu0 %7898
        %v7900 = vsel %vm687, %v7882, 0.0
        %7901 = vadd.xlane.f32.xlu0 %v7900
        %v7902 = vpop.xlane.xlu0 %7901
        %v7903 = vsel %vm687, %v7883, 0.0
        %7904 = vadd.xlane.f32.xlu0 %v7903
        %v7905 = vpop.xlane.xlu0 %7904
        %v7906 = vsel %vm687, %v7884, 0.0
        %7907 = vadd.xlane.f32.xlu0 %v7906
        %v7908 = vpop.xlane.xlu0 %7907
        %v7909 = vrcp.pop 32.0
        %v7910 = vmul.f32 32.0, %v7909
        %v7911 = vsub.f32 1.0, %v7910
        %v7912 = vmul.f32 %v7909, %v7911
        %v7913 = vadd.f32 %v7909, %v7912
        %vm7914 = vweird.f32 %v7909
        %v7915 = vsel %vm7914, %v7909, %v7913
        %v7916 = vmul.f32 %v7887, %v7915
        %v7917 = vmul.f32 %v7890, %v7915
        %v7918 = vmul.f32 %v7893, %v7915
        %v7919 = vmul.f32 %v7896, %v7915
        %v7920 = vmul.f32 %v7899, %v7915
        %v7921 = vmul.f32 %v7902, %v7915
        %v7922 = vmul.f32 %v7905, %v7915
        %v7923 = vmul.f32 %v7908, %v7915
        %v7924 = vsub.f32 %v7877, %v7916
        %v7925 = vsub.f32 %v7878, %v7917
        %v7926 = vsub.f32 %v7879, %v7918
        %v7927 = vsub.f32 %v7880, %v7919
        %v7928 = vsub.f32 %v7881, %v7920
        %v7929 = vsub.f32 %v7882, %v7921
        %v7930 = vsub.f32 %v7883, %v7922
        %v7931 = vsub.f32 %v7884, %v7923
        %v7932 = vmul.f32 %v7924, %v7924
        %v7933 = vmul.f32 %v7925, %v7925
        %v7934 = vmul.f32 %v7926, %v7926
        %v7935 = vmul.f32 %v7927, %v7927
        %v7936 = vmul.f32 %v7928, %v7928
        %v7937 = vmul.f32 %v7929, %v7929
        %v7938 = vmul.f32 %v7930, %v7930
        %v7939 = vmul.f32 %v7931, %v7931
        %v7940 = vsel %vm687, %v7932, 0.0
        %7941 = vadd.xlane.f32.xlu0 %v7940
        %v7942 = vpop.xlane.xlu0 %7941
        %v7943 = vsel %vm687, %v7933, 0.0
        %7944 = vadd.xlane.f32.xlu0 %v7943
        %v7945 = vpop.xlane.xlu0 %7944
        %v7946 = vsel %vm687, %v7934, 0.0
        %7947 = vadd.xlane.f32.xlu0 %v7946
        %v7948 = vpop.xlane.xlu0 %7947
        %v7949 = vsel %vm687, %v7935, 0.0
        %7950 = vadd.xlane.f32.xlu0 %v7949
        %v7951 = vpop.xlane.xlu0 %7950
        %v7952 = vsel %vm687, %v7936, 0.0
        %7953 = vadd.xlane.f32.xlu0 %v7952
        %v7954 = vpop.xlane.xlu0 %7953
        %v7955 = vsel %vm687, %v7937, 0.0
        %7956 = vadd.xlane.f32.xlu0 %v7955
        %v7957 = vpop.xlane.xlu0 %7956
        %v7958 = vsel %vm687, %v7938, 0.0
        %7959 = vadd.xlane.f32.xlu0 %v7958
        %v7960 = vpop.xlane.xlu0 %7959
        %v7961 = vsel %vm687, %v7939, 0.0
        %7962 = vadd.xlane.f32.xlu0 %v7961
        %v7963 = vpop.xlane.xlu0 %7962
        %v7964 = vmul.f32 %v7942, %v7915
        %v7965 = vmul.f32 %v7945, %v7915
        %v7966 = vmul.f32 %v7948, %v7915
        %v7967 = vmul.f32 %v7951, %v7915
        %v7968 = vmul.f32 %v7954, %v7915
        %v7969 = vmul.f32 %v7957, %v7915
        %v7970 = vmul.f32 %v7960, %v7915
        %v7971 = vmul.f32 %v7963, %v7915
        %v7972 = vadd.f32 %v7964, 1e-06
        %v7973 = vadd.f32 %v7965, 1e-06
        %v7974 = vadd.f32 %v7966, 1e-06
        %v7975 = vadd.f32 %v7967, 1e-06
        %v7976 = vadd.f32 %v7968, 1e-06
        %v7977 = vadd.f32 %v7969, 1e-06
        %v7978 = vadd.f32 %v7970, 1e-06
        %v7979 = vadd.f32 %v7971, 1e-06
        %v7980 = vrsqrt.pop %v7972
        %v7981 = vmul.f32 %v7980, %v7972
        %v7982 = vmul.f32 %v7981, %v7980
        %v7983 = vmul.f32 0.5, %v7982
        %v7984 = vsub.f32 1.5, %v7983
        %v7985 = vmul.f32 %v7980, %v7984
        %vm7986 = vweird.f32 %v7972
        %vm7987 = vweird.f32 %v7980
        %vm7988 = vmor %vm7986, %vm7987
        %v7989 = vsel %vm7988, %v7980, %v7985
        %v7990 = vrsqrt.pop %v7973
        %v7991 = vmul.f32 %v7990, %v7973
        %v7992 = vmul.f32 %v7991, %v7990
        %v7993 = vmul.f32 0.5, %v7992
        %v7994 = vsub.f32 1.5, %v7993
        %v7995 = vmul.f32 %v7990, %v7994
        %vm7996 = vweird.f32 %v7973
        %vm7997 = vweird.f32 %v7990
        %vm7998 = vmor %vm7996, %vm7997
        %v7999 = vsel %vm7998, %v7990, %v7995
        %v8000 = vrsqrt.pop %v7974
        %v8001 = vmul.f32 %v8000, %v7974
        %v8002 = vmul.f32 %v8001, %v8000
        %v8003 = vmul.f32 0.5, %v8002
        %v8004 = vsub.f32 1.5, %v8003
        %v8005 = vmul.f32 %v8000, %v8004
        %vm8006 = vweird.f32 %v7974
        %vm8007 = vweird.f32 %v8000
        %vm8008 = vmor %vm8006, %vm8007
        %v8009 = vsel %vm8008, %v8000, %v8005
        %v8010 = vrsqrt.pop %v7975
        %v8011 = vmul.f32 %v8010, %v7975
        %v8012 = vmul.f32 %v8011, %v8010
        %v8013 = vmul.f32 0.5, %v8012
        %v8014 = vsub.f32 1.5, %v8013
        %v8015 = vmul.f32 %v8010, %v8014
        %vm8016 = vweird.f32 %v7975
        %vm8017 = vweird.f32 %v8010
        %vm8018 = vmor %vm8016, %vm8017
        %v8019 = vsel %vm8018, %v8010, %v8015
        %v8020 = vrsqrt.pop %v7976
        %v8021 = vmul.f32 %v8020, %v7976
        %v8022 = vmul.f32 %v8021, %v8020
        %v8023 = vmul.f32 0.5, %v8022
        %v8024 = vsub.f32 1.5, %v8023
        %v8025 = vmul.f32 %v8020, %v8024
        %vm8026 = vweird.f32 %v7976
        %vm8027 = vweird.f32 %v8020
        %vm8028 = vmor %vm8026, %vm8027
        %v8029 = vsel %vm8028, %v8020, %v8025
        %v8030 = vrsqrt.pop %v7977
        %v8031 = vmul.f32 %v8030, %v7977
        %v8032 = vmul.f32 %v8031, %v8030
        %v8033 = vmul.f32 0.5, %v8032
        %v8034 = vsub.f32 1.5, %v8033
        %v8035 = vmul.f32 %v8030, %v8034
        %vm8036 = vweird.f32 %v7977
        %vm8037 = vweird.f32 %v8030
        %vm8038 = vmor %vm8036, %vm8037
        %v8039 = vsel %vm8038, %v8030, %v8035
        %v8040 = vrsqrt.pop %v7978
        %v8041 = vmul.f32 %v8040, %v7978
        %v8042 = vmul.f32 %v8041, %v8040
        %v8043 = vmul.f32 0.5, %v8042
        %v8044 = vsub.f32 1.5, %v8043
        %v8045 = vmul.f32 %v8040, %v8044
        %vm8046 = vweird.f32 %v7978
        %vm8047 = vweird.f32 %v8040
        %vm8048 = vmor %vm8046, %vm8047
        %v8049 = vsel %vm8048, %v8040, %v8045
        %v8050 = vrsqrt.pop %v7979
        %v8051 = vmul.f32 %v8050, %v7979
        %v8052 = vmul.f32 %v8051, %v8050
        %v8053 = vmul.f32 0.5, %v8052
        %v8054 = vsub.f32 1.5, %v8053
        %v8055 = vmul.f32 %v8050, %v8054
        %vm8056 = vweird.f32 %v7979
        %vm8057 = vweird.f32 %v8050
        %vm8058 = vmor %vm8056, %vm8057
        %v8059 = vsel %vm8058, %v8050, %v8055
        %v8060 = vmul.f32 %v7924, %v7989
        %v8061 = vmul.f32 %v7925, %v7999
        %v8062 = vmul.f32 %v7926, %v8009
        %v8063 = vmul.f32 %v7927, %v8019
        %v8064 = vmul.f32 %v7928, %v8029
        %v8065 = vmul.f32 %v7929, %v8039
        %v8066 = vmul.f32 %v7930, %v8049
        %v8067 = vmul.f32 %v7931, %v8059
        %v8068 = vperm.slane %v680, 0
        %v8069 = vmul.f32 %v8060, %v8068
        %v8070 = vmul.f32 %v8061, %v8068
        %v8071 = vmul.f32 %v8062, %v8068
        %v8072 = vmul.f32 %v8063, %v8068
        %v8073 = vmul.f32 %v8064, %v8068
        %v8074 = vmul.f32 %v8065, %v8068
        %v8075 = vmul.f32 %v8066, %v8068
        %v8076 = vmul.f32 %v8067, %v8068
        %v8077 = vperm.slane %v681, 0
        %v8078 = vadd.f32 %v8069, %v8077
        %v8079 = vadd.f32 %v8070, %v8077
        %v8080 = vadd.f32 %v8071, %v8077
        %v8081 = vadd.f32 %v8072, %v8077
        %v8082 = vadd.f32 %v8073, %v8077
        %v8083 = vadd.f32 %v8074, %v8077
        %v8084 = vadd.f32 %v8075, %v8077
        %v8085 = vadd.f32 %v8076, %v8077
        %8086 = vst.msk [vmem:[%s379] sm:$0xff] %vm687, %v8078
        %8087 = vst.msk [vmem:[%s379 + $0x8] sm:$0xff] %vm687, %v8079
        %8088 = vst.msk [vmem:[%s379 + $0x10] sm:$0xff] %vm687, %v8080
        %8089 = vst.msk [vmem:[%s379 + $0x18] sm:$0xff] %vm687, %v8081
        %8090 = vst.msk [vmem:[%s379 + $0x20] sm:$0xff] %vm687, %v8082
        %8091 = vst.msk [vmem:[%s379 + $0x28] sm:$0xff] %vm687, %v8083
        %8092 = vst.msk [vmem:[%s379 + $0x30] sm:$0xff] %vm687, %v8084
        %8093 = vst.msk [vmem:[%s379 + $0x38] sm:$0xff] %vm687, %v8085
        %s8094 = sand.u32 %s233, 1
        %s8095 = scalar_lea.sflag [#allocation3], %s8094
        %s8096 = sand.u32 %s233, 1
        %s8097 = smul.addr %s8096, 64
        %s8098 = scalar_lea.vmem [#allocation2], %s8097
        // Predicated region
        $region53: #{_forward.1} parent=51 // pred_check
          %p8099 = pneg %p243
        $region54: #{_forward.1} parent=51 // pred_check_branch
          %8101 = sbr.rel (%p8099) target = $region56
        $region55: #{_forward.1} parent=51 // pred_region
          %s8102 = smul.u32 8, %s27
          %8104 = vsyncadd %s8095, 0
          %s8105 = smul.addr %s26, 8
          %s8106 = sadd.s32 %s8102, %s8105
          %s8107 = smul.addr %s8106, 8
          %s8108 = scalar_lea.hbm %s8, %s8107
          %s8109 = sshll.u32 %s8098, 4
          %s8110 = int_to_ptr.vmem [resolvable:$true] %s8109
          %s8111 = sshll.u32 %s8108, 4
          %s8112 = int_to_ptr.hbm [resolvable:$true] %s8111
          %8117 = dma.vmem_to_hbm [thread:$0]  %s8110, 1024, %s8112, %s8095, 128, 128, 8
        $region56: #{_forward.1} parent=51 // pred_fallthru
          _
      $region52: #{_forward.1} parent=5 // pred_fallthru
        _
      %p8118 = scmp.le.s32.totalorder 2, %s17
      // Predicated region
      $region57: #{_forward.1} parent=5 // pred_check
        %p8119 = pneg %p8118
      $region58: #{_forward.1} parent=5 // pred_check_branch
        %8121 = sbr.rel (%p8119) target = $region60
      $region59: #{_forward.1} parent=5 // pred_region
        %s8122 = ssub.s32 %s17, 2
        // Predicated region
        $region61: #{_forward.1} parent=59 // pred_check
          %p8123 = pneg %p249
        $region62: #{_forward.1} parent=59 // pred_check_branch
          %8125 = sbr.rel (%p8123) target = $region64
        $region63: #{_forward.1} parent=59 // pred_region
          %s8126 = sand.u32 %s234, 1
          %s8127 = scalar_lea.sflag [#allocation3], %s8126
          %s8128 = sand.u32 %s234, 1
          %s8129 = smul.addr %s8128, 64
          %s8130 = scalar_lea.vmem [#allocation2], %s8129
          %8132 = dma.done %s8127, 1024
        $region64: #{_forward.1} parent=59 // pred_fallthru
          _
      $region60: #{_forward.1} parent=5 // pred_fallthru
        _
    $region6: #{_forward.1} parent=1 // loop_footer
      %s21 = sadd.s32 1, %s17
    $region7: #{_forward.1} parent=1 // loop_footer_branch
      %16 = sbr.rel target = $region3
    $region8: #{_forward.1} parent=1 // loop_exit
      _
    %8133 = vsyncpa [#allocation3], 1
    %s8134 = scalar_lea.sflag [#allocation3], 1
    %8135 = vsyncpa %s8134, 1

</llo_original>
